<compile_context>
chip_gen: v6e
topology: v6e:2x2x1
jax: 0.10.0
libtpu: 0.0.40
codegen_flags: <defaults>
</compile_context>

<pallas_src>
import numpy as np
import jax
import jax.numpy as jnp
from jax.experimental import pallas as pl
from jax.experimental.pallas import tpu as pltpu

# ----------------------------- configuration -------------------------------
BATCH = 2
SEQ = 8
INPUT_SIZE = 16
D_MODEL = 64          # small analogue of the default 512
NHEAD = 4             # small analogue of the default 8
HEAD_DIM = D_MODEL // NHEAD
NUM_LAYERS = 2        # small analogue of the default 6
DIM_FF = 2048         # hard-coded in the PyTorch module
OUTPUT_SIZE = 49      # module default
PAD_OUT = 128         # lane-dense padded decoder output (sliced to 49 outside)
LN_EPS = 1e-5
MAX_LEN = 5000        # PositionalEncoding buffer length (module default)
ROWS = BATCH * SEQ    # merged activation rows (16)

# ------------------------ f32 parameter-slab layout -------------------------
# One (SLAB_ROWS, 128) f32 slab carries every small parameter (single DMA).
EMB_OFF = 0                                           # rows 0..15  : emb_w (16,64)
LAYER_OFF = 16
LAYER_STRIDE = 16                                     # 9 rows used per layer, 8-aligned
R_QB, R_KB, R_VB, R_OB, R_G1, R_B1, R_F2B, R_G2, R_B2 = range(9)
DEC1W_OFF = LAYER_OFF + LAYER_STRIDE * NUM_LAYERS     # 48..111  : dec1_w (64 x 32, rest 0)
DEC1B_OFF = DEC1W_OFF + D_MODEL                       # 112      : dec1_b (32 valid)
DEC2W_OFF = DEC1B_OFF + 8                             # 120..183 : dec2_w (rows 0:32 valid)
DEC2B_OFF = DEC2W_OFF + D_MODEL                       # 184      : dec2_b (128 wide)
SLAB_ROWS = DEC2B_OFF + 8                             # 192

# TODO(synk): nn.Dropout has no inference-time effect; training-mode dropout
# (stochastic masking) is not implemented.


# ------------------------------- fused kernel -------------------------------
def _layernorm(x, g, b):
    mu = jnp.mean(x, axis=-1, keepdims=True)
    var = jnp.mean(jnp.square(x - mu), axis=-1, keepdims=True)
    return (x - mu) * jax.lax.rsqrt(var + LN_EPS) * g + b


def _transformer_kernel(x_ref, peb_ref, qkvw_ref, outw_ref,
                        f1w_ref, f1b_ref, f2w_ref, slab_ref,
                        o_ref, attn_scr):
    """Whole forward pass, both batch elements merged into one (16, 64) tile."""
    scale = 1.0 / float(np.sqrt(HEAD_DIM))

    # --- input embedding + (batch-indexed PE + emb bias) slab, fused --------
    emb_w = slab_ref[EMB_OFF:EMB_OFF + INPUT_SIZE, 0:D_MODEL]          # (16,64) f32
    h = jnp.dot(x_ref[...], emb_w, preferred_element_type=jnp.float32)
    h = h + peb_ref[...]                                               # (16,64)

    # --- encoder layers (statically unrolled) --------------------------------
    for l in range(NUM_LAYERS):
        base = LAYER_OFF + LAYER_STRIDE * l
        qb  = slab_ref[base + R_QB:base + R_QB + 1, 0:D_MODEL]
        kb  = slab_ref[base + R_KB:base + R_KB + 1, 0:D_MODEL]
        vb  = slab_ref[base + R_VB:base + R_VB + 1, 0:D_MODEL]
        ob  = slab_ref[base + R_OB:base + R_OB + 1, 0:D_MODEL]
        g1  = slab_ref[base + R_G1:base + R_G1 + 1, 0:D_MODEL]
        b1  = slab_ref[base + R_B1:base + R_B1 + 1, 0:D_MODEL]
        f2b = slab_ref[base + R_F2B:base + R_F2B + 1, 0:D_MODEL]
        g2  = slab_ref[base + R_G2:base + R_G2 + 1, 0:D_MODEL]
        b2  = slab_ref[base + R_B2:base + R_B2 + 1, 0:D_MODEL]

        # fused QKV projection on the merged tile, bf16 weights / f32 acc
        qkv = jnp.dot(h.astype(jnp.bfloat16), qkvw_ref[l],
                      preferred_element_type=jnp.float32)              # (16,192)

        # per-(batch, head) attention; batch rows are sublane slices (free),
        # head columns are static 16-lane slices.  Head outputs go into a
        # (16, 64) VMEM scratch so the output projection is a single matmul.
        for b in range(BATCH):
            r0 = b * SEQ
            for hd in range(NHEAD):
                c = hd * HEAD_DIM
                q = qkv[r0:r0 + SEQ, c:c + HEAD_DIM] + qb[:, c:c + HEAD_DIM]
                k = qkv[r0:r0 + SEQ, D_MODEL + c:D_MODEL + c + HEAD_DIM] \
                    + kb[:, c:c + HEAD_DIM]
                v = qkv[r0:r0 + SEQ, 2 * D_MODEL + c:2 * D_MODEL + c + HEAD_DIM] \
                    + vb[:, c:c + HEAD_DIM]
                s = jax.lax.dot_general(q, k, (((1,), (1,)), ((), ())),
                                        preferred_element_type=jnp.float32) * scale
                s = s - jnp.max(s, axis=-1, keepdims=True)
                p = jnp.exp(s)                                         # EUP
                p = p * pl.reciprocal(jnp.sum(p, axis=-1, keepdims=True),
                                      approx=True)
                attn_scr[r0:r0 + SEQ, c:c + HEAD_DIM] = jnp.dot(
                    p, v, preferred_element_type=jnp.float32)          # (8,16)

        # single output projection + residual + post-LayerNorm
        attn = jnp.dot(attn_scr[...].astype(jnp.bfloat16), outw_ref[l],
                       preferred_element_type=jnp.float32) + ob        # (16,64)
        h = _layernorm(h + attn, g1, b1)

        # feed-forward (ReLU fused), bf16 weights + bf16 ReLU intermediate
        ff = jnp.dot(h.astype(jnp.bfloat16), f1w_ref[l],
                     preferred_element_type=jnp.float32) + f1b_ref[l]  # (16,2048)
        ff = jnp.maximum(ff, 0.0)
        ff = jnp.dot(ff.astype(jnp.bfloat16), f2w_ref[l],
                     preferred_element_type=jnp.float32) + f2b
        h = _layernorm(h + ff, g2, b2)

    # --- decoder head on the last sequence position of each batch element ----
    last = jnp.concatenate(
        [h[b * SEQ + SEQ - 1:b * SEQ + SEQ, :] for b in range(BATCH)], axis=0)  # (B,64)
    d1w = slab_ref[DEC1W_OFF:DEC1W_OFF + D_MODEL, 0:D_MODEL]           # (64,64) cols 32: zero
    d1b = slab_ref[DEC1B_OFF:DEC1B_OFF + 1, 0:D_MODEL]
    d2w = slab_ref[DEC2W_OFF:DEC2W_OFF + D_MODEL, :]                   # (64,128) rows 32: zero
    d2b = slab_ref[DEC2B_OFF:DEC2B_OFF + 1, :]
    z = jnp.maximum(jnp.dot(last, d1w, preferred_element_type=jnp.float32) + d1b, 0.0)
    y = jnp.dot(z, d2w, preferred_element_type=jnp.float32) + d2b      # (B,128)
    o_ref[...] = (1.0 / (1.0 + jnp.exp(-y))).astype(o_ref.dtype)       # exact sigmoid


# --------------------------- wrapper-side packing ----------------------------
def pack_params(params):
    """One-time repack: bf16 big weights, f32 small-parameter slab, PE+bias slab."""
    packed = {
        "qkv_w": jnp.asarray(params["in_proj_w"], jnp.bfloat16),   # (L,64,192)
        "out_w": jnp.asarray(params["out_proj_w"], jnp.bfloat16),  # (L,64,64)
        "ff1_w": jnp.asarray(params["ff1_w"], jnp.bfloat16),       # (L,64,2048)
        "ff2_w": jnp.asarray(params["ff2_w"], jnp.bfloat16),       # (L,2048,64)
        "ff1_b": jnp.asarray(params["ff1_b"], jnp.float32),        # (L,1,2048)
    }

    # combined per-batch positional encoding + embedding bias -> (B*S, D) slab
    pe_rows = np.asarray(params["pe"], np.float32)[:BATCH, 0, :]       # (B,64) buggy PE index
    emb_b = np.asarray(params["emb_b"], np.float32)                    # (1,64)
    packed["peb"] = jnp.asarray(np.repeat(pe_rows, SEQ, axis=0) + emb_b)

    slab = np.zeros((SLAB_ROWS, PAD_OUT), np.float32)
    slab[EMB_OFF:EMB_OFF + INPUT_SIZE, 0:D_MODEL] = np.asarray(params["emb_w"])
    inb = np.asarray(params["in_proj_b"], np.float32)                  # (L,1,192)
    for l in range(NUM_LAYERS):
        base = LAYER_OFF + LAYER_STRIDE * l
        slab[base + R_QB, 0:D_MODEL] = inb[l, 0, 0:D_MODEL]
        slab[base + R_KB, 0:D_MODEL] = inb[l, 0, D_MODEL:2 * D_MODEL]
        slab[base + R_VB, 0:D_MODEL] = inb[l, 0, 2 * D_MODEL:3 * D_MODEL]
        slab[base + R_OB, 0:D_MODEL] = np.asarray(params["out_proj_b"])[l, 0]
        slab[base + R_G1, 0:D_MODEL] = np.asarray(params["ln1_g"])[l, 0]
        slab[base + R_B1, 0:D_MODEL] = np.asarray(params["ln1_b"])[l, 0]
        slab[base + R_F2B, 0:D_MODEL] = np.asarray(params["ff2_b"])[l, 0]
        slab[base + R_G2, 0:D_MODEL] = np.asarray(params["ln2_g"])[l, 0]
        slab[base + R_B2, 0:D_MODEL] = np.asarray(params["ln2_b"])[l, 0]
    slab[DEC1W_OFF:DEC1W_OFF + D_MODEL, 0:D_MODEL // 2] = np.asarray(params["dec1_w"])
    slab[DEC1B_OFF, 0:D_MODEL // 2] = np.asarray(params["dec1_b"])[0]
    slab[DEC2W_OFF:DEC2W_OFF + D_MODEL // 2, :] = np.asarray(params["dec2_w"])
    slab[DEC2B_OFF, :] = np.asarray(params["dec2_b"])[0]
    packed["slab"] = jnp.asarray(slab)
    return packed


def pallas_forward(packed, x):
    B, S, F = x.shape
    x2d = x.reshape(B * S, F)                                 # merged batch rows
    out = pl.pallas_call(
        _transformer_kernel,
        out_shape=jax.ShapeDtypeStruct((B, PAD_OUT), jnp.float32),
        scratch_shapes=[pltpu.VMEM((B * S, D_MODEL), jnp.float32)],
        cost_estimate=pl.CostEstimate(flops=18_500_000,
                                      transcendentals=1_500,
                                      bytes_accessed=1_300_000),
    )(x2d, packed["peb"], packed["qkv_w"], packed["out_w"],
      packed["ff1_w"], packed["ff1_b"], packed["ff2_w"], packed["slab"])
    return out[:, :OUTPUT_SIZE]


# --------------------------- parameter creation -----------------------------
def init_params(key):
    def w(k, shape, scale=0.05):
        return jax.random.normal(k, shape, dtype=jnp.float32) * scale

    keys = jax.random.split(key, 4)
    params = {}
    params["emb_w"] = w(keys[0], (INPUT_SIZE, D_MODEL))
    params["emb_b"] = w(keys[1], (1, D_MODEL), 0.02)

    # Positional encoding buffer, shape (max_len, 1, d_model) like PyTorch.
    pos = np.arange(MAX_LEN, dtype=np.float32)[:, None]
    div = np.exp(np.arange(0, D_MODEL, 2, dtype=np.float32)
                 * (-np.log(10000.0) / D_MODEL))
    pe = np.zeros((MAX_LEN, D_MODEL), np.float32)
    pe[:, 0::2] = np.sin(pos * div)
    pe[:, 1::2] = np.cos(pos * div)
    params["pe"] = jnp.asarray(pe)[:, None, :]

    lkeys = jax.random.split(keys[2], NUM_LAYERS * 8)

    def stack(fn):
        return jnp.stack([fn(l) for l in range(NUM_LAYERS)], axis=0)

    params["in_proj_w"] = stack(lambda l: w(lkeys[8 * l + 0], (D_MODEL, 3 * D_MODEL)))
    params["in_proj_b"] = stack(lambda l: w(lkeys[8 * l + 1], (1, 3 * D_MODEL), 0.02))
    params["out_proj_w"] = stack(lambda l: w(lkeys[8 * l + 2], (D_MODEL, D_MODEL)))
    params["out_proj_b"] = stack(lambda l: w(lkeys[8 * l + 3], (1, D_MODEL), 0.02))
    params["ff1_w"] = stack(lambda l: w(lkeys[8 * l + 4], (D_MODEL, DIM_FF)))
    params["ff1_b"] = stack(lambda l: w(lkeys[8 * l + 5], (1, DIM_FF), 0.02))
    params["ff2_w"] = stack(lambda l: w(lkeys[8 * l + 6], (DIM_FF, D_MODEL)))
    params["ff2_b"] = stack(lambda l: w(lkeys[8 * l + 7], (1, D_MODEL), 0.02))
    params["ln1_g"] = jnp.ones((NUM_LAYERS, 1, D_MODEL), jnp.float32)
    params["ln1_b"] = jnp.zeros((NUM_LAYERS, 1, D_MODEL), jnp.float32)
    params["ln2_g"] = jnp.ones((NUM_LAYERS, 1, D_MODEL), jnp.float32)
    params["ln2_b"] = jnp.zeros((NUM_LAYERS, 1, D_MODEL), jnp.float32)

    dk = jax.random.split(keys[3], 4)
    params["dec1_w"] = w(dk[0], (D_MODEL, D_MODEL // 2))
    params["dec1_b"] = w(dk[1], (1, D_MODEL // 2), 0.02)
    dec2_w = w(dk[2], (D_MODEL // 2, OUTPUT_SIZE))
    dec2_b = w(dk[3], (1, OUTPUT_SIZE), 0.02)
    # lane-dense padded decoder head: columns [OUTPUT_SIZE:PAD_OUT] are zero.
    params["dec2_w"] = jnp.zeros((D_MODEL // 2, PAD_OUT), jnp.float32
                                 ).at[:, :OUTPUT_SIZE].set(dec2_w)
    params["dec2_b"] = jnp.zeros((1, PAD_OUT), jnp.float32
                                 ).at[:, :OUTPUT_SIZE].set(dec2_b)
    return params


# ------------------------- pure-numpy reference ------------------------------
def _np_ln(x, g, b):
    mu = x.mean(-1, keepdims=True)
    var = ((x - mu) ** 2).mean(-1, keepdims=True)
    return (x - mu) / np.sqrt(var + LN_EPS) * g + b


def reference_forward(params, x):
    p = jax.tree_util.tree_map(lambda a: np.asarray(a, np.float32), params)
    x = np.asarray(x, np.float32)
    B, S, _ = x.shape
    Dh = HEAD_DIM
    h = x @ p["emb_w"] + p["emb_b"]
    h = h + p["pe"][:B]                       # buggy batch-indexed PE, as in PyTorch
    for l in range(NUM_LAYERS):
        qkv = h @ p["in_proj_w"][l] + p["in_proj_b"][l]
        q, k, v = np.split(qkv, 3, axis=-1)
        heads = lambda t: t.reshape(B, S, NHEAD, Dh).transpose(0, 2, 1, 3)
        q, k, v = heads(q), heads(k), heads(v)
        s = q @ k.transpose(0, 1, 3, 2) / np.sqrt(Dh)
        s = s - s.max(-1, keepdims=True)
        a = np.exp(s)
        a = a / a.sum(-1, keepdims=True)
        o = (a @ v).transpose(0, 2, 1, 3).reshape(B, S, D_MODEL)
        attn_out = o @ p["out_proj_w"][l] + p["out_proj_b"][l]
        h = _np_ln(h + attn_out, p["ln1_g"][l], p["ln1_b"][l])
        ff = np.maximum(h @ p["ff1_w"][l] + p["ff1_b"][l], 0.0) @ p["ff2_w"][l] + p["ff2_b"][l]
        h = _np_ln(h + ff, p["ln2_g"][l], p["ln2_b"][l])
    last = h[:, -1, :]
    z = np.maximum(last @ p["dec1_w"] + p["dec1_b"], 0.0)
    logits = z @ p["dec2_w"] + p["dec2_b"]
    out = 1.0 / (1.0 + np.exp(-logits))
    return out[:, :OUTPUT_SIZE]


# ----------------------------------- main ------------------------------------
if __name__ == "__main__":
    key = jax.random.PRNGKey(0)
    pkey, xkey = jax.random.split(key)
    params = init_params(pkey)
    x = jax.random.normal(xkey, (BATCH, SEQ, INPUT_SIZE), dtype=jnp.float32)

    packed = pack_params(params)              # one-time repack (bf16 + slabs)
    fwd = jax.jit(pallas_forward)
    out = jax.block_until_ready(fwd(packed, x))
    out_np = np.asarray(out)

    ref = reference_forward(params, x)
    assert out_np.shape == (BATCH, OUTPUT_SIZE), out_np.shape
    assert np.all(np.isfinite(out_np))
    assert np.allclose(out_np, ref, atol=3e-2, rtol=0.0), \
        float(np.max(np.abs(out_np - ref)))

    print("KERNEL_OK")
</pallas_src>

<mosaic_0001>
module attributes {stable_mosaic.version = 11 : i64} {
  func.func @_transformer_kernel(%arg0: memref<16x16xf32, #tpu.memory_space<vmem>>, %arg1: memref<16x64xf32, #tpu.memory_space<vmem>>, %arg2: memref<2x64x192xbf16, #tpu.memory_space<vmem>>, %arg3: memref<2x64x64xbf16, #tpu.memory_space<vmem>>, %arg4: memref<2x64x2048xbf16, #tpu.memory_space<vmem>>, %arg5: memref<2x1x2048xf32, #tpu.memory_space<vmem>>, %arg6: memref<2x2048x64xbf16, #tpu.memory_space<vmem>>, %arg7: memref<192x128xf32, #tpu.memory_space<vmem>>, %arg8: memref<2x128xf32, #tpu.memory_space<vmem>>, %arg9: memref<16x64xf32, #tpu.memory_space<vmem>>) attributes {dimension_semantics = [], scalar_prefetch = 0 : i64, scratch_operands = 1 : i64, tpu.core_type = #tpu.core_type<tc>} {
    %c0 = arith.constant 0 : index
    %c0_0 = arith.constant 0 : index
    %0 = vector.load %arg7[%c0, %c0_0] : memref<192x128xf32, #tpu.memory_space<vmem>>, vector<16x64xf32>
    %c0_1 = arith.constant 0 : index
    %c0_2 = arith.constant 0 : index
    %1 = vector.load %arg0[%c0_1, %c0_2] : memref<16x16xf32, #tpu.memory_space<vmem>>, vector<16x16xf32>
    %cst = arith.constant dense<0.000000e+00> : vector<16x64xf32>
    %2 = tpu.matmul %1, %0, %cst {dimension_numbers = #tpu.dot_dimension_numbers<[1], [0], [0], [1], [0, 0, 1, 1], [], []>} : vector<16x16xf32>, vector<16x64xf32>, vector<16x64xf32> -> vector<16x64xf32>
    %c0_3 = arith.constant 0 : index
    %c0_4 = arith.constant 0 : index
    %3 = vector.load %arg1[%c0_3, %c0_4] : memref<16x64xf32, #tpu.memory_space<vmem>>, vector<16x64xf32>
    %4 = arith.addf %2, %3 : vector<16x64xf32>
    %c16 = arith.constant 16 : index
    %c0_5 = arith.constant 0 : index
    %5 = vector.load %arg7[%c16, %c0_5] : memref<192x128xf32, #tpu.memory_space<vmem>>, vector<1x64xf32>
    %c17 = arith.constant 17 : index
    %c0_6 = arith.constant 0 : index
    %6 = vector.load %arg7[%c17, %c0_6] : memref<192x128xf32, #tpu.memory_space<vmem>>, vector<1x64xf32>
    %c18 = arith.constant 18 : index
    %c0_7 = arith.constant 0 : index
    %7 = vector.load %arg7[%c18, %c0_7] : memref<192x128xf32, #tpu.memory_space<vmem>>, vector<1x64xf32>
    %c19 = arith.constant 19 : index
    %c0_8 = arith.constant 0 : index
    %8 = vector.load %arg7[%c19, %c0_8] : memref<192x128xf32, #tpu.memory_space<vmem>>, vector<1x64xf32>
    %c20 = arith.constant 20 : index
    %c0_9 = arith.constant 0 : index
    %9 = vector.load %arg7[%c20, %c0_9] : memref<192x128xf32, #tpu.memory_space<vmem>>, vector<1x64xf32>
    %c21 = arith.constant 21 : index
    %c0_10 = arith.constant 0 : index
    %10 = vector.load %arg7[%c21, %c0_10] : memref<192x128xf32, #tpu.memory_space<vmem>>, vector<1x64xf32>
    %c22 = arith.constant 22 : index
    %c0_11 = arith.constant 0 : index
    %11 = vector.load %arg7[%c22, %c0_11] : memref<192x128xf32, #tpu.memory_space<vmem>>, vector<1x64xf32>
    %c23 = arith.constant 23 : index
    %c0_12 = arith.constant 0 : index
    %12 = vector.load %arg7[%c23, %c0_12] : memref<192x128xf32, #tpu.memory_space<vmem>>, vector<1x64xf32>
    %c24 = arith.constant 24 : index
    %c0_13 = arith.constant 0 : index
    %13 = vector.load %arg7[%c24, %c0_13] : memref<192x128xf32, #tpu.memory_space<vmem>>, vector<1x64xf32>
    %14 = arith.truncf %4 : vector<16x64xf32> to vector<16x64xbf16>
    %c0_14 = arith.constant 0 : index
    %c0_15 = arith.constant 0 : index
    %c0_16 = arith.constant 0 : index
    %15 = vector.load %arg2[%c0_14, %c0_15, %c0_16] : memref<2x64x192xbf16, #tpu.memory_space<vmem>>, vector<1x64x192xbf16>
    %16 = vector.shape_cast %15 : vector<1x64x192xbf16> to vector<64x192xbf16>
    %cst_17 = arith.constant dense<0.000000e+00> : vector<16x192xf32>
    %17 = tpu.matmul %14, %16, %cst_17 {dimension_numbers = #tpu.dot_dimension_numbers<[1], [0], [0], [1], [0, 0, 1, 1], [], []>} : vector<16x64xbf16>, vector<64x192xbf16>, vector<16x192xf32> -> vector<16x192xf32>
    %18 = vector.extract_strided_slice %17 {offsets = [0, 0], sizes = [8, 16], strides = [1, 1]} : vector<16x192xf32> to vector<8x16xf32>
    %19 = vector.extract_strided_slice %5 {offsets = [0, 0], sizes = [1, 16], strides = [1, 1]} : vector<1x64xf32> to vector<1x16xf32>
    %20 = vector.broadcast %19 : vector<1x16xf32> to vector<8x16xf32>
    %21 = arith.addf %18, %20 : vector<8x16xf32>
    %22 = vector.extract_strided_slice %17 {offsets = [0, 64], sizes = [8, 16], strides = [1, 1]} : vector<16x192xf32> to vector<8x16xf32>
    %23 = vector.extract_strided_slice %6 {offsets = [0, 0], sizes = [1, 16], strides = [1, 1]} : vector<1x64xf32> to vector<1x16xf32>
    %24 = vector.broadcast %23 : vector<1x16xf32> to vector<8x16xf32>
    %25 = arith.addf %22, %24 : vector<8x16xf32>
    %26 = vector.extract_strided_slice %17 {offsets = [0, 128], sizes = [8, 16], strides = [1, 1]} : vector<16x192xf32> to vector<8x16xf32>
    %27 = vector.extract_strided_slice %7 {offsets = [0, 0], sizes = [1, 16], strides = [1, 1]} : vector<1x64xf32> to vector<1x16xf32>
    %28 = vector.broadcast %27 : vector<1x16xf32> to vector<8x16xf32>
    %29 = arith.addf %26, %28 : vector<8x16xf32>
    %cst_18 = arith.constant dense<0.000000e+00> : vector<8x8xf32>
    %30 = tpu.matmul %21, %25, %cst_18 {dimension_numbers = #tpu.dot_dimension_numbers<[1], [1], [0], [0], [0, 0, 1, 0], [], []>} : vector<8x16xf32>, vector<8x16xf32>, vector<8x8xf32> -> vector<8x8xf32>
    %cst_19 = arith.constant 2.500000e-01 : f32
    %31 = vector.broadcast %cst_19 : f32 to vector<8x8xf32>
    %32 = arith.mulf %30, %31 : vector<8x8xf32>
    %cst_20 = arith.constant dense<0xFF800000> : vector<8xf32>
    %33 = vector.multi_reduction <maximumf>, %32, %cst_20 [1] : vector<8x8xf32> to vector<8xf32>
    %34 = vector.shape_cast %33 : vector<8xf32> to vector<8x1xf32>
    %35 = vector.broadcast %34 : vector<8x1xf32> to vector<8x8xf32>
    %36 = arith.subf %32, %35 : vector<8x8xf32>
    %37 = math.exp %36 : vector<8x8xf32>
    %cst_21 = arith.constant dense<0.000000e+00> : vector<8xf32>
    %38 = vector.multi_reduction <add>, %37, %cst_21 [1] : vector<8x8xf32> to vector<8xf32>
    %39 = vector.shape_cast %38 : vector<8xf32> to vector<8x1xf32>
    %40 = tpu.reciprocal %39 {approx = true} : vector<8x1xf32> -> vector<8x1xf32>
    %41 = vector.broadcast %40 : vector<8x1xf32> to vector<8x8xf32>
    %42 = arith.mulf %37, %41 : vector<8x8xf32>
    %cst_22 = arith.constant dense<0.000000e+00> : vector<8x16xf32>
    %43 = tpu.matmul %42, %29, %cst_22 {dimension_numbers = #tpu.dot_dimension_numbers<[1], [0], [0], [1], [0, 0, 1, 1], [], []>} : vector<8x8xf32>, vector<8x16xf32>, vector<8x16xf32> -> vector<8x16xf32>
    %c0_23 = arith.constant 0 : index
    %c0_24 = arith.constant 0 : index
    %44 = vector.load %arg9[%c0_23, %c0_24] : memref<16x64xf32, #tpu.memory_space<vmem>>, vector<8x16xf32>
    tpu.vector_store %arg9[%c0_23, %c0_24], %43 {strides = array<i32>} : memref<16x64xf32, #tpu.memory_space<vmem>>, vector<8x16xf32>,
    %45 = vector.extract_strided_slice %17 {offsets = [0, 16], sizes = [8, 16], strides = [1, 1]} : vector<16x192xf32> to vector<8x16xf32>
    %46 = vector.extract_strided_slice %5 {offsets = [0, 16], sizes = [1, 16], strides = [1, 1]} : vector<1x64xf32> to vector<1x16xf32>
    %47 = vector.broadcast %46 : vector<1x16xf32> to vector<8x16xf32>
    %48 = arith.addf %45, %47 : vector<8x16xf32>
    %49 = vector.extract_strided_slice %17 {offsets = [0, 80], sizes = [8, 16], strides = [1, 1]} : vector<16x192xf32> to vector<8x16xf32>
    %50 = vector.extract_strided_slice %6 {offsets = [0, 16], sizes = [1, 16], strides = [1, 1]} : vector<1x64xf32> to vector<1x16xf32>
    %51 = vector.broadcast %50 : vector<1x16xf32> to vector<8x16xf32>
    %52 = arith.addf %49, %51 : vector<8x16xf32>
    %53 = vector.extract_strided_slice %17 {offsets = [0, 144], sizes = [8, 16], strides = [1, 1]} : vector<16x192xf32> to vector<8x16xf32>
    %54 = vector.extract_strided_slice %7 {offsets = [0, 16], sizes = [1, 16], strides = [1, 1]} : vector<1x64xf32> to vector<1x16xf32>
    %55 = vector.broadcast %54 : vector<1x16xf32> to vector<8x16xf32>
    %56 = arith.addf %53, %55 : vector<8x16xf32>
    %cst_25 = arith.constant dense<0.000000e+00> : vector<8x8xf32>
    %57 = tpu.matmul %48, %52, %cst_25 {dimension_numbers = #tpu.dot_dimension_numbers<[1], [1], [0], [0], [0, 0, 1, 0], [], []>} : vector<8x16xf32>, vector<8x16xf32>, vector<8x8xf32> -> vector<8x8xf32>
    %cst_26 = arith.constant 2.500000e-01 : f32
    %58 = vector.broadcast %cst_26 : f32 to vector<8x8xf32>
    %59 = arith.mulf %57, %58 : vector<8x8xf32>
    %cst_27 = arith.constant dense<0xFF800000> : vector<8xf32>
    %60 = vector.multi_reduction <maximumf>, %59, %cst_27 [1] : vector<8x8xf32> to vector<8xf32>
    %61 = vector.shape_cast %60 : vector<8xf32> to vector<8x1xf32>
    %62 = vector.broadcast %61 : vector<8x1xf32> to vector<8x8xf32>
    %63 = arith.subf %59, %62 : vector<8x8xf32>
    %64 = math.exp %63 : vector<8x8xf32>
    %cst_28 = arith.constant dense<0.000000e+00> : vector<8xf32>
    %65 = vector.multi_reduction <add>, %64, %cst_28 [1] : vector<8x8xf32> to vector<8xf32>
    %66 = vector.shape_cast %65 : vector<8xf32> to vector<8x1xf32>
    %67 = tpu.reciprocal %66 {approx = true} : vector<8x1xf32> -> vector<8x1xf32>
    %68 = vector.broadcast %67 : vector<8x1xf32> to vector<8x8xf32>
    %69 = arith.mulf %64, %68 : vector<8x8xf32>
    %cst_29 = arith.constant dense<0.000000e+00> : vector<8x16xf32>
    %70 = tpu.matmul %69, %56, %cst_29 {dimension_numbers = #tpu.dot_dimension_numbers<[1], [0], [0], [1], [0, 0, 1, 1], [], []>} : vector<8x8xf32>, vector<8x16xf32>, vector<8x16xf32> -> vector<8x16xf32>
    %c0_30 = arith.constant 0 : index
    %c16_31 = arith.constant 16 : index
    %71 = vector.load %arg9[%c0_30, %c16_31] : memref<16x64xf32, #tpu.memory_space<vmem>>, vector<8x16xf32>
    tpu.vector_store %arg9[%c0_30, %c16_31], %70 {strides = array<i32>} : memref<16x64xf32, #tpu.memory_space<vmem>>, vector<8x16xf32>,
    %72 = vector.extract_strided_slice %17 {offsets = [0, 32], sizes = [8, 16], strides = [1, 1]} : vector<16x192xf32> to vector<8x16xf32>
    %73 = vector.extract_strided_slice %5 {offsets = [0, 32], sizes = [1, 16], strides = [1, 1]} : vector<1x64xf32> to vector<1x16xf32>
    %74 = vector.broadcast %73 : vector<1x16xf32> to vector<8x16xf32>
    %75 = arith.addf %72, %74 : vector<8x16xf32>
    %76 = vector.extract_strided_slice %17 {offsets = [0, 96], sizes = [8, 16], strides = [1, 1]} : vector<16x192xf32> to vector<8x16xf32>
    %77 = vector.extract_strided_slice %6 {offsets = [0, 32], sizes = [1, 16], strides = [1, 1]} : vector<1x64xf32> to vector<1x16xf32>
    %78 = vector.broadcast %77 : vector<1x16xf32> to vector<8x16xf32>
    %79 = arith.addf %76, %78 : vector<8x16xf32>
    %80 = vector.extract_strided_slice %17 {offsets = [0, 160], sizes = [8, 16], strides = [1, 1]} : vector<16x192xf32> to vector<8x16xf32>
    %81 = vector.extract_strided_slice %7 {offsets = [0, 32], sizes = [1, 16], strides = [1, 1]} : vector<1x64xf32> to vector<1x16xf32>
    %82 = vector.broadcast %81 : vector<1x16xf32> to vector<8x16xf32>
    %83 = arith.addf %80, %82 : vector<8x16xf32>
    %cst_32 = arith.constant dense<0.000000e+00> : vector<8x8xf32>
    %84 = tpu.matmul %75, %79, %cst_32 {dimension_numbers = #tpu.dot_dimension_numbers<[1], [1], [0], [0], [0, 0, 1, 0], [], []>} : vector<8x16xf32>, vector<8x16xf32>, vector<8x8xf32> -> vector<8x8xf32>
    %cst_33 = arith.constant 2.500000e-01 : f32
    %85 = vector.broadcast %cst_33 : f32 to vector<8x8xf32>
    %86 = arith.mulf %84, %85 : vector<8x8xf32>
    %cst_34 = arith.constant dense<0xFF800000> : vector<8xf32>
    %87 = vector.multi_reduction <maximumf>, %86, %cst_34 [1] : vector<8x8xf32> to vector<8xf32>
    %88 = vector.shape_cast %87 : vector<8xf32> to vector<8x1xf32>
    %89 = vector.broadcast %88 : vector<8x1xf32> to vector<8x8xf32>
    %90 = arith.subf %86, %89 : vector<8x8xf32>
    %91 = math.exp %90 : vector<8x8xf32>
    %cst_35 = arith.constant dense<0.000000e+00> : vector<8xf32>
    %92 = vector.multi_reduction <add>, %91, %cst_35 [1] : vector<8x8xf32> to vector<8xf32>
    %93 = vector.shape_cast %92 : vector<8xf32> to vector<8x1xf32>
    %94 = tpu.reciprocal %93 {approx = true} : vector<8x1xf32> -> vector<8x1xf32>
    %95 = vector.broadcast %94 : vector<8x1xf32> to vector<8x8xf32>
    %96 = arith.mulf %91, %95 : vector<8x8xf32>
    %cst_36 = arith.constant dense<0.000000e+00> : vector<8x16xf32>
    %97 = tpu.matmul %96, %83, %cst_36 {dimension_numbers = #tpu.dot_dimension_numbers<[1], [0], [0], [1], [0, 0, 1, 1], [], []>} : vector<8x8xf32>, vector<8x16xf32>, vector<8x16xf32> -> vector<8x16xf32>
    %c0_37 = arith.constant 0 : index
    %c32 = arith.constant 32 : index
    %98 = vector.load %arg9[%c0_37, %c32] : memref<16x64xf32, #tpu.memory_space<vmem>>, vector<8x16xf32>
    tpu.vector_store %arg9[%c0_37, %c32], %97 {strides = array<i32>} : memref<16x64xf32, #tpu.memory_space<vmem>>, vector<8x16xf32>,
    %99 = vector.extract_strided_slice %17 {offsets = [0, 48], sizes = [8, 16], strides = [1, 1]} : vector<16x192xf32> to vector<8x16xf32>
    %100 = vector.extract_strided_slice %5 {offsets = [0, 48], sizes = [1, 16], strides = [1, 1]} : vector<1x64xf32> to vector<1x16xf32>
    %101 = vector.broadcast %100 : vector<1x16xf32> to vector<8x16xf32>
    %102 = arith.addf %99, %101 : vector<8x16xf32>
    %103 = vector.extract_strided_slice %17 {offsets = [0, 112], sizes = [8, 16], strides = [1, 1]} : vector<16x192xf32> to vector<8x16xf32>
    %104 = vector.extract_strided_slice %6 {offsets = [0, 48], sizes = [1, 16], strides = [1, 1]} : vector<1x64xf32> to vector<1x16xf32>
    %105 = vector.broadcast %104 : vector<1x16xf32> to vector<8x16xf32>
    %106 = arith.addf %103, %105 : vector<8x16xf32>
    %107 = vector.extract_strided_slice %17 {offsets = [0, 176], sizes = [8, 16], strides = [1, 1]} : vector<16x192xf32> to vector<8x16xf32>
    %108 = vector.extract_strided_slice %7 {offsets = [0, 48], sizes = [1, 16], strides = [1, 1]} : vector<1x64xf32> to vector<1x16xf32>
    %109 = vector.broadcast %108 : vector<1x16xf32> to vector<8x16xf32>
    %110 = arith.addf %107, %109 : vector<8x16xf32>
    %cst_38 = arith.constant dense<0.000000e+00> : vector<8x8xf32>
    %111 = tpu.matmul %102, %106, %cst_38 {dimension_numbers = #tpu.dot_dimension_numbers<[1], [1], [0], [0], [0, 0, 1, 0], [], []>} : vector<8x16xf32>, vector<8x16xf32>, vector<8x8xf32> -> vector<8x8xf32>
    %cst_39 = arith.constant 2.500000e-01 : f32
    %112 = vector.broadcast %cst_39 : f32 to vector<8x8xf32>
    %113 = arith.mulf %111, %112 : vector<8x8xf32>
    %cst_40 = arith.constant dense<0xFF800000> : vector<8xf32>
    %114 = vector.multi_reduction <maximumf>, %113, %cst_40 [1] : vector<8x8xf32> to vector<8xf32>
    %115 = vector.shape_cast %114 : vector<8xf32> to vector<8x1xf32>
    %116 = vector.broadcast %115 : vector<8x1xf32> to vector<8x8xf32>
    %117 = arith.subf %113, %116 : vector<8x8xf32>
    %118 = math.exp %117 : vector<8x8xf32>
    %cst_41 = arith.constant dense<0.000000e+00> : vector<8xf32>
    %119 = vector.multi_reduction <add>, %118, %cst_41 [1] : vector<8x8xf32> to vector<8xf32>
    %120 = vector.shape_cast %119 : vector<8xf32> to vector<8x1xf32>
    %121 = tpu.reciprocal %120 {approx = true} : vector<8x1xf32> -> vector<8x1xf32>
    %122 = vector.broadcast %121 : vector<8x1xf32> to vector<8x8xf32>
    %123 = arith.mulf %118, %122 : vector<8x8xf32>
    %cst_42 = arith.constant dense<0.000000e+00> : vector<8x16xf32>
    %124 = tpu.matmul %123, %110, %cst_42 {dimension_numbers = #tpu.dot_dimension_numbers<[1], [0], [0], [1], [0, 0, 1, 1], [], []>} : vector<8x8xf32>, vector<8x16xf32>, vector<8x16xf32> -> vector<8x16xf32>
    %c0_43 = arith.constant 0 : index
    %c48 = arith.constant 48 : index
    %125 = vector.load %arg9[%c0_43, %c48] : memref<16x64xf32, #tpu.memory_space<vmem>>, vector<8x16xf32>
    tpu.vector_store %arg9[%c0_43, %c48], %124 {strides = array<i32>} : memref<16x64xf32, #tpu.memory_space<vmem>>, vector<8x16xf32>,
    %126 = vector.extract_strided_slice %17 {offsets = [8, 0], sizes = [8, 16], strides = [1, 1]} : vector<16x192xf32> to vector<8x16xf32>
    %127 = vector.extract_strided_slice %5 {offsets = [0, 0], sizes = [1, 16], strides = [1, 1]} : vector<1x64xf32> to vector<1x16xf32>
    %128 = vector.broadcast %127 : vector<1x16xf32> to vector<8x16xf32>
    %129 = arith.addf %126, %128 : vector<8x16xf32>
    %130 = vector.extract_strided_slice %17 {offsets = [8, 64], sizes = [8, 16], strides = [1, 1]} : vector<16x192xf32> to vector<8x16xf32>
    %131 = vector.extract_strided_slice %6 {offsets = [0, 0], sizes = [1, 16], strides = [1, 1]} : vector<1x64xf32> to vector<1x16xf32>
    %132 = vector.broadcast %131 : vector<1x16xf32> to vector<8x16xf32>
    %133 = arith.addf %130, %132 : vector<8x16xf32>
    %134 = vector.extract_strided_slice %17 {offsets = [8, 128], sizes = [8, 16], strides = [1, 1]} : vector<16x192xf32> to vector<8x16xf32>
    %135 = vector.extract_strided_slice %7 {offsets = [0, 0], sizes = [1, 16], strides = [1, 1]} : vector<1x64xf32> to vector<1x16xf32>
    %136 = vector.broadcast %135 : vector<1x16xf32> to vector<8x16xf32>
    %137 = arith.addf %134, %136 : vector<8x16xf32>
    %cst_44 = arith.constant dense<0.000000e+00> : vector<8x8xf32>
    %138 = tpu.matmul %129, %133, %cst_44 {dimension_numbers = #tpu.dot_dimension_numbers<[1], [1], [0], [0], [0, 0, 1, 0], [], []>} : vector<8x16xf32>, vector<8x16xf32>, vector<8x8xf32> -> vector<8x8xf32>
    %cst_45 = arith.constant 2.500000e-01 : f32
    %139 = vector.broadcast %cst_45 : f32 to vector<8x8xf32>
    %140 = arith.mulf %138, %139 : vector<8x8xf32>
    %cst_46 = arith.constant dense<0xFF800000> : vector<8xf32>
    %141 = vector.multi_reduction <maximumf>, %140, %cst_46 [1] : vector<8x8xf32> to vector<8xf32>
    %142 = vector.shape_cast %141 : vector<8xf32> to vector<8x1xf32>
    %143 = vector.broadcast %142 : vector<8x1xf32> to vector<8x8xf32>
    %144 = arith.subf %140, %143 : vector<8x8xf32>
    %145 = math.exp %144 : vector<8x8xf32>
    %cst_47 = arith.constant dense<0.000000e+00> : vector<8xf32>
    %146 = vector.multi_reduction <add>, %145, %cst_47 [1] : vector<8x8xf32> to vector<8xf32>
    %147 = vector.shape_cast %146 : vector<8xf32> to vector<8x1xf32>
    %148 = tpu.reciprocal %147 {approx = true} : vector<8x1xf32> -> vector<8x1xf32>
    %149 = vector.broadcast %148 : vector<8x1xf32> to vector<8x8xf32>
    %150 = arith.mulf %145, %149 : vector<8x8xf32>
    %cst_48 = arith.constant dense<0.000000e+00> : vector<8x16xf32>
    %151 = tpu.matmul %150, %137, %cst_48 {dimension_numbers = #tpu.dot_dimension_numbers<[1], [0], [0], [1], [0, 0, 1, 1], [], []>} : vector<8x8xf32>, vector<8x16xf32>, vector<8x16xf32> -> vector<8x16xf32>
    %c8 = arith.constant 8 : index
    %c0_49 = arith.constant 0 : index
    %152 = vector.load %arg9[%c8, %c0_49] : memref<16x64xf32, #tpu.memory_space<vmem>>, vector<8x16xf32>
    tpu.vector_store %arg9[%c8, %c0_49], %151 {strides = array<i32>} : memref<16x64xf32, #tpu.memory_space<vmem>>, vector<8x16xf32>,
    %153 = vector.extract_strided_slice %17 {offsets = [8, 16], sizes = [8, 16], strides = [1, 1]} : vector<16x192xf32> to vector<8x16xf32>
    %154 = vector.extract_strided_slice %5 {offsets = [0, 16], sizes = [1, 16], strides = [1, 1]} : vector<1x64xf32> to vector<1x16xf32>
    %155 = vector.broadcast %154 : vector<1x16xf32> to vector<8x16xf32>
    %156 = arith.addf %153, %155 : vector<8x16xf32>
    %157 = vector.extract_strided_slice %17 {offsets = [8, 80], sizes = [8, 16], strides = [1, 1]} : vector<16x192xf32> to vector<8x16xf32>
    %158 = vector.extract_strided_slice %6 {offsets = [0, 16], sizes = [1, 16], strides = [1, 1]} : vector<1x64xf32> to vector<1x16xf32>
    %159 = vector.broadcast %158 : vector<1x16xf32> to vector<8x16xf32>
    %160 = arith.addf %157, %159 : vector<8x16xf32>
    %161 = vector.extract_strided_slice %17 {offsets = [8, 144], sizes = [8, 16], strides = [1, 1]} : vector<16x192xf32> to vector<8x16xf32>
    %162 = vector.extract_strided_slice %7 {offsets = [0, 16], sizes = [1, 16], strides = [1, 1]} : vector<1x64xf32> to vector<1x16xf32>
    %163 = vector.broadcast %162 : vector<1x16xf32> to vector<8x16xf32>
    %164 = arith.addf %161, %163 : vector<8x16xf32>
    %cst_50 = arith.constant dense<0.000000e+00> : vector<8x8xf32>
    %165 = tpu.matmul %156, %160, %cst_50 {dimension_numbers = #tpu.dot_dimension_numbers<[1], [1], [0], [0], [0, 0, 1, 0], [], []>} : vector<8x16xf32>, vector<8x16xf32>, vector<8x8xf32> -> vector<8x8xf32>
    %cst_51 = arith.constant 2.500000e-01 : f32
    %166 = vector.broadcast %cst_51 : f32 to vector<8x8xf32>
    %167 = arith.mulf %165, %166 : vector<8x8xf32>
    %cst_52 = arith.constant dense<0xFF800000> : vector<8xf32>
    %168 = vector.multi_reduction <maximumf>, %167, %cst_52 [1] : vector<8x8xf32> to vector<8xf32>
    %169 = vector.shape_cast %168 : vector<8xf32> to vector<8x1xf32>
    %170 = vector.broadcast %169 : vector<8x1xf32> to vector<8x8xf32>
    %171 = arith.subf %167, %170 : vector<8x8xf32>
    %172 = math.exp %171 : vector<8x8xf32>
    %cst_53 = arith.constant dense<0.000000e+00> : vector<8xf32>
    %173 = vector.multi_reduction <add>, %172, %cst_53 [1] : vector<8x8xf32> to vector<8xf32>
    %174 = vector.shape_cast %173 : vector<8xf32> to vector<8x1xf32>
    %175 = tpu.reciprocal %174 {approx = true} : vector<8x1xf32> -> vector<8x1xf32>
    %176 = vector.broadcast %175 : vector<8x1xf32> to vector<8x8xf32>
    %177 = arith.mulf %172, %176 : vector<8x8xf32>
    %cst_54 = arith.constant dense<0.000000e+00> : vector<8x16xf32>
    %178 = tpu.matmul %177, %164, %cst_54 {dimension_numbers = #tpu.dot_dimension_numbers<[1], [0], [0], [1], [0, 0, 1, 1], [], []>} : vector<8x8xf32>, vector<8x16xf32>, vector<8x16xf32> -> vector<8x16xf32>
    %c8_55 = arith.constant 8 : index
    %c16_56 = arith.constant 16 : index
    %179 = vector.load %arg9[%c8_55, %c16_56] : memref<16x64xf32, #tpu.memory_space<vmem>>, vector<8x16xf32>
    tpu.vector_store %arg9[%c8_55, %c16_56], %178 {strides = array<i32>} : memref<16x64xf32, #tpu.memory_space<vmem>>, vector<8x16xf32>,
    %180 = vector.extract_strided_slice %17 {offsets = [8, 32], sizes = [8, 16], strides = [1, 1]} : vector<16x192xf32> to vector<8x16xf32>
    %181 = vector.extract_strided_slice %5 {offsets = [0, 32], sizes = [1, 16], strides = [1, 1]} : vector<1x64xf32> to vector<1x16xf32>
    %182 = vector.broadcast %181 : vector<1x16xf32> to vector<8x16xf32>
    %183 = arith.addf %180, %182 : vector<8x16xf32>
    %184 = vector.extract_strided_slice %17 {offsets = [8, 96], sizes = [8, 16], strides = [1, 1]} : vector<16x192xf32> to vector<8x16xf32>
    %185 = vector.extract_strided_slice %6 {offsets = [0, 32], sizes = [1, 16], strides = [1, 1]} : vector<1x64xf32> to vector<1x16xf32>
    %186 = vector.broadcast %185 : vector<1x16xf32> to vector<8x16xf32>
    %187 = arith.addf %184, %186 : vector<8x16xf32>
    %188 = vector.extract_strided_slice %17 {offsets = [8, 160], sizes = [8, 16], strides = [1, 1]} : vector<16x192xf32> to vector<8x16xf32>
    %189 = vector.extract_strided_slice %7 {offsets = [0, 32], sizes = [1, 16], strides = [1, 1]} : vector<1x64xf32> to vector<1x16xf32>
    %190 = vector.broadcast %189 : vector<1x16xf32> to vector<8x16xf32>
    %191 = arith.addf %188, %190 : vector<8x16xf32>
    %cst_57 = arith.constant dense<0.000000e+00> : vector<8x8xf32>
    %192 = tpu.matmul %183, %187, %cst_57 {dimension_numbers = #tpu.dot_dimension_numbers<[1], [1], [0], [0], [0, 0, 1, 0], [], []>} : vector<8x16xf32>, vector<8x16xf32>, vector<8x8xf32> -> vector<8x8xf32>
    %cst_58 = arith.constant 2.500000e-01 : f32
    %193 = vector.broadcast %cst_58 : f32 to vector<8x8xf32>
    %194 = arith.mulf %192, %193 : vector<8x8xf32>
    %cst_59 = arith.constant dense<0xFF800000> : vector<8xf32>
    %195 = vector.multi_reduction <maximumf>, %194, %cst_59 [1] : vector<8x8xf32> to vector<8xf32>
    %196 = vector.shape_cast %195 : vector<8xf32> to vector<8x1xf32>
    %197 = vector.broadcast %196 : vector<8x1xf32> to vector<8x8xf32>
    %198 = arith.subf %194, %197 : vector<8x8xf32>
    %199 = math.exp %198 : vector<8x8xf32>
    %cst_60 = arith.constant dense<0.000000e+00> : vector<8xf32>
    %200 = vector.multi_reduction <add>, %199, %cst_60 [1] : vector<8x8xf32> to vector<8xf32>
    %201 = vector.shape_cast %200 : vector<8xf32> to vector<8x1xf32>
    %202 = tpu.reciprocal %201 {approx = true} : vector<8x1xf32> -> vector<8x1xf32>
    %203 = vector.broadcast %202 : vector<8x1xf32> to vector<8x8xf32>
    %204 = arith.mulf %199, %203 : vector<8x8xf32>
    %cst_61 = arith.constant dense<0.000000e+00> : vector<8x16xf32>
    %205 = tpu.matmul %204, %191, %cst_61 {dimension_numbers = #tpu.dot_dimension_numbers<[1], [0], [0], [1], [0, 0, 1, 1], [], []>} : vector<8x8xf32>, vector<8x16xf32>, vector<8x16xf32> -> vector<8x16xf32>
    %c8_62 = arith.constant 8 : index
    %c32_63 = arith.constant 32 : index
    %206 = vector.load %arg9[%c8_62, %c32_63] : memref<16x64xf32, #tpu.memory_space<vmem>>, vector<8x16xf32>
    tpu.vector_store %arg9[%c8_62, %c32_63], %205 {strides = array<i32>} : memref<16x64xf32, #tpu.memory_space<vmem>>, vector<8x16xf32>,
    %207 = vector.extract_strided_slice %17 {offsets = [8, 48], sizes = [8, 16], strides = [1, 1]} : vector<16x192xf32> to vector<8x16xf32>
    %208 = vector.extract_strided_slice %5 {offsets = [0, 48], sizes = [1, 16], strides = [1, 1]} : vector<1x64xf32> to vector<1x16xf32>
    %209 = vector.broadcast %208 : vector<1x16xf32> to vector<8x16xf32>
    %210 = arith.addf %207, %209 : vector<8x16xf32>
    %211 = vector.extract_strided_slice %17 {offsets = [8, 112], sizes = [8, 16], strides = [1, 1]} : vector<16x192xf32> to vector<8x16xf32>
    %212 = vector.extract_strided_slice %6 {offsets = [0, 48], sizes = [1, 16], strides = [1, 1]} : vector<1x64xf32> to vector<1x16xf32>
    %213 = vector.broadcast %212 : vector<1x16xf32> to vector<8x16xf32>
    %214 = arith.addf %211, %213 : vector<8x16xf32>
    %215 = vector.extract_strided_slice %17 {offsets = [8, 176], sizes = [8, 16], strides = [1, 1]} : vector<16x192xf32> to vector<8x16xf32>
    %216 = vector.extract_strided_slice %7 {offsets = [0, 48], sizes = [1, 16], strides = [1, 1]} : vector<1x64xf32> to vector<1x16xf32>
    %217 = vector.broadcast %216 : vector<1x16xf32> to vector<8x16xf32>
    %218 = arith.addf %215, %217 : vector<8x16xf32>
    %cst_64 = arith.constant dense<0.000000e+00> : vector<8x8xf32>
    %219 = tpu.matmul %210, %214, %cst_64 {dimension_numbers = #tpu.dot_dimension_numbers<[1], [1], [0], [0], [0, 0, 1, 0], [], []>} : vector<8x16xf32>, vector<8x16xf32>, vector<8x8xf32> -> vector<8x8xf32>
    %cst_65 = arith.constant 2.500000e-01 : f32
    %220 = vector.broadcast %cst_65 : f32 to vector<8x8xf32>
    %221 = arith.mulf %219, %220 : vector<8x8xf32>
    %cst_66 = arith.constant dense<0xFF800000> : vector<8xf32>
    %222 = vector.multi_reduction <maximumf>, %221, %cst_66 [1] : vector<8x8xf32> to vector<8xf32>
    %223 = vector.shape_cast %222 : vector<8xf32> to vector<8x1xf32>
    %224 = vector.broadcast %223 : vector<8x1xf32> to vector<8x8xf32>
    %225 = arith.subf %221, %224 : vector<8x8xf32>
    %226 = math.exp %225 : vector<8x8xf32>
    %cst_67 = arith.constant dense<0.000000e+00> : vector<8xf32>
    %227 = vector.multi_reduction <add>, %226, %cst_67 [1] : vector<8x8xf32> to vector<8xf32>
    %228 = vector.shape_cast %227 : vector<8xf32> to vector<8x1xf32>
    %229 = tpu.reciprocal %228 {approx = true} : vector<8x1xf32> -> vector<8x1xf32>
    %230 = vector.broadcast %229 : vector<8x1xf32> to vector<8x8xf32>
    %231 = arith.mulf %226, %230 : vector<8x8xf32>
    %cst_68 = arith.constant dense<0.000000e+00> : vector<8x16xf32>
    %232 = tpu.matmul %231, %218, %cst_68 {dimension_numbers = #tpu.dot_dimension_numbers<[1], [0], [0], [1], [0, 0, 1, 1], [], []>} : vector<8x8xf32>, vector<8x16xf32>, vector<8x16xf32> -> vector<8x16xf32>
    %c8_69 = arith.constant 8 : index
    %c48_70 = arith.constant 48 : index
    %233 = vector.load %arg9[%c8_69, %c48_70] : memref<16x64xf32, #tpu.memory_space<vmem>>, vector<8x16xf32>
    tpu.vector_store %arg9[%c8_69, %c48_70], %232 {strides = array<i32>} : memref<16x64xf32, #tpu.memory_space<vmem>>, vector<8x16xf32>,
    %c0_71 = arith.constant 0 : index
    %c0_72 = arith.constant 0 : index
    %234 = vector.load %arg9[%c0_71, %c0_72] : memref<16x64xf32, #tpu.memory_space<vmem>>, vector<16x64xf32>
    %235 = arith.truncf %234 : vector<16x64xf32> to vector<16x64xbf16>
    %c0_73 = arith.constant 0 : index
    %c0_74 = arith.constant 0 : index
    %c0_75 = arith.constant 0 : index
    %236 = vector.load %arg3[%c0_73, %c0_74, %c0_75] : memref<2x64x64xbf16, #tpu.memory_space<vmem>>, vector<1x64x64xbf16>
    %237 = vector.shape_cast %236 : vector<1x64x64xbf16> to vector<64x64xbf16>
    %cst_76 = arith.constant dense<0.000000e+00> : vector<16x64xf32>
    %238 = tpu.matmul %235, %237, %cst_76 {dimension_numbers = #tpu.dot_dimension_numbers<[1], [0], [0], [1], [0, 0, 1, 1], [], []>} : vector<16x64xbf16>, vector<64x64xbf16>, vector<16x64xf32> -> vector<16x64xf32>
    %239 = vector.broadcast %8 : vector<1x64xf32> to vector<16x64xf32>
    %240 = arith.addf %238, %239 : vector<16x64xf32>
    %241 = arith.addf %4, %240 : vector<16x64xf32>
    %cst_77 = arith.constant dense<0.000000e+00> : vector<16xf32>
    %242 = vector.multi_reduction <add>, %241, %cst_77 [1] : vector<16x64xf32> to vector<16xf32>
    %243 = vector.shape_cast %242 : vector<16xf32> to vector<16x1xf32>
    %cst_78 = arith.constant 6.400000e+01 : f32
    %244 = vector.broadcast %cst_78 : f32 to vector<16x1xf32>
    %245 = arith.divf %243, %244 : vector<16x1xf32>
    %246 = vector.broadcast %245 : vector<16x1xf32> to vector<16x64xf32>
    %247 = arith.subf %241, %246 : vector<16x64xf32>
    %248 = arith.mulf %247, %247 : vector<16x64xf32>
    %cst_79 = arith.constant dense<0.000000e+00> : vector<16xf32>
    %249 = vector.multi_reduction <add>, %248, %cst_79 [1] : vector<16x64xf32> to vector<16xf32>
    %250 = vector.shape_cast %249 : vector<16xf32> to vector<16x1xf32>
    %cst_80 = arith.constant 6.400000e+01 : f32
    %251 = vector.broadcast %cst_80 : f32 to vector<16x1xf32>
    %252 = arith.divf %250, %251 : vector<16x1xf32>
    %253 = vector.broadcast %245 : vector<16x1xf32> to vector<16x64xf32>
    %254 = arith.subf %241, %253 : vector<16x64xf32>
    %cst_81 = arith.constant 9.99999974E-6 : f32
    %255 = vector.broadcast %cst_81 : f32 to vector<16x1xf32>
    %256 = arith.addf %252, %255 : vector<16x1xf32>
    %257 = math.rsqrt %256 : vector<16x1xf32>
    %258 = vector.broadcast %257 : vector<16x1xf32> to vector<16x64xf32>
    %259 = arith.mulf %254, %258 : vector<16x64xf32>
    %260 = vector.broadcast %9 : vector<1x64xf32> to vector<16x64xf32>
    %261 = arith.mulf %259, %260 : vector<16x64xf32>
    %262 = vector.broadcast %10 : vector<1x64xf32> to vector<16x64xf32>
    %263 = arith.addf %261, %262 : vector<16x64xf32>
    %264 = arith.truncf %263 : vector<16x64xf32> to vector<16x64xbf16>
    %c0_82 = arith.constant 0 : index
    %c0_83 = arith.constant 0 : index
    %c0_84 = arith.constant 0 : index
    %265 = vector.load %arg4[%c0_82, %c0_83, %c0_84] : memref<2x64x2048xbf16, #tpu.memory_space<vmem>>, vector<1x64x2048xbf16>
    %266 = vector.shape_cast %265 : vector<1x64x2048xbf16> to vector<64x2048xbf16>
    %cst_85 = arith.constant dense<0.000000e+00> : vector<16x2048xf32>
    %267 = tpu.matmul %264, %266, %cst_85 {dimension_numbers = #tpu.dot_dimension_numbers<[1], [0], [0], [1], [0, 0, 1, 1], [], []>} : vector<16x64xbf16>, vector<64x2048xbf16>, vector<16x2048xf32> -> vector<16x2048xf32>
    %c0_86 = arith.constant 0 : index
    %c0_87 = arith.constant 0 : index
    %c0_88 = arith.constant 0 : index
    %268 = vector.load %arg5[%c0_86, %c0_87, %c0_88] : memref<2x1x2048xf32, #tpu.memory_space<vmem>>, vector<1x1x2048xf32>
    %269 = vector.shape_cast %268 : vector<1x1x2048xf32> to vector<1x2048xf32>
    %270 = vector.broadcast %269 : vector<1x2048xf32> to vector<16x2048xf32>
    %271 = arith.addf %267, %270 : vector<16x2048xf32>
    %cst_89 = arith.constant 0.000000e+00 : f32
    %272 = vector.broadcast %cst_89 : f32 to vector<16x2048xf32>
    %273 = arith.maximumf %271, %272 : vector<16x2048xf32>
    %274 = arith.truncf %273 : vector<16x2048xf32> to vector<16x2048xbf16>
    %c0_90 = arith.constant 0 : index
    %c0_91 = arith.constant 0 : index
    %c0_92 = arith.constant 0 : index
    %275 = vector.load %arg6[%c0_90, %c0_91, %c0_92] : memref<2x2048x64xbf16, #tpu.memory_space<vmem>>, vector<1x2048x64xbf16>
    %276 = vector.shape_cast %275 : vector<1x2048x64xbf16> to vector<2048x64xbf16>
    %cst_93 = arith.constant dense<0.000000e+00> : vector<16x64xf32>
    %277 = tpu.matmul %274, %276, %cst_93 {dimension_numbers = #tpu.dot_dimension_numbers<[1], [0], [0], [1], [0, 0, 1, 1], [], []>} : vector<16x2048xbf16>, vector<2048x64xbf16>, vector<16x64xf32> -> vector<16x64xf32>
    %278 = vector.broadcast %11 : vector<1x64xf32> to vector<16x64xf32>
    %279 = arith.addf %277, %278 : vector<16x64xf32>
    %280 = arith.addf %263, %279 : vector<16x64xf32>
    %cst_94 = arith.constant dense<0.000000e+00> : vector<16xf32>
    %281 = vector.multi_reduction <add>, %280, %cst_94 [1] : vector<16x64xf32> to vector<16xf32>
    %282 = vector.shape_cast %281 : vector<16xf32> to vector<16x1xf32>
    %cst_95 = arith.constant 6.400000e+01 : f32
    %283 = vector.broadcast %cst_95 : f32 to vector<16x1xf32>
    %284 = arith.divf %282, %283 : vector<16x1xf32>
    %285 = vector.broadcast %284 : vector<16x1xf32> to vector<16x64xf32>
    %286 = arith.subf %280, %285 : vector<16x64xf32>
    %287 = arith.mulf %286, %286 : vector<16x64xf32>
    %cst_96 = arith.constant dense<0.000000e+00> : vector<16xf32>
    %288 = vector.multi_reduction <add>, %287, %cst_96 [1] : vector<16x64xf32> to vector<16xf32>
    %289 = vector.shape_cast %288 : vector<16xf32> to vector<16x1xf32>
    %cst_97 = arith.constant 6.400000e+01 : f32
    %290 = vector.broadcast %cst_97 : f32 to vector<16x1xf32>
    %291 = arith.divf %289, %290 : vector<16x1xf32>
    %292 = vector.broadcast %284 : vector<16x1xf32> to vector<16x64xf32>
    %293 = arith.subf %280, %292 : vector<16x64xf32>
    %cst_98 = arith.constant 9.99999974E-6 : f32
    %294 = vector.broadcast %cst_98 : f32 to vector<16x1xf32>
    %295 = arith.addf %291, %294 : vector<16x1xf32>
    %296 = math.rsqrt %295 : vector<16x1xf32>
    %297 = vector.broadcast %296 : vector<16x1xf32> to vector<16x64xf32>
    %298 = arith.mulf %293, %297 : vector<16x64xf32>
    %299 = vector.broadcast %12 : vector<1x64xf32> to vector<16x64xf32>
    %300 = arith.mulf %298, %299 : vector<16x64xf32>
    %301 = vector.broadcast %13 : vector<1x64xf32> to vector<16x64xf32>
    %302 = arith.addf %300, %301 : vector<16x64xf32>
    %c32_99 = arith.constant 32 : index
    %c0_100 = arith.constant 0 : index
    %303 = vector.load %arg7[%c32_99, %c0_100] : memref<192x128xf32, #tpu.memory_space<vmem>>, vector<1x64xf32>
    %c33 = arith.constant 33 : index
    %c0_101 = arith.constant 0 : index
    %304 = vector.load %arg7[%c33, %c0_101] : memref<192x128xf32, #tpu.memory_space<vmem>>, vector<1x64xf32>
    %c34 = arith.constant 34 : index
    %c0_102 = arith.constant 0 : index
    %305 = vector.load %arg7[%c34, %c0_102] : memref<192x128xf32, #tpu.memory_space<vmem>>, vector<1x64xf32>
    %c35 = arith.constant 35 : index
    %c0_103 = arith.constant 0 : index
    %306 = vector.load %arg7[%c35, %c0_103] : memref<192x128xf32, #tpu.memory_space<vmem>>, vector<1x64xf32>
    %c36 = arith.constant 36 : index
    %c0_104 = arith.constant 0 : index
    %307 = vector.load %arg7[%c36, %c0_104] : memref<192x128xf32, #tpu.memory_space<vmem>>, vector<1x64xf32>
    %c37 = arith.constant 37 : index
    %c0_105 = arith.constant 0 : index
    %308 = vector.load %arg7[%c37, %c0_105] : memref<192x128xf32, #tpu.memory_space<vmem>>, vector<1x64xf32>
    %c38 = arith.constant 38 : index
    %c0_106 = arith.constant 0 : index
    %309 = vector.load %arg7[%c38, %c0_106] : memref<192x128xf32, #tpu.memory_space<vmem>>, vector<1x64xf32>
    %c39 = arith.constant 39 : index
    %c0_107 = arith.constant 0 : index
    %310 = vector.load %arg7[%c39, %c0_107] : memref<192x128xf32, #tpu.memory_space<vmem>>, vector<1x64xf32>
    %c40 = arith.constant 40 : index
    %c0_108 = arith.constant 0 : index
    %311 = vector.load %arg7[%c40, %c0_108] : memref<192x128xf32, #tpu.memory_space<vmem>>, vector<1x64xf32>
    %312 = arith.truncf %302 : vector<16x64xf32> to vector<16x64xbf16>
    %c1 = arith.constant 1 : index
    %c0_109 = arith.constant 0 : index
    %c0_110 = arith.constant 0 : index
    %313 = vector.load %arg2[%c1, %c0_109, %c0_110] : memref<2x64x192xbf16, #tpu.memory_space<vmem>>, vector<1x64x192xbf16>
    %314 = vector.shape_cast %313 : vector<1x64x192xbf16> to vector<64x192xbf16>
    %cst_111 = arith.constant dense<0.000000e+00> : vector<16x192xf32>
    %315 = tpu.matmul %312, %314, %cst_111 {dimension_numbers = #tpu.dot_dimension_numbers<[1], [0], [0], [1], [0, 0, 1, 1], [], []>} : vector<16x64xbf16>, vector<64x192xbf16>, vector<16x192xf32> -> vector<16x192xf32>
    %316 = vector.extract_strided_slice %315 {offsets = [0, 0], sizes = [8, 16], strides = [1, 1]} : vector<16x192xf32> to vector<8x16xf32>
    %317 = vector.extract_strided_slice %303 {offsets = [0, 0], sizes = [1, 16], strides = [1, 1]} : vector<1x64xf32> to vector<1x16xf32>
    %318 = vector.broadcast %317 : vector<1x16xf32> to vector<8x16xf32>
    %319 = arith.addf %316, %318 : vector<8x16xf32>
    %320 = vector.extract_strided_slice %315 {offsets = [0, 64], sizes = [8, 16], strides = [1, 1]} : vector<16x192xf32> to vector<8x16xf32>
    %321 = vector.extract_strided_slice %304 {offsets = [0, 0], sizes = [1, 16], strides = [1, 1]} : vector<1x64xf32> to vector<1x16xf32>
    %322 = vector.broadcast %321 : vector<1x16xf32> to vector<8x16xf32>
    %323 = arith.addf %320, %322 : vector<8x16xf32>
    %324 = vector.extract_strided_slice %315 {offsets = [0, 128], sizes = [8, 16], strides = [1, 1]} : vector<16x192xf32> to vector<8x16xf32>
    %325 = vector.extract_strided_slice %305 {offsets = [0, 0], sizes = [1, 16], strides = [1, 1]} : vector<1x64xf32> to vector<1x16xf32>
    %326 = vector.broadcast %325 : vector<1x16xf32> to vector<8x16xf32>
    %327 = arith.addf %324, %326 : vector<8x16xf32>
    %cst_112 = arith.constant dense<0.000000e+00> : vector<8x8xf32>
    %328 = tpu.matmul %319, %323, %cst_112 {dimension_numbers = #tpu.dot_dimension_numbers<[1], [1], [0], [0], [0, 0, 1, 0], [], []>} : vector<8x16xf32>, vector<8x16xf32>, vector<8x8xf32> -> vector<8x8xf32>
    %cst_113 = arith.constant 2.500000e-01 : f32
    %329 = vector.broadcast %cst_113 : f32 to vector<8x8xf32>
    %330 = arith.mulf %328, %329 : vector<8x8xf32>
    %cst_114 = arith.constant dense<0xFF800000> : vector<8xf32>
    %331 = vector.multi_reduction <maximumf>, %330, %cst_114 [1] : vector<8x8xf32> to vector<8xf32>
    %332 = vector.shape_cast %331 : vector<8xf32> to vector<8x1xf32>
    %333 = vector.broadcast %332 : vector<8x1xf32> to vector<8x8xf32>
    %334 = arith.subf %330, %333 : vector<8x8xf32>
    %335 = math.exp %334 : vector<8x8xf32>
    %cst_115 = arith.constant dense<0.000000e+00> : vector<8xf32>
    %336 = vector.multi_reduction <add>, %335, %cst_115 [1] : vector<8x8xf32> to vector<8xf32>
    %337 = vector.shape_cast %336 : vector<8xf32> to vector<8x1xf32>
    %338 = tpu.reciprocal %337 {approx = true} : vector<8x1xf32> -> vector<8x1xf32>
    %339 = vector.broadcast %338 : vector<8x1xf32> to vector<8x8xf32>
    %340 = arith.mulf %335, %339 : vector<8x8xf32>
    %cst_116 = arith.constant dense<0.000000e+00> : vector<8x16xf32>
    %341 = tpu.matmul %340, %327, %cst_116 {dimension_numbers = #tpu.dot_dimension_numbers<[1], [0], [0], [1], [0, 0, 1, 1], [], []>} : vector<8x8xf32>, vector<8x16xf32>, vector<8x16xf32> -> vector<8x16xf32>
    %c0_117 = arith.constant 0 : index
    %c0_118 = arith.constant 0 : index
    %342 = vector.load %arg9[%c0_117, %c0_118] : memref<16x64xf32, #tpu.memory_space<vmem>>, vector<8x16xf32>
    tpu.vector_store %arg9[%c0_117, %c0_118], %341 {strides = array<i32>} : memref<16x64xf32, #tpu.memory_space<vmem>>, vector<8x16xf32>,
    %343 = vector.extract_strided_slice %315 {offsets = [0, 16], sizes = [8, 16], strides = [1, 1]} : vector<16x192xf32> to vector<8x16xf32>
    %344 = vector.extract_strided_slice %303 {offsets = [0, 16], sizes = [1, 16], strides = [1, 1]} : vector<1x64xf32> to vector<1x16xf32>
    %345 = vector.broadcast %344 : vector<1x16xf32> to vector<8x16xf32>
    %346 = arith.addf %343, %345 : vector<8x16xf32>
    %347 = vector.extract_strided_slice %315 {offsets = [0, 80], sizes = [8, 16], strides = [1, 1]} : vector<16x192xf32> to vector<8x16xf32>
    %348 = vector.extract_strided_slice %304 {offsets = [0, 16], sizes = [1, 16], strides = [1, 1]} : vector<1x64xf32> to vector<1x16xf32>
    %349 = vector.broadcast %348 : vector<1x16xf32> to vector<8x16xf32>
    %350 = arith.addf %347, %349 : vector<8x16xf32>
    %351 = vector.extract_strided_slice %315 {offsets = [0, 144], sizes = [8, 16], strides = [1, 1]} : vector<16x192xf32> to vector<8x16xf32>
    %352 = vector.extract_strided_slice %305 {offsets = [0, 16], sizes = [1, 16], strides = [1, 1]} : vector<1x64xf32> to vector<1x16xf32>
    %353 = vector.broadcast %352 : vector<1x16xf32> to vector<8x16xf32>
    %354 = arith.addf %351, %353 : vector<8x16xf32>
    %cst_119 = arith.constant dense<0.000000e+00> : vector<8x8xf32>
    %355 = tpu.matmul %346, %350, %cst_119 {dimension_numbers = #tpu.dot_dimension_numbers<[1], [1], [0], [0], [0, 0, 1, 0], [], []>} : vector<8x16xf32>, vector<8x16xf32>, vector<8x8xf32> -> vector<8x8xf32>
    %cst_120 = arith.constant 2.500000e-01 : f32
    %356 = vector.broadcast %cst_120 : f32 to vector<8x8xf32>
    %357 = arith.mulf %355, %356 : vector<8x8xf32>
    %cst_121 = arith.constant dense<0xFF800000> : vector<8xf32>
    %358 = vector.multi_reduction <maximumf>, %357, %cst_121 [1] : vector<8x8xf32> to vector<8xf32>
    %359 = vector.shape_cast %358 : vector<8xf32> to vector<8x1xf32>
    %360 = vector.broadcast %359 : vector<8x1xf32> to vector<8x8xf32>
    %361 = arith.subf %357, %360 : vector<8x8xf32>
    %362 = math.exp %361 : vector<8x8xf32>
    %cst_122 = arith.constant dense<0.000000e+00> : vector<8xf32>
    %363 = vector.multi_reduction <add>, %362, %cst_122 [1] : vector<8x8xf32> to vector<8xf32>
    %364 = vector.shape_cast %363 : vector<8xf32> to vector<8x1xf32>
    %365 = tpu.reciprocal %364 {approx = true} : vector<8x1xf32> -> vector<8x1xf32>
    %366 = vector.broadcast %365 : vector<8x1xf32> to vector<8x8xf32>
    %367 = arith.mulf %362, %366 : vector<8x8xf32>
    %cst_123 = arith.constant dense<0.000000e+00> : vector<8x16xf32>
    %368 = tpu.matmul %367, %354, %cst_123 {dimension_numbers = #tpu.dot_dimension_numbers<[1], [0], [0], [1], [0, 0, 1, 1], [], []>} : vector<8x8xf32>, vector<8x16xf32>, vector<8x16xf32> -> vector<8x16xf32>
    %c0_124 = arith.constant 0 : index
    %c16_125 = arith.constant 16 : index
    %369 = vector.load %arg9[%c0_124, %c16_125] : memref<16x64xf32, #tpu.memory_space<vmem>>, vector<8x16xf32>
    tpu.vector_store %arg9[%c0_124, %c16_125], %368 {strides = array<i32>} : memref<16x64xf32, #tpu.memory_space<vmem>>, vector<8x16xf32>,
    %370 = vector.extract_strided_slice %315 {offsets = [0, 32], sizes = [8, 16], strides = [1, 1]} : vector<16x192xf32> to vector<8x16xf32>
    %371 = vector.extract_strided_slice %303 {offsets = [0, 32], sizes = [1, 16], strides = [1, 1]} : vector<1x64xf32> to vector<1x16xf32>
    %372 = vector.broadcast %371 : vector<1x16xf32> to vector<8x16xf32>
    %373 = arith.addf %370, %372 : vector<8x16xf32>
    %374 = vector.extract_strided_slice %315 {offsets = [0, 96], sizes = [8, 16], strides = [1, 1]} : vector<16x192xf32> to vector<8x16xf32>
    %375 = vector.extract_strided_slice %304 {offsets = [0, 32], sizes = [1, 16], strides = [1, 1]} : vector<1x64xf32> to vector<1x16xf32>
    %376 = vector.broadcast %375 : vector<1x16xf32> to vector<8x16xf32>
    %377 = arith.addf %374, %376 : vector<8x16xf32>
    %378 = vector.extract_strided_slice %315 {offsets = [0, 160], sizes = [8, 16], strides = [1, 1]} : vector<16x192xf32> to vector<8x16xf32>
    %379 = vector.extract_strided_slice %305 {offsets = [0, 32], sizes = [1, 16], strides = [1, 1]} : vector<1x64xf32> to vector<1x16xf32>
    %380 = vector.broadcast %379 : vector<1x16xf32> to vector<8x16xf32>
    %381 = arith.addf %378, %380 : vector<8x16xf32>
    %cst_126 = arith.constant dense<0.000000e+00> : vector<8x8xf32>
    %382 = tpu.matmul %373, %377, %cst_126 {dimension_numbers = #tpu.dot_dimension_numbers<[1], [1], [0], [0], [0, 0, 1, 0], [], []>} : vector<8x16xf32>, vector<8x16xf32>, vector<8x8xf32> -> vector<8x8xf32>
    %cst_127 = arith.constant 2.500000e-01 : f32
    %383 = vector.broadcast %cst_127 : f32 to vector<8x8xf32>
    %384 = arith.mulf %382, %383 : vector<8x8xf32>
    %cst_128 = arith.constant dense<0xFF800000> : vector<8xf32>
    %385 = vector.multi_reduction <maximumf>, %384, %cst_128 [1] : vector<8x8xf32> to vector<8xf32>
    %386 = vector.shape_cast %385 : vector<8xf32> to vector<8x1xf32>
    %387 = vector.broadcast %386 : vector<8x1xf32> to vector<8x8xf32>
    %388 = arith.subf %384, %387 : vector<8x8xf32>
    %389 = math.exp %388 : vector<8x8xf32>
    %cst_129 = arith.constant dense<0.000000e+00> : vector<8xf32>
    %390 = vector.multi_reduction <add>, %389, %cst_129 [1] : vector<8x8xf32> to vector<8xf32>
    %391 = vector.shape_cast %390 : vector<8xf32> to vector<8x1xf32>
    %392 = tpu.reciprocal %391 {approx = true} : vector<8x1xf32> -> vector<8x1xf32>
    %393 = vector.broadcast %392 : vector<8x1xf32> to vector<8x8xf32>
    %394 = arith.mulf %389, %393 : vector<8x8xf32>
    %cst_130 = arith.constant dense<0.000000e+00> : vector<8x16xf32>
    %395 = tpu.matmul %394, %381, %cst_130 {dimension_numbers = #tpu.dot_dimension_numbers<[1], [0], [0], [1], [0, 0, 1, 1], [], []>} : vector<8x8xf32>, vector<8x16xf32>, vector<8x16xf32> -> vector<8x16xf32>
    %c0_131 = arith.constant 0 : index
    %c32_132 = arith.constant 32 : index
    %396 = vector.load %arg9[%c0_131, %c32_132] : memref<16x64xf32, #tpu.memory_space<vmem>>, vector<8x16xf32>
    tpu.vector_store %arg9[%c0_131, %c32_132], %395 {strides = array<i32>} : memref<16x64xf32, #tpu.memory_space<vmem>>, vector<8x16xf32>,
    %397 = vector.extract_strided_slice %315 {offsets = [0, 48], sizes = [8, 16], strides = [1, 1]} : vector<16x192xf32> to vector<8x16xf32>
    %398 = vector.extract_strided_slice %303 {offsets = [0, 48], sizes = [1, 16], strides = [1, 1]} : vector<1x64xf32> to vector<1x16xf32>
    %399 = vector.broadcast %398 : vector<1x16xf32> to vector<8x16xf32>
    %400 = arith.addf %397, %399 : vector<8x16xf32>
    %401 = vector.extract_strided_slice %315 {offsets = [0, 112], sizes = [8, 16], strides = [1, 1]} : vector<16x192xf32> to vector<8x16xf32>
    %402 = vector.extract_strided_slice %304 {offsets = [0, 48], sizes = [1, 16], strides = [1, 1]} : vector<1x64xf32> to vector<1x16xf32>
    %403 = vector.broadcast %402 : vector<1x16xf32> to vector<8x16xf32>
    %404 = arith.addf %401, %403 : vector<8x16xf32>
    %405 = vector.extract_strided_slice %315 {offsets = [0, 176], sizes = [8, 16], strides = [1, 1]} : vector<16x192xf32> to vector<8x16xf32>
    %406 = vector.extract_strided_slice %305 {offsets = [0, 48], sizes = [1, 16], strides = [1, 1]} : vector<1x64xf32> to vector<1x16xf32>
    %407 = vector.broadcast %406 : vector<1x16xf32> to vector<8x16xf32>
    %408 = arith.addf %405, %407 : vector<8x16xf32>
    %cst_133 = arith.constant dense<0.000000e+00> : vector<8x8xf32>
    %409 = tpu.matmul %400, %404, %cst_133 {dimension_numbers = #tpu.dot_dimension_numbers<[1], [1], [0], [0], [0, 0, 1, 0], [], []>} : vector<8x16xf32>, vector<8x16xf32>, vector<8x8xf32> -> vector<8x8xf32>
    %cst_134 = arith.constant 2.500000e-01 : f32
    %410 = vector.broadcast %cst_134 : f32 to vector<8x8xf32>
    %411 = arith.mulf %409, %410 : vector<8x8xf32>
    %cst_135 = arith.constant dense<0xFF800000> : vector<8xf32>
    %412 = vector.multi_reduction <maximumf>, %411, %cst_135 [1] : vector<8x8xf32> to vector<8xf32>
    %413 = vector.shape_cast %412 : vector<8xf32> to vector<8x1xf32>
    %414 = vector.broadcast %413 : vector<8x1xf32> to vector<8x8xf32>
    %415 = arith.subf %411, %414 : vector<8x8xf32>
    %416 = math.exp %415 : vector<8x8xf32>
    %cst_136 = arith.constant dense<0.000000e+00> : vector<8xf32>
    %417 = vector.multi_reduction <add>, %416, %cst_136 [1] : vector<8x8xf32> to vector<8xf32>
    %418 = vector.shape_cast %417 : vector<8xf32> to vector<8x1xf32>
    %419 = tpu.reciprocal %418 {approx = true} : vector<8x1xf32> -> vector<8x1xf32>
    %420 = vector.broadcast %419 : vector<8x1xf32> to vector<8x8xf32>
    %421 = arith.mulf %416, %420 : vector<8x8xf32>
    %cst_137 = arith.constant dense<0.000000e+00> : vector<8x16xf32>
    %422 = tpu.matmul %421, %408, %cst_137 {dimension_numbers = #tpu.dot_dimension_numbers<[1], [0], [0], [1], [0, 0, 1, 1], [], []>} : vector<8x8xf32>, vector<8x16xf32>, vector<8x16xf32> -> vector<8x16xf32>
    %c0_138 = arith.constant 0 : index
    %c48_139 = arith.constant 48 : index
    %423 = vector.load %arg9[%c0_138, %c48_139] : memref<16x64xf32, #tpu.memory_space<vmem>>, vector<8x16xf32>
    tpu.vector_store %arg9[%c0_138, %c48_139], %422 {strides = array<i32>} : memref<16x64xf32, #tpu.memory_space<vmem>>, vector<8x16xf32>,
    %424 = vector.extract_strided_slice %315 {offsets = [8, 0], sizes = [8, 16], strides = [1, 1]} : vector<16x192xf32> to vector<8x16xf32>
    %425 = vector.extract_strided_slice %303 {offsets = [0, 0], sizes = [1, 16], strides = [1, 1]} : vector<1x64xf32> to vector<1x16xf32>
    %426 = vector.broadcast %425 : vector<1x16xf32> to vector<8x16xf32>
    %427 = arith.addf %424, %426 : vector<8x16xf32>
    %428 = vector.extract_strided_slice %315 {offsets = [8, 64], sizes = [8, 16], strides = [1, 1]} : vector<16x192xf32> to vector<8x16xf32>
    %429 = vector.extract_strided_slice %304 {offsets = [0, 0], sizes = [1, 16], strides = [1, 1]} : vector<1x64xf32> to vector<1x16xf32>
    %430 = vector.broadcast %429 : vector<1x16xf32> to vector<8x16xf32>
    %431 = arith.addf %428, %430 : vector<8x16xf32>
    %432 = vector.extract_strided_slice %315 {offsets = [8, 128], sizes = [8, 16], strides = [1, 1]} : vector<16x192xf32> to vector<8x16xf32>
    %433 = vector.extract_strided_slice %305 {offsets = [0, 0], sizes = [1, 16], strides = [1, 1]} : vector<1x64xf32> to vector<1x16xf32>
    %434 = vector.broadcast %433 : vector<1x16xf32> to vector<8x16xf32>
    %435 = arith.addf %432, %434 : vector<8x16xf32>
    %cst_140 = arith.constant dense<0.000000e+00> : vector<8x8xf32>
    %436 = tpu.matmul %427, %431, %cst_140 {dimension_numbers = #tpu.dot_dimension_numbers<[1], [1], [0], [0], [0, 0, 1, 0], [], []>} : vector<8x16xf32>, vector<8x16xf32>, vector<8x8xf32> -> vector<8x8xf32>
    %cst_141 = arith.constant 2.500000e-01 : f32
    %437 = vector.broadcast %cst_141 : f32 to vector<8x8xf32>
    %438 = arith.mulf %436, %437 : vector<8x8xf32>
    %cst_142 = arith.constant dense<0xFF800000> : vector<8xf32>
    %439 = vector.multi_reduction <maximumf>, %438, %cst_142 [1] : vector<8x8xf32> to vector<8xf32>
    %440 = vector.shape_cast %439 : vector<8xf32> to vector<8x1xf32>
    %441 = vector.broadcast %440 : vector<8x1xf32> to vector<8x8xf32>
    %442 = arith.subf %438, %441 : vector<8x8xf32>
    %443 = math.exp %442 : vector<8x8xf32>
    %cst_143 = arith.constant dense<0.000000e+00> : vector<8xf32>
    %444 = vector.multi_reduction <add>, %443, %cst_143 [1] : vector<8x8xf32> to vector<8xf32>
    %445 = vector.shape_cast %444 : vector<8xf32> to vector<8x1xf32>
    %446 = tpu.reciprocal %445 {approx = true} : vector<8x1xf32> -> vector<8x1xf32>
    %447 = vector.broadcast %446 : vector<8x1xf32> to vector<8x8xf32>
    %448 = arith.mulf %443, %447 : vector<8x8xf32>
    %cst_144 = arith.constant dense<0.000000e+00> : vector<8x16xf32>
    %449 = tpu.matmul %448, %435, %cst_144 {dimension_numbers = #tpu.dot_dimension_numbers<[1], [0], [0], [1], [0, 0, 1, 1], [], []>} : vector<8x8xf32>, vector<8x16xf32>, vector<8x16xf32> -> vector<8x16xf32>
    %c8_145 = arith.constant 8 : index
    %c0_146 = arith.constant 0 : index
    %450 = vector.load %arg9[%c8_145, %c0_146] : memref<16x64xf32, #tpu.memory_space<vmem>>, vector<8x16xf32>
    tpu.vector_store %arg9[%c8_145, %c0_146], %449 {strides = array<i32>} : memref<16x64xf32, #tpu.memory_space<vmem>>, vector<8x16xf32>,
    %451 = vector.extract_strided_slice %315 {offsets = [8, 16], sizes = [8, 16], strides = [1, 1]} : vector<16x192xf32> to vector<8x16xf32>
    %452 = vector.extract_strided_slice %303 {offsets = [0, 16], sizes = [1, 16], strides = [1, 1]} : vector<1x64xf32> to vector<1x16xf32>
    %453 = vector.broadcast %452 : vector<1x16xf32> to vector<8x16xf32>
    %454 = arith.addf %451, %453 : vector<8x16xf32>
    %455 = vector.extract_strided_slice %315 {offsets = [8, 80], sizes = [8, 16], strides = [1, 1]} : vector<16x192xf32> to vector<8x16xf32>
    %456 = vector.extract_strided_slice %304 {offsets = [0, 16], sizes = [1, 16], strides = [1, 1]} : vector<1x64xf32> to vector<1x16xf32>
    %457 = vector.broadcast %456 : vector<1x16xf32> to vector<8x16xf32>
    %458 = arith.addf %455, %457 : vector<8x16xf32>
    %459 = vector.extract_strided_slice %315 {offsets = [8, 144], sizes = [8, 16], strides = [1, 1]} : vector<16x192xf32> to vector<8x16xf32>
    %460 = vector.extract_strided_slice %305 {offsets = [0, 16], sizes = [1, 16], strides = [1, 1]} : vector<1x64xf32> to vector<1x16xf32>
    %461 = vector.broadcast %460 : vector<1x16xf32> to vector<8x16xf32>
    %462 = arith.addf %459, %461 : vector<8x16xf32>
    %cst_147 = arith.constant dense<0.000000e+00> : vector<8x8xf32>
    %463 = tpu.matmul %454, %458, %cst_147 {dimension_numbers = #tpu.dot_dimension_numbers<[1], [1], [0], [0], [0, 0, 1, 0], [], []>} : vector<8x16xf32>, vector<8x16xf32>, vector<8x8xf32> -> vector<8x8xf32>
    %cst_148 = arith.constant 2.500000e-01 : f32
    %464 = vector.broadcast %cst_148 : f32 to vector<8x8xf32>
    %465 = arith.mulf %463, %464 : vector<8x8xf32>
    %cst_149 = arith.constant dense<0xFF800000> : vector<8xf32>
    %466 = vector.multi_reduction <maximumf>, %465, %cst_149 [1] : vector<8x8xf32> to vector<8xf32>
    %467 = vector.shape_cast %466 : vector<8xf32> to vector<8x1xf32>
    %468 = vector.broadcast %467 : vector<8x1xf32> to vector<8x8xf32>
    %469 = arith.subf %465, %468 : vector<8x8xf32>
    %470 = math.exp %469 : vector<8x8xf32>
    %cst_150 = arith.constant dense<0.000000e+00> : vector<8xf32>
    %471 = vector.multi_reduction <add>, %470, %cst_150 [1] : vector<8x8xf32> to vector<8xf32>
    %472 = vector.shape_cast %471 : vector<8xf32> to vector<8x1xf32>
    %473 = tpu.reciprocal %472 {approx = true} : vector<8x1xf32> -> vector<8x1xf32>
    %474 = vector.broadcast %473 : vector<8x1xf32> to vector<8x8xf32>
    %475 = arith.mulf %470, %474 : vector<8x8xf32>
    %cst_151 = arith.constant dense<0.000000e+00> : vector<8x16xf32>
    %476 = tpu.matmul %475, %462, %cst_151 {dimension_numbers = #tpu.dot_dimension_numbers<[1], [0], [0], [1], [0, 0, 1, 1], [], []>} : vector<8x8xf32>, vector<8x16xf32>, vector<8x16xf32> -> vector<8x16xf32>
    %c8_152 = arith.constant 8 : index
    %c16_153 = arith.constant 16 : index
    %477 = vector.load %arg9[%c8_152, %c16_153] : memref<16x64xf32, #tpu.memory_space<vmem>>, vector<8x16xf32>
    tpu.vector_store %arg9[%c8_152, %c16_153], %476 {strides = array<i32>} : memref<16x64xf32, #tpu.memory_space<vmem>>, vector<8x16xf32>,
    %478 = vector.extract_strided_slice %315 {offsets = [8, 32], sizes = [8, 16], strides = [1, 1]} : vector<16x192xf32> to vector<8x16xf32>
    %479 = vector.extract_strided_slice %303 {offsets = [0, 32], sizes = [1, 16], strides = [1, 1]} : vector<1x64xf32> to vector<1x16xf32>
    %480 = vector.broadcast %479 : vector<1x16xf32> to vector<8x16xf32>
    %481 = arith.addf %478, %480 : vector<8x16xf32>
    %482 = vector.extract_strided_slice %315 {offsets = [8, 96], sizes = [8, 16], strides = [1, 1]} : vector<16x192xf32> to vector<8x16xf32>
    %483 = vector.extract_strided_slice %304 {offsets = [0, 32], sizes = [1, 16], strides = [1, 1]} : vector<1x64xf32> to vector<1x16xf32>
    %484 = vector.broadcast %483 : vector<1x16xf32> to vector<8x16xf32>
    %485 = arith.addf %482, %484 : vector<8x16xf32>
    %486 = vector.extract_strided_slice %315 {offsets = [8, 160], sizes = [8, 16], strides = [1, 1]} : vector<16x192xf32> to vector<8x16xf32>
    %487 = vector.extract_strided_slice %305 {offsets = [0, 32], sizes = [1, 16], strides = [1, 1]} : vector<1x64xf32> to vector<1x16xf32>
    %488 = vector.broadcast %487 : vector<1x16xf32> to vector<8x16xf32>
    %489 = arith.addf %486, %488 : vector<8x16xf32>
    %cst_154 = arith.constant dense<0.000000e+00> : vector<8x8xf32>
    %490 = tpu.matmul %481, %485, %cst_154 {dimension_numbers = #tpu.dot_dimension_numbers<[1], [1], [0], [0], [0, 0, 1, 0], [], []>} : vector<8x16xf32>, vector<8x16xf32>, vector<8x8xf32> -> vector<8x8xf32>
    %cst_155 = arith.constant 2.500000e-01 : f32
    %491 = vector.broadcast %cst_155 : f32 to vector<8x8xf32>
    %492 = arith.mulf %490, %491 : vector<8x8xf32>
    %cst_156 = arith.constant dense<0xFF800000> : vector<8xf32>
    %493 = vector.multi_reduction <maximumf>, %492, %cst_156 [1] : vector<8x8xf32> to vector<8xf32>
    %494 = vector.shape_cast %493 : vector<8xf32> to vector<8x1xf32>
    %495 = vector.broadcast %494 : vector<8x1xf32> to vector<8x8xf32>
    %496 = arith.subf %492, %495 : vector<8x8xf32>
    %497 = math.exp %496 : vector<8x8xf32>
    %cst_157 = arith.constant dense<0.000000e+00> : vector<8xf32>
    %498 = vector.multi_reduction <add>, %497, %cst_157 [1] : vector<8x8xf32> to vector<8xf32>
    %499 = vector.shape_cast %498 : vector<8xf32> to vector<8x1xf32>
    %500 = tpu.reciprocal %499 {approx = true} : vector<8x1xf32> -> vector<8x1xf32>
    %501 = vector.broadcast %500 : vector<8x1xf32> to vector<8x8xf32>
    %502 = arith.mulf %497, %501 : vector<8x8xf32>
    %cst_158 = arith.constant dense<0.000000e+00> : vector<8x16xf32>
    %503 = tpu.matmul %502, %489, %cst_158 {dimension_numbers = #tpu.dot_dimension_numbers<[1], [0], [0], [1], [0, 0, 1, 1], [], []>} : vector<8x8xf32>, vector<8x16xf32>, vector<8x16xf32> -> vector<8x16xf32>
    %c8_159 = arith.constant 8 : index
    %c32_160 = arith.constant 32 : index
    %504 = vector.load %arg9[%c8_159, %c32_160] : memref<16x64xf32, #tpu.memory_space<vmem>>, vector<8x16xf32>
    tpu.vector_store %arg9[%c8_159, %c32_160], %503 {strides = array<i32>} : memref<16x64xf32, #tpu.memory_space<vmem>>, vector<8x16xf32>,
    %505 = vector.extract_strided_slice %315 {offsets = [8, 48], sizes = [8, 16], strides = [1, 1]} : vector<16x192xf32> to vector<8x16xf32>
    %506 = vector.extract_strided_slice %303 {offsets = [0, 48], sizes = [1, 16], strides = [1, 1]} : vector<1x64xf32> to vector<1x16xf32>
    %507 = vector.broadcast %506 : vector<1x16xf32> to vector<8x16xf32>
    %508 = arith.addf %505, %507 : vector<8x16xf32>
    %509 = vector.extract_strided_slice %315 {offsets = [8, 112], sizes = [8, 16], strides = [1, 1]} : vector<16x192xf32> to vector<8x16xf32>
    %510 = vector.extract_strided_slice %304 {offsets = [0, 48], sizes = [1, 16], strides = [1, 1]} : vector<1x64xf32> to vector<1x16xf32>
    %511 = vector.broadcast %510 : vector<1x16xf32> to vector<8x16xf32>
    %512 = arith.addf %509, %511 : vector<8x16xf32>
    %513 = vector.extract_strided_slice %315 {offsets = [8, 176], sizes = [8, 16], strides = [1, 1]} : vector<16x192xf32> to vector<8x16xf32>
    %514 = vector.extract_strided_slice %305 {offsets = [0, 48], sizes = [1, 16], strides = [1, 1]} : vector<1x64xf32> to vector<1x16xf32>
    %515 = vector.broadcast %514 : vector<1x16xf32> to vector<8x16xf32>
    %516 = arith.addf %513, %515 : vector<8x16xf32>
    %cst_161 = arith.constant dense<0.000000e+00> : vector<8x8xf32>
    %517 = tpu.matmul %508, %512, %cst_161 {dimension_numbers = #tpu.dot_dimension_numbers<[1], [1], [0], [0], [0, 0, 1, 0], [], []>} : vector<8x16xf32>, vector<8x16xf32>, vector<8x8xf32> -> vector<8x8xf32>
    %cst_162 = arith.constant 2.500000e-01 : f32
    %518 = vector.broadcast %cst_162 : f32 to vector<8x8xf32>
    %519 = arith.mulf %517, %518 : vector<8x8xf32>
    %cst_163 = arith.constant dense<0xFF800000> : vector<8xf32>
    %520 = vector.multi_reduction <maximumf>, %519, %cst_163 [1] : vector<8x8xf32> to vector<8xf32>
    %521 = vector.shape_cast %520 : vector<8xf32> to vector<8x1xf32>
    %522 = vector.broadcast %521 : vector<8x1xf32> to vector<8x8xf32>
    %523 = arith.subf %519, %522 : vector<8x8xf32>
    %524 = math.exp %523 : vector<8x8xf32>
    %cst_164 = arith.constant dense<0.000000e+00> : vector<8xf32>
    %525 = vector.multi_reduction <add>, %524, %cst_164 [1] : vector<8x8xf32> to vector<8xf32>
    %526 = vector.shape_cast %525 : vector<8xf32> to vector<8x1xf32>
    %527 = tpu.reciprocal %526 {approx = true} : vector<8x1xf32> -> vector<8x1xf32>
    %528 = vector.broadcast %527 : vector<8x1xf32> to vector<8x8xf32>
    %529 = arith.mulf %524, %528 : vector<8x8xf32>
    %cst_165 = arith.constant dense<0.000000e+00> : vector<8x16xf32>
    %530 = tpu.matmul %529, %516, %cst_165 {dimension_numbers = #tpu.dot_dimension_numbers<[1], [0], [0], [1], [0, 0, 1, 1], [], []>} : vector<8x8xf32>, vector<8x16xf32>, vector<8x16xf32> -> vector<8x16xf32>
    %c8_166 = arith.constant 8 : index
    %c48_167 = arith.constant 48 : index
    %531 = vector.load %arg9[%c8_166, %c48_167] : memref<16x64xf32, #tpu.memory_space<vmem>>, vector<8x16xf32>
    tpu.vector_store %arg9[%c8_166, %c48_167], %530 {strides = array<i32>} : memref<16x64xf32, #tpu.memory_space<vmem>>, vector<8x16xf32>,
    %c0_168 = arith.constant 0 : index
    %c0_169 = arith.constant 0 : index
    %532 = vector.load %arg9[%c0_168, %c0_169] : memref<16x64xf32, #tpu.memory_space<vmem>>, vector<16x64xf32>
    %533 = arith.truncf %532 : vector<16x64xf32> to vector<16x64xbf16>
    %c1_170 = arith.constant 1 : index
    %c0_171 = arith.constant 0 : index
    %c0_172 = arith.constant 0 : index
    %534 = vector.load %arg3[%c1_170, %c0_171, %c0_172] : memref<2x64x64xbf16, #tpu.memory_space<vmem>>, vector<1x64x64xbf16>
    %535 = vector.shape_cast %534 : vector<1x64x64xbf16> to vector<64x64xbf16>
    %cst_173 = arith.constant dense<0.000000e+00> : vector<16x64xf32>
    %536 = tpu.matmul %533, %535, %cst_173 {dimension_numbers = #tpu.dot_dimension_numbers<[1], [0], [0], [1], [0, 0, 1, 1], [], []>} : vector<16x64xbf16>, vector<64x64xbf16>, vector<16x64xf32> -> vector<16x64xf32>
    %537 = vector.broadcast %306 : vector<1x64xf32> to vector<16x64xf32>
    %538 = arith.addf %536, %537 : vector<16x64xf32>
    %539 = arith.addf %302, %538 : vector<16x64xf32>
    %cst_174 = arith.constant dense<0.000000e+00> : vector<16xf32>
    %540 = vector.multi_reduction <add>, %539, %cst_174 [1] : vector<16x64xf32> to vector<16xf32>
    %541 = vector.shape_cast %540 : vector<16xf32> to vector<16x1xf32>
    %cst_175 = arith.constant 6.400000e+01 : f32
    %542 = vector.broadcast %cst_175 : f32 to vector<16x1xf32>
    %543 = arith.divf %541, %542 : vector<16x1xf32>
    %544 = vector.broadcast %543 : vector<16x1xf32> to vector<16x64xf32>
    %545 = arith.subf %539, %544 : vector<16x64xf32>
    %546 = arith.mulf %545, %545 : vector<16x64xf32>
    %cst_176 = arith.constant dense<0.000000e+00> : vector<16xf32>
    %547 = vector.multi_reduction <add>, %546, %cst_176 [1] : vector<16x64xf32> to vector<16xf32>
    %548 = vector.shape_cast %547 : vector<16xf32> to vector<16x1xf32>
    %cst_177 = arith.constant 6.400000e+01 : f32
    %549 = vector.broadcast %cst_177 : f32 to vector<16x1xf32>
    %550 = arith.divf %548, %549 : vector<16x1xf32>
    %551 = vector.broadcast %543 : vector<16x1xf32> to vector<16x64xf32>
    %552 = arith.subf %539, %551 : vector<16x64xf32>
    %cst_178 = arith.constant 9.99999974E-6 : f32
    %553 = vector.broadcast %cst_178 : f32 to vector<16x1xf32>
    %554 = arith.addf %550, %553 : vector<16x1xf32>
    %555 = math.rsqrt %554 : vector<16x1xf32>
    %556 = vector.broadcast %555 : vector<16x1xf32> to vector<16x64xf32>
    %557 = arith.mulf %552, %556 : vector<16x64xf32>
    %558 = vector.broadcast %307 : vector<1x64xf32> to vector<16x64xf32>
    %559 = arith.mulf %557, %558 : vector<16x64xf32>
    %560 = vector.broadcast %308 : vector<1x64xf32> to vector<16x64xf32>
    %561 = arith.addf %559, %560 : vector<16x64xf32>
    %562 = arith.truncf %561 : vector<16x64xf32> to vector<16x64xbf16>
    %c1_179 = arith.constant 1 : index
    %c0_180 = arith.constant 0 : index
    %c0_181 = arith.constant 0 : index
    %563 = vector.load %arg4[%c1_179, %c0_180, %c0_181] : memref<2x64x2048xbf16, #tpu.memory_space<vmem>>, vector<1x64x2048xbf16>
    %564 = vector.shape_cast %563 : vector<1x64x2048xbf16> to vector<64x2048xbf16>
    %cst_182 = arith.constant dense<0.000000e+00> : vector<16x2048xf32>
    %565 = tpu.matmul %562, %564, %cst_182 {dimension_numbers = #tpu.dot_dimension_numbers<[1], [0], [0], [1], [0, 0, 1, 1], [], []>} : vector<16x64xbf16>, vector<64x2048xbf16>, vector<16x2048xf32> -> vector<16x2048xf32>
    %c1_183 = arith.constant 1 : index
    %c0_184 = arith.constant 0 : index
    %c0_185 = arith.constant 0 : index
    %566 = vector.load %arg5[%c1_183, %c0_184, %c0_185] : memref<2x1x2048xf32, #tpu.memory_space<vmem>>, vector<1x1x2048xf32>
    %567 = vector.shape_cast %566 : vector<1x1x2048xf32> to vector<1x2048xf32>
    %568 = vector.broadcast %567 : vector<1x2048xf32> to vector<16x2048xf32>
    %569 = arith.addf %565, %568 : vector<16x2048xf32>
    %cst_186 = arith.constant 0.000000e+00 : f32
    %570 = vector.broadcast %cst_186 : f32 to vector<16x2048xf32>
    %571 = arith.maximumf %569, %570 : vector<16x2048xf32>
    %572 = arith.truncf %571 : vector<16x2048xf32> to vector<16x2048xbf16>
    %c1_187 = arith.constant 1 : index
    %c0_188 = arith.constant 0 : index
    %c0_189 = arith.constant 0 : index
    %573 = vector.load %arg6[%c1_187, %c0_188, %c0_189] : memref<2x2048x64xbf16, #tpu.memory_space<vmem>>, vector<1x2048x64xbf16>
    %574 = vector.shape_cast %573 : vector<1x2048x64xbf16> to vector<2048x64xbf16>
    %cst_190 = arith.constant dense<0.000000e+00> : vector<16x64xf32>
    %575 = tpu.matmul %572, %574, %cst_190 {dimension_numbers = #tpu.dot_dimension_numbers<[1], [0], [0], [1], [0, 0, 1, 1], [], []>} : vector<16x2048xbf16>, vector<2048x64xbf16>, vector<16x64xf32> -> vector<16x64xf32>
    %576 = vector.broadcast %309 : vector<1x64xf32> to vector<16x64xf32>
    %577 = arith.addf %575, %576 : vector<16x64xf32>
    %578 = arith.addf %561, %577 : vector<16x64xf32>
    %cst_191 = arith.constant dense<0.000000e+00> : vector<16xf32>
    %579 = vector.multi_reduction <add>, %578, %cst_191 [1] : vector<16x64xf32> to vector<16xf32>
    %580 = vector.shape_cast %579 : vector<16xf32> to vector<16x1xf32>
    %cst_192 = arith.constant 6.400000e+01 : f32
    %581 = vector.broadcast %cst_192 : f32 to vector<16x1xf32>
    %582 = arith.divf %580, %581 : vector<16x1xf32>
    %583 = vector.broadcast %582 : vector<16x1xf32> to vector<16x64xf32>
    %584 = arith.subf %578, %583 : vector<16x64xf32>
    %585 = arith.mulf %584, %584 : vector<16x64xf32>
    %cst_193 = arith.constant dense<0.000000e+00> : vector<16xf32>
    %586 = vector.multi_reduction <add>, %585, %cst_193 [1] : vector<16x64xf32> to vector<16xf32>
    %587 = vector.shape_cast %586 : vector<16xf32> to vector<16x1xf32>
    %cst_194 = arith.constant 6.400000e+01 : f32
    %588 = vector.broadcast %cst_194 : f32 to vector<16x1xf32>
    %589 = arith.divf %587, %588 : vector<16x1xf32>
    %590 = vector.broadcast %582 : vector<16x1xf32> to vector<16x64xf32>
    %591 = arith.subf %578, %590 : vector<16x64xf32>
    %cst_195 = arith.constant 9.99999974E-6 : f32
    %592 = vector.broadcast %cst_195 : f32 to vector<16x1xf32>
    %593 = arith.addf %589, %592 : vector<16x1xf32>
    %594 = math.rsqrt %593 : vector<16x1xf32>
    %595 = vector.broadcast %594 : vector<16x1xf32> to vector<16x64xf32>
    %596 = arith.mulf %591, %595 : vector<16x64xf32>
    %597 = vector.broadcast %310 : vector<1x64xf32> to vector<16x64xf32>
    %598 = arith.mulf %596, %597 : vector<16x64xf32>
    %599 = vector.broadcast %311 : vector<1x64xf32> to vector<16x64xf32>
    %600 = arith.addf %598, %599 : vector<16x64xf32>
    %601 = vector.extract_strided_slice %600 {offsets = [7, 0], sizes = [1, 64], strides = [1, 1]} : vector<16x64xf32> to vector<1x64xf32>
    %602 = vector.extract_strided_slice %600 {offsets = [15, 0], sizes = [1, 64], strides = [1, 1]} : vector<16x64xf32> to vector<1x64xf32>
    %603 = tpu.concatenate %601, %602 in 0 : vector<1x64xf32>, vector<1x64xf32> -> vector<2x64xf32>
    %c48_196 = arith.constant 48 : index
    %c0_197 = arith.constant 0 : index
    %604 = vector.load %arg7[%c48_196, %c0_197] : memref<192x128xf32, #tpu.memory_space<vmem>>, vector<64x64xf32>
    %c112 = arith.constant 112 : index
    %c0_198 = arith.constant 0 : index
    %605 = vector.load %arg7[%c112, %c0_198] : memref<192x128xf32, #tpu.memory_space<vmem>>, vector<1x64xf32>
    %c120 = arith.constant 120 : index
    %c0_199 = arith.constant 0 : index
    %606 = vector.load %arg7[%c120, %c0_199] : memref<192x128xf32, #tpu.memory_space<vmem>>, vector<64x128xf32>
    %c184 = arith.constant 184 : index
    %c0_200 = arith.constant 0 : index
    %607 = vector.load %arg7[%c184, %c0_200] : memref<192x128xf32, #tpu.memory_space<vmem>>, vector<1x128xf32>
    %cst_201 = arith.constant dense<0.000000e+00> : vector<2x64xf32>
    %608 = tpu.matmul %603, %604, %cst_201 {dimension_numbers = #tpu.dot_dimension_numbers<[1], [0], [0], [1], [0, 0, 1, 1], [], []>} : vector<2x64xf32>, vector<64x64xf32>, vector<2x64xf32> -> vector<2x64xf32>
    %609 = vector.broadcast %605 : vector<1x64xf32> to vector<2x64xf32>
    %610 = arith.addf %608, %609 : vector<2x64xf32>
    %cst_202 = arith.constant 0.000000e+00 : f32
    %611 = vector.broadcast %cst_202 : f32 to vector<2x64xf32>
    %612 = arith.maximumf %610, %611 : vector<2x64xf32>
    %cst_203 = arith.constant dense<0.000000e+00> : vector<2x128xf32>
    %613 = tpu.matmul %612, %606, %cst_203 {dimension_numbers = #tpu.dot_dimension_numbers<[1], [0], [0], [1], [0, 0, 1, 1], [], []>} : vector<2x64xf32>, vector<64x128xf32>, vector<2x128xf32> -> vector<2x128xf32>
    %614 = vector.broadcast %607 : vector<1x128xf32> to vector<2x128xf32>
    %615 = arith.addf %613, %614 : vector<2x128xf32>
    %cst_204 = arith.constant 0.000000e+00 : f32
    %616 = vector.broadcast %cst_204 : f32 to vector<2x128xf32>
    %617 = arith.subf %616, %615 : vector<2x128xf32>
    %618 = math.exp %617 : vector<2x128xf32>
    %cst_205 = arith.constant 1.000000e+00 : f32
    %619 = vector.broadcast %cst_205 : f32 to vector<2x128xf32>
    %620 = arith.addf %619, %618 : vector<2x128xf32>
    %cst_206 = arith.constant 1.000000e+00 : f32
    %621 = vector.broadcast %cst_206 : f32 to vector<2x128xf32>
    %622 = arith.divf %621, %620 : vector<2x128xf32>
    %c0_207 = arith.constant 0 : index
    %c0_208 = arith.constant 0 : index
    %623 = vector.load %arg8[%c0_207, %c0_208] : memref<2x128xf32, #tpu.memory_space<vmem>>, vector<2x128xf32>
    tpu.vector_store %arg8[%c0_207, %c0_208], %622 {strides = array<i32>} : memref<2x128xf32, #tpu.memory_space<vmem>>, vector<2x128xf32>,
    return
  }
}

</mosaic_0001>

<llo_original>
// kernel: pallas_forward.1
$region0: #{pallas_forward.1}
  #allocation0 [shape = 'u32[]', space=smem, size = 0x4, offset = 0x4, fixed_abs, tag = 'smem constant byte address 0x4 - core index']
  #allocation1 [shape = 'u32[144,128]{1,0:T(1,128)}', space=vmem, size = 0x12000, scoped, tag = 'internal scratch']
  #allocation2 [shape = 'f32[16,64]{1,0:T(8,128)}', space=vmem, size = 0x2000, scoped, tag = 'scratch operand']
  %s0 = inlined_call_operand.vmem [shape: f32[16,16], index: 0, kind: input, shape index: {}]
  %s1 = inlined_call_operand.vmem [shape: f32[16,64], index: 1, kind: input, shape index: {}]
  %s2 = inlined_call_operand.vmem [shape: bf16[2,64,192], index: 2, kind: input, shape index: {}]
  %s3 = inlined_call_operand.vmem [shape: bf16[2,64,64], index: 3, kind: input, shape index: {}]
  %s4 = inlined_call_operand.vmem [shape: bf16[2,64,2048], index: 4, kind: input, shape index: {}]
  %s5 = inlined_call_operand.vmem [shape: f32[2,1,2048], index: 5, kind: input, shape index: {}]
  %s6 = inlined_call_operand.vmem [shape: bf16[2,2048,64], index: 6, kind: input, shape index: {}]
  %s7 = inlined_call_operand.vmem [shape: f32[192,128], index: 7, kind: input, shape index: {}]
  %s8 = inlined_call_operand.hbm [shape: f32[2,128], index: 8, kind: output, shape index: {}]
  %s9 = sld [smem:[#allocation0]]
  $region42: #{pallas_forward.1} parent=0
    _
  %s11 = ssub.s32 1, %s9
  %s12 = scalar_select 0, %s11, %s9
  $region1: #{pallas_forward.1} parent=0
    #allocation3 [shape = 'u8[1024]{0}', space=vmem, size = 0x400, scoped, tag = 'output window, operand 0, single buffered']
    #allocation4 [shape = 's32[1]{0}', space=sflag, size = 0x4, scoped, tag = 'scoped memory for pallas_forward.1']
    %13 = vsyncpa [#allocation4], 0
    // Predicated region
    $region2: #{pallas_forward.1} parent=1 // pred_check
      _
    $region3: #{pallas_forward.1} parent=1 // pred_check_branch
      %15 = sbr.rel (0) target = $region5
    $region4: #{pallas_forward.1} parent=1 // pred_region
      _
    $region5: #{pallas_forward.1} parent=1 // pred_fallthru
      _
    // Predicated region
    $region6: #{pallas_forward.1} parent=1 // pred_check
      _
    $region7: #{pallas_forward.1} parent=1 // pred_check_branch
      %17 = sbr.rel (0) target = $region9
    $region8: #{pallas_forward.1} parent=1 // pred_region
      _
    $region9: #{pallas_forward.1} parent=1 // pred_fallthru
      _
    // Predicated region
    $region10: #{pallas_forward.1} parent=1 // pred_check
      _
    $region11: #{pallas_forward.1} parent=1 // pred_check_branch
      %19 = sbr.rel (0) target = $region13
    $region12: #{pallas_forward.1} parent=1 // pred_region
      _
    $region13: #{pallas_forward.1} parent=1 // pred_fallthru
      _
    // Predicated region
    $region14: #{pallas_forward.1} parent=1 // pred_check
      _
    $region15: #{pallas_forward.1} parent=1 // pred_check_branch
      %21 = sbr.rel (0) target = $region17
    $region16: #{pallas_forward.1} parent=1 // pred_region
      _
    $region17: #{pallas_forward.1} parent=1 // pred_fallthru
      _
    // Predicated region
    $region18: #{pallas_forward.1} parent=1 // pred_check
      _
    $region19: #{pallas_forward.1} parent=1 // pred_check_branch
      %23 = sbr.rel (0) target = $region21
    $region20: #{pallas_forward.1} parent=1 // pred_region
      _
    $region21: #{pallas_forward.1} parent=1 // pred_fallthru
      _
    // Predicated region
    $region22: #{pallas_forward.1} parent=1 // pred_check
      _
    $region23: #{pallas_forward.1} parent=1 // pred_check_branch
      %25 = sbr.rel (0) target = $region25
    $region24: #{pallas_forward.1} parent=1 // pred_region
      _
    $region25: #{pallas_forward.1} parent=1 // pred_fallthru
      _
    // Predicated region
    $region26: #{pallas_forward.1} parent=1 // pred_check
      _
    $region27: #{pallas_forward.1} parent=1 // pred_check_branch
      %27 = sbr.rel (0) target = $region29
    $region28: #{pallas_forward.1} parent=1 // pred_region
      _
    $region29: #{pallas_forward.1} parent=1 // pred_fallthru
      _
    // Predicated region
    $region30: #{pallas_forward.1} parent=1 // pred_check
      _
    $region31: #{pallas_forward.1} parent=1 // pred_check_branch
      %29 = sbr.rel (0) target = $region33
    $region32: #{pallas_forward.1} parent=1 // pred_region
      _
    $region33: #{pallas_forward.1} parent=1 // pred_fallthru
      _
    %v31 = vld [vmem:[%s7] sm:$0xff]
    %v32 = vld [vmem:[%s7 + $0x8] sm:$0xff]
    %v33 = vld [vmem:[%s0] sm:$0xff]
    %v34 = vld [vmem:[%s0 + $0x8] sm:$0xff]
    %v35 = vld [vmem:[%s1] sm:$0xff]
    %v36 = vld [vmem:[%s1 + $0x8] sm:$0xff]
    %vm37 = vcmask 130048
    %v39 = vsel %vm37, %v33, 0
    %v42 = vsel %vm37, %v34, 0
    %44 = vmatprep.subr.mxu0 0.0
    %45 = vmatpush1.msra.mxu0 0.0
    %46 = vmatprep.subr.mxu0 0.0
    %47 = vmatpush1.msra.mxu0 0.0
    %48 = vmatprep.subr.mxu0 0.0
    %49 = vmatpush1.msra.mxu0 0.0
    %50 = vmatprep.subr.mxu0 0.0
    %51 = vmatpush1.msra.mxu0 0.0
    %52 = vmatprep.subr.mxu0 0.0
    %53 = vmatpush1.msra.mxu0 0.0
    %54 = vmatprep.subr.mxu0 0.0
    %55 = vmatpush1.msra.mxu0 0.0
    %56 = vmatprep.subr.mxu0 0.0
    %57 = vmatpush1.msra.mxu0 0.0
    %58 = vmatprep.subr.mxu0 0.0
    %59 = vmatpush1.msra.mxu0 0.0
    %60 = vmatprep.subr.mxu0 0.0
    %61 = vmatpush1.msra.mxu0 0.0
    %62 = vmatprep.subr.mxu0 0.0
    %63 = vmatpush1.msra.mxu0 0.0
    %64 = vmatprep.subr.mxu0 0.0
    %65 = vmatpush1.msra.mxu0 0.0
    %66 = vmatprep.subr.mxu0 0.0
    %67 = vmatpush1.msra.mxu0 0.0
    %68 = vmatprep.subr.mxu0 0.0
    %69 = vmatpush1.msra.mxu0 0.0
    %70 = vmatprep.subr.mxu0 0.0
    %71 = vmatpush1.msra.mxu0 0.0
    %72 = vmatprep.subr.mxu0 0.0
    %73 = vmatpush1.msra.mxu0 %v32
    %74 = vmatprep.subr.mxu0 0.0
    %75 = vmatpush1.msra.mxu0 %v31
    %76 = vmatprep.subr.mxu0 0.0
    %77 = vmatpush2.msra.mxu0 0.0
    %78 = vmatprep.subr.mxu0 0.0
    %79 = vmatpush2.msra.mxu0 0.0
    %80 = vmatprep.subr.mxu0 0.0
    %81 = vmatpush2.msra.mxu0 0.0
    %82 = vmatprep.subr.mxu0 0.0
    %83 = vmatpush2.msra.mxu0 0.0
    %84 = vmatprep.subr.mxu0 0.0
    %85 = vmatpush2.msra.mxu0 0.0
    %86 = vmatprep.subr.mxu0 0.0
    %87 = vmatpush2.msra.mxu0 0.0
    %88 = vmatprep.subr.mxu0 0.0
    %89 = vmatpush2.msra.mxu0 0.0
    %90 = vmatprep.subr.mxu0 0.0
    %91 = vmatpush2.msra.mxu0 0.0
    %92 = vmatprep.subr.mxu0 0.0
    %93 = vmatpush2.msra.mxu0 0.0
    %94 = vmatprep.subr.mxu0 0.0
    %95 = vmatpush2.msra.mxu0 0.0
    %96 = vmatprep.subr.mxu0 0.0
    %97 = vmatpush2.msra.mxu0 0.0
    %98 = vmatprep.subr.mxu0 0.0
    %99 = vmatpush2.msra.mxu0 0.0
    %100 = vmatprep.subr.mxu0 0.0
    %101 = vmatpush2.msra.mxu0 0.0
    %102 = vmatprep.subr.mxu0 0.0
    %103 = vmatpush2.msra.mxu0 0.0
    %104 = vmatprep.subr.mxu0 0.0
    %105 = vmatpush2.msra.mxu0 0.0
    %106 = vmatprep.subr.mxu0 0.0
    %107 = vmatpush2.msra.mxu0 0.0
    %108 = vmatprep.mubr.f32.mxu0 0.0
    %109 = vmatmul.mubr.f32.gmra.mxu0 %v39
    %v110 = vpop.f32.mrf.mxu0
    %v111 = vadd.f32 %v35, %v110
    %v112 = vpop.f32.mrf.mxu0
    %113 = vmatprep.mubr.f32.mxu0 0.0
    %114 = vmatmul.mubr.f32.gmra.mxu0 %v42
    %v115 = vpop.f32.mrf.mxu0
    %v116 = vadd.f32 %v36, %v115
    %v117 = vpop.f32.mrf.mxu0
    %118 = vdwg.mxu0
    %v119 = vld [vmem:[%s7 + $0x10] sm:$0x1]
    %v120 = vld [vmem:[%s7 + $0x11] sm:$0x1]
    %v121 = vld [vmem:[%s7 + $0x12] sm:$0x1]
    %v122 = vld [vmem:[%s7 + $0x13] sm:$0x1]
    %v123 = vld [vmem:[%s7 + $0x14] sm:$0x1]
    %v124 = vld [vmem:[%s7 + $0x15] sm:$0x1]
    %v125 = vld [vmem:[%s7 + $0x16] sm:$0x1]
    %v126 = vld [vmem:[%s7 + $0x17] sm:$0x1]
    %v127 = vld [vmem:[%s7 + $0x18] sm:$0x1]
    %v128 = vpack.c.bf16 %v116, %v111
    %v129 = vld [vmem:[%s2] sm:$0xff]
    %v130 = vld [vmem:[%s2 + $0x8] sm:$0xff]
    %v131 = vld [vmem:[%s2 + $0x10] sm:$0xff]
    %v132 = vld [vmem:[%s2 + $0x18] sm:$0xff]
    %v133 = vld [vmem:[%s2 + $0x20] sm:$0xff]
    %v134 = vld [vmem:[%s2 + $0x28] sm:$0xff]
    %v135 = vld [vmem:[%s2 + $0x30] sm:$0xff]
    %v136 = vld [vmem:[%s2 + $0x38] sm:$0xff]
    %v145 = vunpack.c.l.b16 %v129
    %v146 = vunpack.c.h.b16 %v129
    %v147 = vunpack.c.l.b16 %v130
    %v148 = vunpack.c.h.b16 %v130
    %v149 = vunpack.c.l.b16 %v131
    %v150 = vunpack.c.h.b16 %v131
    %v151 = vunpack.c.l.b16 %v132
    %v152 = vunpack.c.h.b16 %v132
    %v153 = vunpack.c.l.b16 %v133
    %v154 = vunpack.c.h.b16 %v133
    %v155 = vunpack.c.l.b16 %v134
    %v156 = vunpack.c.h.b16 %v134
    %v157 = vunpack.c.l.b16 %v135
    %v158 = vunpack.c.h.b16 %v135
    %v159 = vunpack.c.l.b16 %v136
    %v160 = vunpack.c.h.b16 %v136
    %v161 = vpack.c.b16 %v147, %v145
    %v162 = vpack.c.b16 %v148, %v146
    %v163 = vpack.c.b16 %v151, %v149
    %v164 = vpack.c.b16 %v152, %v150
    %v165 = vpack.c.b16 %v155, %v153
    %v166 = vpack.c.b16 %v156, %v154
    %v167 = vpack.c.b16 %v159, %v157
    %v168 = vpack.c.b16 %v160, %v158
    %vm177 = vcmask 523264
    %v179 = vsel %vm177, %v128, 0
    %181 = vmatprep.subr.bf16.mxu0 0
    %182 = vmatpush1.bf16.msra.mxu0 0
    %183 = vmatprep.subr.bf16.mxu0 0
    %184 = vmatpush1.bf16.msra.mxu0 0
    %185 = vmatprep.subr.bf16.mxu0 0
    %186 = vmatpush1.bf16.msra.mxu0 0
    %187 = vmatprep.subr.bf16.mxu0 0
    %188 = vmatpush1.bf16.msra.mxu0 0
    %189 = vmatprep.subr.bf16.mxu0 %v168
    %190 = vmatpush1.bf16.msra.mxu0 %v167
    %191 = vmatprep.subr.bf16.mxu0 %v166
    %192 = vmatpush1.bf16.msra.mxu0 %v165
    %193 = vmatprep.subr.bf16.mxu0 %v164
    %194 = vmatpush1.bf16.msra.mxu0 %v163
    %195 = vmatprep.subr.bf16.mxu0 %v162
    %196 = vmatpush1.bf16.msra.mxu0 %v161
    %197 = vmatprep.subr.bf16.mxu0 0
    %198 = vmatpush2.bf16.msra.mxu0 0
    %199 = vmatprep.subr.bf16.mxu0 0
    %200 = vmatpush2.bf16.msra.mxu0 0
    %201 = vmatprep.subr.bf16.mxu0 0
    %202 = vmatpush2.bf16.msra.mxu0 0
    %203 = vmatprep.subr.bf16.mxu0 0
    %204 = vmatpush2.bf16.msra.mxu0 0
    %205 = vmatprep.subr.bf16.mxu0 0
    %206 = vmatpush2.bf16.msra.mxu0 0
    %207 = vmatprep.subr.bf16.mxu0 0
    %208 = vmatpush2.bf16.msra.mxu0 0
    %209 = vmatprep.subr.bf16.mxu0 0
    %210 = vmatpush2.bf16.msra.mxu0 0
    %211 = vmatprep.subr.bf16.mxu0 0
    %212 = vmatpush2.bf16.msra.mxu0 0
    %213 = vmatprep.mubr.bf16.mxu0 0
    %214 = vmatmul.mubr.bf16.gmra.mxu0 %v179
    %v215 = vpop.f32.mrf.mxu0
    %v216 = vadd.f32 0.0, %v215
    %v217 = vpop.f32.mrf.mxu0
    %v218 = vadd.f32 0.0, %v217
    %v219 = vpop.f32.mrf.mxu0
    %v220 = vadd.f32 0.0, %v219
    %v221 = vpop.f32.mrf.mxu0
    %v222 = vadd.f32 0.0, %v221
    %223 = vdwg.mxu0
    %v224 = vlaneseq
    %v225 = vshrl.u32 %v224, 7
    %v226 = vsub.s32 0, %v225
    %v227 = vrot.slane %v119, %v226
    %v228 = vadd.f32 %v216, %v227
    %v229 = vlaneseq
    %v230 = vshrl.u32 %v229, 7
    %v231 = vsub.s32 0, %v230
    %v232 = vrot.slane %v120, %v231
    %234 = vrot.lane.b32.xlu0 %v232, 64
    %v235 = vpop.permute.xlu0 %234
    %v237 = vadd.f32 %v216, %v235
    %v238 = vlaneseq
    %v239 = vshrl.u32 %v238, 7
    %v240 = vsub.s32 0, %v239
    %v241 = vrot.slane %v121, %v240
    %v242 = vadd.f32 %v218, %v241
    %244 = vrot.lane.b32.xlu0 %v237, 64
    %v245 = vpop.permute.xlu0 %244
    %v247 = vsel %vm37, %v228, 0
    %v249 = vsel %vm37, %v245, 0
    %251 = vmatprep.subr.mxu0 0.0
    %252 = vmatpush1.xpose.msra.mxu0 0.0
    %253 = vmatprep.subr.mxu0 0.0
    %254 = vmatpush1.xpose.msra.mxu0 0.0
    %255 = vmatprep.subr.mxu0 0.0
    %256 = vmatpush1.xpose.msra.mxu0 0.0
    %257 = vmatprep.subr.mxu0 0.0
    %258 = vmatpush1.xpose.msra.mxu0 0.0
    %259 = vmatprep.subr.mxu0 0.0
    %260 = vmatpush1.xpose.msra.mxu0 0.0
    %261 = vmatprep.subr.mxu0 0.0
    %262 = vmatpush1.xpose.msra.mxu0 0.0
    %263 = vmatprep.subr.mxu0 0.0
    %264 = vmatpush1.xpose.msra.mxu0 0.0
    %265 = vmatprep.subr.mxu0 0.0
    %266 = vmatpush1.xpose.msra.mxu0 0.0
    %267 = vmatprep.subr.mxu0 0.0
    %268 = vmatpush1.xpose.msra.mxu0 0.0
    %269 = vmatprep.subr.mxu0 0.0
    %270 = vmatpush1.xpose.msra.mxu0 0.0
    %271 = vmatprep.subr.mxu0 0.0
    %272 = vmatpush1.xpose.msra.mxu0 0.0
    %273 = vmatprep.subr.mxu0 0.0
    %274 = vmatpush1.xpose.msra.mxu0 0.0
    %275 = vmatprep.subr.mxu0 0.0
    %276 = vmatpush1.xpose.msra.mxu0 0.0
    %277 = vmatprep.subr.mxu0 0.0
    %278 = vmatpush1.xpose.msra.mxu0 0.0
    %279 = vmatprep.subr.mxu0 0.0
    %280 = vmatpush1.xpose.msra.mxu0 0.0
    %281 = vmatprep.subr.mxu0 0.0
    %282 = vmatpush1.xpose.msra.mxu0 %v249
    %283 = vmatprep.subr.mxu0 0.0
    %284 = vmatpush2.xpose.msra.mxu0 0.0
    %285 = vmatprep.subr.mxu0 0.0
    %286 = vmatpush2.xpose.msra.mxu0 0.0
    %287 = vmatprep.subr.mxu0 0.0
    %288 = vmatpush2.xpose.msra.mxu0 0.0
    %289 = vmatprep.subr.mxu0 0.0
    %290 = vmatpush2.xpose.msra.mxu0 0.0
    %291 = vmatprep.subr.mxu0 0.0
    %292 = vmatpush2.xpose.msra.mxu0 0.0
    %293 = vmatprep.subr.mxu0 0.0
    %294 = vmatpush2.xpose.msra.mxu0 0.0
    %295 = vmatprep.subr.mxu0 0.0
    %296 = vmatpush2.xpose.msra.mxu0 0.0
    %297 = vmatprep.subr.mxu0 0.0
    %298 = vmatpush2.xpose.msra.mxu0 0.0
    %299 = vmatprep.subr.mxu0 0.0
    %300 = vmatpush2.xpose.msra.mxu0 0.0
    %301 = vmatprep.subr.mxu0 0.0
    %302 = vmatpush2.xpose.msra.mxu0 0.0
    %303 = vmatprep.subr.mxu0 0.0
    %304 = vmatpush2.xpose.msra.mxu0 0.0
    %305 = vmatprep.subr.mxu0 0.0
    %306 = vmatpush2.xpose.msra.mxu0 0.0
    %307 = vmatprep.subr.mxu0 0.0
    %308 = vmatpush2.xpose.msra.mxu0 0.0
    %309 = vmatprep.subr.mxu0 0.0
    %310 = vmatpush2.xpose.msra.mxu0 0.0
    %311 = vmatprep.subr.mxu0 0.0
    %312 = vmatpush2.xpose.msra.mxu0 0.0
    %313 = vmatprep.subr.mxu0 0.0
    %314 = vmatpush2.xpose.msra.mxu0 0.0
    %315 = vmatprep.mubr.f32.mxu0 0.0
    %316 = vmatmul.mubr.f32.gmra.mxu0 %v247
    %v317 = vpop.f32.mrf.mxu0
    %v318 = vadd.f32 0.0, %v317
    %v319 = vpop.f32.mrf.mxu0
    %320 = vdwg.mxu0
    %v321 = vmul.f32 %v318, 0.25
    %vm322 = vcmask 64512
    %v323 = vsel %vm322, %v321, -inf
    %324 = vmax.xlane.f32.xlu0 %v323
    %v325 = vpop.xlane.xlu0 %324
    %v326 = vsub.f32 %v321, %v325
    %v327 = vmul.f32 %v326, 1.442695
    %v328 = vpow.pop %v327
    %v329 = vsel %vm322, %v328, 0.0
    %330 = vadd.xlane.f32.xlu0 %v329
    %v331 = vpop.xlane.xlu0 %330
    %v332 = vrcp.pop %v331
    %v333 = vmul.f32 %v328, %v332
    %v335 = vsel %vm322, %v333, 0
    %337 = vmatprep.subr.mxu0 0.0
    %338 = vmatpush1.msra.mxu0 0.0
    %339 = vmatprep.subr.mxu0 0.0
    %340 = vmatpush1.msra.mxu0 0.0
    %341 = vmatprep.subr.mxu0 0.0
    %342 = vmatpush1.msra.mxu0 0.0
    %343 = vmatprep.subr.mxu0 0.0
    %344 = vmatpush1.msra.mxu0 0.0
    %345 = vmatprep.subr.mxu0 0.0
    %346 = vmatpush1.msra.mxu0 0.0
    %347 = vmatprep.subr.mxu0 0.0
    %348 = vmatpush1.msra.mxu0 0.0
    %349 = vmatprep.subr.mxu0 0.0
    %350 = vmatpush1.msra.mxu0 0.0
    %351 = vmatprep.subr.mxu0 0.0
    %352 = vmatpush1.msra.mxu0 0.0
    %353 = vmatprep.subr.mxu0 0.0
    %354 = vmatpush1.msra.mxu0 0.0
    %355 = vmatprep.subr.mxu0 0.0
    %356 = vmatpush1.msra.mxu0 0.0
    %357 = vmatprep.subr.mxu0 0.0
    %358 = vmatpush1.msra.mxu0 0.0
    %359 = vmatprep.subr.mxu0 0.0
    %360 = vmatpush1.msra.mxu0 0.0
    %361 = vmatprep.subr.mxu0 0.0
    %362 = vmatpush1.msra.mxu0 0.0
    %363 = vmatprep.subr.mxu0 0.0
    %364 = vmatpush1.msra.mxu0 0.0
    %365 = vmatprep.subr.mxu0 0.0
    %366 = vmatpush1.msra.mxu0 0.0
    %367 = vmatprep.subr.mxu0 0.0
    %368 = vmatpush1.msra.mxu0 %v242
    %369 = vmatprep.subr.mxu0 0.0
    %370 = vmatpush2.msra.mxu0 0.0
    %371 = vmatprep.subr.mxu0 0.0
    %372 = vmatpush2.msra.mxu0 0.0
    %373 = vmatprep.subr.mxu0 0.0
    %374 = vmatpush2.msra.mxu0 0.0
    %375 = vmatprep.subr.mxu0 0.0
    %376 = vmatpush2.msra.mxu0 0.0
    %377 = vmatprep.subr.mxu0 0.0
    %378 = vmatpush2.msra.mxu0 0.0
    %379 = vmatprep.subr.mxu0 0.0
    %380 = vmatpush2.msra.mxu0 0.0
    %381 = vmatprep.subr.mxu0 0.0
    %382 = vmatpush2.msra.mxu0 0.0
    %383 = vmatprep.subr.mxu0 0.0
    %384 = vmatpush2.msra.mxu0 0.0
    %385 = vmatprep.subr.mxu0 0.0
    %386 = vmatpush2.msra.mxu0 0.0
    %387 = vmatprep.subr.mxu0 0.0
    %388 = vmatpush2.msra.mxu0 0.0
    %389 = vmatprep.subr.mxu0 0.0
    %390 = vmatpush2.msra.mxu0 0.0
    %391 = vmatprep.subr.mxu0 0.0
    %392 = vmatpush2.msra.mxu0 0.0
    %393 = vmatprep.subr.mxu0 0.0
    %394 = vmatpush2.msra.mxu0 0.0
    %395 = vmatprep.subr.mxu0 0.0
    %396 = vmatpush2.msra.mxu0 0.0
    %397 = vmatprep.subr.mxu0 0.0
    %398 = vmatpush2.msra.mxu0 0.0
    %399 = vmatprep.subr.mxu0 0.0
    %400 = vmatpush2.msra.mxu0 0.0
    %401 = vmatprep.mubr.f32.mxu0 0.0
    %402 = vmatmul.mubr.f32.gmra.mxu0 %v335
    %v403 = vpop.f32.mrf.mxu0
    %v404 = vadd.f32 0.0, %v403
    %v405 = vpop.f32.mrf.mxu0
    %406 = vdwg.mxu0
    %407 = vst.msk [vmem:[#allocation2] sm:$0xff] %vm37, %v404
    %408 = vrot.lane.b32.xlu0 %v228, 112
    %v409 = vpop.permute.xlu0 %408
    %410 = vrot.lane.b32.xlu0 %v237, 48
    %v411 = vpop.permute.xlu0 %410
    %v412 = vsel %vm37, %v409, 0
    %v414 = vsel %vm37, %v411, 0
    %416 = vmatprep.subr.mxu0 0.0
    %417 = vmatpush1.xpose.msra.mxu0 0.0
    %418 = vmatprep.subr.mxu0 0.0
    %419 = vmatpush1.xpose.msra.mxu0 0.0
    %420 = vmatprep.subr.mxu0 0.0
    %421 = vmatpush1.xpose.msra.mxu0 0.0
    %422 = vmatprep.subr.mxu0 0.0
    %423 = vmatpush1.xpose.msra.mxu0 0.0
    %424 = vmatprep.subr.mxu0 0.0
    %425 = vmatpush1.xpose.msra.mxu0 0.0
    %426 = vmatprep.subr.mxu0 0.0
    %427 = vmatpush1.xpose.msra.mxu0 0.0
    %428 = vmatprep.subr.mxu0 0.0
    %429 = vmatpush1.xpose.msra.mxu0 0.0
    %430 = vmatprep.subr.mxu0 0.0
    %431 = vmatpush1.xpose.msra.mxu0 0.0
    %432 = vmatprep.subr.mxu0 0.0
    %433 = vmatpush1.xpose.msra.mxu0 0.0
    %434 = vmatprep.subr.mxu0 0.0
    %435 = vmatpush1.xpose.msra.mxu0 0.0
    %436 = vmatprep.subr.mxu0 0.0
    %437 = vmatpush1.xpose.msra.mxu0 0.0
    %438 = vmatprep.subr.mxu0 0.0
    %439 = vmatpush1.xpose.msra.mxu0 0.0
    %440 = vmatprep.subr.mxu0 0.0
    %441 = vmatpush1.xpose.msra.mxu0 0.0
    %442 = vmatprep.subr.mxu0 0.0
    %443 = vmatpush1.xpose.msra.mxu0 0.0
    %444 = vmatprep.subr.mxu0 0.0
    %445 = vmatpush1.xpose.msra.mxu0 0.0
    %446 = vmatprep.subr.mxu0 0.0
    %447 = vmatpush1.xpose.msra.mxu0 %v414
    %448 = vmatprep.subr.mxu0 0.0
    %449 = vmatpush2.xpose.msra.mxu0 0.0
    %450 = vmatprep.subr.mxu0 0.0
    %451 = vmatpush2.xpose.msra.mxu0 0.0
    %452 = vmatprep.subr.mxu0 0.0
    %453 = vmatpush2.xpose.msra.mxu0 0.0
    %454 = vmatprep.subr.mxu0 0.0
    %455 = vmatpush2.xpose.msra.mxu0 0.0
    %456 = vmatprep.subr.mxu0 0.0
    %457 = vmatpush2.xpose.msra.mxu0 0.0
    %458 = vmatprep.subr.mxu0 0.0
    %459 = vmatpush2.xpose.msra.mxu0 0.0
    %460 = vmatprep.subr.mxu0 0.0
    %461 = vmatpush2.xpose.msra.mxu0 0.0
    %462 = vmatprep.subr.mxu0 0.0
    %463 = vmatpush2.xpose.msra.mxu0 0.0
    %464 = vmatprep.subr.mxu0 0.0
    %465 = vmatpush2.xpose.msra.mxu0 0.0
    %466 = vmatprep.subr.mxu0 0.0
    %467 = vmatpush2.xpose.msra.mxu0 0.0
    %468 = vmatprep.subr.mxu0 0.0
    %469 = vmatpush2.xpose.msra.mxu0 0.0
    %470 = vmatprep.subr.mxu0 0.0
    %471 = vmatpush2.xpose.msra.mxu0 0.0
    %472 = vmatprep.subr.mxu0 0.0
    %473 = vmatpush2.xpose.msra.mxu0 0.0
    %474 = vmatprep.subr.mxu0 0.0
    %475 = vmatpush2.xpose.msra.mxu0 0.0
    %476 = vmatprep.subr.mxu0 0.0
    %477 = vmatpush2.xpose.msra.mxu0 0.0
    %478 = vmatprep.subr.mxu0 0.0
    %479 = vmatpush2.xpose.msra.mxu0 0.0
    %480 = vmatprep.mubr.f32.mxu0 0.0
    %481 = vmatmul.mubr.f32.gmra.mxu0 %v412
    %v482 = vpop.f32.mrf.mxu0
    %v483 = vadd.f32 0.0, %v482
    %v484 = vpop.f32.mrf.mxu0
    %485 = vdwg.mxu0
    %v486 = vmul.f32 %v483, 0.25
    %v487 = vsel %vm322, %v486, -inf
    %488 = vmax.xlane.f32.xlu0 %v487
    %v489 = vpop.xlane.xlu0 %488
    %v490 = vsub.f32 %v486, %v489
    %v491 = vmul.f32 %v490, 1.442695
    %v492 = vpow.pop %v491
    %v493 = vsel %vm322, %v492, 0.0
    %494 = vadd.xlane.f32.xlu0 %v493
    %v495 = vpop.xlane.xlu0 %494
    %v496 = vrcp.pop %v495
    %v497 = vmul.f32 %v492, %v496
    %499 = vrot.lane.b32.xlu0 %v242, 112
    %v500 = vpop.permute.xlu0 %499
    %v503 = vsel %vm322, %v497, 0
    %505 = vmatprep.subr.mxu0 0.0
    %506 = vmatpush1.msra.mxu0 0.0
    %507 = vmatprep.subr.mxu0 0.0
    %508 = vmatpush1.msra.mxu0 0.0
    %509 = vmatprep.subr.mxu0 0.0
    %510 = vmatpush1.msra.mxu0 0.0
    %511 = vmatprep.subr.mxu0 0.0
    %512 = vmatpush1.msra.mxu0 0.0
    %513 = vmatprep.subr.mxu0 0.0
    %514 = vmatpush1.msra.mxu0 0.0
    %515 = vmatprep.subr.mxu0 0.0
    %516 = vmatpush1.msra.mxu0 0.0
    %517 = vmatprep.subr.mxu0 0.0
    %518 = vmatpush1.msra.mxu0 0.0
    %519 = vmatprep.subr.mxu0 0.0
    %520 = vmatpush1.msra.mxu0 0.0
    %521 = vmatprep.subr.mxu0 0.0
    %522 = vmatpush1.msra.mxu0 0.0
    %523 = vmatprep.subr.mxu0 0.0
    %524 = vmatpush1.msra.mxu0 0.0
    %525 = vmatprep.subr.mxu0 0.0
    %526 = vmatpush1.msra.mxu0 0.0
    %527 = vmatprep.subr.mxu0 0.0
    %528 = vmatpush1.msra.mxu0 0.0
    %529 = vmatprep.subr.mxu0 0.0
    %530 = vmatpush1.msra.mxu0 0.0
    %531 = vmatprep.subr.mxu0 0.0
    %532 = vmatpush1.msra.mxu0 0.0
    %533 = vmatprep.subr.mxu0 0.0
    %534 = vmatpush1.msra.mxu0 0.0
    %535 = vmatprep.subr.mxu0 0.0
    %536 = vmatpush1.msra.mxu0 %v500
    %537 = vmatprep.subr.mxu0 0.0
    %538 = vmatpush2.msra.mxu0 0.0
    %539 = vmatprep.subr.mxu0 0.0
    %540 = vmatpush2.msra.mxu0 0.0
    %541 = vmatprep.subr.mxu0 0.0
    %542 = vmatpush2.msra.mxu0 0.0
    %543 = vmatprep.subr.mxu0 0.0
    %544 = vmatpush2.msra.mxu0 0.0
    %545 = vmatprep.subr.mxu0 0.0
    %546 = vmatpush2.msra.mxu0 0.0
    %547 = vmatprep.subr.mxu0 0.0
    %548 = vmatpush2.msra.mxu0 0.0
    %549 = vmatprep.subr.mxu0 0.0
    %550 = vmatpush2.msra.mxu0 0.0
    %551 = vmatprep.subr.mxu0 0.0
    %552 = vmatpush2.msra.mxu0 0.0
    %553 = vmatprep.subr.mxu0 0.0
    %554 = vmatpush2.msra.mxu0 0.0
    %555 = vmatprep.subr.mxu0 0.0
    %556 = vmatpush2.msra.mxu0 0.0
    %557 = vmatprep.subr.mxu0 0.0
    %558 = vmatpush2.msra.mxu0 0.0
    %559 = vmatprep.subr.mxu0 0.0
    %560 = vmatpush2.msra.mxu0 0.0
    %561 = vmatprep.subr.mxu0 0.0
    %562 = vmatpush2.msra.mxu0 0.0
    %563 = vmatprep.subr.mxu0 0.0
    %564 = vmatpush2.msra.mxu0 0.0
    %565 = vmatprep.subr.mxu0 0.0
    %566 = vmatpush2.msra.mxu0 0.0
    %567 = vmatprep.subr.mxu0 0.0
    %568 = vmatpush2.msra.mxu0 0.0
    %569 = vmatprep.mubr.f32.mxu0 0.0
    %570 = vmatmul.mubr.f32.gmra.mxu0 %v503
    %v571 = vpop.f32.mrf.mxu0
    %v572 = vadd.f32 0.0, %v571
    %v573 = vpop.f32.mrf.mxu0
    %574 = vdwg.mxu0
    %576 = vrot.lane.b32.xlu0 %v572, 16
    %v577 = vpop.permute.xlu0 %576
    %vm579 = vcmask 261248
    %580 = vst.msk [vmem:[#allocation2] sm:$0xff] %vm579, %v577
    %581 = vrot.lane.b32.xlu0 %v228, 96
    %v582 = vpop.permute.xlu0 %581
    %583 = vrot.lane.b32.xlu0 %v237, 32
    %v584 = vpop.permute.xlu0 %583
    %v585 = vsel %vm37, %v582, 0
    %v587 = vsel %vm37, %v584, 0
    %589 = vmatprep.subr.mxu0 0.0
    %590 = vmatpush1.xpose.msra.mxu0 0.0
    %591 = vmatprep.subr.mxu0 0.0
    %592 = vmatpush1.xpose.msra.mxu0 0.0
    %593 = vmatprep.subr.mxu0 0.0
    %594 = vmatpush1.xpose.msra.mxu0 0.0
    %595 = vmatprep.subr.mxu0 0.0
    %596 = vmatpush1.xpose.msra.mxu0 0.0
    %597 = vmatprep.subr.mxu0 0.0
    %598 = vmatpush1.xpose.msra.mxu0 0.0
    %599 = vmatprep.subr.mxu0 0.0
    %600 = vmatpush1.xpose.msra.mxu0 0.0
    %601 = vmatprep.subr.mxu0 0.0
    %602 = vmatpush1.xpose.msra.mxu0 0.0
    %603 = vmatprep.subr.mxu0 0.0
    %604 = vmatpush1.xpose.msra.mxu0 0.0
    %605 = vmatprep.subr.mxu0 0.0
    %606 = vmatpush1.xpose.msra.mxu0 0.0
    %607 = vmatprep.subr.mxu0 0.0
    %608 = vmatpush1.xpose.msra.mxu0 0.0
    %609 = vmatprep.subr.mxu0 0.0
    %610 = vmatpush1.xpose.msra.mxu0 0.0
    %611 = vmatprep.subr.mxu0 0.0
    %612 = vmatpush1.xpose.msra.mxu0 0.0
    %613 = vmatprep.subr.mxu0 0.0
    %614 = vmatpush1.xpose.msra.mxu0 0.0
    %615 = vmatprep.subr.mxu0 0.0
    %616 = vmatpush1.xpose.msra.mxu0 0.0
    %617 = vmatprep.subr.mxu0 0.0
    %618 = vmatpush1.xpose.msra.mxu0 0.0
    %619 = vmatprep.subr.mxu0 0.0
    %620 = vmatpush1.xpose.msra.mxu0 %v587
    %621 = vmatprep.subr.mxu0 0.0
    %622 = vmatpush2.xpose.msra.mxu0 0.0
    %623 = vmatprep.subr.mxu0 0.0
    %624 = vmatpush2.xpose.msra.mxu0 0.0
    %625 = vmatprep.subr.mxu0 0.0
    %626 = vmatpush2.xpose.msra.mxu0 0.0
    %627 = vmatprep.subr.mxu0 0.0
    %628 = vmatpush2.xpose.msra.mxu0 0.0
    %629 = vmatprep.subr.mxu0 0.0
    %630 = vmatpush2.xpose.msra.mxu0 0.0
    %631 = vmatprep.subr.mxu0 0.0
    %632 = vmatpush2.xpose.msra.mxu0 0.0
    %633 = vmatprep.subr.mxu0 0.0
    %634 = vmatpush2.xpose.msra.mxu0 0.0
    %635 = vmatprep.subr.mxu0 0.0
    %636 = vmatpush2.xpose.msra.mxu0 0.0
    %637 = vmatprep.subr.mxu0 0.0
    %638 = vmatpush2.xpose.msra.mxu0 0.0
    %639 = vmatprep.subr.mxu0 0.0
    %640 = vmatpush2.xpose.msra.mxu0 0.0
    %641 = vmatprep.subr.mxu0 0.0
    %642 = vmatpush2.xpose.msra.mxu0 0.0
    %643 = vmatprep.subr.mxu0 0.0
    %644 = vmatpush2.xpose.msra.mxu0 0.0
    %645 = vmatprep.subr.mxu0 0.0
    %646 = vmatpush2.xpose.msra.mxu0 0.0
    %647 = vmatprep.subr.mxu0 0.0
    %648 = vmatpush2.xpose.msra.mxu0 0.0
    %649 = vmatprep.subr.mxu0 0.0
    %650 = vmatpush2.xpose.msra.mxu0 0.0
    %651 = vmatprep.subr.mxu0 0.0
    %652 = vmatpush2.xpose.msra.mxu0 0.0
    %653 = vmatprep.mubr.f32.mxu0 0.0
    %654 = vmatmul.mubr.f32.gmra.mxu0 %v585
    %v655 = vpop.f32.mrf.mxu0
    %v656 = vadd.f32 0.0, %v655
    %v657 = vpop.f32.mrf.mxu0
    %658 = vdwg.mxu0
    %v659 = vmul.f32 %v656, 0.25
    %v660 = vsel %vm322, %v659, -inf
    %661 = vmax.xlane.f32.xlu0 %v660
    %v662 = vpop.xlane.xlu0 %661
    %v663 = vsub.f32 %v659, %v662
    %v664 = vmul.f32 %v663, 1.442695
    %v665 = vpow.pop %v664
    %v666 = vsel %vm322, %v665, 0.0
    %667 = vadd.xlane.f32.xlu0 %v666
    %v668 = vpop.xlane.xlu0 %667
    %v669 = vrcp.pop %v668
    %v670 = vmul.f32 %v665, %v669
    %671 = vrot.lane.b32.xlu0 %v242, 96
    %v672 = vpop.permute.xlu0 %671
    %v675 = vsel %vm322, %v670, 0
    %677 = vmatprep.subr.mxu0 0.0
    %678 = vmatpush1.msra.mxu0 0.0
    %679 = vmatprep.subr.mxu0 0.0
    %680 = vmatpush1.msra.mxu0 0.0
    %681 = vmatprep.subr.mxu0 0.0
    %682 = vmatpush1.msra.mxu0 0.0
    %683 = vmatprep.subr.mxu0 0.0
    %684 = vmatpush1.msra.mxu0 0.0
    %685 = vmatprep.subr.mxu0 0.0
    %686 = vmatpush1.msra.mxu0 0.0
    %687 = vmatprep.subr.mxu0 0.0
    %688 = vmatpush1.msra.mxu0 0.0
    %689 = vmatprep.subr.mxu0 0.0
    %690 = vmatpush1.msra.mxu0 0.0
    %691 = vmatprep.subr.mxu0 0.0
    %692 = vmatpush1.msra.mxu0 0.0
    %693 = vmatprep.subr.mxu0 0.0
    %694 = vmatpush1.msra.mxu0 0.0
    %695 = vmatprep.subr.mxu0 0.0
    %696 = vmatpush1.msra.mxu0 0.0
    %697 = vmatprep.subr.mxu0 0.0
    %698 = vmatpush1.msra.mxu0 0.0
    %699 = vmatprep.subr.mxu0 0.0
    %700 = vmatpush1.msra.mxu0 0.0
    %701 = vmatprep.subr.mxu0 0.0
    %702 = vmatpush1.msra.mxu0 0.0
    %703 = vmatprep.subr.mxu0 0.0
    %704 = vmatpush1.msra.mxu0 0.0
    %705 = vmatprep.subr.mxu0 0.0
    %706 = vmatpush1.msra.mxu0 0.0
    %707 = vmatprep.subr.mxu0 0.0
    %708 = vmatpush1.msra.mxu0 %v672
    %709 = vmatprep.subr.mxu0 0.0
    %710 = vmatpush2.msra.mxu0 0.0
    %711 = vmatprep.subr.mxu0 0.0
    %712 = vmatpush2.msra.mxu0 0.0
    %713 = vmatprep.subr.mxu0 0.0
    %714 = vmatpush2.msra.mxu0 0.0
    %715 = vmatprep.subr.mxu0 0.0
    %716 = vmatpush2.msra.mxu0 0.0
    %717 = vmatprep.subr.mxu0 0.0
    %718 = vmatpush2.msra.mxu0 0.0
    %719 = vmatprep.subr.mxu0 0.0
    %720 = vmatpush2.msra.mxu0 0.0
    %721 = vmatprep.subr.mxu0 0.0
    %722 = vmatpush2.msra.mxu0 0.0
    %723 = vmatprep.subr.mxu0 0.0
    %724 = vmatpush2.msra.mxu0 0.0
    %725 = vmatprep.subr.mxu0 0.0
    %726 = vmatpush2.msra.mxu0 0.0
    %727 = vmatprep.subr.mxu0 0.0
    %728 = vmatpush2.msra.mxu0 0.0
    %729 = vmatprep.subr.mxu0 0.0
    %730 = vmatpush2.msra.mxu0 0.0
    %731 = vmatprep.subr.mxu0 0.0
    %732 = vmatpush2.msra.mxu0 0.0
    %733 = vmatprep.subr.mxu0 0.0
    %734 = vmatpush2.msra.mxu0 0.0
    %735 = vmatprep.subr.mxu0 0.0
    %736 = vmatpush2.msra.mxu0 0.0
    %737 = vmatprep.subr.mxu0 0.0
    %738 = vmatpush2.msra.mxu0 0.0
    %739 = vmatprep.subr.mxu0 0.0
    %740 = vmatpush2.msra.mxu0 0.0
    %741 = vmatprep.mubr.f32.mxu0 0.0
    %742 = vmatmul.mubr.f32.gmra.mxu0 %v675
    %v743 = vpop.f32.mrf.mxu0
    %v744 = vadd.f32 0.0, %v743
    %v745 = vpop.f32.mrf.mxu0
    %746 = vdwg.mxu0
    %748 = vrot.lane.b32.xlu0 %v744, 32
    %v749 = vpop.permute.xlu0 %748
    %vm751 = vcmask 392448
    %752 = vst.msk [vmem:[#allocation2] sm:$0xff] %vm751, %v749
    %753 = vrot.lane.b32.xlu0 %v228, 80
    %v754 = vpop.permute.xlu0 %753
    %755 = vrot.lane.b32.xlu0 %v237, 16
    %v756 = vpop.permute.xlu0 %755
    %v757 = vsel %vm37, %v754, 0
    %v759 = vsel %vm37, %v756, 0
    %761 = vmatprep.subr.mxu0 0.0
    %762 = vmatpush1.xpose.msra.mxu0 0.0
    %763 = vmatprep.subr.mxu0 0.0
    %764 = vmatpush1.xpose.msra.mxu0 0.0
    %765 = vmatprep.subr.mxu0 0.0
    %766 = vmatpush1.xpose.msra.mxu0 0.0
    %767 = vmatprep.subr.mxu0 0.0
    %768 = vmatpush1.xpose.msra.mxu0 0.0
    %769 = vmatprep.subr.mxu0 0.0
    %770 = vmatpush1.xpose.msra.mxu0 0.0
    %771 = vmatprep.subr.mxu0 0.0
    %772 = vmatpush1.xpose.msra.mxu0 0.0
    %773 = vmatprep.subr.mxu0 0.0
    %774 = vmatpush1.xpose.msra.mxu0 0.0
    %775 = vmatprep.subr.mxu0 0.0
    %776 = vmatpush1.xpose.msra.mxu0 0.0
    %777 = vmatprep.subr.mxu0 0.0
    %778 = vmatpush1.xpose.msra.mxu0 0.0
    %779 = vmatprep.subr.mxu0 0.0
    %780 = vmatpush1.xpose.msra.mxu0 0.0
    %781 = vmatprep.subr.mxu0 0.0
    %782 = vmatpush1.xpose.msra.mxu0 0.0
    %783 = vmatprep.subr.mxu0 0.0
    %784 = vmatpush1.xpose.msra.mxu0 0.0
    %785 = vmatprep.subr.mxu0 0.0
    %786 = vmatpush1.xpose.msra.mxu0 0.0
    %787 = vmatprep.subr.mxu0 0.0
    %788 = vmatpush1.xpose.msra.mxu0 0.0
    %789 = vmatprep.subr.mxu0 0.0
    %790 = vmatpush1.xpose.msra.mxu0 0.0
    %791 = vmatprep.subr.mxu0 0.0
    %792 = vmatpush1.xpose.msra.mxu0 %v759
    %793 = vmatprep.subr.mxu0 0.0
    %794 = vmatpush2.xpose.msra.mxu0 0.0
    %795 = vmatprep.subr.mxu0 0.0
    %796 = vmatpush2.xpose.msra.mxu0 0.0
    %797 = vmatprep.subr.mxu0 0.0
    %798 = vmatpush2.xpose.msra.mxu0 0.0
    %799 = vmatprep.subr.mxu0 0.0
    %800 = vmatpush2.xpose.msra.mxu0 0.0
    %801 = vmatprep.subr.mxu0 0.0
    %802 = vmatpush2.xpose.msra.mxu0 0.0
    %803 = vmatprep.subr.mxu0 0.0
    %804 = vmatpush2.xpose.msra.mxu0 0.0
    %805 = vmatprep.subr.mxu0 0.0
    %806 = vmatpush2.xpose.msra.mxu0 0.0
    %807 = vmatprep.subr.mxu0 0.0
    %808 = vmatpush2.xpose.msra.mxu0 0.0
    %809 = vmatprep.subr.mxu0 0.0
    %810 = vmatpush2.xpose.msra.mxu0 0.0
    %811 = vmatprep.subr.mxu0 0.0
    %812 = vmatpush2.xpose.msra.mxu0 0.0
    %813 = vmatprep.subr.mxu0 0.0
    %814 = vmatpush2.xpose.msra.mxu0 0.0
    %815 = vmatprep.subr.mxu0 0.0
    %816 = vmatpush2.xpose.msra.mxu0 0.0
    %817 = vmatprep.subr.mxu0 0.0
    %818 = vmatpush2.xpose.msra.mxu0 0.0
    %819 = vmatprep.subr.mxu0 0.0
    %820 = vmatpush2.xpose.msra.mxu0 0.0
    %821 = vmatprep.subr.mxu0 0.0
    %822 = vmatpush2.xpose.msra.mxu0 0.0
    %823 = vmatprep.subr.mxu0 0.0
    %824 = vmatpush2.xpose.msra.mxu0 0.0
    %825 = vmatprep.mubr.f32.mxu0 0.0
    %826 = vmatmul.mubr.f32.gmra.mxu0 %v757
    %v827 = vpop.f32.mrf.mxu0
    %v828 = vadd.f32 0.0, %v827
    %v829 = vpop.f32.mrf.mxu0
    %830 = vdwg.mxu0
    %v831 = vmul.f32 %v828, 0.25
    %v832 = vsel %vm322, %v831, -inf
    %833 = vmax.xlane.f32.xlu0 %v832
    %v834 = vpop.xlane.xlu0 %833
    %v835 = vsub.f32 %v831, %v834
    %v836 = vmul.f32 %v835, 1.442695
    %v837 = vpow.pop %v836
    %v838 = vsel %vm322, %v837, 0.0
    %839 = vadd.xlane.f32.xlu0 %v838
    %v840 = vpop.xlane.xlu0 %839
    %v841 = vrcp.pop %v840
    %v842 = vmul.f32 %v837, %v841
    %843 = vrot.lane.b32.xlu0 %v242, 80
    %v844 = vpop.permute.xlu0 %843
    %v847 = vsel %vm322, %v842, 0
    %849 = vmatprep.subr.mxu0 0.0
    %850 = vmatpush1.msra.mxu0 0.0
    %851 = vmatprep.subr.mxu0 0.0
    %852 = vmatpush1.msra.mxu0 0.0
    %853 = vmatprep.subr.mxu0 0.0
    %854 = vmatpush1.msra.mxu0 0.0
    %855 = vmatprep.subr.mxu0 0.0
    %856 = vmatpush1.msra.mxu0 0.0
    %857 = vmatprep.subr.mxu0 0.0
    %858 = vmatpush1.msra.mxu0 0.0
    %859 = vmatprep.subr.mxu0 0.0
    %860 = vmatpush1.msra.mxu0 0.0
    %861 = vmatprep.subr.mxu0 0.0
    %862 = vmatpush1.msra.mxu0 0.0
    %863 = vmatprep.subr.mxu0 0.0
    %864 = vmatpush1.msra.mxu0 0.0
    %865 = vmatprep.subr.mxu0 0.0
    %866 = vmatpush1.msra.mxu0 0.0
    %867 = vmatprep.subr.mxu0 0.0
    %868 = vmatpush1.msra.mxu0 0.0
    %869 = vmatprep.subr.mxu0 0.0
    %870 = vmatpush1.msra.mxu0 0.0
    %871 = vmatprep.subr.mxu0 0.0
    %872 = vmatpush1.msra.mxu0 0.0
    %873 = vmatprep.subr.mxu0 0.0
    %874 = vmatpush1.msra.mxu0 0.0
    %875 = vmatprep.subr.mxu0 0.0
    %876 = vmatpush1.msra.mxu0 0.0
    %877 = vmatprep.subr.mxu0 0.0
    %878 = vmatpush1.msra.mxu0 0.0
    %879 = vmatprep.subr.mxu0 0.0
    %880 = vmatpush1.msra.mxu0 %v844
    %881 = vmatprep.subr.mxu0 0.0
    %882 = vmatpush2.msra.mxu0 0.0
    %883 = vmatprep.subr.mxu0 0.0
    %884 = vmatpush2.msra.mxu0 0.0
    %885 = vmatprep.subr.mxu0 0.0
    %886 = vmatpush2.msra.mxu0 0.0
    %887 = vmatprep.subr.mxu0 0.0
    %888 = vmatpush2.msra.mxu0 0.0
    %889 = vmatprep.subr.mxu0 0.0
    %890 = vmatpush2.msra.mxu0 0.0
    %891 = vmatprep.subr.mxu0 0.0
    %892 = vmatpush2.msra.mxu0 0.0
    %893 = vmatprep.subr.mxu0 0.0
    %894 = vmatpush2.msra.mxu0 0.0
    %895 = vmatprep.subr.mxu0 0.0
    %896 = vmatpush2.msra.mxu0 0.0
    %897 = vmatprep.subr.mxu0 0.0
    %898 = vmatpush2.msra.mxu0 0.0
    %899 = vmatprep.subr.mxu0 0.0
    %900 = vmatpush2.msra.mxu0 0.0
    %901 = vmatprep.subr.mxu0 0.0
    %902 = vmatpush2.msra.mxu0 0.0
    %903 = vmatprep.subr.mxu0 0.0
    %904 = vmatpush2.msra.mxu0 0.0
    %905 = vmatprep.subr.mxu0 0.0
    %906 = vmatpush2.msra.mxu0 0.0
    %907 = vmatprep.subr.mxu0 0.0
    %908 = vmatpush2.msra.mxu0 0.0
    %909 = vmatprep.subr.mxu0 0.0
    %910 = vmatpush2.msra.mxu0 0.0
    %911 = vmatprep.subr.mxu0 0.0
    %912 = vmatpush2.msra.mxu0 0.0
    %913 = vmatprep.mubr.f32.mxu0 0.0
    %914 = vmatmul.mubr.f32.gmra.mxu0 %v847
    %v915 = vpop.f32.mrf.mxu0
    %v916 = vadd.f32 0.0, %v915
    %v917 = vpop.f32.mrf.mxu0
    %918 = vdwg.mxu0
    %920 = vrot.lane.b32.xlu0 %v916, 48
    %v921 = vpop.permute.xlu0 %920
    %vm923 = vcmask 523648
    %924 = vst.msk [vmem:[#allocation2] sm:$0xff] %vm923, %v921
    %v925 = vadd.f32 %v220, %v227
    %v926 = vadd.f32 %v220, %v235
    %v927 = vadd.f32 %v222, %v241
    %929 = vrot.lane.b32.xlu0 %v926, 64
    %v930 = vpop.permute.xlu0 %929
    %v932 = vsel %vm37, %v925, 0
    %v934 = vsel %vm37, %v930, 0
    %936 = vmatprep.subr.mxu0 0.0
    %937 = vmatpush1.xpose.msra.mxu0 0.0
    %938 = vmatprep.subr.mxu0 0.0
    %939 = vmatpush1.xpose.msra.mxu0 0.0
    %940 = vmatprep.subr.mxu0 0.0
    %941 = vmatpush1.xpose.msra.mxu0 0.0
    %942 = vmatprep.subr.mxu0 0.0
    %943 = vmatpush1.xpose.msra.mxu0 0.0
    %944 = vmatprep.subr.mxu0 0.0
    %945 = vmatpush1.xpose.msra.mxu0 0.0
    %946 = vmatprep.subr.mxu0 0.0
    %947 = vmatpush1.xpose.msra.mxu0 0.0
    %948 = vmatprep.subr.mxu0 0.0
    %949 = vmatpush1.xpose.msra.mxu0 0.0
    %950 = vmatprep.subr.mxu0 0.0
    %951 = vmatpush1.xpose.msra.mxu0 0.0
    %952 = vmatprep.subr.mxu0 0.0
    %953 = vmatpush1.xpose.msra.mxu0 0.0
    %954 = vmatprep.subr.mxu0 0.0
    %955 = vmatpush1.xpose.msra.mxu0 0.0
    %956 = vmatprep.subr.mxu0 0.0
    %957 = vmatpush1.xpose.msra.mxu0 0.0
    %958 = vmatprep.subr.mxu0 0.0
    %959 = vmatpush1.xpose.msra.mxu0 0.0
    %960 = vmatprep.subr.mxu0 0.0
    %961 = vmatpush1.xpose.msra.mxu0 0.0
    %962 = vmatprep.subr.mxu0 0.0
    %963 = vmatpush1.xpose.msra.mxu0 0.0
    %964 = vmatprep.subr.mxu0 0.0
    %965 = vmatpush1.xpose.msra.mxu0 0.0
    %966 = vmatprep.subr.mxu0 0.0
    %967 = vmatpush1.xpose.msra.mxu0 %v934
    %968 = vmatprep.subr.mxu0 0.0
    %969 = vmatpush2.xpose.msra.mxu0 0.0
    %970 = vmatprep.subr.mxu0 0.0
    %971 = vmatpush2.xpose.msra.mxu0 0.0
    %972 = vmatprep.subr.mxu0 0.0
    %973 = vmatpush2.xpose.msra.mxu0 0.0
    %974 = vmatprep.subr.mxu0 0.0
    %975 = vmatpush2.xpose.msra.mxu0 0.0
    %976 = vmatprep.subr.mxu0 0.0
    %977 = vmatpush2.xpose.msra.mxu0 0.0
    %978 = vmatprep.subr.mxu0 0.0
    %979 = vmatpush2.xpose.msra.mxu0 0.0
    %980 = vmatprep.subr.mxu0 0.0
    %981 = vmatpush2.xpose.msra.mxu0 0.0
    %982 = vmatprep.subr.mxu0 0.0
    %983 = vmatpush2.xpose.msra.mxu0 0.0
    %984 = vmatprep.subr.mxu0 0.0
    %985 = vmatpush2.xpose.msra.mxu0 0.0
    %986 = vmatprep.subr.mxu0 0.0
    %987 = vmatpush2.xpose.msra.mxu0 0.0
    %988 = vmatprep.subr.mxu0 0.0
    %989 = vmatpush2.xpose.msra.mxu0 0.0
    %990 = vmatprep.subr.mxu0 0.0
    %991 = vmatpush2.xpose.msra.mxu0 0.0
    %992 = vmatprep.subr.mxu0 0.0
    %993 = vmatpush2.xpose.msra.mxu0 0.0
    %994 = vmatprep.subr.mxu0 0.0
    %995 = vmatpush2.xpose.msra.mxu0 0.0
    %996 = vmatprep.subr.mxu0 0.0
    %997 = vmatpush2.xpose.msra.mxu0 0.0
    %998 = vmatprep.subr.mxu0 0.0
    %999 = vmatpush2.xpose.msra.mxu0 0.0
    %1000 = vmatprep.mubr.f32.mxu0 0.0
    %1001 = vmatmul.mubr.f32.gmra.mxu0 %v932
    %v1002 = vpop.f32.mrf.mxu0
    %v1003 = vadd.f32 0.0, %v1002
    %v1004 = vpop.f32.mrf.mxu0
    %1005 = vdwg.mxu0
    %v1006 = vmul.f32 %v1003, 0.25
    %v1007 = vsel %vm322, %v1006, -inf
    %1008 = vmax.xlane.f32.xlu0 %v1007
    %v1009 = vpop.xlane.xlu0 %1008
    %v1010 = vsub.f32 %v1006, %v1009
    %v1011 = vmul.f32 %v1010, 1.442695
    %v1012 = vpow.pop %v1011
    %v1013 = vsel %vm322, %v1012, 0.0
    %1014 = vadd.xlane.f32.xlu0 %v1013
    %v1015 = vpop.xlane.xlu0 %1014
    %v1016 = vrcp.pop %v1015
    %v1017 = vmul.f32 %v1012, %v1016
    %v1019 = vsel %vm322, %v1017, 0
    %1021 = vmatprep.subr.mxu0 0.0
    %1022 = vmatpush1.msra.mxu0 0.0
    %1023 = vmatprep.subr.mxu0 0.0
    %1024 = vmatpush1.msra.mxu0 0.0
    %1025 = vmatprep.subr.mxu0 0.0
    %1026 = vmatpush1.msra.mxu0 0.0
    %1027 = vmatprep.subr.mxu0 0.0
    %1028 = vmatpush1.msra.mxu0 0.0
    %1029 = vmatprep.subr.mxu0 0.0
    %1030 = vmatpush1.msra.mxu0 0.0
    %1031 = vmatprep.subr.mxu0 0.0
    %1032 = vmatpush1.msra.mxu0 0.0
    %1033 = vmatprep.subr.mxu0 0.0
    %1034 = vmatpush1.msra.mxu0 0.0
    %1035 = vmatprep.subr.mxu0 0.0
    %1036 = vmatpush1.msra.mxu0 0.0
    %1037 = vmatprep.subr.mxu0 0.0
    %1038 = vmatpush1.msra.mxu0 0.0
    %1039 = vmatprep.subr.mxu0 0.0
    %1040 = vmatpush1.msra.mxu0 0.0
    %1041 = vmatprep.subr.mxu0 0.0
    %1042 = vmatpush1.msra.mxu0 0.0
    %1043 = vmatprep.subr.mxu0 0.0
    %1044 = vmatpush1.msra.mxu0 0.0
    %1045 = vmatprep.subr.mxu0 0.0
    %1046 = vmatpush1.msra.mxu0 0.0
    %1047 = vmatprep.subr.mxu0 0.0
    %1048 = vmatpush1.msra.mxu0 0.0
    %1049 = vmatprep.subr.mxu0 0.0
    %1050 = vmatpush1.msra.mxu0 0.0
    %1051 = vmatprep.subr.mxu0 0.0
    %1052 = vmatpush1.msra.mxu0 %v927
    %1053 = vmatprep.subr.mxu0 0.0
    %1054 = vmatpush2.msra.mxu0 0.0
    %1055 = vmatprep.subr.mxu0 0.0
    %1056 = vmatpush2.msra.mxu0 0.0
    %1057 = vmatprep.subr.mxu0 0.0
    %1058 = vmatpush2.msra.mxu0 0.0
    %1059 = vmatprep.subr.mxu0 0.0
    %1060 = vmatpush2.msra.mxu0 0.0
    %1061 = vmatprep.subr.mxu0 0.0
    %1062 = vmatpush2.msra.mxu0 0.0
    %1063 = vmatprep.subr.mxu0 0.0
    %1064 = vmatpush2.msra.mxu0 0.0
    %1065 = vmatprep.subr.mxu0 0.0
    %1066 = vmatpush2.msra.mxu0 0.0
    %1067 = vmatprep.subr.mxu0 0.0
    %1068 = vmatpush2.msra.mxu0 0.0
    %1069 = vmatprep.subr.mxu0 0.0
    %1070 = vmatpush2.msra.mxu0 0.0
    %1071 = vmatprep.subr.mxu0 0.0
    %1072 = vmatpush2.msra.mxu0 0.0
    %1073 = vmatprep.subr.mxu0 0.0
    %1074 = vmatpush2.msra.mxu0 0.0
    %1075 = vmatprep.subr.mxu0 0.0
    %1076 = vmatpush2.msra.mxu0 0.0
    %1077 = vmatprep.subr.mxu0 0.0
    %1078 = vmatpush2.msra.mxu0 0.0
    %1079 = vmatprep.subr.mxu0 0.0
    %1080 = vmatpush2.msra.mxu0 0.0
    %1081 = vmatprep.subr.mxu0 0.0
    %1082 = vmatpush2.msra.mxu0 0.0
    %1083 = vmatprep.subr.mxu0 0.0
    %1084 = vmatpush2.msra.mxu0 0.0
    %1085 = vmatprep.mubr.f32.mxu0 0.0
    %1086 = vmatmul.mubr.f32.gmra.mxu0 %v1019
    %v1087 = vpop.f32.mrf.mxu0
    %v1088 = vadd.f32 0.0, %v1087
    %v1089 = vpop.f32.mrf.mxu0
    %1090 = vdwg.mxu0
    %1091 = vst.msk [vmem:[#allocation2 + $0x8] sm:$0xff] %vm37, %v1088
    %1092 = vrot.lane.b32.xlu0 %v925, 112
    %v1093 = vpop.permute.xlu0 %1092
    %1094 = vrot.lane.b32.xlu0 %v926, 48
    %v1095 = vpop.permute.xlu0 %1094
    %v1096 = vsel %vm37, %v1093, 0
    %v1098 = vsel %vm37, %v1095, 0
    %1100 = vmatprep.subr.mxu0 0.0
    %1101 = vmatpush1.xpose.msra.mxu0 0.0
    %1102 = vmatprep.subr.mxu0 0.0
    %1103 = vmatpush1.xpose.msra.mxu0 0.0
    %1104 = vmatprep.subr.mxu0 0.0
    %1105 = vmatpush1.xpose.msra.mxu0 0.0
    %1106 = vmatprep.subr.mxu0 0.0
    %1107 = vmatpush1.xpose.msra.mxu0 0.0
    %1108 = vmatprep.subr.mxu0 0.0
    %1109 = vmatpush1.xpose.msra.mxu0 0.0
    %1110 = vmatprep.subr.mxu0 0.0
    %1111 = vmatpush1.xpose.msra.mxu0 0.0
    %1112 = vmatprep.subr.mxu0 0.0
    %1113 = vmatpush1.xpose.msra.mxu0 0.0
    %1114 = vmatprep.subr.mxu0 0.0
    %1115 = vmatpush1.xpose.msra.mxu0 0.0
    %1116 = vmatprep.subr.mxu0 0.0
    %1117 = vmatpush1.xpose.msra.mxu0 0.0
    %1118 = vmatprep.subr.mxu0 0.0
    %1119 = vmatpush1.xpose.msra.mxu0 0.0
    %1120 = vmatprep.subr.mxu0 0.0
    %1121 = vmatpush1.xpose.msra.mxu0 0.0
    %1122 = vmatprep.subr.mxu0 0.0
    %1123 = vmatpush1.xpose.msra.mxu0 0.0
    %1124 = vmatprep.subr.mxu0 0.0
    %1125 = vmatpush1.xpose.msra.mxu0 0.0
    %1126 = vmatprep.subr.mxu0 0.0
    %1127 = vmatpush1.xpose.msra.mxu0 0.0
    %1128 = vmatprep.subr.mxu0 0.0
    %1129 = vmatpush1.xpose.msra.mxu0 0.0
    %1130 = vmatprep.subr.mxu0 0.0
    %1131 = vmatpush1.xpose.msra.mxu0 %v1098
    %1132 = vmatprep.subr.mxu0 0.0
    %1133 = vmatpush2.xpose.msra.mxu0 0.0
    %1134 = vmatprep.subr.mxu0 0.0
    %1135 = vmatpush2.xpose.msra.mxu0 0.0
    %1136 = vmatprep.subr.mxu0 0.0
    %1137 = vmatpush2.xpose.msra.mxu0 0.0
    %1138 = vmatprep.subr.mxu0 0.0
    %1139 = vmatpush2.xpose.msra.mxu0 0.0
    %1140 = vmatprep.subr.mxu0 0.0
    %1141 = vmatpush2.xpose.msra.mxu0 0.0
    %1142 = vmatprep.subr.mxu0 0.0
    %1143 = vmatpush2.xpose.msra.mxu0 0.0
    %1144 = vmatprep.subr.mxu0 0.0
    %1145 = vmatpush2.xpose.msra.mxu0 0.0
    %1146 = vmatprep.subr.mxu0 0.0
    %1147 = vmatpush2.xpose.msra.mxu0 0.0
    %1148 = vmatprep.subr.mxu0 0.0
    %1149 = vmatpush2.xpose.msra.mxu0 0.0
    %1150 = vmatprep.subr.mxu0 0.0
    %1151 = vmatpush2.xpose.msra.mxu0 0.0
    %1152 = vmatprep.subr.mxu0 0.0
    %1153 = vmatpush2.xpose.msra.mxu0 0.0
    %1154 = vmatprep.subr.mxu0 0.0
    %1155 = vmatpush2.xpose.msra.mxu0 0.0
    %1156 = vmatprep.subr.mxu0 0.0
    %1157 = vmatpush2.xpose.msra.mxu0 0.0
    %1158 = vmatprep.subr.mxu0 0.0
    %1159 = vmatpush2.xpose.msra.mxu0 0.0
    %1160 = vmatprep.subr.mxu0 0.0
    %1161 = vmatpush2.xpose.msra.mxu0 0.0
    %1162 = vmatprep.subr.mxu0 0.0
    %1163 = vmatpush2.xpose.msra.mxu0 0.0
    %1164 = vmatprep.mubr.f32.mxu0 0.0
    %1165 = vmatmul.mubr.f32.gmra.mxu0 %v1096
    %v1166 = vpop.f32.mrf.mxu0
    %v1167 = vadd.f32 0.0, %v1166
    %v1168 = vpop.f32.mrf.mxu0
    %1169 = vdwg.mxu0
    %v1170 = vmul.f32 %v1167, 0.25
    %v1171 = vsel %vm322, %v1170, -inf
    %1172 = vmax.xlane.f32.xlu0 %v1171
    %v1173 = vpop.xlane.xlu0 %1172
    %v1174 = vsub.f32 %v1170, %v1173
    %v1175 = vmul.f32 %v1174, 1.442695
    %v1176 = vpow.pop %v1175
    %v1177 = vsel %vm322, %v1176, 0.0
    %1178 = vadd.xlane.f32.xlu0 %v1177
    %v1179 = vpop.xlane.xlu0 %1178
    %v1180 = vrcp.pop %v1179
    %v1181 = vmul.f32 %v1176, %v1180
    %1183 = vrot.lane.b32.xlu0 %v927, 112
    %v1184 = vpop.permute.xlu0 %1183
    %v1187 = vsel %vm322, %v1181, 0
    %1189 = vmatprep.subr.mxu0 0.0
    %1190 = vmatpush1.msra.mxu0 0.0
    %1191 = vmatprep.subr.mxu0 0.0
    %1192 = vmatpush1.msra.mxu0 0.0
    %1193 = vmatprep.subr.mxu0 0.0
    %1194 = vmatpush1.msra.mxu0 0.0
    %1195 = vmatprep.subr.mxu0 0.0
    %1196 = vmatpush1.msra.mxu0 0.0
    %1197 = vmatprep.subr.mxu0 0.0
    %1198 = vmatpush1.msra.mxu0 0.0
    %1199 = vmatprep.subr.mxu0 0.0
    %1200 = vmatpush1.msra.mxu0 0.0
    %1201 = vmatprep.subr.mxu0 0.0
    %1202 = vmatpush1.msra.mxu0 0.0
    %1203 = vmatprep.subr.mxu0 0.0
    %1204 = vmatpush1.msra.mxu0 0.0
    %1205 = vmatprep.subr.mxu0 0.0
    %1206 = vmatpush1.msra.mxu0 0.0
    %1207 = vmatprep.subr.mxu0 0.0
    %1208 = vmatpush1.msra.mxu0 0.0
    %1209 = vmatprep.subr.mxu0 0.0
    %1210 = vmatpush1.msra.mxu0 0.0
    %1211 = vmatprep.subr.mxu0 0.0
    %1212 = vmatpush1.msra.mxu0 0.0
    %1213 = vmatprep.subr.mxu0 0.0
    %1214 = vmatpush1.msra.mxu0 0.0
    %1215 = vmatprep.subr.mxu0 0.0
    %1216 = vmatpush1.msra.mxu0 0.0
    %1217 = vmatprep.subr.mxu0 0.0
    %1218 = vmatpush1.msra.mxu0 0.0
    %1219 = vmatprep.subr.mxu0 0.0
    %1220 = vmatpush1.msra.mxu0 %v1184
    %1221 = vmatprep.subr.mxu0 0.0
    %1222 = vmatpush2.msra.mxu0 0.0
    %1223 = vmatprep.subr.mxu0 0.0
    %1224 = vmatpush2.msra.mxu0 0.0
    %1225 = vmatprep.subr.mxu0 0.0
    %1226 = vmatpush2.msra.mxu0 0.0
    %1227 = vmatprep.subr.mxu0 0.0
    %1228 = vmatpush2.msra.mxu0 0.0
    %1229 = vmatprep.subr.mxu0 0.0
    %1230 = vmatpush2.msra.mxu0 0.0
    %1231 = vmatprep.subr.mxu0 0.0
    %1232 = vmatpush2.msra.mxu0 0.0
    %1233 = vmatprep.subr.mxu0 0.0
    %1234 = vmatpush2.msra.mxu0 0.0
    %1235 = vmatprep.subr.mxu0 0.0
    %1236 = vmatpush2.msra.mxu0 0.0
    %1237 = vmatprep.subr.mxu0 0.0
    %1238 = vmatpush2.msra.mxu0 0.0
    %1239 = vmatprep.subr.mxu0 0.0
    %1240 = vmatpush2.msra.mxu0 0.0
    %1241 = vmatprep.subr.mxu0 0.0
    %1242 = vmatpush2.msra.mxu0 0.0
    %1243 = vmatprep.subr.mxu0 0.0
    %1244 = vmatpush2.msra.mxu0 0.0
    %1245 = vmatprep.subr.mxu0 0.0
    %1246 = vmatpush2.msra.mxu0 0.0
    %1247 = vmatprep.subr.mxu0 0.0
    %1248 = vmatpush2.msra.mxu0 0.0
    %1249 = vmatprep.subr.mxu0 0.0
    %1250 = vmatpush2.msra.mxu0 0.0
    %1251 = vmatprep.subr.mxu0 0.0
    %1252 = vmatpush2.msra.mxu0 0.0
    %1253 = vmatprep.mubr.f32.mxu0 0.0
    %1254 = vmatmul.mubr.f32.gmra.mxu0 %v1187
    %v1255 = vpop.f32.mrf.mxu0
    %v1256 = vadd.f32 0.0, %v1255
    %v1257 = vpop.f32.mrf.mxu0
    %1258 = vdwg.mxu0
    %1260 = vrot.lane.b32.xlu0 %v1256, 16
    %v1261 = vpop.permute.xlu0 %1260
    %1263 = vst.msk [vmem:[#allocation2 + $0x8] sm:$0xff] %vm579, %v1261
    %1264 = vrot.lane.b32.xlu0 %v925, 96
    %v1265 = vpop.permute.xlu0 %1264
    %1266 = vrot.lane.b32.xlu0 %v926, 32
    %v1267 = vpop.permute.xlu0 %1266
    %v1268 = vsel %vm37, %v1265, 0
    %v1270 = vsel %vm37, %v1267, 0
    %1272 = vmatprep.subr.mxu0 0.0
    %1273 = vmatpush1.xpose.msra.mxu0 0.0
    %1274 = vmatprep.subr.mxu0 0.0
    %1275 = vmatpush1.xpose.msra.mxu0 0.0
    %1276 = vmatprep.subr.mxu0 0.0
    %1277 = vmatpush1.xpose.msra.mxu0 0.0
    %1278 = vmatprep.subr.mxu0 0.0
    %1279 = vmatpush1.xpose.msra.mxu0 0.0
    %1280 = vmatprep.subr.mxu0 0.0
    %1281 = vmatpush1.xpose.msra.mxu0 0.0
    %1282 = vmatprep.subr.mxu0 0.0
    %1283 = vmatpush1.xpose.msra.mxu0 0.0
    %1284 = vmatprep.subr.mxu0 0.0
    %1285 = vmatpush1.xpose.msra.mxu0 0.0
    %1286 = vmatprep.subr.mxu0 0.0
    %1287 = vmatpush1.xpose.msra.mxu0 0.0
    %1288 = vmatprep.subr.mxu0 0.0
    %1289 = vmatpush1.xpose.msra.mxu0 0.0
    %1290 = vmatprep.subr.mxu0 0.0
    %1291 = vmatpush1.xpose.msra.mxu0 0.0
    %1292 = vmatprep.subr.mxu0 0.0
    %1293 = vmatpush1.xpose.msra.mxu0 0.0
    %1294 = vmatprep.subr.mxu0 0.0
    %1295 = vmatpush1.xpose.msra.mxu0 0.0
    %1296 = vmatprep.subr.mxu0 0.0
    %1297 = vmatpush1.xpose.msra.mxu0 0.0
    %1298 = vmatprep.subr.mxu0 0.0
    %1299 = vmatpush1.xpose.msra.mxu0 0.0
    %1300 = vmatprep.subr.mxu0 0.0
    %1301 = vmatpush1.xpose.msra.mxu0 0.0
    %1302 = vmatprep.subr.mxu0 0.0
    %1303 = vmatpush1.xpose.msra.mxu0 %v1270
    %1304 = vmatprep.subr.mxu0 0.0
    %1305 = vmatpush2.xpose.msra.mxu0 0.0
    %1306 = vmatprep.subr.mxu0 0.0
    %1307 = vmatpush2.xpose.msra.mxu0 0.0
    %1308 = vmatprep.subr.mxu0 0.0
    %1309 = vmatpush2.xpose.msra.mxu0 0.0
    %1310 = vmatprep.subr.mxu0 0.0
    %1311 = vmatpush2.xpose.msra.mxu0 0.0
    %1312 = vmatprep.subr.mxu0 0.0
    %1313 = vmatpush2.xpose.msra.mxu0 0.0
    %1314 = vmatprep.subr.mxu0 0.0
    %1315 = vmatpush2.xpose.msra.mxu0 0.0
    %1316 = vmatprep.subr.mxu0 0.0
    %1317 = vmatpush2.xpose.msra.mxu0 0.0
    %1318 = vmatprep.subr.mxu0 0.0
    %1319 = vmatpush2.xpose.msra.mxu0 0.0
    %1320 = vmatprep.subr.mxu0 0.0
    %1321 = vmatpush2.xpose.msra.mxu0 0.0
    %1322 = vmatprep.subr.mxu0 0.0
    %1323 = vmatpush2.xpose.msra.mxu0 0.0
    %1324 = vmatprep.subr.mxu0 0.0
    %1325 = vmatpush2.xpose.msra.mxu0 0.0
    %1326 = vmatprep.subr.mxu0 0.0
    %1327 = vmatpush2.xpose.msra.mxu0 0.0
    %1328 = vmatprep.subr.mxu0 0.0
    %1329 = vmatpush2.xpose.msra.mxu0 0.0
    %1330 = vmatprep.subr.mxu0 0.0
    %1331 = vmatpush2.xpose.msra.mxu0 0.0
    %1332 = vmatprep.subr.mxu0 0.0
    %1333 = vmatpush2.xpose.msra.mxu0 0.0
    %1334 = vmatprep.subr.mxu0 0.0
    %1335 = vmatpush2.xpose.msra.mxu0 0.0
    %1336 = vmatprep.mubr.f32.mxu0 0.0
    %1337 = vmatmul.mubr.f32.gmra.mxu0 %v1268
    %v1338 = vpop.f32.mrf.mxu0
    %v1339 = vadd.f32 0.0, %v1338
    %v1340 = vpop.f32.mrf.mxu0
    %1341 = vdwg.mxu0
    %v1342 = vmul.f32 %v1339, 0.25
    %v1343 = vsel %vm322, %v1342, -inf
    %1344 = vmax.xlane.f32.xlu0 %v1343
    %v1345 = vpop.xlane.xlu0 %1344
    %v1346 = vsub.f32 %v1342, %v1345
    %v1347 = vmul.f32 %v1346, 1.442695
    %v1348 = vpow.pop %v1347
    %v1349 = vsel %vm322, %v1348, 0.0
    %1350 = vadd.xlane.f32.xlu0 %v1349
    %v1351 = vpop.xlane.xlu0 %1350
    %v1352 = vrcp.pop %v1351
    %v1353 = vmul.f32 %v1348, %v1352
    %1354 = vrot.lane.b32.xlu0 %v927, 96
    %v1355 = vpop.permute.xlu0 %1354
    %v1358 = vsel %vm322, %v1353, 0
    %1360 = vmatprep.subr.mxu0 0.0
    %1361 = vmatpush1.msra.mxu0 0.0
    %1362 = vmatprep.subr.mxu0 0.0
    %1363 = vmatpush1.msra.mxu0 0.0
    %1364 = vmatprep.subr.mxu0 0.0
    %1365 = vmatpush1.msra.mxu0 0.0
    %1366 = vmatprep.subr.mxu0 0.0
    %1367 = vmatpush1.msra.mxu0 0.0
    %1368 = vmatprep.subr.mxu0 0.0
    %1369 = vmatpush1.msra.mxu0 0.0
    %1370 = vmatprep.subr.mxu0 0.0
    %1371 = vmatpush1.msra.mxu0 0.0
    %1372 = vmatprep.subr.mxu0 0.0
    %1373 = vmatpush1.msra.mxu0 0.0
    %1374 = vmatprep.subr.mxu0 0.0
    %1375 = vmatpush1.msra.mxu0 0.0
    %1376 = vmatprep.subr.mxu0 0.0
    %1377 = vmatpush1.msra.mxu0 0.0
    %1378 = vmatprep.subr.mxu0 0.0
    %1379 = vmatpush1.msra.mxu0 0.0
    %1380 = vmatprep.subr.mxu0 0.0
    %1381 = vmatpush1.msra.mxu0 0.0
    %1382 = vmatprep.subr.mxu0 0.0
    %1383 = vmatpush1.msra.mxu0 0.0
    %1384 = vmatprep.subr.mxu0 0.0
    %1385 = vmatpush1.msra.mxu0 0.0
    %1386 = vmatprep.subr.mxu0 0.0
    %1387 = vmatpush1.msra.mxu0 0.0
    %1388 = vmatprep.subr.mxu0 0.0
    %1389 = vmatpush1.msra.mxu0 0.0
    %1390 = vmatprep.subr.mxu0 0.0
    %1391 = vmatpush1.msra.mxu0 %v1355
    %1392 = vmatprep.subr.mxu0 0.0
    %1393 = vmatpush2.msra.mxu0 0.0
    %1394 = vmatprep.subr.mxu0 0.0
    %1395 = vmatpush2.msra.mxu0 0.0
    %1396 = vmatprep.subr.mxu0 0.0
    %1397 = vmatpush2.msra.mxu0 0.0
    %1398 = vmatprep.subr.mxu0 0.0
    %1399 = vmatpush2.msra.mxu0 0.0
    %1400 = vmatprep.subr.mxu0 0.0
    %1401 = vmatpush2.msra.mxu0 0.0
    %1402 = vmatprep.subr.mxu0 0.0
    %1403 = vmatpush2.msra.mxu0 0.0
    %1404 = vmatprep.subr.mxu0 0.0
    %1405 = vmatpush2.msra.mxu0 0.0
    %1406 = vmatprep.subr.mxu0 0.0
    %1407 = vmatpush2.msra.mxu0 0.0
    %1408 = vmatprep.subr.mxu0 0.0
    %1409 = vmatpush2.msra.mxu0 0.0
    %1410 = vmatprep.subr.mxu0 0.0
    %1411 = vmatpush2.msra.mxu0 0.0
    %1412 = vmatprep.subr.mxu0 0.0
    %1413 = vmatpush2.msra.mxu0 0.0
    %1414 = vmatprep.subr.mxu0 0.0
    %1415 = vmatpush2.msra.mxu0 0.0
    %1416 = vmatprep.subr.mxu0 0.0
    %1417 = vmatpush2.msra.mxu0 0.0
    %1418 = vmatprep.subr.mxu0 0.0
    %1419 = vmatpush2.msra.mxu0 0.0
    %1420 = vmatprep.subr.mxu0 0.0
    %1421 = vmatpush2.msra.mxu0 0.0
    %1422 = vmatprep.subr.mxu0 0.0
    %1423 = vmatpush2.msra.mxu0 0.0
    %1424 = vmatprep.mubr.f32.mxu0 0.0
    %1425 = vmatmul.mubr.f32.gmra.mxu0 %v1358
    %v1426 = vpop.f32.mrf.mxu0
    %v1427 = vadd.f32 0.0, %v1426
    %v1428 = vpop.f32.mrf.mxu0
    %1429 = vdwg.mxu0
    %1431 = vrot.lane.b32.xlu0 %v1427, 32
    %v1432 = vpop.permute.xlu0 %1431
    %1434 = vst.msk [vmem:[#allocation2 + $0x8] sm:$0xff] %vm751, %v1432
    %1435 = vrot.lane.b32.xlu0 %v925, 80
    %v1436 = vpop.permute.xlu0 %1435
    %1437 = vrot.lane.b32.xlu0 %v926, 16
    %v1438 = vpop.permute.xlu0 %1437
    %v1439 = vsel %vm37, %v1436, 0
    %v1441 = vsel %vm37, %v1438, 0
    %1443 = vmatprep.subr.mxu0 0.0
    %1444 = vmatpush1.xpose.msra.mxu0 0.0
    %1445 = vmatprep.subr.mxu0 0.0
    %1446 = vmatpush1.xpose.msra.mxu0 0.0
    %1447 = vmatprep.subr.mxu0 0.0
    %1448 = vmatpush1.xpose.msra.mxu0 0.0
    %1449 = vmatprep.subr.mxu0 0.0
    %1450 = vmatpush1.xpose.msra.mxu0 0.0
    %1451 = vmatprep.subr.mxu0 0.0
    %1452 = vmatpush1.xpose.msra.mxu0 0.0
    %1453 = vmatprep.subr.mxu0 0.0
    %1454 = vmatpush1.xpose.msra.mxu0 0.0
    %1455 = vmatprep.subr.mxu0 0.0
    %1456 = vmatpush1.xpose.msra.mxu0 0.0
    %1457 = vmatprep.subr.mxu0 0.0
    %1458 = vmatpush1.xpose.msra.mxu0 0.0
    %1459 = vmatprep.subr.mxu0 0.0
    %1460 = vmatpush1.xpose.msra.mxu0 0.0
    %1461 = vmatprep.subr.mxu0 0.0
    %1462 = vmatpush1.xpose.msra.mxu0 0.0
    %1463 = vmatprep.subr.mxu0 0.0
    %1464 = vmatpush1.xpose.msra.mxu0 0.0
    %1465 = vmatprep.subr.mxu0 0.0
    %1466 = vmatpush1.xpose.msra.mxu0 0.0
    %1467 = vmatprep.subr.mxu0 0.0
    %1468 = vmatpush1.xpose.msra.mxu0 0.0
    %1469 = vmatprep.subr.mxu0 0.0
    %1470 = vmatpush1.xpose.msra.mxu0 0.0
    %1471 = vmatprep.subr.mxu0 0.0
    %1472 = vmatpush1.xpose.msra.mxu0 0.0
    %1473 = vmatprep.subr.mxu0 0.0
    %1474 = vmatpush1.xpose.msra.mxu0 %v1441
    %1475 = vmatprep.subr.mxu0 0.0
    %1476 = vmatpush2.xpose.msra.mxu0 0.0
    %1477 = vmatprep.subr.mxu0 0.0
    %1478 = vmatpush2.xpose.msra.mxu0 0.0
    %1479 = vmatprep.subr.mxu0 0.0
    %1480 = vmatpush2.xpose.msra.mxu0 0.0
    %1481 = vmatprep.subr.mxu0 0.0
    %1482 = vmatpush2.xpose.msra.mxu0 0.0
    %1483 = vmatprep.subr.mxu0 0.0
    %1484 = vmatpush2.xpose.msra.mxu0 0.0
    %1485 = vmatprep.subr.mxu0 0.0
    %1486 = vmatpush2.xpose.msra.mxu0 0.0
    %1487 = vmatprep.subr.mxu0 0.0
    %1488 = vmatpush2.xpose.msra.mxu0 0.0
    %1489 = vmatprep.subr.mxu0 0.0
    %1490 = vmatpush2.xpose.msra.mxu0 0.0
    %1491 = vmatprep.subr.mxu0 0.0
    %1492 = vmatpush2.xpose.msra.mxu0 0.0
    %1493 = vmatprep.subr.mxu0 0.0
    %1494 = vmatpush2.xpose.msra.mxu0 0.0
    %1495 = vmatprep.subr.mxu0 0.0
    %1496 = vmatpush2.xpose.msra.mxu0 0.0
    %1497 = vmatprep.subr.mxu0 0.0
    %1498 = vmatpush2.xpose.msra.mxu0 0.0
    %1499 = vmatprep.subr.mxu0 0.0
    %1500 = vmatpush2.xpose.msra.mxu0 0.0
    %1501 = vmatprep.subr.mxu0 0.0
    %1502 = vmatpush2.xpose.msra.mxu0 0.0
    %1503 = vmatprep.subr.mxu0 0.0
    %1504 = vmatpush2.xpose.msra.mxu0 0.0
    %1505 = vmatprep.subr.mxu0 0.0
    %1506 = vmatpush2.xpose.msra.mxu0 0.0
    %1507 = vmatprep.mubr.f32.mxu0 0.0
    %1508 = vmatmul.mubr.f32.gmra.mxu0 %v1439
    %v1509 = vpop.f32.mrf.mxu0
    %v1510 = vadd.f32 0.0, %v1509
    %v1511 = vpop.f32.mrf.mxu0
    %1512 = vdwg.mxu0
    %v1513 = vmul.f32 %v1510, 0.25
    %v1514 = vsel %vm322, %v1513, -inf
    %1515 = vmax.xlane.f32.xlu0 %v1514
    %v1516 = vpop.xlane.xlu0 %1515
    %v1517 = vsub.f32 %v1513, %v1516
    %v1518 = vmul.f32 %v1517, 1.442695
    %v1519 = vpow.pop %v1518
    %v1520 = vsel %vm322, %v1519, 0.0
    %1521 = vadd.xlane.f32.xlu0 %v1520
    %v1522 = vpop.xlane.xlu0 %1521
    %v1523 = vrcp.pop %v1522
    %v1524 = vmul.f32 %v1519, %v1523
    %1525 = vrot.lane.b32.xlu0 %v927, 80
    %v1526 = vpop.permute.xlu0 %1525
    %v1529 = vsel %vm322, %v1524, 0
    %1531 = vmatprep.subr.mxu0 0.0
    %1532 = vmatpush1.msra.mxu0 0.0
    %1533 = vmatprep.subr.mxu0 0.0
    %1534 = vmatpush1.msra.mxu0 0.0
    %1535 = vmatprep.subr.mxu0 0.0
    %1536 = vmatpush1.msra.mxu0 0.0
    %1537 = vmatprep.subr.mxu0 0.0
    %1538 = vmatpush1.msra.mxu0 0.0
    %1539 = vmatprep.subr.mxu0 0.0
    %1540 = vmatpush1.msra.mxu0 0.0
    %1541 = vmatprep.subr.mxu0 0.0
    %1542 = vmatpush1.msra.mxu0 0.0
    %1543 = vmatprep.subr.mxu0 0.0
    %1544 = vmatpush1.msra.mxu0 0.0
    %1545 = vmatprep.subr.mxu0 0.0
    %1546 = vmatpush1.msra.mxu0 0.0
    %1547 = vmatprep.subr.mxu0 0.0
    %1548 = vmatpush1.msra.mxu0 0.0
    %1549 = vmatprep.subr.mxu0 0.0
    %1550 = vmatpush1.msra.mxu0 0.0
    %1551 = vmatprep.subr.mxu0 0.0
    %1552 = vmatpush1.msra.mxu0 0.0
    %1553 = vmatprep.subr.mxu0 0.0
    %1554 = vmatpush1.msra.mxu0 0.0
    %1555 = vmatprep.subr.mxu0 0.0
    %1556 = vmatpush1.msra.mxu0 0.0
    %1557 = vmatprep.subr.mxu0 0.0
    %1558 = vmatpush1.msra.mxu0 0.0
    %1559 = vmatprep.subr.mxu0 0.0
    %1560 = vmatpush1.msra.mxu0 0.0
    %1561 = vmatprep.subr.mxu0 0.0
    %1562 = vmatpush1.msra.mxu0 %v1526
    %1563 = vmatprep.subr.mxu0 0.0
    %1564 = vmatpush2.msra.mxu0 0.0
    %1565 = vmatprep.subr.mxu0 0.0
    %1566 = vmatpush2.msra.mxu0 0.0
    %1567 = vmatprep.subr.mxu0 0.0
    %1568 = vmatpush2.msra.mxu0 0.0
    %1569 = vmatprep.subr.mxu0 0.0
    %1570 = vmatpush2.msra.mxu0 0.0
    %1571 = vmatprep.subr.mxu0 0.0
    %1572 = vmatpush2.msra.mxu0 0.0
    %1573 = vmatprep.subr.mxu0 0.0
    %1574 = vmatpush2.msra.mxu0 0.0
    %1575 = vmatprep.subr.mxu0 0.0
    %1576 = vmatpush2.msra.mxu0 0.0
    %1577 = vmatprep.subr.mxu0 0.0
    %1578 = vmatpush2.msra.mxu0 0.0
    %1579 = vmatprep.subr.mxu0 0.0
    %1580 = vmatpush2.msra.mxu0 0.0
    %1581 = vmatprep.subr.mxu0 0.0
    %1582 = vmatpush2.msra.mxu0 0.0
    %1583 = vmatprep.subr.mxu0 0.0
    %1584 = vmatpush2.msra.mxu0 0.0
    %1585 = vmatprep.subr.mxu0 0.0
    %1586 = vmatpush2.msra.mxu0 0.0
    %1587 = vmatprep.subr.mxu0 0.0
    %1588 = vmatpush2.msra.mxu0 0.0
    %1589 = vmatprep.subr.mxu0 0.0
    %1590 = vmatpush2.msra.mxu0 0.0
    %1591 = vmatprep.subr.mxu0 0.0
    %1592 = vmatpush2.msra.mxu0 0.0
    %1593 = vmatprep.subr.mxu0 0.0
    %1594 = vmatpush2.msra.mxu0 0.0
    %1595 = vmatprep.mubr.f32.mxu0 0.0
    %1596 = vmatmul.mubr.f32.gmra.mxu0 %v1529
    %v1597 = vpop.f32.mrf.mxu0
    %v1598 = vadd.f32 0.0, %v1597
    %v1599 = vpop.f32.mrf.mxu0
    %1600 = vdwg.mxu0
    %1602 = vrot.lane.b32.xlu0 %v1598, 48
    %v1603 = vpop.permute.xlu0 %1602
    %1605 = vst.msk [vmem:[#allocation2 + $0x8] sm:$0xff] %vm923, %v1603
    %v1606 = vld [vmem:[#allocation2] sm:$0xff]
    %v1607 = vld [vmem:[#allocation2 + $0x8] sm:$0xff]
    %v1608 = vpack.c.bf16 %v1607, %v1606
    %v1609 = vld [vmem:[%s3] sm:$0xf]
    %v1610 = vld [vmem:[%s3 + $0x4] sm:$0xf]
    %v1611 = vld [vmem:[%s3 + $0x8] sm:$0xf]
    %v1612 = vld [vmem:[%s3 + $0xc] sm:$0xf]
    %v1613 = vld [vmem:[%s3 + $0x10] sm:$0xf]
    %v1614 = vld [vmem:[%s3 + $0x14] sm:$0xf]
    %v1615 = vld [vmem:[%s3 + $0x18] sm:$0xf]
    %v1616 = vld [vmem:[%s3 + $0x1c] sm:$0xf]
    %v1617 = vlaneseq
    %v1618 = vshrl.u32 %v1617, 7
    %v1619 = vsub.s32 0, %v1618
    %v1620 = vrot.slane %v122, %v1619
    %v1629 = vunpack.c.l.b16 %v1609
    %v1630 = vunpack.c.l.b16 %v1610
    %v1631 = vunpack.c.l.b16 %v1611
    %v1632 = vunpack.c.l.b16 %v1612
    %v1633 = vunpack.c.l.b16 %v1613
    %v1634 = vunpack.c.l.b16 %v1614
    %v1635 = vunpack.c.l.b16 %v1615
    %v1636 = vunpack.c.l.b16 %v1616
    %v1637 = vpack.c.b16 %v1630, %v1629
    %v1638 = vpack.c.b16 %v1632, %v1631
    %v1639 = vpack.c.b16 %v1634, %v1633
    %v1640 = vpack.c.b16 %v1636, %v1635
    %v1646 = vsel %vm177, %v1608, 0
    %1648 = vmatprep.subr.bf16.mxu0 0
    %1649 = vmatpush1.bf16.msra.mxu0 0
    %1650 = vmatprep.subr.bf16.mxu0 0
    %1651 = vmatpush1.bf16.msra.mxu0 0
    %1652 = vmatprep.subr.bf16.mxu0 0
    %1653 = vmatpush1.bf16.msra.mxu0 0
    %1654 = vmatprep.subr.bf16.mxu0 0
    %1655 = vmatpush1.bf16.msra.mxu0 0
    %1656 = vmatprep.subr.bf16.mxu0 0
    %1657 = vmatpush1.bf16.msra.mxu0 %v1640
    %1658 = vmatprep.subr.bf16.mxu0 0
    %1659 = vmatpush1.bf16.msra.mxu0 %v1639
    %1660 = vmatprep.subr.bf16.mxu0 0
    %1661 = vmatpush1.bf16.msra.mxu0 %v1638
    %1662 = vmatprep.subr.bf16.mxu0 0
    %1663 = vmatpush1.bf16.msra.mxu0 %v1637
    %1664 = vmatprep.subr.bf16.mxu0 0
    %1665 = vmatpush2.bf16.msra.mxu0 0
    %1666 = vmatprep.subr.bf16.mxu0 0
    %1667 = vmatpush2.bf16.msra.mxu0 0
    %1668 = vmatprep.subr.bf16.mxu0 0
    %1669 = vmatpush2.bf16.msra.mxu0 0
    %1670 = vmatprep.subr.bf16.mxu0 0
    %1671 = vmatpush2.bf16.msra.mxu0 0
    %1672 = vmatprep.subr.bf16.mxu0 0
    %1673 = vmatpush2.bf16.msra.mxu0 0
    %1674 = vmatprep.subr.bf16.mxu0 0
    %1675 = vmatpush2.bf16.msra.mxu0 0
    %1676 = vmatprep.subr.bf16.mxu0 0
    %1677 = vmatpush2.bf16.msra.mxu0 0
    %1678 = vmatprep.subr.bf16.mxu0 0
    %1679 = vmatpush2.bf16.msra.mxu0 0
    %1680 = vmatprep.mubr.bf16.mxu0 0
    %1681 = vmatmul.mubr.bf16.gmra.mxu0 %v1646
    %v1682 = vpop.f32.mrf.mxu0
    %v1683 = vadd.f32 %v1620, %v1682
    %v1684 = vpop.f32.mrf.mxu0
    %v1685 = vpop.f32.mrf.mxu0
    %v1686 = vadd.f32 %v1620, %v1685
    %v1687 = vpop.f32.mrf.mxu0
    %1688 = vdwg.mxu0
    %v1689 = vadd.f32 %v111, %v1683
    %v1690 = vadd.f32 %v116, %v1686
    %v1691 = vsel %vm177, %v1689, 0.0
    %1692 = vadd.xlane.f32.xlu0 %v1691
    %v1693 = vpop.xlane.xlu0 %1692
    %v1694 = vsel %vm177, %v1690, 0.0
    %1695 = vadd.xlane.f32.xlu0 %v1694
    %v1696 = vpop.xlane.xlu0 %1695
    %v1697 = vrcp.pop 64.0
    %v1698 = vmul.f32 %v1693, %v1697
    %v1699 = vmul.f32 %v1696, %v1697
    %v1700 = vsub.f32 %v1689, %v1698
    %v1701 = vsub.f32 %v1690, %v1699
    %v1702 = vmul.f32 %v1700, %v1700
    %v1703 = vmul.f32 %v1701, %v1701
    %v1704 = vsel %vm177, %v1702, 0.0
    %1705 = vadd.xlane.f32.xlu0 %v1704
    %v1706 = vpop.xlane.xlu0 %1705
    %v1707 = vsel %vm177, %v1703, 0.0
    %1708 = vadd.xlane.f32.xlu0 %v1707
    %v1709 = vpop.xlane.xlu0 %1708
    %v1710 = vmul.f32 %v1706, %v1697
    %v1711 = vmul.f32 %v1709, %v1697
    %v1712 = vadd.f32 %v1710, 1e-05
    %v1713 = vadd.f32 %v1711, 1e-05
    %v1714 = vrsqrt.pop %v1712
    %v1715 = vrsqrt.pop %v1713
    %v1716 = vmul.f32 %v1700, %v1714
    %v1717 = vmul.f32 %v1701, %v1715
    %v1718 = vlaneseq
    %v1719 = vshrl.u32 %v1718, 7
    %v1720 = vsub.s32 0, %v1719
    %v1721 = vrot.slane %v123, %v1720
    %v1722 = vmul.f32 %v1716, %v1721
    %v1723 = vmul.f32 %v1717, %v1721
    %v1724 = vlaneseq
    %v1725 = vshrl.u32 %v1724, 7
    %v1726 = vsub.s32 0, %v1725
    %v1727 = vrot.slane %v124, %v1726
    %v1728 = vadd.f32 %v1722, %v1727
    %v1729 = vadd.f32 %v1723, %v1727
    %v1730 = vpack.c.bf16 %v1729, %v1728
    %v1731 = vld [vmem:[%s4] sm:$0xff]
    %v1732 = vld [vmem:[%s4 + $0x8] sm:$0xff]
    %v1733 = vld [vmem:[%s4 + $0x10] sm:$0xff]
    %v1734 = vld [vmem:[%s4 + $0x18] sm:$0xff]
    %v1735 = vld [vmem:[%s4 + $0x20] sm:$0xff]
    %v1736 = vld [vmem:[%s4 + $0x28] sm:$0xff]
    %v1737 = vld [vmem:[%s4 + $0x30] sm:$0xff]
    %v1738 = vld [vmem:[%s4 + $0x38] sm:$0xff]
    %v1739 = vld [vmem:[%s4 + $0x40] sm:$0xff]
    %v1740 = vld [vmem:[%s4 + $0x48] sm:$0xff]
    %v1741 = vld [vmem:[%s4 + $0x50] sm:$0xff]
    %v1742 = vld [vmem:[%s4 + $0x58] sm:$0xff]
    %v1743 = vld [vmem:[%s4 + $0x60] sm:$0xff]
    %v1744 = vld [vmem:[%s4 + $0x68] sm:$0xff]
    %v1745 = vld [vmem:[%s4 + $0x70] sm:$0xff]
    %v1746 = vld [vmem:[%s4 + $0x78] sm:$0xff]
    %v1747 = vld [vmem:[%s4 + $0x80] sm:$0xff]
    %v1748 = vld [vmem:[%s4 + $0x88] sm:$0xff]
    %v1749 = vld [vmem:[%s4 + $0x90] sm:$0xff]
    %v1750 = vld [vmem:[%s4 + $0x98] sm:$0xff]
    %v1751 = vld [vmem:[%s4 + $0xa0] sm:$0xff]
    %v1752 = vld [vmem:[%s4 + $0xa8] sm:$0xff]
    %v1753 = vld [vmem:[%s4 + $0xb0] sm:$0xff]
    %v1754 = vld [vmem:[%s4 + $0xb8] sm:$0xff]
    %v1755 = vld [vmem:[%s4 + $0xc0] sm:$0xff]
    %v1756 = vld [vmem:[%s4 + $0xc8] sm:$0xff]
    %v1757 = vld [vmem:[%s4 + $0xd0] sm:$0xff]
    %v1758 = vld [vmem:[%s4 + $0xd8] sm:$0xff]
    %v1759 = vld [vmem:[%s4 + $0xe0] sm:$0xff]
    %v1760 = vld [vmem:[%s4 + $0xe8] sm:$0xff]
    %v1761 = vld [vmem:[%s4 + $0xf0] sm:$0xff]
    %v1762 = vld [vmem:[%s4 + $0xf8] sm:$0xff]
    %v1763 = vld [vmem:[%s4 + $0x100] sm:$0xff]
    %v1764 = vld [vmem:[%s4 + $0x108] sm:$0xff]
    %v1765 = vld [vmem:[%s4 + $0x110] sm:$0xff]
    %v1766 = vld [vmem:[%s4 + $0x118] sm:$0xff]
    %v1767 = vld [vmem:[%s4 + $0x120] sm:$0xff]
    %v1768 = vld [vmem:[%s4 + $0x128] sm:$0xff]
    %v1769 = vld [vmem:[%s4 + $0x130] sm:$0xff]
    %v1770 = vld [vmem:[%s4 + $0x138] sm:$0xff]
    %v1771 = vld [vmem:[%s4 + $0x140] sm:$0xff]
    %v1772 = vld [vmem:[%s4 + $0x148] sm:$0xff]
    %v1773 = vld [vmem:[%s4 + $0x150] sm:$0xff]
    %v1774 = vld [vmem:[%s4 + $0x158] sm:$0xff]
    %v1775 = vld [vmem:[%s4 + $0x160] sm:$0xff]
    %v1776 = vld [vmem:[%s4 + $0x168] sm:$0xff]
    %v1777 = vld [vmem:[%s4 + $0x170] sm:$0xff]
    %v1778 = vld [vmem:[%s4 + $0x178] sm:$0xff]
    %v1779 = vld [vmem:[%s4 + $0x180] sm:$0xff]
    %v1780 = vld [vmem:[%s4 + $0x188] sm:$0xff]
    %v1781 = vld [vmem:[%s4 + $0x190] sm:$0xff]
    %v1782 = vld [vmem:[%s4 + $0x198] sm:$0xff]
    %v1783 = vld [vmem:[%s4 + $0x1a0] sm:$0xff]
    %v1784 = vld [vmem:[%s4 + $0x1a8] sm:$0xff]
    %v1785 = vld [vmem:[%s4 + $0x1b0] sm:$0xff]
    %v1786 = vld [vmem:[%s4 + $0x1b8] sm:$0xff]
    %v1787 = vld [vmem:[%s4 + $0x1c0] sm:$0xff]
    %v1788 = vld [vmem:[%s4 + $0x1c8] sm:$0xff]
    %v1789 = vld [vmem:[%s4 + $0x1d0] sm:$0xff]
    %v1790 = vld [vmem:[%s4 + $0x1d8] sm:$0xff]
    %v1791 = vld [vmem:[%s4 + $0x1e0] sm:$0xff]
    %v1792 = vld [vmem:[%s4 + $0x1e8] sm:$0xff]
    %v1793 = vld [vmem:[%s4 + $0x1f0] sm:$0xff]
    %v1794 = vld [vmem:[%s4 + $0x1f8] sm:$0xff]
    %v1795 = vld [vmem:[%s5] sm:$0xff]
    %v1796 = vld [vmem:[%s5 + $0x8] sm:$0xff]
    %v1799 = vlaneseq
    %v1800 = vshrl.u32 %v1799, 7
    %v1801 = vsub.s32 0, %v1800
    %v1802 = vrot.slane %v1795, %v1801
    %v1803 = vlaneseq
    %v1804 = vshrl.u32 %v1803, 7
    %v1805 = vsub.s32 1, %v1804
    %v1806 = vrot.slane %v1795, %v1805
    %v1807 = vlaneseq
    %v1808 = vshrl.u32 %v1807, 7
    %v1809 = vsub.s32 2, %v1808
    %v1810 = vrot.slane %v1795, %v1809
    %v1811 = vlaneseq
    %v1812 = vshrl.u32 %v1811, 7
    %v1813 = vsub.s32 3, %v1812
    %v1814 = vrot.slane %v1795, %v1813
    %v1815 = vlaneseq
    %v1816 = vshrl.u32 %v1815, 7
    %v1817 = vsub.s32 4, %v1816
    %v1818 = vrot.slane %v1795, %v1817
    %v1819 = vlaneseq
    %v1820 = vshrl.u32 %v1819, 7
    %v1821 = vsub.s32 5, %v1820
    %v1822 = vrot.slane %v1795, %v1821
    %v1823 = vlaneseq
    %v1824 = vshrl.u32 %v1823, 7
    %v1825 = vsub.s32 6, %v1824
    %v1826 = vrot.slane %v1795, %v1825
    %v1827 = vlaneseq
    %v1828 = vshrl.u32 %v1827, 7
    %v1829 = vsub.s32 7, %v1828
    %v1830 = vrot.slane %v1795, %v1829
    %v1831 = vlaneseq
    %v1832 = vshrl.u32 %v1831, 7
    %v1833 = vsub.s32 0, %v1832
    %v1834 = vrot.slane %v1796, %v1833
    %v1835 = vlaneseq
    %v1836 = vshrl.u32 %v1835, 7
    %v1837 = vsub.s32 1, %v1836
    %v1838 = vrot.slane %v1796, %v1837
    %v1839 = vlaneseq
    %v1840 = vshrl.u32 %v1839, 7
    %v1841 = vsub.s32 2, %v1840
    %v1842 = vrot.slane %v1796, %v1841
    %v1843 = vlaneseq
    %v1844 = vshrl.u32 %v1843, 7
    %v1845 = vsub.s32 3, %v1844
    %v1846 = vrot.slane %v1796, %v1845
    %v1847 = vlaneseq
    %v1848 = vshrl.u32 %v1847, 7
    %v1849 = vsub.s32 4, %v1848
    %v1850 = vrot.slane %v1796, %v1849
    %v1851 = vlaneseq
    %v1852 = vshrl.u32 %v1851, 7
    %v1853 = vsub.s32 5, %v1852
    %v1854 = vrot.slane %v1796, %v1853
    %v1855 = vlaneseq
    %v1856 = vshrl.u32 %v1855, 7
    %v1857 = vsub.s32 6, %v1856
    %v1858 = vrot.slane %v1796, %v1857
    %v1859 = vlaneseq
    %v1860 = vshrl.u32 %v1859, 7
    %v1861 = vsub.s32 7, %v1860
    %v1862 = vrot.slane %v1796, %v1861
    %v1943 = vunpack.c.l.b16 %v1731
    %v1944 = vunpack.c.h.b16 %v1731
    %v1945 = vunpack.c.l.b16 %v1732
    %v1946 = vunpack.c.h.b16 %v1732
    %v1947 = vunpack.c.l.b16 %v1733
    %v1948 = vunpack.c.h.b16 %v1733
    %v1949 = vunpack.c.l.b16 %v1734
    %v1950 = vunpack.c.h.b16 %v1734
    %v1951 = vunpack.c.l.b16 %v1735
    %v1952 = vunpack.c.h.b16 %v1735
    %v1953 = vunpack.c.l.b16 %v1736
    %v1954 = vunpack.c.h.b16 %v1736
    %v1955 = vunpack.c.l.b16 %v1737
    %v1956 = vunpack.c.h.b16 %v1737
    %v1957 = vunpack.c.l.b16 %v1738
    %v1958 = vunpack.c.h.b16 %v1738
    %v1959 = vunpack.c.l.b16 %v1739
    %v1960 = vunpack.c.h.b16 %v1739
    %v1961 = vunpack.c.l.b16 %v1740
    %v1962 = vunpack.c.h.b16 %v1740
    %v1963 = vunpack.c.l.b16 %v1741
    %v1964 = vunpack.c.h.b16 %v1741
    %v1965 = vunpack.c.l.b16 %v1742
    %v1966 = vunpack.c.h.b16 %v1742
    %v1967 = vunpack.c.l.b16 %v1743
    %v1968 = vunpack.c.h.b16 %v1743
    %v1969 = vunpack.c.l.b16 %v1744
    %v1970 = vunpack.c.h.b16 %v1744
    %v1971 = vunpack.c.l.b16 %v1745
    %v1972 = vunpack.c.h.b16 %v1745
    %v1973 = vunpack.c.l.b16 %v1746
    %v1974 = vunpack.c.h.b16 %v1746
    %v1975 = vunpack.c.l.b16 %v1747
    %v1976 = vunpack.c.h.b16 %v1747
    %v1977 = vunpack.c.l.b16 %v1748
    %v1978 = vunpack.c.h.b16 %v1748
    %v1979 = vunpack.c.l.b16 %v1749
    %v1980 = vunpack.c.h.b16 %v1749
    %v1981 = vunpack.c.l.b16 %v1750
    %v1982 = vunpack.c.h.b16 %v1750
    %v1983 = vunpack.c.l.b16 %v1751
    %v1984 = vunpack.c.h.b16 %v1751
    %v1985 = vunpack.c.l.b16 %v1752
    %v1986 = vunpack.c.h.b16 %v1752
    %v1987 = vunpack.c.l.b16 %v1753
    %v1988 = vunpack.c.h.b16 %v1753
    %v1989 = vunpack.c.l.b16 %v1754
    %v1990 = vunpack.c.h.b16 %v1754
    %v1991 = vunpack.c.l.b16 %v1755
    %v1992 = vunpack.c.h.b16 %v1755
    %v1993 = vunpack.c.l.b16 %v1756
    %v1994 = vunpack.c.h.b16 %v1756
    %v1995 = vunpack.c.l.b16 %v1757
    %v1996 = vunpack.c.h.b16 %v1757
    %v1997 = vunpack.c.l.b16 %v1758
    %v1998 = vunpack.c.h.b16 %v1758
    %v1999 = vunpack.c.l.b16 %v1759
    %v2000 = vunpack.c.h.b16 %v1759
    %v2001 = vunpack.c.l.b16 %v1760
    %v2002 = vunpack.c.h.b16 %v1760
    %v2003 = vunpack.c.l.b16 %v1761
    %v2004 = vunpack.c.h.b16 %v1761
    %v2005 = vunpack.c.l.b16 %v1762
    %v2006 = vunpack.c.h.b16 %v1762
    %v2007 = vunpack.c.l.b16 %v1763
    %v2008 = vunpack.c.h.b16 %v1763
    %v2009 = vunpack.c.l.b16 %v1764
    %v2010 = vunpack.c.h.b16 %v1764
    %v2011 = vunpack.c.l.b16 %v1765
    %v2012 = vunpack.c.h.b16 %v1765
    %v2013 = vunpack.c.l.b16 %v1766
    %v2014 = vunpack.c.h.b16 %v1766
    %v2015 = vunpack.c.l.b16 %v1767
    %v2016 = vunpack.c.h.b16 %v1767
    %v2017 = vunpack.c.l.b16 %v1768
    %v2018 = vunpack.c.h.b16 %v1768
    %v2019 = vunpack.c.l.b16 %v1769
    %v2020 = vunpack.c.h.b16 %v1769
    %v2021 = vunpack.c.l.b16 %v1770
    %v2022 = vunpack.c.h.b16 %v1770
    %v2023 = vunpack.c.l.b16 %v1771
    %v2024 = vunpack.c.h.b16 %v1771
    %v2025 = vunpack.c.l.b16 %v1772
    %v2026 = vunpack.c.h.b16 %v1772
    %v2027 = vunpack.c.l.b16 %v1773
    %v2028 = vunpack.c.h.b16 %v1773
    %v2029 = vunpack.c.l.b16 %v1774
    %v2030 = vunpack.c.h.b16 %v1774
    %v2031 = vunpack.c.l.b16 %v1775
    %v2032 = vunpack.c.h.b16 %v1775
    %v2033 = vunpack.c.l.b16 %v1776
    %v2034 = vunpack.c.h.b16 %v1776
    %v2035 = vunpack.c.l.b16 %v1777
    %v2036 = vunpack.c.h.b16 %v1777
    %v2037 = vunpack.c.l.b16 %v1778
    %v2038 = vunpack.c.h.b16 %v1778
    %v2039 = vunpack.c.l.b16 %v1779
    %v2040 = vunpack.c.h.b16 %v1779
    %v2041 = vunpack.c.l.b16 %v1780
    %v2042 = vunpack.c.h.b16 %v1780
    %v2043 = vunpack.c.l.b16 %v1781
    %v2044 = vunpack.c.h.b16 %v1781
    %v2045 = vunpack.c.l.b16 %v1782
    %v2046 = vunpack.c.h.b16 %v1782
    %v2047 = vunpack.c.l.b16 %v1783
    %v2048 = vunpack.c.h.b16 %v1783
    %v2049 = vunpack.c.l.b16 %v1784
    %v2050 = vunpack.c.h.b16 %v1784
    %v2051 = vunpack.c.l.b16 %v1785
    %v2052 = vunpack.c.h.b16 %v1785
    %v2053 = vunpack.c.l.b16 %v1786
    %v2054 = vunpack.c.h.b16 %v1786
    %v2055 = vunpack.c.l.b16 %v1787
    %v2056 = vunpack.c.h.b16 %v1787
    %v2057 = vunpack.c.l.b16 %v1788
    %v2058 = vunpack.c.h.b16 %v1788
    %v2059 = vunpack.c.l.b16 %v1789
    %v2060 = vunpack.c.h.b16 %v1789
    %v2061 = vunpack.c.l.b16 %v1790
    %v2062 = vunpack.c.h.b16 %v1790
    %v2063 = vunpack.c.l.b16 %v1791
    %v2064 = vunpack.c.h.b16 %v1791
    %v2065 = vunpack.c.l.b16 %v1792
    %v2066 = vunpack.c.h.b16 %v1792
    %v2067 = vunpack.c.l.b16 %v1793
    %v2068 = vunpack.c.h.b16 %v1793
    %v2069 = vunpack.c.l.b16 %v1794
    %v2070 = vunpack.c.h.b16 %v1794
    %v2071 = vpack.c.b16 %v1959, %v1943
    %v2072 = vpack.c.b16 %v1960, %v1944
    %v2073 = vpack.c.b16 %v1961, %v1945
    %v2074 = vpack.c.b16 %v1962, %v1946
    %v2075 = vpack.c.b16 %v1963, %v1947
    %v2076 = vpack.c.b16 %v1964, %v1948
    %v2077 = vpack.c.b16 %v1965, %v1949
    %v2078 = vpack.c.b16 %v1966, %v1950
    %v2079 = vpack.c.b16 %v1967, %v1951
    %v2080 = vpack.c.b16 %v1968, %v1952
    %v2081 = vpack.c.b16 %v1969, %v1953
    %v2082 = vpack.c.b16 %v1970, %v1954
    %v2083 = vpack.c.b16 %v1971, %v1955
    %v2084 = vpack.c.b16 %v1972, %v1956
    %v2085 = vpack.c.b16 %v1973, %v1957
    %v2086 = vpack.c.b16 %v1974, %v1958
    %v2087 = vpack.c.b16 %v1991, %v1975
    %v2088 = vpack.c.b16 %v1992, %v1976
    %v2089 = vpack.c.b16 %v1993, %v1977
    %v2090 = vpack.c.b16 %v1994, %v1978
    %v2091 = vpack.c.b16 %v1995, %v1979
    %v2092 = vpack.c.b16 %v1996, %v1980
    %v2093 = vpack.c.b16 %v1997, %v1981
    %v2094 = vpack.c.b16 %v1998, %v1982
    %v2095 = vpack.c.b16 %v1999, %v1983
    %v2096 = vpack.c.b16 %v2000, %v1984
    %v2097 = vpack.c.b16 %v2001, %v1985
    %v2098 = vpack.c.b16 %v2002, %v1986
    %v2099 = vpack.c.b16 %v2003, %v1987
    %v2100 = vpack.c.b16 %v2004, %v1988
    %v2101 = vpack.c.b16 %v2005, %v1989
    %v2102 = vpack.c.b16 %v2006, %v1990
    %v2103 = vpack.c.b16 %v2023, %v2007
    %v2104 = vpack.c.b16 %v2024, %v2008
    %v2105 = vpack.c.b16 %v2025, %v2009
    %v2106 = vpack.c.b16 %v2026, %v2010
    %v2107 = vpack.c.b16 %v2027, %v2011
    %v2108 = vpack.c.b16 %v2028, %v2012
    %v2109 = vpack.c.b16 %v2029, %v2013
    %v2110 = vpack.c.b16 %v2030, %v2014
    %v2111 = vpack.c.b16 %v2031, %v2015
    %v2112 = vpack.c.b16 %v2032, %v2016
    %v2113 = vpack.c.b16 %v2033, %v2017
    %v2114 = vpack.c.b16 %v2034, %v2018
    %v2115 = vpack.c.b16 %v2035, %v2019
    %v2116 = vpack.c.b16 %v2036, %v2020
    %v2117 = vpack.c.b16 %v2037, %v2021
    %v2118 = vpack.c.b16 %v2038, %v2022
    %v2119 = vpack.c.b16 %v2055, %v2039
    %v2120 = vpack.c.b16 %v2056, %v2040
    %v2121 = vpack.c.b16 %v2057, %v2041
    %v2122 = vpack.c.b16 %v2058, %v2042
    %v2123 = vpack.c.b16 %v2059, %v2043
    %v2124 = vpack.c.b16 %v2060, %v2044
    %v2125 = vpack.c.b16 %v2061, %v2045
    %v2126 = vpack.c.b16 %v2062, %v2046
    %v2127 = vpack.c.b16 %v2063, %v2047
    %v2128 = vpack.c.b16 %v2064, %v2048
    %v2129 = vpack.c.b16 %v2065, %v2049
    %v2130 = vpack.c.b16 %v2066, %v2050
    %v2131 = vpack.c.b16 %v2067, %v2051
    %v2132 = vpack.c.b16 %v2068, %v2052
    %v2133 = vpack.c.b16 %v2069, %v2053
    %v2134 = vpack.c.b16 %v2070, %v2054
    %v2200 = vsel %vm177, %v1730, 0
    %2202 = vmatprep.subr.bf16.mxu0 0
    %2203 = vmatpush1.bf16.msra.mxu0 0
    %2204 = vmatprep.subr.bf16.mxu0 0
    %2205 = vmatpush1.bf16.msra.mxu0 0
    %2206 = vmatprep.subr.bf16.mxu0 0
    %2207 = vmatpush1.bf16.msra.mxu0 0
    %2208 = vmatprep.subr.bf16.mxu0 0
    %2209 = vmatpush1.bf16.msra.mxu0 0
    %2210 = vmatprep.subr.bf16.mxu0 %v2120
    %2211 = vmatpush1.bf16.msra.mxu0 %v2119
    %2212 = vmatprep.subr.bf16.mxu0 %v2104
    %2213 = vmatpush1.bf16.msra.mxu0 %v2103
    %2214 = vmatprep.subr.bf16.mxu0 %v2088
    %2215 = vmatpush1.bf16.msra.mxu0 %v2087
    %2216 = vmatprep.subr.bf16.mxu0 %v2072
    %2217 = vmatpush1.bf16.msra.mxu0 %v2071
    %2218 = vmatprep.subr.bf16.mxu0 0
    %2219 = vmatpush2.bf16.msra.mxu0 0
    %2220 = vmatprep.subr.bf16.mxu0 0
    %2221 = vmatpush2.bf16.msra.mxu0 0
    %2222 = vmatprep.subr.bf16.mxu0 0
    %2223 = vmatpush2.bf16.msra.mxu0 0
    %2224 = vmatprep.subr.bf16.mxu0 0
    %2225 = vmatpush2.bf16.msra.mxu0 0
    %2226 = vmatprep.subr.bf16.mxu0 0
    %2227 = vmatpush2.bf16.msra.mxu0 0
    %2228 = vmatprep.subr.bf16.mxu0 0
    %2229 = vmatpush2.bf16.msra.mxu0 0
    %2230 = vmatprep.subr.bf16.mxu0 0
    %2231 = vmatpush2.bf16.msra.mxu0 0
    %2232 = vmatprep.subr.bf16.mxu0 0
    %2233 = vmatpush2.bf16.msra.mxu0 0
    %2234 = vmatprep.mubr.bf16.mxu0 0
    %2235 = vmatmul.mubr.bf16.gmra.mxu0 %v2200
    %v2236 = vpop.f32.mrf.mxu0
    %v2237 = vadd.f32 %v1802, %v2236
    %v2238 = vpop.f32.mrf.mxu0
    %v2239 = vadd.f32 %v1806, %v2238
    %v2240 = vpop.f32.mrf.mxu0
    %v2241 = vadd.f32 %v1802, %v2240
    %v2242 = vpop.f32.mrf.mxu0
    %v2243 = vadd.f32 %v1806, %v2242
    %2244 = vdwg.mxu0
    %2245 = vmatprep.subr.bf16.mxu0 0
    %2246 = vmatpush1.bf16.msra.mxu0 0
    %2247 = vmatprep.subr.bf16.mxu0 0
    %2248 = vmatpush1.bf16.msra.mxu0 0
    %2249 = vmatprep.subr.bf16.mxu0 0
    %2250 = vmatpush1.bf16.msra.mxu0 0
    %2251 = vmatprep.subr.bf16.mxu0 0
    %2252 = vmatpush1.bf16.msra.mxu0 0
    %2253 = vmatprep.subr.bf16.mxu0 %v2122
    %2254 = vmatpush1.bf16.msra.mxu0 %v2121
    %2255 = vmatprep.subr.bf16.mxu0 %v2106
    %2256 = vmatpush1.bf16.msra.mxu0 %v2105
    %2257 = vmatprep.subr.bf16.mxu0 %v2090
    %2258 = vmatpush1.bf16.msra.mxu0 %v2089
    %2259 = vmatprep.subr.bf16.mxu0 %v2074
    %2260 = vmatpush1.bf16.msra.mxu0 %v2073
    %2261 = vmatprep.subr.bf16.mxu0 0
    %2262 = vmatpush2.bf16.msra.mxu0 0
    %2263 = vmatprep.subr.bf16.mxu0 0
    %2264 = vmatpush2.bf16.msra.mxu0 0
    %2265 = vmatprep.subr.bf16.mxu0 0
    %2266 = vmatpush2.bf16.msra.mxu0 0
    %2267 = vmatprep.subr.bf16.mxu0 0
    %2268 = vmatpush2.bf16.msra.mxu0 0
    %2269 = vmatprep.subr.bf16.mxu0 0
    %2270 = vmatpush2.bf16.msra.mxu0 0
    %2271 = vmatprep.subr.bf16.mxu0 0
    %2272 = vmatpush2.bf16.msra.mxu0 0
    %2273 = vmatprep.subr.bf16.mxu0 0
    %2274 = vmatpush2.bf16.msra.mxu0 0
    %2275 = vmatprep.subr.bf16.mxu0 0
    %2276 = vmatpush2.bf16.msra.mxu0 0
    %2277 = vmatprep.mubr.bf16.mxu0 0
    %2278 = vmatmul.mubr.bf16.gmra.mxu0 %v2200
    %v2279 = vpop.f32.mrf.mxu0
    %v2280 = vadd.f32 %v1810, %v2279
    %v2281 = vpop.f32.mrf.mxu0
    %v2282 = vadd.f32 %v1814, %v2281
    %v2283 = vpop.f32.mrf.mxu0
    %v2284 = vadd.f32 %v1810, %v2283
    %v2285 = vpop.f32.mrf.mxu0
    %v2286 = vadd.f32 %v1814, %v2285
    %2287 = vdwg.mxu0
    %2288 = vmatprep.subr.bf16.mxu0 0
    %2289 = vmatpush1.bf16.msra.mxu0 0
    %2290 = vmatprep.subr.bf16.mxu0 0
    %2291 = vmatpush1.bf16.msra.mxu0 0
    %2292 = vmatprep.subr.bf16.mxu0 0
    %2293 = vmatpush1.bf16.msra.mxu0 0
    %2294 = vmatprep.subr.bf16.mxu0 0
    %2295 = vmatpush1.bf16.msra.mxu0 0
    %2296 = vmatprep.subr.bf16.mxu0 %v2124
    %2297 = vmatpush1.bf16.msra.mxu0 %v2123
    %2298 = vmatprep.subr.bf16.mxu0 %v2108
    %2299 = vmatpush1.bf16.msra.mxu0 %v2107
    %2300 = vmatprep.subr.bf16.mxu0 %v2092
    %2301 = vmatpush1.bf16.msra.mxu0 %v2091
    %2302 = vmatprep.subr.bf16.mxu0 %v2076
    %2303 = vmatpush1.bf16.msra.mxu0 %v2075
    %2304 = vmatprep.subr.bf16.mxu0 0
    %2305 = vmatpush2.bf16.msra.mxu0 0
    %2306 = vmatprep.subr.bf16.mxu0 0
    %2307 = vmatpush2.bf16.msra.mxu0 0
    %2308 = vmatprep.subr.bf16.mxu0 0
    %2309 = vmatpush2.bf16.msra.mxu0 0
    %2310 = vmatprep.subr.bf16.mxu0 0
    %2311 = vmatpush2.bf16.msra.mxu0 0
    %2312 = vmatprep.subr.bf16.mxu0 0
    %2313 = vmatpush2.bf16.msra.mxu0 0
    %2314 = vmatprep.subr.bf16.mxu0 0
    %2315 = vmatpush2.bf16.msra.mxu0 0
    %2316 = vmatprep.subr.bf16.mxu0 0
    %2317 = vmatpush2.bf16.msra.mxu0 0
    %2318 = vmatprep.subr.bf16.mxu0 0
    %2319 = vmatpush2.bf16.msra.mxu0 0
    %2320 = vmatprep.mubr.bf16.mxu0 0
    %2321 = vmatmul.mubr.bf16.gmra.mxu0 %v2200
    %v2322 = vpop.f32.mrf.mxu0
    %v2323 = vadd.f32 %v1818, %v2322
    %v2324 = vpop.f32.mrf.mxu0
    %v2325 = vadd.f32 %v1822, %v2324
    %v2326 = vpop.f32.mrf.mxu0
    %v2327 = vadd.f32 %v1818, %v2326
    %v2328 = vpop.f32.mrf.mxu0
    %v2329 = vadd.f32 %v1822, %v2328
    %2330 = vdwg.mxu0
    %2331 = vmatprep.subr.bf16.mxu0 0
    %2332 = vmatpush1.bf16.msra.mxu0 0
    %2333 = vmatprep.subr.bf16.mxu0 0
    %2334 = vmatpush1.bf16.msra.mxu0 0
    %2335 = vmatprep.subr.bf16.mxu0 0
    %2336 = vmatpush1.bf16.msra.mxu0 0
    %2337 = vmatprep.subr.bf16.mxu0 0
    %2338 = vmatpush1.bf16.msra.mxu0 0
    %2339 = vmatprep.subr.bf16.mxu0 %v2126
    %2340 = vmatpush1.bf16.msra.mxu0 %v2125
    %2341 = vmatprep.subr.bf16.mxu0 %v2110
    %2342 = vmatpush1.bf16.msra.mxu0 %v2109
    %2343 = vmatprep.subr.bf16.mxu0 %v2094
    %2344 = vmatpush1.bf16.msra.mxu0 %v2093
    %2345 = vmatprep.subr.bf16.mxu0 %v2078
    %2346 = vmatpush1.bf16.msra.mxu0 %v2077
    %2347 = vmatprep.subr.bf16.mxu0 0
    %2348 = vmatpush2.bf16.msra.mxu0 0
    %2349 = vmatprep.subr.bf16.mxu0 0
    %2350 = vmatpush2.bf16.msra.mxu0 0
    %2351 = vmatprep.subr.bf16.mxu0 0
    %2352 = vmatpush2.bf16.msra.mxu0 0
    %2353 = vmatprep.subr.bf16.mxu0 0
    %2354 = vmatpush2.bf16.msra.mxu0 0
    %2355 = vmatprep.subr.bf16.mxu0 0
    %2356 = vmatpush2.bf16.msra.mxu0 0
    %2357 = vmatprep.subr.bf16.mxu0 0
    %2358 = vmatpush2.bf16.msra.mxu0 0
    %2359 = vmatprep.subr.bf16.mxu0 0
    %2360 = vmatpush2.bf16.msra.mxu0 0
    %2361 = vmatprep.subr.bf16.mxu0 0
    %2362 = vmatpush2.bf16.msra.mxu0 0
    %2363 = vmatprep.mubr.bf16.mxu0 0
    %2364 = vmatmul.mubr.bf16.gmra.mxu0 %v2200
    %v2365 = vpop.f32.mrf.mxu0
    %v2366 = vadd.f32 %v1826, %v2365
    %v2367 = vpop.f32.mrf.mxu0
    %v2368 = vadd.f32 %v1830, %v2367
    %v2369 = vpop.f32.mrf.mxu0
    %v2370 = vadd.f32 %v1826, %v2369
    %v2371 = vpop.f32.mrf.mxu0
    %v2372 = vadd.f32 %v1830, %v2371
    %2373 = vdwg.mxu0
    %2374 = vmatprep.subr.bf16.mxu0 0
    %2375 = vmatpush1.bf16.msra.mxu0 0
    %2376 = vmatprep.subr.bf16.mxu0 0
    %2377 = vmatpush1.bf16.msra.mxu0 0
    %2378 = vmatprep.subr.bf16.mxu0 0
    %2379 = vmatpush1.bf16.msra.mxu0 0
    %2380 = vmatprep.subr.bf16.mxu0 0
    %2381 = vmatpush1.bf16.msra.mxu0 0
    %2382 = vmatprep.subr.bf16.mxu0 %v2128
    %2383 = vmatpush1.bf16.msra.mxu0 %v2127
    %2384 = vmatprep.subr.bf16.mxu0 %v2112
    %2385 = vmatpush1.bf16.msra.mxu0 %v2111
    %2386 = vmatprep.subr.bf16.mxu0 %v2096
    %2387 = vmatpush1.bf16.msra.mxu0 %v2095
    %2388 = vmatprep.subr.bf16.mxu0 %v2080
    %2389 = vmatpush1.bf16.msra.mxu0 %v2079
    %2390 = vmatprep.subr.bf16.mxu0 0
    %2391 = vmatpush2.bf16.msra.mxu0 0
    %2392 = vmatprep.subr.bf16.mxu0 0
    %2393 = vmatpush2.bf16.msra.mxu0 0
    %2394 = vmatprep.subr.bf16.mxu0 0
    %2395 = vmatpush2.bf16.msra.mxu0 0
    %2396 = vmatprep.subr.bf16.mxu0 0
    %2397 = vmatpush2.bf16.msra.mxu0 0
    %2398 = vmatprep.subr.bf16.mxu0 0
    %2399 = vmatpush2.bf16.msra.mxu0 0
    %2400 = vmatprep.subr.bf16.mxu0 0
    %2401 = vmatpush2.bf16.msra.mxu0 0
    %2402 = vmatprep.subr.bf16.mxu0 0
    %2403 = vmatpush2.bf16.msra.mxu0 0
    %2404 = vmatprep.subr.bf16.mxu0 0
    %2405 = vmatpush2.bf16.msra.mxu0 0
    %2406 = vmatprep.mubr.bf16.mxu0 0
    %2407 = vmatmul.mubr.bf16.gmra.mxu0 %v2200
    %v2408 = vpop.f32.mrf.mxu0
    %v2409 = vadd.f32 %v1834, %v2408
    %v2410 = vpop.f32.mrf.mxu0
    %v2411 = vadd.f32 %v1838, %v2410
    %v2412 = vpop.f32.mrf.mxu0
    %v2413 = vadd.f32 %v1834, %v2412
    %v2414 = vpop.f32.mrf.mxu0
    %v2415 = vadd.f32 %v1838, %v2414
    %2416 = vdwg.mxu0
    %2417 = vmatprep.subr.bf16.mxu0 0
    %2418 = vmatpush1.bf16.msra.mxu0 0
    %2419 = vmatprep.subr.bf16.mxu0 0
    %2420 = vmatpush1.bf16.msra.mxu0 0
    %2421 = vmatprep.subr.bf16.mxu0 0
    %2422 = vmatpush1.bf16.msra.mxu0 0
    %2423 = vmatprep.subr.bf16.mxu0 0
    %2424 = vmatpush1.bf16.msra.mxu0 0
    %2425 = vmatprep.subr.bf16.mxu0 %v2130
    %2426 = vmatpush1.bf16.msra.mxu0 %v2129
    %2427 = vmatprep.subr.bf16.mxu0 %v2114
    %2428 = vmatpush1.bf16.msra.mxu0 %v2113
    %2429 = vmatprep.subr.bf16.mxu0 %v2098
    %2430 = vmatpush1.bf16.msra.mxu0 %v2097
    %2431 = vmatprep.subr.bf16.mxu0 %v2082
    %2432 = vmatpush1.bf16.msra.mxu0 %v2081
    %2433 = vmatprep.subr.bf16.mxu0 0
    %2434 = vmatpush2.bf16.msra.mxu0 0
    %2435 = vmatprep.subr.bf16.mxu0 0
    %2436 = vmatpush2.bf16.msra.mxu0 0
    %2437 = vmatprep.subr.bf16.mxu0 0
    %2438 = vmatpush2.bf16.msra.mxu0 0
    %2439 = vmatprep.subr.bf16.mxu0 0
    %2440 = vmatpush2.bf16.msra.mxu0 0
    %2441 = vmatprep.subr.bf16.mxu0 0
    %2442 = vmatpush2.bf16.msra.mxu0 0
    %2443 = vmatprep.subr.bf16.mxu0 0
    %2444 = vmatpush2.bf16.msra.mxu0 0
    %2445 = vmatprep.subr.bf16.mxu0 0
    %2446 = vmatpush2.bf16.msra.mxu0 0
    %2447 = vmatprep.subr.bf16.mxu0 0
    %2448 = vmatpush2.bf16.msra.mxu0 0
    %2449 = vmatprep.mubr.bf16.mxu0 0
    %2450 = vmatmul.mubr.bf16.gmra.mxu0 %v2200
    %v2451 = vpop.f32.mrf.mxu0
    %v2452 = vadd.f32 %v1842, %v2451
    %v2453 = vpop.f32.mrf.mxu0
    %v2454 = vadd.f32 %v1846, %v2453
    %v2455 = vpop.f32.mrf.mxu0
    %v2456 = vadd.f32 %v1842, %v2455
    %v2457 = vpop.f32.mrf.mxu0
    %v2458 = vadd.f32 %v1846, %v2457
    %2459 = vdwg.mxu0
    %2460 = vmatprep.subr.bf16.mxu0 0
    %2461 = vmatpush1.bf16.msra.mxu0 0
    %2462 = vmatprep.subr.bf16.mxu0 0
    %2463 = vmatpush1.bf16.msra.mxu0 0
    %2464 = vmatprep.subr.bf16.mxu0 0
    %2465 = vmatpush1.bf16.msra.mxu0 0
    %2466 = vmatprep.subr.bf16.mxu0 0
    %2467 = vmatpush1.bf16.msra.mxu0 0
    %2468 = vmatprep.subr.bf16.mxu0 %v2132
    %2469 = vmatpush1.bf16.msra.mxu0 %v2131
    %2470 = vmatprep.subr.bf16.mxu0 %v2116
    %2471 = vmatpush1.bf16.msra.mxu0 %v2115
    %2472 = vmatprep.subr.bf16.mxu0 %v2100
    %2473 = vmatpush1.bf16.msra.mxu0 %v2099
    %2474 = vmatprep.subr.bf16.mxu0 %v2084
    %2475 = vmatpush1.bf16.msra.mxu0 %v2083
    %2476 = vmatprep.subr.bf16.mxu0 0
    %2477 = vmatpush2.bf16.msra.mxu0 0
    %2478 = vmatprep.subr.bf16.mxu0 0
    %2479 = vmatpush2.bf16.msra.mxu0 0
    %2480 = vmatprep.subr.bf16.mxu0 0
    %2481 = vmatpush2.bf16.msra.mxu0 0
    %2482 = vmatprep.subr.bf16.mxu0 0
    %2483 = vmatpush2.bf16.msra.mxu0 0
    %2484 = vmatprep.subr.bf16.mxu0 0
    %2485 = vmatpush2.bf16.msra.mxu0 0
    %2486 = vmatprep.subr.bf16.mxu0 0
    %2487 = vmatpush2.bf16.msra.mxu0 0
    %2488 = vmatprep.subr.bf16.mxu0 0
    %2489 = vmatpush2.bf16.msra.mxu0 0
    %2490 = vmatprep.subr.bf16.mxu0 0
    %2491 = vmatpush2.bf16.msra.mxu0 0
    %2492 = vmatprep.mubr.bf16.mxu0 0
    %2493 = vmatmul.mubr.bf16.gmra.mxu0 %v2200
    %v2494 = vpop.f32.mrf.mxu0
    %v2495 = vadd.f32 %v1850, %v2494
    %v2496 = vpop.f32.mrf.mxu0
    %v2497 = vadd.f32 %v1854, %v2496
    %v2498 = vpop.f32.mrf.mxu0
    %v2499 = vadd.f32 %v1850, %v2498
    %v2500 = vpop.f32.mrf.mxu0
    %v2501 = vadd.f32 %v1854, %v2500
    %2502 = vdwg.mxu0
    %2503 = vmatprep.subr.bf16.mxu0 0
    %2504 = vmatpush1.bf16.msra.mxu0 0
    %2505 = vmatprep.subr.bf16.mxu0 0
    %2506 = vmatpush1.bf16.msra.mxu0 0
    %2507 = vmatprep.subr.bf16.mxu0 0
    %2508 = vmatpush1.bf16.msra.mxu0 0
    %2509 = vmatprep.subr.bf16.mxu0 0
    %2510 = vmatpush1.bf16.msra.mxu0 0
    %2511 = vmatprep.subr.bf16.mxu0 %v2134
    %2512 = vmatpush1.bf16.msra.mxu0 %v2133
    %2513 = vmatprep.subr.bf16.mxu0 %v2118
    %2514 = vmatpush1.bf16.msra.mxu0 %v2117
    %2515 = vmatprep.subr.bf16.mxu0 %v2102
    %2516 = vmatpush1.bf16.msra.mxu0 %v2101
    %2517 = vmatprep.subr.bf16.mxu0 %v2086
    %2518 = vmatpush1.bf16.msra.mxu0 %v2085
    %2519 = vmatprep.subr.bf16.mxu0 0
    %2520 = vmatpush2.bf16.msra.mxu0 0
    %2521 = vmatprep.subr.bf16.mxu0 0
    %2522 = vmatpush2.bf16.msra.mxu0 0
    %2523 = vmatprep.subr.bf16.mxu0 0
    %2524 = vmatpush2.bf16.msra.mxu0 0
    %2525 = vmatprep.subr.bf16.mxu0 0
    %2526 = vmatpush2.bf16.msra.mxu0 0
    %2527 = vmatprep.subr.bf16.mxu0 0
    %2528 = vmatpush2.bf16.msra.mxu0 0
    %2529 = vmatprep.subr.bf16.mxu0 0
    %2530 = vmatpush2.bf16.msra.mxu0 0
    %2531 = vmatprep.subr.bf16.mxu0 0
    %2532 = vmatpush2.bf16.msra.mxu0 0
    %2533 = vmatprep.subr.bf16.mxu0 0
    %2534 = vmatpush2.bf16.msra.mxu0 0
    %2535 = vmatprep.mubr.bf16.mxu0 0
    %2536 = vmatmul.mubr.bf16.gmra.mxu0 %v2200
    %v2537 = vpop.f32.mrf.mxu0
    %v2538 = vadd.f32 %v1858, %v2537
    %v2539 = vpop.f32.mrf.mxu0
    %v2540 = vadd.f32 %v1862, %v2539
    %v2541 = vpop.f32.mrf.mxu0
    %v2542 = vadd.f32 %v1858, %v2541
    %v2543 = vpop.f32.mrf.mxu0
    %v2544 = vadd.f32 %v1862, %v2543
    %2545 = vdwg.mxu0
    %v2546 = vmax.f32 %v2237, 0.0
    %v2547 = vmax.f32 %v2239, 0.0
    %v2548 = vmax.f32 %v2280, 0.0
    %v2549 = vmax.f32 %v2282, 0.0
    %v2550 = vmax.f32 %v2323, 0.0
    %v2551 = vmax.f32 %v2325, 0.0
    %v2552 = vmax.f32 %v2366, 0.0
    %v2553 = vmax.f32 %v2368, 0.0
    %v2554 = vmax.f32 %v2409, 0.0
    %v2555 = vmax.f32 %v2411, 0.0
    %v2556 = vmax.f32 %v2452, 0.0
    %v2557 = vmax.f32 %v2454, 0.0
    %v2558 = vmax.f32 %v2495, 0.0
    %v2559 = vmax.f32 %v2497, 0.0
    %v2560 = vmax.f32 %v2538, 0.0
    %v2561 = vmax.f32 %v2540, 0.0
    %v2562 = vmax.f32 %v2241, 0.0
    %v2563 = vmax.f32 %v2243, 0.0
    %v2564 = vmax.f32 %v2284, 0.0
    %v2565 = vmax.f32 %v2286, 0.0
    %v2566 = vmax.f32 %v2327, 0.0
    %v2567 = vmax.f32 %v2329, 0.0
    %v2568 = vmax.f32 %v2370, 0.0
    %v2569 = vmax.f32 %v2372, 0.0
    %v2570 = vmax.f32 %v2413, 0.0
    %v2571 = vmax.f32 %v2415, 0.0
    %v2572 = vmax.f32 %v2456, 0.0
    %v2573 = vmax.f32 %v2458, 0.0
    %v2574 = vmax.f32 %v2499, 0.0
    %v2575 = vmax.f32 %v2501, 0.0
    %v2576 = vmax.f32 %v2542, 0.0
    %v2577 = vmax.f32 %v2544, 0.0
    %v2578 = vpack.c.bf16 %v2562, %v2546
    %v2579 = vpack.c.bf16 %v2563, %v2547
    %v2580 = vpack.c.bf16 %v2564, %v2548
    %v2581 = vpack.c.bf16 %v2565, %v2549
    %v2582 = vpack.c.bf16 %v2566, %v2550
    %v2583 = vpack.c.bf16 %v2567, %v2551
    %v2584 = vpack.c.bf16 %v2568, %v2552
    %v2585 = vpack.c.bf16 %v2569, %v2553
    %v2586 = vpack.c.bf16 %v2570, %v2554
    %v2587 = vpack.c.bf16 %v2571, %v2555
    %v2588 = vpack.c.bf16 %v2572, %v2556
    %v2589 = vpack.c.bf16 %v2573, %v2557
    %v2590 = vpack.c.bf16 %v2574, %v2558
    %v2591 = vpack.c.bf16 %v2575, %v2559
    %v2592 = vpack.c.bf16 %v2576, %v2560
    %v2593 = vpack.c.bf16 %v2577, %v2561
    %v2594 = vld [vmem:[%s6] sm:$0xf]
    %v2595 = vld [vmem:[%s6 + $0x4] sm:$0xf]
    %v2596 = vld [vmem:[%s6 + $0x8] sm:$0xf]
    %v2597 = vld [vmem:[%s6 + $0xc] sm:$0xf]
    %v2598 = vld [vmem:[%s6 + $0x10] sm:$0xf]
    %v2599 = vld [vmem:[%s6 + $0x14] sm:$0xf]
    %v2600 = vld [vmem:[%s6 + $0x18] sm:$0xf]
    %v2601 = vld [vmem:[%s6 + $0x1c] sm:$0xf]
    %v2602 = vld [vmem:[%s6 + $0x20] sm:$0xf]
    %v2603 = vld [vmem:[%s6 + $0x24] sm:$0xf]
    %v2604 = vld [vmem:[%s6 + $0x28] sm:$0xf]
    %v2605 = vld [vmem:[%s6 + $0x2c] sm:$0xf]
    %v2606 = vld [vmem:[%s6 + $0x30] sm:$0xf]
    %v2607 = vld [vmem:[%s6 + $0x34] sm:$0xf]
    %v2608 = vld [vmem:[%s6 + $0x38] sm:$0xf]
    %v2609 = vld [vmem:[%s6 + $0x3c] sm:$0xf]
    %v2610 = vld [vmem:[%s6 + $0x40] sm:$0xf]
    %v2611 = vld [vmem:[%s6 + $0x44] sm:$0xf]
    %v2612 = vld [vmem:[%s6 + $0x48] sm:$0xf]
    %v2613 = vld [vmem:[%s6 + $0x4c] sm:$0xf]
    %v2614 = vld [vmem:[%s6 + $0x50] sm:$0xf]
    %v2615 = vld [vmem:[%s6 + $0x54] sm:$0xf]
    %v2616 = vld [vmem:[%s6 + $0x58] sm:$0xf]
    %v2617 = vld [vmem:[%s6 + $0x5c] sm:$0xf]
    %v2618 = vld [vmem:[%s6 + $0x60] sm:$0xf]
    %v2619 = vld [vmem:[%s6 + $0x64] sm:$0xf]
    %v2620 = vld [vmem:[%s6 + $0x68] sm:$0xf]
    %v2621 = vld [vmem:[%s6 + $0x6c] sm:$0xf]
    %v2622 = vld [vmem:[%s6 + $0x70] sm:$0xf]
    %v2623 = vld [vmem:[%s6 + $0x74] sm:$0xf]
    %v2624 = vld [vmem:[%s6 + $0x78] sm:$0xf]
    %v2625 = vld [vmem:[%s6 + $0x7c] sm:$0xf]
    %v2626 = vld [vmem:[%s6 + $0x80] sm:$0xf]
    %v2627 = vld [vmem:[%s6 + $0x84] sm:$0xf]
    %v2628 = vld [vmem:[%s6 + $0x88] sm:$0xf]
    %v2629 = vld [vmem:[%s6 + $0x8c] sm:$0xf]
    %v2630 = vld [vmem:[%s6 + $0x90] sm:$0xf]
    %v2631 = vld [vmem:[%s6 + $0x94] sm:$0xf]
    %v2632 = vld [vmem:[%s6 + $0x98] sm:$0xf]
    %v2633 = vld [vmem:[%s6 + $0x9c] sm:$0xf]
    %v2634 = vld [vmem:[%s6 + $0xa0] sm:$0xf]
    %v2635 = vld [vmem:[%s6 + $0xa4] sm:$0xf]
    %v2636 = vld [vmem:[%s6 + $0xa8] sm:$0xf]
    %v2637 = vld [vmem:[%s6 + $0xac] sm:$0xf]
    %v2638 = vld [vmem:[%s6 + $0xb0] sm:$0xf]
    %v2639 = vld [vmem:[%s6 + $0xb4] sm:$0xf]
    %v2640 = vld [vmem:[%s6 + $0xb8] sm:$0xf]
    %v2641 = vld [vmem:[%s6 + $0xbc] sm:$0xf]
    %v2642 = vld [vmem:[%s6 + $0xc0] sm:$0xf]
    %v2643 = vld [vmem:[%s6 + $0xc4] sm:$0xf]
    %v2644 = vld [vmem:[%s6 + $0xc8] sm:$0xf]
    %v2645 = vld [vmem:[%s6 + $0xcc] sm:$0xf]
    %v2646 = vld [vmem:[%s6 + $0xd0] sm:$0xf]
    %v2647 = vld [vmem:[%s6 + $0xd4] sm:$0xf]
    %v2648 = vld [vmem:[%s6 + $0xd8] sm:$0xf]
    %v2649 = vld [vmem:[%s6 + $0xdc] sm:$0xf]
    %v2650 = vld [vmem:[%s6 + $0xe0] sm:$0xf]
    %v2651 = vld [vmem:[%s6 + $0xe4] sm:$0xf]
    %v2652 = vld [vmem:[%s6 + $0xe8] sm:$0xf]
    %v2653 = vld [vmem:[%s6 + $0xec] sm:$0xf]
    %v2654 = vld [vmem:[%s6 + $0xf0] sm:$0xf]
    %v2655 = vld [vmem:[%s6 + $0xf4] sm:$0xf]
    %v2656 = vld [vmem:[%s6 + $0xf8] sm:$0xf]
    %v2657 = vld [vmem:[%s6 + $0xfc] sm:$0xf]
    %v2658 = vld [vmem:[%s6 + $0x100] sm:$0xf]
    %v2659 = vld [vmem:[%s6 + $0x104] sm:$0xf]
    %v2660 = vld [vmem:[%s6 + $0x108] sm:$0xf]
    %v2661 = vld [vmem:[%s6 + $0x10c] sm:$0xf]
    %v2662 = vld [vmem:[%s6 + $0x110] sm:$0xf]
    %v2663 = vld [vmem:[%s6 + $0x114] sm:$0xf]
    %v2664 = vld [vmem:[%s6 + $0x118] sm:$0xf]
    %v2665 = vld [vmem:[%s6 + $0x11c] sm:$0xf]
    %v2666 = vld [vmem:[%s6 + $0x120] sm:$0xf]
    %v2667 = vld [vmem:[%s6 + $0x124] sm:$0xf]
    %v2668 = vld [vmem:[%s6 + $0x128] sm:$0xf]
    %v2669 = vld [vmem:[%s6 + $0x12c] sm:$0xf]
    %v2670 = vld [vmem:[%s6 + $0x130] sm:$0xf]
    %v2671 = vld [vmem:[%s6 + $0x134] sm:$0xf]
    %v2672 = vld [vmem:[%s6 + $0x138] sm:$0xf]
    %v2673 = vld [vmem:[%s6 + $0x13c] sm:$0xf]
    %v2674 = vld [vmem:[%s6 + $0x140] sm:$0xf]
    %v2675 = vld [vmem:[%s6 + $0x144] sm:$0xf]
    %v2676 = vld [vmem:[%s6 + $0x148] sm:$0xf]
    %v2677 = vld [vmem:[%s6 + $0x14c] sm:$0xf]
    %v2678 = vld [vmem:[%s6 + $0x150] sm:$0xf]
    %v2679 = vld [vmem:[%s6 + $0x154] sm:$0xf]
    %v2680 = vld [vmem:[%s6 + $0x158] sm:$0xf]
    %v2681 = vld [vmem:[%s6 + $0x15c] sm:$0xf]
    %v2682 = vld [vmem:[%s6 + $0x160] sm:$0xf]
    %v2683 = vld [vmem:[%s6 + $0x164] sm:$0xf]
    %v2684 = vld [vmem:[%s6 + $0x168] sm:$0xf]
    %v2685 = vld [vmem:[%s6 + $0x16c] sm:$0xf]
    %v2686 = vld [vmem:[%s6 + $0x170] sm:$0xf]
    %v2687 = vld [vmem:[%s6 + $0x174] sm:$0xf]
    %v2688 = vld [vmem:[%s6 + $0x178] sm:$0xf]
    %v2689 = vld [vmem:[%s6 + $0x17c] sm:$0xf]
    %v2690 = vld [vmem:[%s6 + $0x180] sm:$0xf]
    %v2691 = vld [vmem:[%s6 + $0x184] sm:$0xf]
    %v2692 = vld [vmem:[%s6 + $0x188] sm:$0xf]
    %v2693 = vld [vmem:[%s6 + $0x18c] sm:$0xf]
    %v2694 = vld [vmem:[%s6 + $0x190] sm:$0xf]
    %v2695 = vld [vmem:[%s6 + $0x194] sm:$0xf]
    %v2696 = vld [vmem:[%s6 + $0x198] sm:$0xf]
    %v2697 = vld [vmem:[%s6 + $0x19c] sm:$0xf]
    %v2698 = vld [vmem:[%s6 + $0x1a0] sm:$0xf]
    %v2699 = vld [vmem:[%s6 + $0x1a4] sm:$0xf]
    %v2700 = vld [vmem:[%s6 + $0x1a8] sm:$0xf]
    %v2701 = vld [vmem:[%s6 + $0x1ac] sm:$0xf]
    %v2702 = vld [vmem:[%s6 + $0x1b0] sm:$0xf]
    %v2703 = vld [vmem:[%s6 + $0x1b4] sm:$0xf]
    %v2704 = vld [vmem:[%s6 + $0x1b8] sm:$0xf]
    %v2705 = vld [vmem:[%s6 + $0x1bc] sm:$0xf]
    %v2706 = vld [vmem:[%s6 + $0x1c0] sm:$0xf]
    %v2707 = vld [vmem:[%s6 + $0x1c4] sm:$0xf]
    %v2708 = vld [vmem:[%s6 + $0x1c8] sm:$0xf]
    %v2709 = vld [vmem:[%s6 + $0x1cc] sm:$0xf]
    %v2710 = vld [vmem:[%s6 + $0x1d0] sm:$0xf]
    %v2711 = vld [vmem:[%s6 + $0x1d4] sm:$0xf]
    %v2712 = vld [vmem:[%s6 + $0x1d8] sm:$0xf]
    %v2713 = vld [vmem:[%s6 + $0x1dc] sm:$0xf]
    %v2714 = vld [vmem:[%s6 + $0x1e0] sm:$0xf]
    %v2715 = vld [vmem:[%s6 + $0x1e4] sm:$0xf]
    %v2716 = vld [vmem:[%s6 + $0x1e8] sm:$0xf]
    %v2717 = vld [vmem:[%s6 + $0x1ec] sm:$0xf]
    %v2718 = vld [vmem:[%s6 + $0x1f0] sm:$0xf]
    %v2719 = vld [vmem:[%s6 + $0x1f4] sm:$0xf]
    %v2720 = vld [vmem:[%s6 + $0x1f8] sm:$0xf]
    %v2721 = vld [vmem:[%s6 + $0x1fc] sm:$0xf]
    %v2722 = vld [vmem:[%s6 + $0x200] sm:$0xf]
    %v2723 = vld [vmem:[%s6 + $0x204] sm:$0xf]
    %v2724 = vld [vmem:[%s6 + $0x208] sm:$0xf]
    %v2725 = vld [vmem:[%s6 + $0x20c] sm:$0xf]
    %v2726 = vld [vmem:[%s6 + $0x210] sm:$0xf]
    %v2727 = vld [vmem:[%s6 + $0x214] sm:$0xf]
    %v2728 = vld [vmem:[%s6 + $0x218] sm:$0xf]
    %v2729 = vld [vmem:[%s6 + $0x21c] sm:$0xf]
    %v2730 = vld [vmem:[%s6 + $0x220] sm:$0xf]
    %v2731 = vld [vmem:[%s6 + $0x224] sm:$0xf]
    %v2732 = vld [vmem:[%s6 + $0x228] sm:$0xf]
    %v2733 = vld [vmem:[%s6 + $0x22c] sm:$0xf]
    %v2734 = vld [vmem:[%s6 + $0x230] sm:$0xf]
    %v2735 = vld [vmem:[%s6 + $0x234] sm:$0xf]
    %v2736 = vld [vmem:[%s6 + $0x238] sm:$0xf]
    %v2737 = vld [vmem:[%s6 + $0x23c] sm:$0xf]
    %v2738 = vld [vmem:[%s6 + $0x240] sm:$0xf]
    %v2739 = vld [vmem:[%s6 + $0x244] sm:$0xf]
    %v2740 = vld [vmem:[%s6 + $0x248] sm:$0xf]
    %v2741 = vld [vmem:[%s6 + $0x24c] sm:$0xf]
    %v2742 = vld [vmem:[%s6 + $0x250] sm:$0xf]
    %v2743 = vld [vmem:[%s6 + $0x254] sm:$0xf]
    %v2744 = vld [vmem:[%s6 + $0x258] sm:$0xf]
    %v2745 = vld [vmem:[%s6 + $0x25c] sm:$0xf]
    %v2746 = vld [vmem:[%s6 + $0x260] sm:$0xf]
    %v2747 = vld [vmem:[%s6 + $0x264] sm:$0xf]
    %v2748 = vld [vmem:[%s6 + $0x268] sm:$0xf]
    %v2749 = vld [vmem:[%s6 + $0x26c] sm:$0xf]
    %v2750 = vld [vmem:[%s6 + $0x270] sm:$0xf]
    %v2751 = vld [vmem:[%s6 + $0x274] sm:$0xf]
    %v2752 = vld [vmem:[%s6 + $0x278] sm:$0xf]
    %v2753 = vld [vmem:[%s6 + $0x27c] sm:$0xf]
    %v2754 = vld [vmem:[%s6 + $0x280] sm:$0xf]
    %v2755 = vld [vmem:[%s6 + $0x284] sm:$0xf]
    %v2756 = vld [vmem:[%s6 + $0x288] sm:$0xf]
    %v2757 = vld [vmem:[%s6 + $0x28c] sm:$0xf]
    %v2758 = vld [vmem:[%s6 + $0x290] sm:$0xf]
    %v2759 = vld [vmem:[%s6 + $0x294] sm:$0xf]
    %v2760 = vld [vmem:[%s6 + $0x298] sm:$0xf]
    %v2761 = vld [vmem:[%s6 + $0x29c] sm:$0xf]
    %v2762 = vld [vmem:[%s6 + $0x2a0] sm:$0xf]
    %v2763 = vld [vmem:[%s6 + $0x2a4] sm:$0xf]
    %v2764 = vld [vmem:[%s6 + $0x2a8] sm:$0xf]
    %v2765 = vld [vmem:[%s6 + $0x2ac] sm:$0xf]
    %v2766 = vld [vmem:[%s6 + $0x2b0] sm:$0xf]
    %v2767 = vld [vmem:[%s6 + $0x2b4] sm:$0xf]
    %v2768 = vld [vmem:[%s6 + $0x2b8] sm:$0xf]
    %v2769 = vld [vmem:[%s6 + $0x2bc] sm:$0xf]
    %v2770 = vld [vmem:[%s6 + $0x2c0] sm:$0xf]
    %v2771 = vld [vmem:[%s6 + $0x2c4] sm:$0xf]
    %v2772 = vld [vmem:[%s6 + $0x2c8] sm:$0xf]
    %v2773 = vld [vmem:[%s6 + $0x2cc] sm:$0xf]
    %v2774 = vld [vmem:[%s6 + $0x2d0] sm:$0xf]
    %v2775 = vld [vmem:[%s6 + $0x2d4] sm:$0xf]
    %v2776 = vld [vmem:[%s6 + $0x2d8] sm:$0xf]
    %v2777 = vld [vmem:[%s6 + $0x2dc] sm:$0xf]
    %v2778 = vld [vmem:[%s6 + $0x2e0] sm:$0xf]
    %v2779 = vld [vmem:[%s6 + $0x2e4] sm:$0xf]
    %v2780 = vld [vmem:[%s6 + $0x2e8] sm:$0xf]
    %v2781 = vld [vmem:[%s6 + $0x2ec] sm:$0xf]
    %v2782 = vld [vmem:[%s6 + $0x2f0] sm:$0xf]
    %v2783 = vld [vmem:[%s6 + $0x2f4] sm:$0xf]
    %v2784 = vld [vmem:[%s6 + $0x2f8] sm:$0xf]
    %v2785 = vld [vmem:[%s6 + $0x2fc] sm:$0xf]
    %v2786 = vld [vmem:[%s6 + $0x300] sm:$0xf]
    %v2787 = vld [vmem:[%s6 + $0x304] sm:$0xf]
    %v2788 = vld [vmem:[%s6 + $0x308] sm:$0xf]
    %v2789 = vld [vmem:[%s6 + $0x30c] sm:$0xf]
    %v2790 = vld [vmem:[%s6 + $0x310] sm:$0xf]
    %v2791 = vld [vmem:[%s6 + $0x314] sm:$0xf]
    %v2792 = vld [vmem:[%s6 + $0x318] sm:$0xf]
    %v2793 = vld [vmem:[%s6 + $0x31c] sm:$0xf]
    %v2794 = vld [vmem:[%s6 + $0x320] sm:$0xf]
    %v2795 = vld [vmem:[%s6 + $0x324] sm:$0xf]
    %v2796 = vld [vmem:[%s6 + $0x328] sm:$0xf]
    %v2797 = vld [vmem:[%s6 + $0x32c] sm:$0xf]
    %v2798 = vld [vmem:[%s6 + $0x330] sm:$0xf]
    %v2799 = vld [vmem:[%s6 + $0x334] sm:$0xf]
    %v2800 = vld [vmem:[%s6 + $0x338] sm:$0xf]
    %v2801 = vld [vmem:[%s6 + $0x33c] sm:$0xf]
    %v2802 = vld [vmem:[%s6 + $0x340] sm:$0xf]
    %v2803 = vld [vmem:[%s6 + $0x344] sm:$0xf]
    %v2804 = vld [vmem:[%s6 + $0x348] sm:$0xf]
    %v2805 = vld [vmem:[%s6 + $0x34c] sm:$0xf]
    %v2806 = vld [vmem:[%s6 + $0x350] sm:$0xf]
    %v2807 = vld [vmem:[%s6 + $0x354] sm:$0xf]
    %v2808 = vld [vmem:[%s6 + $0x358] sm:$0xf]
    %v2809 = vld [vmem:[%s6 + $0x35c] sm:$0xf]
    %v2810 = vld [vmem:[%s6 + $0x360] sm:$0xf]
    %v2811 = vld [vmem:[%s6 + $0x364] sm:$0xf]
    %v2812 = vld [vmem:[%s6 + $0x368] sm:$0xf]
    %v2813 = vld [vmem:[%s6 + $0x36c] sm:$0xf]
    %v2814 = vld [vmem:[%s6 + $0x370] sm:$0xf]
    %v2815 = vld [vmem:[%s6 + $0x374] sm:$0xf]
    %v2816 = vld [vmem:[%s6 + $0x378] sm:$0xf]
    %v2817 = vld [vmem:[%s6 + $0x37c] sm:$0xf]
    %v2818 = vld [vmem:[%s6 + $0x380] sm:$0xf]
    %v2819 = vld [vmem:[%s6 + $0x384] sm:$0xf]
    %v2820 = vld [vmem:[%s6 + $0x388] sm:$0xf]
    %v2821 = vld [vmem:[%s6 + $0x38c] sm:$0xf]
    %v2822 = vld [vmem:[%s6 + $0x390] sm:$0xf]
    %v2823 = vld [vmem:[%s6 + $0x394] sm:$0xf]
    %v2824 = vld [vmem:[%s6 + $0x398] sm:$0xf]
    %v2825 = vld [vmem:[%s6 + $0x39c] sm:$0xf]
    %v2826 = vld [vmem:[%s6 + $0x3a0] sm:$0xf]
    %v2827 = vld [vmem:[%s6 + $0x3a4] sm:$0xf]
    %v2828 = vld [vmem:[%s6 + $0x3a8] sm:$0xf]
    %v2829 = vld [vmem:[%s6 + $0x3ac] sm:$0xf]
    %v2830 = vld [vmem:[%s6 + $0x3b0] sm:$0xf]
    %v2831 = vld [vmem:[%s6 + $0x3b4] sm:$0xf]
    %v2832 = vld [vmem:[%s6 + $0x3b8] sm:$0xf]
    %v2833 = vld [vmem:[%s6 + $0x3bc] sm:$0xf]
    %v2834 = vld [vmem:[%s6 + $0x3c0] sm:$0xf]
    %v2835 = vld [vmem:[%s6 + $0x3c4] sm:$0xf]
    %v2836 = vld [vmem:[%s6 + $0x3c8] sm:$0xf]
    %v2837 = vld [vmem:[%s6 + $0x3cc] sm:$0xf]
    %v2838 = vld [vmem:[%s6 + $0x3d0] sm:$0xf]
    %v2839 = vld [vmem:[%s6 + $0x3d4] sm:$0xf]
    %v2840 = vld [vmem:[%s6 + $0x3d8] sm:$0xf]
    %v2841 = vld [vmem:[%s6 + $0x3dc] sm:$0xf]
    %v2842 = vld [vmem:[%s6 + $0x3e0] sm:$0xf]
    %v2843 = vld [vmem:[%s6 + $0x3e4] sm:$0xf]
    %v2844 = vld [vmem:[%s6 + $0x3e8] sm:$0xf]
    %v2845 = vld [vmem:[%s6 + $0x3ec] sm:$0xf]
    %v2846 = vld [vmem:[%s6 + $0x3f0] sm:$0xf]
    %v2847 = vld [vmem:[%s6 + $0x3f4] sm:$0xf]
    %v2848 = vld [vmem:[%s6 + $0x3f8] sm:$0xf]
    %v2849 = vld [vmem:[%s6 + $0x3fc] sm:$0xf]
    %v2850 = vlaneseq
    %v2851 = vshrl.u32 %v2850, 7
    %v2852 = vsub.s32 0, %v2851
    %v2853 = vrot.slane %v125, %v2852
    %v3110 = vunpack.c.l.b16 %v2594
    %v3111 = vunpack.c.l.b16 %v2595
    %v3112 = vunpack.c.l.b16 %v2596
    %v3113 = vunpack.c.l.b16 %v2597
    %v3114 = vunpack.c.l.b16 %v2598
    %v3115 = vunpack.c.l.b16 %v2599
    %v3116 = vunpack.c.l.b16 %v2600
    %v3117 = vunpack.c.l.b16 %v2601
    %v3118 = vunpack.c.l.b16 %v2602
    %v3119 = vunpack.c.l.b16 %v2603
    %v3120 = vunpack.c.l.b16 %v2604
    %v3121 = vunpack.c.l.b16 %v2605
    %v3122 = vunpack.c.l.b16 %v2606
    %v3123 = vunpack.c.l.b16 %v2607
    %v3124 = vunpack.c.l.b16 %v2608
    %v3125 = vunpack.c.l.b16 %v2609
    %v3126 = vunpack.c.l.b16 %v2610
    %v3127 = vunpack.c.l.b16 %v2611
    %v3128 = vunpack.c.l.b16 %v2612
    %v3129 = vunpack.c.l.b16 %v2613
    %v3130 = vunpack.c.l.b16 %v2614
    %v3131 = vunpack.c.l.b16 %v2615
    %v3132 = vunpack.c.l.b16 %v2616
    %v3133 = vunpack.c.l.b16 %v2617
    %v3134 = vunpack.c.l.b16 %v2618
    %v3135 = vunpack.c.l.b16 %v2619
    %v3136 = vunpack.c.l.b16 %v2620
    %v3137 = vunpack.c.l.b16 %v2621
    %v3138 = vunpack.c.l.b16 %v2622
    %v3139 = vunpack.c.l.b16 %v2623
    %v3140 = vunpack.c.l.b16 %v2624
    %v3141 = vunpack.c.l.b16 %v2625
    %v3142 = vunpack.c.l.b16 %v2626
    %v3143 = vunpack.c.l.b16 %v2627
    %v3144 = vunpack.c.l.b16 %v2628
    %v3145 = vunpack.c.l.b16 %v2629
    %v3146 = vunpack.c.l.b16 %v2630
    %v3147 = vunpack.c.l.b16 %v2631
    %v3148 = vunpack.c.l.b16 %v2632
    %v3149 = vunpack.c.l.b16 %v2633
    %v3150 = vunpack.c.l.b16 %v2634
    %v3151 = vunpack.c.l.b16 %v2635
    %v3152 = vunpack.c.l.b16 %v2636
    %v3153 = vunpack.c.l.b16 %v2637
    %v3154 = vunpack.c.l.b16 %v2638
    %v3155 = vunpack.c.l.b16 %v2639
    %v3156 = vunpack.c.l.b16 %v2640
    %v3157 = vunpack.c.l.b16 %v2641
    %v3158 = vunpack.c.l.b16 %v2642
    %v3159 = vunpack.c.l.b16 %v2643
    %v3160 = vunpack.c.l.b16 %v2644
    %v3161 = vunpack.c.l.b16 %v2645
    %v3162 = vunpack.c.l.b16 %v2646
    %v3163 = vunpack.c.l.b16 %v2647
    %v3164 = vunpack.c.l.b16 %v2648
    %v3165 = vunpack.c.l.b16 %v2649
    %v3166 = vunpack.c.l.b16 %v2650
    %v3167 = vunpack.c.l.b16 %v2651
    %v3168 = vunpack.c.l.b16 %v2652
    %v3169 = vunpack.c.l.b16 %v2653
    %v3170 = vunpack.c.l.b16 %v2654
    %v3171 = vunpack.c.l.b16 %v2655
    %v3172 = vunpack.c.l.b16 %v2656
    %v3173 = vunpack.c.l.b16 %v2657
    %v3174 = vunpack.c.l.b16 %v2658
    %v3175 = vunpack.c.l.b16 %v2659
    %v3176 = vunpack.c.l.b16 %v2660
    %v3177 = vunpack.c.l.b16 %v2661
    %v3178 = vunpack.c.l.b16 %v2662
    %v3179 = vunpack.c.l.b16 %v2663
    %v3180 = vunpack.c.l.b16 %v2664
    %v3181 = vunpack.c.l.b16 %v2665
    %v3182 = vunpack.c.l.b16 %v2666
    %v3183 = vunpack.c.l.b16 %v2667
    %v3184 = vunpack.c.l.b16 %v2668
    %v3185 = vunpack.c.l.b16 %v2669
    %v3186 = vunpack.c.l.b16 %v2670
    %v3187 = vunpack.c.l.b16 %v2671
    %v3188 = vunpack.c.l.b16 %v2672
    %v3189 = vunpack.c.l.b16 %v2673
    %v3190 = vunpack.c.l.b16 %v2674
    %v3191 = vunpack.c.l.b16 %v2675
    %v3192 = vunpack.c.l.b16 %v2676
    %v3193 = vunpack.c.l.b16 %v2677
    %v3194 = vunpack.c.l.b16 %v2678
    %v3195 = vunpack.c.l.b16 %v2679
    %v3196 = vunpack.c.l.b16 %v2680
    %v3197 = vunpack.c.l.b16 %v2681
    %v3198 = vunpack.c.l.b16 %v2682
    %v3199 = vunpack.c.l.b16 %v2683
    %v3200 = vunpack.c.l.b16 %v2684
    %v3201 = vunpack.c.l.b16 %v2685
    %v3202 = vunpack.c.l.b16 %v2686
    %v3203 = vunpack.c.l.b16 %v2687
    %v3204 = vunpack.c.l.b16 %v2688
    %v3205 = vunpack.c.l.b16 %v2689
    %v3206 = vunpack.c.l.b16 %v2690
    %v3207 = vunpack.c.l.b16 %v2691
    %v3208 = vunpack.c.l.b16 %v2692
    %v3209 = vunpack.c.l.b16 %v2693
    %v3210 = vunpack.c.l.b16 %v2694
    %v3211 = vunpack.c.l.b16 %v2695
    %v3212 = vunpack.c.l.b16 %v2696
    %v3213 = vunpack.c.l.b16 %v2697
    %v3214 = vunpack.c.l.b16 %v2698
    %v3215 = vunpack.c.l.b16 %v2699
    %v3216 = vunpack.c.l.b16 %v2700
    %v3217 = vunpack.c.l.b16 %v2701
    %v3218 = vunpack.c.l.b16 %v2702
    %v3219 = vunpack.c.l.b16 %v2703
    %v3220 = vunpack.c.l.b16 %v2704
    %v3221 = vunpack.c.l.b16 %v2705
    %v3222 = vunpack.c.l.b16 %v2706
    %v3223 = vunpack.c.l.b16 %v2707
    %v3224 = vunpack.c.l.b16 %v2708
    %v3225 = vunpack.c.l.b16 %v2709
    %v3226 = vunpack.c.l.b16 %v2710
    %v3227 = vunpack.c.l.b16 %v2711
    %v3228 = vunpack.c.l.b16 %v2712
    %v3229 = vunpack.c.l.b16 %v2713
    %v3230 = vunpack.c.l.b16 %v2714
    %v3231 = vunpack.c.l.b16 %v2715
    %v3232 = vunpack.c.l.b16 %v2716
    %v3233 = vunpack.c.l.b16 %v2717
    %v3234 = vunpack.c.l.b16 %v2718
    %v3235 = vunpack.c.l.b16 %v2719
    %v3236 = vunpack.c.l.b16 %v2720
    %v3237 = vunpack.c.l.b16 %v2721
    %v3238 = vunpack.c.l.b16 %v2722
    %v3239 = vunpack.c.l.b16 %v2723
    %v3240 = vunpack.c.l.b16 %v2724
    %v3241 = vunpack.c.l.b16 %v2725
    %v3242 = vunpack.c.l.b16 %v2726
    %v3243 = vunpack.c.l.b16 %v2727
    %v3244 = vunpack.c.l.b16 %v2728
    %v3245 = vunpack.c.l.b16 %v2729
    %v3246 = vunpack.c.l.b16 %v2730
    %v3247 = vunpack.c.l.b16 %v2731
    %v3248 = vunpack.c.l.b16 %v2732
    %v3249 = vunpack.c.l.b16 %v2733
    %v3250 = vunpack.c.l.b16 %v2734
    %v3251 = vunpack.c.l.b16 %v2735
    %v3252 = vunpack.c.l.b16 %v2736
    %v3253 = vunpack.c.l.b16 %v2737
    %v3254 = vunpack.c.l.b16 %v2738
    %v3255 = vunpack.c.l.b16 %v2739
    %v3256 = vunpack.c.l.b16 %v2740
    %v3257 = vunpack.c.l.b16 %v2741
    %v3258 = vunpack.c.l.b16 %v2742
    %v3259 = vunpack.c.l.b16 %v2743
    %v3260 = vunpack.c.l.b16 %v2744
    %v3261 = vunpack.c.l.b16 %v2745
    %v3262 = vunpack.c.l.b16 %v2746
    %v3263 = vunpack.c.l.b16 %v2747
    %v3264 = vunpack.c.l.b16 %v2748
    %v3265 = vunpack.c.l.b16 %v2749
    %v3266 = vunpack.c.l.b16 %v2750
    %v3267 = vunpack.c.l.b16 %v2751
    %v3268 = vunpack.c.l.b16 %v2752
    %v3269 = vunpack.c.l.b16 %v2753
    %v3270 = vunpack.c.l.b16 %v2754
    %v3271 = vunpack.c.l.b16 %v2755
    %v3272 = vunpack.c.l.b16 %v2756
    %v3273 = vunpack.c.l.b16 %v2757
    %v3274 = vunpack.c.l.b16 %v2758
    %v3275 = vunpack.c.l.b16 %v2759
    %v3276 = vunpack.c.l.b16 %v2760
    %v3277 = vunpack.c.l.b16 %v2761
    %v3278 = vunpack.c.l.b16 %v2762
    %v3279 = vunpack.c.l.b16 %v2763
    %v3280 = vunpack.c.l.b16 %v2764
    %v3281 = vunpack.c.l.b16 %v2765
    %v3282 = vunpack.c.l.b16 %v2766
    %v3283 = vunpack.c.l.b16 %v2767
    %v3284 = vunpack.c.l.b16 %v2768
    %v3285 = vunpack.c.l.b16 %v2769
    %v3286 = vunpack.c.l.b16 %v2770
    %v3287 = vunpack.c.l.b16 %v2771
    %v3288 = vunpack.c.l.b16 %v2772
    %v3289 = vunpack.c.l.b16 %v2773
    %v3290 = vunpack.c.l.b16 %v2774
    %v3291 = vunpack.c.l.b16 %v2775
    %v3292 = vunpack.c.l.b16 %v2776
    %v3293 = vunpack.c.l.b16 %v2777
    %v3294 = vunpack.c.l.b16 %v2778
    %v3295 = vunpack.c.l.b16 %v2779
    %v3296 = vunpack.c.l.b16 %v2780
    %v3297 = vunpack.c.l.b16 %v2781
    %v3298 = vunpack.c.l.b16 %v2782
    %v3299 = vunpack.c.l.b16 %v2783
    %v3300 = vunpack.c.l.b16 %v2784
    %v3301 = vunpack.c.l.b16 %v2785
    %v3302 = vunpack.c.l.b16 %v2786
    %v3303 = vunpack.c.l.b16 %v2787
    %v3304 = vunpack.c.l.b16 %v2788
    %v3305 = vunpack.c.l.b16 %v2789
    %v3306 = vunpack.c.l.b16 %v2790
    %v3307 = vunpack.c.l.b16 %v2791
    %v3308 = vunpack.c.l.b16 %v2792
    %v3309 = vunpack.c.l.b16 %v2793
    %v3310 = vunpack.c.l.b16 %v2794
    %v3311 = vunpack.c.l.b16 %v2795
    %v3312 = vunpack.c.l.b16 %v2796
    %v3313 = vunpack.c.l.b16 %v2797
    %v3314 = vunpack.c.l.b16 %v2798
    %v3315 = vunpack.c.l.b16 %v2799
    %v3316 = vunpack.c.l.b16 %v2800
    %v3317 = vunpack.c.l.b16 %v2801
    %v3318 = vunpack.c.l.b16 %v2802
    %v3319 = vunpack.c.l.b16 %v2803
    %v3320 = vunpack.c.l.b16 %v2804
    %v3321 = vunpack.c.l.b16 %v2805
    %v3322 = vunpack.c.l.b16 %v2806
    %v3323 = vunpack.c.l.b16 %v2807
    %v3324 = vunpack.c.l.b16 %v2808
    %v3325 = vunpack.c.l.b16 %v2809
    %v3326 = vunpack.c.l.b16 %v2810
    %v3327 = vunpack.c.l.b16 %v2811
    %v3328 = vunpack.c.l.b16 %v2812
    %v3329 = vunpack.c.l.b16 %v2813
    %v3330 = vunpack.c.l.b16 %v2814
    %v3331 = vunpack.c.l.b16 %v2815
    %v3332 = vunpack.c.l.b16 %v2816
    %v3333 = vunpack.c.l.b16 %v2817
    %v3334 = vunpack.c.l.b16 %v2818
    %v3335 = vunpack.c.l.b16 %v2819
    %v3336 = vunpack.c.l.b16 %v2820
    %v3337 = vunpack.c.l.b16 %v2821
    %v3338 = vunpack.c.l.b16 %v2822
    %v3339 = vunpack.c.l.b16 %v2823
    %v3340 = vunpack.c.l.b16 %v2824
    %v3341 = vunpack.c.l.b16 %v2825
    %v3342 = vunpack.c.l.b16 %v2826
    %v3343 = vunpack.c.l.b16 %v2827
    %v3344 = vunpack.c.l.b16 %v2828
    %v3345 = vunpack.c.l.b16 %v2829
    %v3346 = vunpack.c.l.b16 %v2830
    %v3347 = vunpack.c.l.b16 %v2831
    %v3348 = vunpack.c.l.b16 %v2832
    %v3349 = vunpack.c.l.b16 %v2833
    %v3350 = vunpack.c.l.b16 %v2834
    %v3351 = vunpack.c.l.b16 %v2835
    %v3352 = vunpack.c.l.b16 %v2836
    %v3353 = vunpack.c.l.b16 %v2837
    %v3354 = vunpack.c.l.b16 %v2838
    %v3355 = vunpack.c.l.b16 %v2839
    %v3356 = vunpack.c.l.b16 %v2840
    %v3357 = vunpack.c.l.b16 %v2841
    %v3358 = vunpack.c.l.b16 %v2842
    %v3359 = vunpack.c.l.b16 %v2843
    %v3360 = vunpack.c.l.b16 %v2844
    %v3361 = vunpack.c.l.b16 %v2845
    %v3362 = vunpack.c.l.b16 %v2846
    %v3363 = vunpack.c.l.b16 %v2847
    %v3364 = vunpack.c.l.b16 %v2848
    %v3365 = vunpack.c.l.b16 %v2849
    %v3366 = vpack.c.b16 %v3111, %v3110
    %v3367 = vpack.c.b16 %v3113, %v3112
    %v3368 = vpack.c.b16 %v3115, %v3114
    %v3369 = vpack.c.b16 %v3117, %v3116
    %v3370 = vpack.c.b16 %v3119, %v3118
    %v3371 = vpack.c.b16 %v3121, %v3120
    %v3372 = vpack.c.b16 %v3123, %v3122
    %v3373 = vpack.c.b16 %v3125, %v3124
    %v3374 = vpack.c.b16 %v3127, %v3126
    %v3375 = vpack.c.b16 %v3129, %v3128
    %v3376 = vpack.c.b16 %v3131, %v3130
    %v3377 = vpack.c.b16 %v3133, %v3132
    %v3378 = vpack.c.b16 %v3135, %v3134
    %v3379 = vpack.c.b16 %v3137, %v3136
    %v3380 = vpack.c.b16 %v3139, %v3138
    %v3381 = vpack.c.b16 %v3141, %v3140
    %v3382 = vpack.c.b16 %v3143, %v3142
    %v3383 = vpack.c.b16 %v3145, %v3144
    %v3384 = vpack.c.b16 %v3147, %v3146
    %v3385 = vpack.c.b16 %v3149, %v3148
    %v3386 = vpack.c.b16 %v3151, %v3150
    %v3387 = vpack.c.b16 %v3153, %v3152
    %v3388 = vpack.c.b16 %v3155, %v3154
    %v3389 = vpack.c.b16 %v3157, %v3156
    %v3390 = vpack.c.b16 %v3159, %v3158
    %v3391 = vpack.c.b16 %v3161, %v3160
    %v3392 = vpack.c.b16 %v3163, %v3162
    %v3393 = vpack.c.b16 %v3165, %v3164
    %v3394 = vpack.c.b16 %v3167, %v3166
    %v3395 = vpack.c.b16 %v3169, %v3168
    %v3396 = vpack.c.b16 %v3171, %v3170
    %v3397 = vpack.c.b16 %v3173, %v3172
    %v3398 = vpack.c.b16 %v3175, %v3174
    %v3399 = vpack.c.b16 %v3177, %v3176
    %v3400 = vpack.c.b16 %v3179, %v3178
    %v3401 = vpack.c.b16 %v3181, %v3180
    %v3402 = vpack.c.b16 %v3183, %v3182
    %v3403 = vpack.c.b16 %v3185, %v3184
    %v3404 = vpack.c.b16 %v3187, %v3186
    %v3405 = vpack.c.b16 %v3189, %v3188
    %v3406 = vpack.c.b16 %v3191, %v3190
    %v3407 = vpack.c.b16 %v3193, %v3192
    %v3408 = vpack.c.b16 %v3195, %v3194
    %v3409 = vpack.c.b16 %v3197, %v3196
    %v3410 = vpack.c.b16 %v3199, %v3198
    %v3411 = vpack.c.b16 %v3201, %v3200
    %v3412 = vpack.c.b16 %v3203, %v3202
    %v3413 = vpack.c.b16 %v3205, %v3204
    %v3414 = vpack.c.b16 %v3207, %v3206
    %v3415 = vpack.c.b16 %v3209, %v3208
    %v3416 = vpack.c.b16 %v3211, %v3210
    %v3417 = vpack.c.b16 %v3213, %v3212
    %v3418 = vpack.c.b16 %v3215, %v3214
    %v3419 = vpack.c.b16 %v3217, %v3216
    %v3420 = vpack.c.b16 %v3219, %v3218
    %v3421 = vpack.c.b16 %v3221, %v3220
    %v3422 = vpack.c.b16 %v3223, %v3222
    %v3423 = vpack.c.b16 %v3225, %v3224
    %v3424 = vpack.c.b16 %v3227, %v3226
    %v3425 = vpack.c.b16 %v3229, %v3228
    %v3426 = vpack.c.b16 %v3231, %v3230
    %v3427 = vpack.c.b16 %v3233, %v3232
    %v3428 = vpack.c.b16 %v3235, %v3234
    %v3429 = vpack.c.b16 %v3237, %v3236
    %v3430 = vpack.c.b16 %v3239, %v3238
    %v3431 = vpack.c.b16 %v3241, %v3240
    %v3432 = vpack.c.b16 %v3243, %v3242
    %v3433 = vpack.c.b16 %v3245, %v3244
    %v3434 = vpack.c.b16 %v3247, %v3246
    %v3435 = vpack.c.b16 %v3249, %v3248
    %v3436 = vpack.c.b16 %v3251, %v3250
    %v3437 = vpack.c.b16 %v3253, %v3252
    %v3438 = vpack.c.b16 %v3255, %v3254
    %v3439 = vpack.c.b16 %v3257, %v3256
    %v3440 = vpack.c.b16 %v3259, %v3258
    %v3441 = vpack.c.b16 %v3261, %v3260
    %v3442 = vpack.c.b16 %v3263, %v3262
    %v3443 = vpack.c.b16 %v3265, %v3264
    %v3444 = vpack.c.b16 %v3267, %v3266
    %v3445 = vpack.c.b16 %v3269, %v3268
    %v3446 = vpack.c.b16 %v3271, %v3270
    %v3447 = vpack.c.b16 %v3273, %v3272
    %v3448 = vpack.c.b16 %v3275, %v3274
    %v3449 = vpack.c.b16 %v3277, %v3276
    %v3450 = vpack.c.b16 %v3279, %v3278
    %v3451 = vpack.c.b16 %v3281, %v3280
    %v3452 = vpack.c.b16 %v3283, %v3282
    %v3453 = vpack.c.b16 %v3285, %v3284
    %v3454 = vpack.c.b16 %v3287, %v3286
    %v3455 = vpack.c.b16 %v3289, %v3288
    %v3456 = vpack.c.b16 %v3291, %v3290
    %v3457 = vpack.c.b16 %v3293, %v3292
    %v3458 = vpack.c.b16 %v3295, %v3294
    %v3459 = vpack.c.b16 %v3297, %v3296
    %v3460 = vpack.c.b16 %v3299, %v3298
    %v3461 = vpack.c.b16 %v3301, %v3300
    %v3462 = vpack.c.b16 %v3303, %v3302
    %v3463 = vpack.c.b16 %v3305, %v3304
    %v3464 = vpack.c.b16 %v3307, %v3306
    %v3465 = vpack.c.b16 %v3309, %v3308
    %v3466 = vpack.c.b16 %v3311, %v3310
    %v3467 = vpack.c.b16 %v3313, %v3312
    %v3468 = vpack.c.b16 %v3315, %v3314
    %v3469 = vpack.c.b16 %v3317, %v3316
    %v3470 = vpack.c.b16 %v3319, %v3318
    %v3471 = vpack.c.b16 %v3321, %v3320
    %v3472 = vpack.c.b16 %v3323, %v3322
    %v3473 = vpack.c.b16 %v3325, %v3324
    %v3474 = vpack.c.b16 %v3327, %v3326
    %v3475 = vpack.c.b16 %v3329, %v3328
    %v3476 = vpack.c.b16 %v3331, %v3330
    %v3477 = vpack.c.b16 %v3333, %v3332
    %v3478 = vpack.c.b16 %v3335, %v3334
    %v3479 = vpack.c.b16 %v3337, %v3336
    %v3480 = vpack.c.b16 %v3339, %v3338
    %v3481 = vpack.c.b16 %v3341, %v3340
    %v3482 = vpack.c.b16 %v3343, %v3342
    %v3483 = vpack.c.b16 %v3345, %v3344
    %v3484 = vpack.c.b16 %v3347, %v3346
    %v3485 = vpack.c.b16 %v3349, %v3348
    %v3486 = vpack.c.b16 %v3351, %v3350
    %v3487 = vpack.c.b16 %v3353, %v3352
    %v3488 = vpack.c.b16 %v3355, %v3354
    %v3489 = vpack.c.b16 %v3357, %v3356
    %v3490 = vpack.c.b16 %v3359, %v3358
    %v3491 = vpack.c.b16 %v3361, %v3360
    %v3492 = vpack.c.b16 %v3363, %v3362
    %v3493 = vpack.c.b16 %v3365, %v3364
    %3622 = vmatprep.subr.bf16.mxu0 0
    %3623 = vmatpush1.bf16.msra.mxu0 %v3373
    %3624 = vmatprep.subr.bf16.mxu0 0
    %3625 = vmatpush1.bf16.msra.mxu0 %v3372
    %3626 = vmatprep.subr.bf16.mxu0 0
    %3627 = vmatpush1.bf16.msra.mxu0 %v3371
    %3628 = vmatprep.subr.bf16.mxu0 0
    %3629 = vmatpush1.bf16.msra.mxu0 %v3370
    %3630 = vmatprep.subr.bf16.mxu0 0
    %3631 = vmatpush1.bf16.msra.mxu0 %v3369
    %3632 = vmatprep.subr.bf16.mxu0 0
    %3633 = vmatpush1.bf16.msra.mxu0 %v3368
    %3634 = vmatprep.subr.bf16.mxu0 0
    %3635 = vmatpush1.bf16.msra.mxu0 %v3367
    %3636 = vmatprep.subr.bf16.mxu0 0
    %3637 = vmatpush1.bf16.msra.mxu0 %v3366
    %3638 = vmatprep.subr.bf16.mxu0 0
    %3639 = vmatpush2.bf16.msra.mxu0 %v3381
    %3640 = vmatprep.subr.bf16.mxu0 0
    %3641 = vmatpush2.bf16.msra.mxu0 %v3380
    %3642 = vmatprep.subr.bf16.mxu0 0
    %3643 = vmatpush2.bf16.msra.mxu0 %v3379
    %3644 = vmatprep.subr.bf16.mxu0 0
    %3645 = vmatpush2.bf16.msra.mxu0 %v3378
    %3646 = vmatprep.subr.bf16.mxu0 0
    %3647 = vmatpush2.bf16.msra.mxu0 %v3377
    %3648 = vmatprep.subr.bf16.mxu0 0
    %3649 = vmatpush2.bf16.msra.mxu0 %v3376
    %3650 = vmatprep.subr.bf16.mxu0 0
    %3651 = vmatpush2.bf16.msra.mxu0 %v3375
    %3652 = vmatprep.subr.bf16.mxu0 0
    %3653 = vmatpush2.bf16.msra.mxu0 %v3374
    %3654 = vmatprep.mubr.bf16.mxu0 %v2579
    %3655 = vmatmul.mubr.bf16.gmra.mxu0 %v2578
    %v3656 = vpop.f32.mrf.mxu0
    %v3657 = vadd.f32 %v2853, %v3656
    %v3658 = vpop.f32.mrf.mxu0
    %v3659 = vpop.f32.mrf.mxu0
    %v3660 = vadd.f32 %v2853, %v3659
    %v3661 = vpop.f32.mrf.mxu0
    %3662 = vdwg.mxu0
    %3663 = vmatprep.subr.bf16.mxu0 0
    %3664 = vmatpush1.bf16.msra.mxu0 %v3389
    %3665 = vmatprep.subr.bf16.mxu0 0
    %3666 = vmatpush1.bf16.msra.mxu0 %v3388
    %3667 = vmatprep.subr.bf16.mxu0 0
    %3668 = vmatpush1.bf16.msra.mxu0 %v3387
    %3669 = vmatprep.subr.bf16.mxu0 0
    %3670 = vmatpush1.bf16.msra.mxu0 %v3386
    %3671 = vmatprep.subr.bf16.mxu0 0
    %3672 = vmatpush1.bf16.msra.mxu0 %v3385
    %3673 = vmatprep.subr.bf16.mxu0 0
    %3674 = vmatpush1.bf16.msra.mxu0 %v3384
    %3675 = vmatprep.subr.bf16.mxu0 0
    %3676 = vmatpush1.bf16.msra.mxu0 %v3383
    %3677 = vmatprep.subr.bf16.mxu0 0
    %3678 = vmatpush1.bf16.msra.mxu0 %v3382
    %3679 = vmatprep.subr.bf16.mxu0 0
    %3680 = vmatpush2.bf16.msra.mxu0 %v3397
    %3681 = vmatprep.subr.bf16.mxu0 0
    %3682 = vmatpush2.bf16.msra.mxu0 %v3396
    %3683 = vmatprep.subr.bf16.mxu0 0
    %3684 = vmatpush2.bf16.msra.mxu0 %v3395
    %3685 = vmatprep.subr.bf16.mxu0 0
    %3686 = vmatpush2.bf16.msra.mxu0 %v3394
    %3687 = vmatprep.subr.bf16.mxu0 0
    %3688 = vmatpush2.bf16.msra.mxu0 %v3393
    %3689 = vmatprep.subr.bf16.mxu0 0
    %3690 = vmatpush2.bf16.msra.mxu0 %v3392
    %3691 = vmatprep.subr.bf16.mxu0 0
    %3692 = vmatpush2.bf16.msra.mxu0 %v3391
    %3693 = vmatprep.subr.bf16.mxu0 0
    %3694 = vmatpush2.bf16.msra.mxu0 %v3390
    %3695 = vmatprep.mubr.bf16.mxu0 %v2581
    %3696 = vmatmul.mubr.bf16.gmra.mxu0 %v2580
    %v3697 = vpop.f32.mrf.mxu0
    %v3698 = vadd.f32 %v3657, %v3697
    %v3699 = vpop.f32.mrf.mxu0
    %v3700 = vpop.f32.mrf.mxu0
    %v3701 = vadd.f32 %v3660, %v3700
    %v3702 = vpop.f32.mrf.mxu0
    %3703 = vdwg.mxu0
    %3704 = vmatprep.subr.bf16.mxu0 0
    %3705 = vmatpush1.bf16.msra.mxu0 %v3405
    %3706 = vmatprep.subr.bf16.mxu0 0
    %3707 = vmatpush1.bf16.msra.mxu0 %v3404
    %3708 = vmatprep.subr.bf16.mxu0 0
    %3709 = vmatpush1.bf16.msra.mxu0 %v3403
    %3710 = vmatprep.subr.bf16.mxu0 0
    %3711 = vmatpush1.bf16.msra.mxu0 %v3402
    %3712 = vmatprep.subr.bf16.mxu0 0
    %3713 = vmatpush1.bf16.msra.mxu0 %v3401
    %3714 = vmatprep.subr.bf16.mxu0 0
    %3715 = vmatpush1.bf16.msra.mxu0 %v3400
    %3716 = vmatprep.subr.bf16.mxu0 0
    %3717 = vmatpush1.bf16.msra.mxu0 %v3399
    %3718 = vmatprep.subr.bf16.mxu0 0
    %3719 = vmatpush1.bf16.msra.mxu0 %v3398
    %3720 = vmatprep.subr.bf16.mxu0 0
    %3721 = vmatpush2.bf16.msra.mxu0 %v3413
    %3722 = vmatprep.subr.bf16.mxu0 0
    %3723 = vmatpush2.bf16.msra.mxu0 %v3412
    %3724 = vmatprep.subr.bf16.mxu0 0
    %3725 = vmatpush2.bf16.msra.mxu0 %v3411
    %3726 = vmatprep.subr.bf16.mxu0 0
    %3727 = vmatpush2.bf16.msra.mxu0 %v3410
    %3728 = vmatprep.subr.bf16.mxu0 0
    %3729 = vmatpush2.bf16.msra.mxu0 %v3409
    %3730 = vmatprep.subr.bf16.mxu0 0
    %3731 = vmatpush2.bf16.msra.mxu0 %v3408
    %3732 = vmatprep.subr.bf16.mxu0 0
    %3733 = vmatpush2.bf16.msra.mxu0 %v3407
    %3734 = vmatprep.subr.bf16.mxu0 0
    %3735 = vmatpush2.bf16.msra.mxu0 %v3406
    %3736 = vmatprep.mubr.bf16.mxu0 %v2583
    %3737 = vmatmul.mubr.bf16.gmra.mxu0 %v2582
    %v3738 = vpop.f32.mrf.mxu0
    %v3739 = vadd.f32 %v3698, %v3738
    %v3740 = vpop.f32.mrf.mxu0
    %v3741 = vpop.f32.mrf.mxu0
    %v3742 = vadd.f32 %v3701, %v3741
    %v3743 = vpop.f32.mrf.mxu0
    %3744 = vdwg.mxu0
    %3745 = vmatprep.subr.bf16.mxu0 0
    %3746 = vmatpush1.bf16.msra.mxu0 %v3421
    %3747 = vmatprep.subr.bf16.mxu0 0
    %3748 = vmatpush1.bf16.msra.mxu0 %v3420
    %3749 = vmatprep.subr.bf16.mxu0 0
    %3750 = vmatpush1.bf16.msra.mxu0 %v3419
    %3751 = vmatprep.subr.bf16.mxu0 0
    %3752 = vmatpush1.bf16.msra.mxu0 %v3418
    %3753 = vmatprep.subr.bf16.mxu0 0
    %3754 = vmatpush1.bf16.msra.mxu0 %v3417
    %3755 = vmatprep.subr.bf16.mxu0 0
    %3756 = vmatpush1.bf16.msra.mxu0 %v3416
    %3757 = vmatprep.subr.bf16.mxu0 0
    %3758 = vmatpush1.bf16.msra.mxu0 %v3415
    %3759 = vmatprep.subr.bf16.mxu0 0
    %3760 = vmatpush1.bf16.msra.mxu0 %v3414
    %3761 = vmatprep.subr.bf16.mxu0 0
    %3762 = vmatpush2.bf16.msra.mxu0 %v3429
    %3763 = vmatprep.subr.bf16.mxu0 0
    %3764 = vmatpush2.bf16.msra.mxu0 %v3428
    %3765 = vmatprep.subr.bf16.mxu0 0
    %3766 = vmatpush2.bf16.msra.mxu0 %v3427
    %3767 = vmatprep.subr.bf16.mxu0 0
    %3768 = vmatpush2.bf16.msra.mxu0 %v3426
    %3769 = vmatprep.subr.bf16.mxu0 0
    %3770 = vmatpush2.bf16.msra.mxu0 %v3425
    %3771 = vmatprep.subr.bf16.mxu0 0
    %3772 = vmatpush2.bf16.msra.mxu0 %v3424
    %3773 = vmatprep.subr.bf16.mxu0 0
    %3774 = vmatpush2.bf16.msra.mxu0 %v3423
    %3775 = vmatprep.subr.bf16.mxu0 0
    %3776 = vmatpush2.bf16.msra.mxu0 %v3422
    %3777 = vmatprep.mubr.bf16.mxu0 %v2585
    %3778 = vmatmul.mubr.bf16.gmra.mxu0 %v2584
    %v3779 = vpop.f32.mrf.mxu0
    %v3780 = vadd.f32 %v3739, %v3779
    %v3781 = vpop.f32.mrf.mxu0
    %v3782 = vpop.f32.mrf.mxu0
    %v3783 = vadd.f32 %v3742, %v3782
    %v3784 = vpop.f32.mrf.mxu0
    %3785 = vdwg.mxu0
    %3786 = vmatprep.subr.bf16.mxu0 0
    %3787 = vmatpush1.bf16.msra.mxu0 %v3437
    %3788 = vmatprep.subr.bf16.mxu0 0
    %3789 = vmatpush1.bf16.msra.mxu0 %v3436
    %3790 = vmatprep.subr.bf16.mxu0 0
    %3791 = vmatpush1.bf16.msra.mxu0 %v3435
    %3792 = vmatprep.subr.bf16.mxu0 0
    %3793 = vmatpush1.bf16.msra.mxu0 %v3434
    %3794 = vmatprep.subr.bf16.mxu0 0
    %3795 = vmatpush1.bf16.msra.mxu0 %v3433
    %3796 = vmatprep.subr.bf16.mxu0 0
    %3797 = vmatpush1.bf16.msra.mxu0 %v3432
    %3798 = vmatprep.subr.bf16.mxu0 0
    %3799 = vmatpush1.bf16.msra.mxu0 %v3431
    %3800 = vmatprep.subr.bf16.mxu0 0
    %3801 = vmatpush1.bf16.msra.mxu0 %v3430
    %3802 = vmatprep.subr.bf16.mxu0 0
    %3803 = vmatpush2.bf16.msra.mxu0 %v3445
    %3804 = vmatprep.subr.bf16.mxu0 0
    %3805 = vmatpush2.bf16.msra.mxu0 %v3444
    %3806 = vmatprep.subr.bf16.mxu0 0
    %3807 = vmatpush2.bf16.msra.mxu0 %v3443
    %3808 = vmatprep.subr.bf16.mxu0 0
    %3809 = vmatpush2.bf16.msra.mxu0 %v3442
    %3810 = vmatprep.subr.bf16.mxu0 0
    %3811 = vmatpush2.bf16.msra.mxu0 %v3441
    %3812 = vmatprep.subr.bf16.mxu0 0
    %3813 = vmatpush2.bf16.msra.mxu0 %v3440
    %3814 = vmatprep.subr.bf16.mxu0 0
    %3815 = vmatpush2.bf16.msra.mxu0 %v3439
    %3816 = vmatprep.subr.bf16.mxu0 0
    %3817 = vmatpush2.bf16.msra.mxu0 %v3438
    %3818 = vmatprep.mubr.bf16.mxu0 %v2587
    %3819 = vmatmul.mubr.bf16.gmra.mxu0 %v2586
    %v3820 = vpop.f32.mrf.mxu0
    %v3821 = vadd.f32 %v3780, %v3820
    %v3822 = vpop.f32.mrf.mxu0
    %v3823 = vpop.f32.mrf.mxu0
    %v3824 = vadd.f32 %v3783, %v3823
    %v3825 = vpop.f32.mrf.mxu0
    %3826 = vdwg.mxu0
    %3827 = vmatprep.subr.bf16.mxu0 0
    %3828 = vmatpush1.bf16.msra.mxu0 %v3453
    %3829 = vmatprep.subr.bf16.mxu0 0
    %3830 = vmatpush1.bf16.msra.mxu0 %v3452
    %3831 = vmatprep.subr.bf16.mxu0 0
    %3832 = vmatpush1.bf16.msra.mxu0 %v3451
    %3833 = vmatprep.subr.bf16.mxu0 0
    %3834 = vmatpush1.bf16.msra.mxu0 %v3450
    %3835 = vmatprep.subr.bf16.mxu0 0
    %3836 = vmatpush1.bf16.msra.mxu0 %v3449
    %3837 = vmatprep.subr.bf16.mxu0 0
    %3838 = vmatpush1.bf16.msra.mxu0 %v3448
    %3839 = vmatprep.subr.bf16.mxu0 0
    %3840 = vmatpush1.bf16.msra.mxu0 %v3447
    %3841 = vmatprep.subr.bf16.mxu0 0
    %3842 = vmatpush1.bf16.msra.mxu0 %v3446
    %3843 = vmatprep.subr.bf16.mxu0 0
    %3844 = vmatpush2.bf16.msra.mxu0 %v3461
    %3845 = vmatprep.subr.bf16.mxu0 0
    %3846 = vmatpush2.bf16.msra.mxu0 %v3460
    %3847 = vmatprep.subr.bf16.mxu0 0
    %3848 = vmatpush2.bf16.msra.mxu0 %v3459
    %3849 = vmatprep.subr.bf16.mxu0 0
    %3850 = vmatpush2.bf16.msra.mxu0 %v3458
    %3851 = vmatprep.subr.bf16.mxu0 0
    %3852 = vmatpush2.bf16.msra.mxu0 %v3457
    %3853 = vmatprep.subr.bf16.mxu0 0
    %3854 = vmatpush2.bf16.msra.mxu0 %v3456
    %3855 = vmatprep.subr.bf16.mxu0 0
    %3856 = vmatpush2.bf16.msra.mxu0 %v3455
    %3857 = vmatprep.subr.bf16.mxu0 0
    %3858 = vmatpush2.bf16.msra.mxu0 %v3454
    %3859 = vmatprep.mubr.bf16.mxu0 %v2589
    %3860 = vmatmul.mubr.bf16.gmra.mxu0 %v2588
    %v3861 = vpop.f32.mrf.mxu0
    %v3862 = vadd.f32 %v3821, %v3861
    %v3863 = vpop.f32.mrf.mxu0
    %v3864 = vpop.f32.mrf.mxu0
    %v3865 = vadd.f32 %v3824, %v3864
    %v3866 = vpop.f32.mrf.mxu0
    %3867 = vdwg.mxu0
    %3868 = vmatprep.subr.bf16.mxu0 0
    %3869 = vmatpush1.bf16.msra.mxu0 %v3469
    %3870 = vmatprep.subr.bf16.mxu0 0
    %3871 = vmatpush1.bf16.msra.mxu0 %v3468
    %3872 = vmatprep.subr.bf16.mxu0 0
    %3873 = vmatpush1.bf16.msra.mxu0 %v3467
    %3874 = vmatprep.subr.bf16.mxu0 0
    %3875 = vmatpush1.bf16.msra.mxu0 %v3466
    %3876 = vmatprep.subr.bf16.mxu0 0
    %3877 = vmatpush1.bf16.msra.mxu0 %v3465
    %3878 = vmatprep.subr.bf16.mxu0 0
    %3879 = vmatpush1.bf16.msra.mxu0 %v3464
    %3880 = vmatprep.subr.bf16.mxu0 0
    %3881 = vmatpush1.bf16.msra.mxu0 %v3463
    %3882 = vmatprep.subr.bf16.mxu0 0
    %3883 = vmatpush1.bf16.msra.mxu0 %v3462
    %3884 = vmatprep.subr.bf16.mxu0 0
    %3885 = vmatpush2.bf16.msra.mxu0 %v3477
    %3886 = vmatprep.subr.bf16.mxu0 0
    %3887 = vmatpush2.bf16.msra.mxu0 %v3476
    %3888 = vmatprep.subr.bf16.mxu0 0
    %3889 = vmatpush2.bf16.msra.mxu0 %v3475
    %3890 = vmatprep.subr.bf16.mxu0 0
    %3891 = vmatpush2.bf16.msra.mxu0 %v3474
    %3892 = vmatprep.subr.bf16.mxu0 0
    %3893 = vmatpush2.bf16.msra.mxu0 %v3473
    %3894 = vmatprep.subr.bf16.mxu0 0
    %3895 = vmatpush2.bf16.msra.mxu0 %v3472
    %3896 = vmatprep.subr.bf16.mxu0 0
    %3897 = vmatpush2.bf16.msra.mxu0 %v3471
    %3898 = vmatprep.subr.bf16.mxu0 0
    %3899 = vmatpush2.bf16.msra.mxu0 %v3470
    %3900 = vmatprep.mubr.bf16.mxu0 %v2591
    %3901 = vmatmul.mubr.bf16.gmra.mxu0 %v2590
    %v3902 = vpop.f32.mrf.mxu0
    %v3903 = vadd.f32 %v3862, %v3902
    %v3904 = vpop.f32.mrf.mxu0
    %v3905 = vpop.f32.mrf.mxu0
    %v3906 = vadd.f32 %v3865, %v3905
    %v3907 = vpop.f32.mrf.mxu0
    %3908 = vdwg.mxu0
    %3909 = vmatprep.subr.bf16.mxu0 0
    %3910 = vmatpush1.bf16.msra.mxu0 %v3485
    %3911 = vmatprep.subr.bf16.mxu0 0
    %3912 = vmatpush1.bf16.msra.mxu0 %v3484
    %3913 = vmatprep.subr.bf16.mxu0 0
    %3914 = vmatpush1.bf16.msra.mxu0 %v3483
    %3915 = vmatprep.subr.bf16.mxu0 0
    %3916 = vmatpush1.bf16.msra.mxu0 %v3482
    %3917 = vmatprep.subr.bf16.mxu0 0
    %3918 = vmatpush1.bf16.msra.mxu0 %v3481
    %3919 = vmatprep.subr.bf16.mxu0 0
    %3920 = vmatpush1.bf16.msra.mxu0 %v3480
    %3921 = vmatprep.subr.bf16.mxu0 0
    %3922 = vmatpush1.bf16.msra.mxu0 %v3479
    %3923 = vmatprep.subr.bf16.mxu0 0
    %3924 = vmatpush1.bf16.msra.mxu0 %v3478
    %3925 = vmatprep.subr.bf16.mxu0 0
    %3926 = vmatpush2.bf16.msra.mxu0 %v3493
    %3927 = vmatprep.subr.bf16.mxu0 0
    %3928 = vmatpush2.bf16.msra.mxu0 %v3492
    %3929 = vmatprep.subr.bf16.mxu0 0
    %3930 = vmatpush2.bf16.msra.mxu0 %v3491
    %3931 = vmatprep.subr.bf16.mxu0 0
    %3932 = vmatpush2.bf16.msra.mxu0 %v3490
    %3933 = vmatprep.subr.bf16.mxu0 0
    %3934 = vmatpush2.bf16.msra.mxu0 %v3489
    %3935 = vmatprep.subr.bf16.mxu0 0
    %3936 = vmatpush2.bf16.msra.mxu0 %v3488
    %3937 = vmatprep.subr.bf16.mxu0 0
    %3938 = vmatpush2.bf16.msra.mxu0 %v3487
    %3939 = vmatprep.subr.bf16.mxu0 0
    %3940 = vmatpush2.bf16.msra.mxu0 %v3486
    %3941 = vmatprep.mubr.bf16.mxu0 %v2593
    %3942 = vmatmul.mubr.bf16.gmra.mxu0 %v2592
    %v3943 = vpop.f32.mrf.mxu0
    %v3944 = vadd.f32 %v3903, %v3943
    %v3945 = vpop.f32.mrf.mxu0
    %v3946 = vpop.f32.mrf.mxu0
    %v3947 = vadd.f32 %v3906, %v3946
    %v3948 = vpop.f32.mrf.mxu0
    %3949 = vdwg.mxu0
    %v3950 = vadd.f32 %v1728, %v3944
    %v3951 = vadd.f32 %v1729, %v3947
    %v3952 = vsel %vm177, %v3950, 0.0
    %3953 = vadd.xlane.f32.xlu0 %v3952
    %v3954 = vpop.xlane.xlu0 %3953
    %v3955 = vsel %vm177, %v3951, 0.0
    %3956 = vadd.xlane.f32.xlu0 %v3955
    %v3957 = vpop.xlane.xlu0 %3956
    %v3958 = vmul.f32 %v3954, %v1697
    %v3959 = vmul.f32 %v3957, %v1697
    %v3960 = vsub.f32 %v3950, %v3958
    %v3961 = vsub.f32 %v3951, %v3959
    %v3962 = vmul.f32 %v3960, %v3960
    %v3963 = vmul.f32 %v3961, %v3961
    %v3964 = vsel %vm177, %v3962, 0.0
    %3965 = vadd.xlane.f32.xlu0 %v3964
    %v3966 = vpop.xlane.xlu0 %3965
    %v3967 = vsel %vm177, %v3963, 0.0
    %3968 = vadd.xlane.f32.xlu0 %v3967
    %v3969 = vpop.xlane.xlu0 %3968
    %v3970 = vmul.f32 %v3966, %v1697
    %v3971 = vmul.f32 %v3969, %v1697
    %v3972 = vadd.f32 %v3970, 1e-05
    %v3973 = vadd.f32 %v3971, 1e-05
    %v3974 = vrsqrt.pop %v3972
    %v3975 = vrsqrt.pop %v3973
    %v3976 = vmul.f32 %v3960, %v3974
    %v3977 = vmul.f32 %v3961, %v3975
    %v3978 = vlaneseq
    %v3979 = vshrl.u32 %v3978, 7
    %v3980 = vsub.s32 0, %v3979
    %v3981 = vrot.slane %v126, %v3980
    %v3982 = vmul.f32 %v3976, %v3981
    %v3983 = vmul.f32 %v3977, %v3981
    %v3984 = vlaneseq
    %v3985 = vshrl.u32 %v3984, 7
    %v3986 = vsub.s32 0, %v3985
    %v3987 = vrot.slane %v127, %v3986
    %v3988 = vadd.f32 %v3982, %v3987
    %v3989 = vadd.f32 %v3983, %v3987
    %v3990 = vld [vmem:[%s7 + $0x20] sm:$0x1]
    %v3991 = vld [vmem:[%s7 + $0x21] sm:$0x1]
    %v3992 = vld [vmem:[%s7 + $0x22] sm:$0x1]
    %v3993 = vld [vmem:[%s7 + $0x23] sm:$0x1]
    %v3994 = vld [vmem:[%s7 + $0x24] sm:$0x1]
    %v3995 = vld [vmem:[%s7 + $0x25] sm:$0x1]
    %v3996 = vld [vmem:[%s7 + $0x26] sm:$0x1]
    %v3997 = vld [vmem:[%s7 + $0x27] sm:$0x1]
    %v3998 = vld [vmem:[%s7 + $0x28] sm:$0x1]
    %v3999 = vpack.c.bf16 %v3989, %v3988
    %s4000 = scalar_lea.vmem %s2, 64
    %v4001 = vld [vmem:[%s4000] sm:$0xff]
    %v4002 = vld [vmem:[%s4000 + $0x8] sm:$0xff]
    %v4003 = vld [vmem:[%s4000 + $0x10] sm:$0xff]
    %v4004 = vld [vmem:[%s4000 + $0x18] sm:$0xff]
    %v4005 = vld [vmem:[%s4000 + $0x20] sm:$0xff]
    %v4006 = vld [vmem:[%s4000 + $0x28] sm:$0xff]
    %v4007 = vld [vmem:[%s4000 + $0x30] sm:$0xff]
    %v4008 = vld [vmem:[%s4000 + $0x38] sm:$0xff]
    %v4017 = vunpack.c.l.b16 %v4001
    %v4018 = vunpack.c.h.b16 %v4001
    %v4019 = vunpack.c.l.b16 %v4002
    %v4020 = vunpack.c.h.b16 %v4002
    %v4021 = vunpack.c.l.b16 %v4003
    %v4022 = vunpack.c.h.b16 %v4003
    %v4023 = vunpack.c.l.b16 %v4004
    %v4024 = vunpack.c.h.b16 %v4004
    %v4025 = vunpack.c.l.b16 %v4005
    %v4026 = vunpack.c.h.b16 %v4005
    %v4027 = vunpack.c.l.b16 %v4006
    %v4028 = vunpack.c.h.b16 %v4006
    %v4029 = vunpack.c.l.b16 %v4007
    %v4030 = vunpack.c.h.b16 %v4007
    %v4031 = vunpack.c.l.b16 %v4008
    %v4032 = vunpack.c.h.b16 %v4008
    %v4033 = vpack.c.b16 %v4019, %v4017
    %v4034 = vpack.c.b16 %v4020, %v4018
    %v4035 = vpack.c.b16 %v4023, %v4021
    %v4036 = vpack.c.b16 %v4024, %v4022
    %v4037 = vpack.c.b16 %v4027, %v4025
    %v4038 = vpack.c.b16 %v4028, %v4026
    %v4039 = vpack.c.b16 %v4031, %v4029
    %v4040 = vpack.c.b16 %v4032, %v4030
    %v4050 = vsel %vm177, %v3999, 0
    %4052 = vmatprep.subr.bf16.mxu0 0
    %4053 = vmatpush1.bf16.msra.mxu0 0
    %4054 = vmatprep.subr.bf16.mxu0 0
    %4055 = vmatpush1.bf16.msra.mxu0 0
    %4056 = vmatprep.subr.bf16.mxu0 0
    %4057 = vmatpush1.bf16.msra.mxu0 0
    %4058 = vmatprep.subr.bf16.mxu0 0
    %4059 = vmatpush1.bf16.msra.mxu0 0
    %4060 = vmatprep.subr.bf16.mxu0 %v4040
    %4061 = vmatpush1.bf16.msra.mxu0 %v4039
    %4062 = vmatprep.subr.bf16.mxu0 %v4038
    %4063 = vmatpush1.bf16.msra.mxu0 %v4037
    %4064 = vmatprep.subr.bf16.mxu0 %v4036
    %4065 = vmatpush1.bf16.msra.mxu0 %v4035
    %4066 = vmatprep.subr.bf16.mxu0 %v4034
    %4067 = vmatpush1.bf16.msra.mxu0 %v4033
    %4068 = vmatprep.subr.bf16.mxu0 0
    %4069 = vmatpush2.bf16.msra.mxu0 0
    %4070 = vmatprep.subr.bf16.mxu0 0
    %4071 = vmatpush2.bf16.msra.mxu0 0
    %4072 = vmatprep.subr.bf16.mxu0 0
    %4073 = vmatpush2.bf16.msra.mxu0 0
    %4074 = vmatprep.subr.bf16.mxu0 0
    %4075 = vmatpush2.bf16.msra.mxu0 0
    %4076 = vmatprep.subr.bf16.mxu0 0
    %4077 = vmatpush2.bf16.msra.mxu0 0
    %4078 = vmatprep.subr.bf16.mxu0 0
    %4079 = vmatpush2.bf16.msra.mxu0 0
    %4080 = vmatprep.subr.bf16.mxu0 0
    %4081 = vmatpush2.bf16.msra.mxu0 0
    %4082 = vmatprep.subr.bf16.mxu0 0
    %4083 = vmatpush2.bf16.msra.mxu0 0
    %4084 = vmatprep.mubr.bf16.mxu0 0
    %4085 = vmatmul.mubr.bf16.gmra.mxu0 %v4050
    %v4086 = vpop.f32.mrf.mxu0
    %v4087 = vadd.f32 0.0, %v4086
    %v4088 = vpop.f32.mrf.mxu0
    %v4089 = vadd.f32 0.0, %v4088
    %v4090 = vpop.f32.mrf.mxu0
    %v4091 = vadd.f32 0.0, %v4090
    %v4092 = vpop.f32.mrf.mxu0
    %v4093 = vadd.f32 0.0, %v4092
    %4094 = vdwg.mxu0
    %v4095 = vlaneseq
    %v4096 = vshrl.u32 %v4095, 7
    %v4097 = vsub.s32 0, %v4096
    %v4098 = vrot.slane %v3990, %v4097
    %v4099 = vadd.f32 %v4087, %v4098
    %v4100 = vlaneseq
    %v4101 = vshrl.u32 %v4100, 7
    %v4102 = vsub.s32 0, %v4101
    %v4103 = vrot.slane %v3991, %v4102
    %4105 = vrot.lane.b32.xlu0 %v4103, 64
    %v4106 = vpop.permute.xlu0 %4105
    %v4108 = vadd.f32 %v4087, %v4106
    %v4109 = vlaneseq
    %v4110 = vshrl.u32 %v4109, 7
    %v4111 = vsub.s32 0, %v4110
    %v4112 = vrot.slane %v3992, %v4111
    %v4113 = vadd.f32 %v4089, %v4112
    %4115 = vrot.lane.b32.xlu0 %v4108, 64
    %v4116 = vpop.permute.xlu0 %4115
    %v4118 = vsel %vm37, %v4099, 0
    %v4120 = vsel %vm37, %v4116, 0
    %4122 = vmatprep.subr.mxu0 0.0
    %4123 = vmatpush1.xpose.msra.mxu0 0.0
    %4124 = vmatprep.subr.mxu0 0.0
    %4125 = vmatpush1.xpose.msra.mxu0 0.0
    %4126 = vmatprep.subr.mxu0 0.0
    %4127 = vmatpush1.xpose.msra.mxu0 0.0
    %4128 = vmatprep.subr.mxu0 0.0
    %4129 = vmatpush1.xpose.msra.mxu0 0.0
    %4130 = vmatprep.subr.mxu0 0.0
    %4131 = vmatpush1.xpose.msra.mxu0 0.0
    %4132 = vmatprep.subr.mxu0 0.0
    %4133 = vmatpush1.xpose.msra.mxu0 0.0
    %4134 = vmatprep.subr.mxu0 0.0
    %4135 = vmatpush1.xpose.msra.mxu0 0.0
    %4136 = vmatprep.subr.mxu0 0.0
    %4137 = vmatpush1.xpose.msra.mxu0 0.0
    %4138 = vmatprep.subr.mxu0 0.0
    %4139 = vmatpush1.xpose.msra.mxu0 0.0
    %4140 = vmatprep.subr.mxu0 0.0
    %4141 = vmatpush1.xpose.msra.mxu0 0.0
    %4142 = vmatprep.subr.mxu0 0.0
    %4143 = vmatpush1.xpose.msra.mxu0 0.0
    %4144 = vmatprep.subr.mxu0 0.0
    %4145 = vmatpush1.xpose.msra.mxu0 0.0
    %4146 = vmatprep.subr.mxu0 0.0
    %4147 = vmatpush1.xpose.msra.mxu0 0.0
    %4148 = vmatprep.subr.mxu0 0.0
    %4149 = vmatpush1.xpose.msra.mxu0 0.0
    %4150 = vmatprep.subr.mxu0 0.0
    %4151 = vmatpush1.xpose.msra.mxu0 0.0
    %4152 = vmatprep.subr.mxu0 0.0
    %4153 = vmatpush1.xpose.msra.mxu0 %v4120
    %4154 = vmatprep.subr.mxu0 0.0
    %4155 = vmatpush2.xpose.msra.mxu0 0.0
    %4156 = vmatprep.subr.mxu0 0.0
    %4157 = vmatpush2.xpose.msra.mxu0 0.0
    %4158 = vmatprep.subr.mxu0 0.0
    %4159 = vmatpush2.xpose.msra.mxu0 0.0
    %4160 = vmatprep.subr.mxu0 0.0
    %4161 = vmatpush2.xpose.msra.mxu0 0.0
    %4162 = vmatprep.subr.mxu0 0.0
    %4163 = vmatpush2.xpose.msra.mxu0 0.0
    %4164 = vmatprep.subr.mxu0 0.0
    %4165 = vmatpush2.xpose.msra.mxu0 0.0
    %4166 = vmatprep.subr.mxu0 0.0
    %4167 = vmatpush2.xpose.msra.mxu0 0.0
    %4168 = vmatprep.subr.mxu0 0.0
    %4169 = vmatpush2.xpose.msra.mxu0 0.0
    %4170 = vmatprep.subr.mxu0 0.0
    %4171 = vmatpush2.xpose.msra.mxu0 0.0
    %4172 = vmatprep.subr.mxu0 0.0
    %4173 = vmatpush2.xpose.msra.mxu0 0.0
    %4174 = vmatprep.subr.mxu0 0.0
    %4175 = vmatpush2.xpose.msra.mxu0 0.0
    %4176 = vmatprep.subr.mxu0 0.0
    %4177 = vmatpush2.xpose.msra.mxu0 0.0
    %4178 = vmatprep.subr.mxu0 0.0
    %4179 = vmatpush2.xpose.msra.mxu0 0.0
    %4180 = vmatprep.subr.mxu0 0.0
    %4181 = vmatpush2.xpose.msra.mxu0 0.0
    %4182 = vmatprep.subr.mxu0 0.0
    %4183 = vmatpush2.xpose.msra.mxu0 0.0
    %4184 = vmatprep.subr.mxu0 0.0
    %4185 = vmatpush2.xpose.msra.mxu0 0.0
    %4186 = vmatprep.mubr.f32.mxu0 0.0
    %4187 = vmatmul.mubr.f32.gmra.mxu0 %v4118
    %v4188 = vpop.f32.mrf.mxu0
    %v4189 = vadd.f32 0.0, %v4188
    %v4190 = vpop.f32.mrf.mxu0
    %4191 = vdwg.mxu0
    %v4192 = vmul.f32 %v4189, 0.25
    %v4193 = vsel %vm322, %v4192, -inf
    %4194 = vmax.xlane.f32.xlu0 %v4193
    %v4195 = vpop.xlane.xlu0 %4194
    %v4196 = vsub.f32 %v4192, %v4195
    %v4197 = vmul.f32 %v4196, 1.442695
    %v4198 = vpow.pop %v4197
    %v4199 = vsel %vm322, %v4198, 0.0
    %4200 = vadd.xlane.f32.xlu0 %v4199
    %v4201 = vpop.xlane.xlu0 %4200
    %v4202 = vrcp.pop %v4201
    %v4203 = vmul.f32 %v4198, %v4202
    %v4205 = vsel %vm322, %v4203, 0
    %4207 = vmatprep.subr.mxu0 0.0
    %4208 = vmatpush1.msra.mxu0 0.0
    %4209 = vmatprep.subr.mxu0 0.0
    %4210 = vmatpush1.msra.mxu0 0.0
    %4211 = vmatprep.subr.mxu0 0.0
    %4212 = vmatpush1.msra.mxu0 0.0
    %4213 = vmatprep.subr.mxu0 0.0
    %4214 = vmatpush1.msra.mxu0 0.0
    %4215 = vmatprep.subr.mxu0 0.0
    %4216 = vmatpush1.msra.mxu0 0.0
    %4217 = vmatprep.subr.mxu0 0.0
    %4218 = vmatpush1.msra.mxu0 0.0
    %4219 = vmatprep.subr.mxu0 0.0
    %4220 = vmatpush1.msra.mxu0 0.0
    %4221 = vmatprep.subr.mxu0 0.0
    %4222 = vmatpush1.msra.mxu0 0.0
    %4223 = vmatprep.subr.mxu0 0.0
    %4224 = vmatpush1.msra.mxu0 0.0
    %4225 = vmatprep.subr.mxu0 0.0
    %4226 = vmatpush1.msra.mxu0 0.0
    %4227 = vmatprep.subr.mxu0 0.0
    %4228 = vmatpush1.msra.mxu0 0.0
    %4229 = vmatprep.subr.mxu0 0.0
    %4230 = vmatpush1.msra.mxu0 0.0
    %4231 = vmatprep.subr.mxu0 0.0
    %4232 = vmatpush1.msra.mxu0 0.0
    %4233 = vmatprep.subr.mxu0 0.0
    %4234 = vmatpush1.msra.mxu0 0.0
    %4235 = vmatprep.subr.mxu0 0.0
    %4236 = vmatpush1.msra.mxu0 0.0
    %4237 = vmatprep.subr.mxu0 0.0
    %4238 = vmatpush1.msra.mxu0 %v4113
    %4239 = vmatprep.subr.mxu0 0.0
    %4240 = vmatpush2.msra.mxu0 0.0
    %4241 = vmatprep.subr.mxu0 0.0
    %4242 = vmatpush2.msra.mxu0 0.0
    %4243 = vmatprep.subr.mxu0 0.0
    %4244 = vmatpush2.msra.mxu0 0.0
    %4245 = vmatprep.subr.mxu0 0.0
    %4246 = vmatpush2.msra.mxu0 0.0
    %4247 = vmatprep.subr.mxu0 0.0
    %4248 = vmatpush2.msra.mxu0 0.0
    %4249 = vmatprep.subr.mxu0 0.0
    %4250 = vmatpush2.msra.mxu0 0.0
    %4251 = vmatprep.subr.mxu0 0.0
    %4252 = vmatpush2.msra.mxu0 0.0
    %4253 = vmatprep.subr.mxu0 0.0
    %4254 = vmatpush2.msra.mxu0 0.0
    %4255 = vmatprep.subr.mxu0 0.0
    %4256 = vmatpush2.msra.mxu0 0.0
    %4257 = vmatprep.subr.mxu0 0.0
    %4258 = vmatpush2.msra.mxu0 0.0
    %4259 = vmatprep.subr.mxu0 0.0
    %4260 = vmatpush2.msra.mxu0 0.0
    %4261 = vmatprep.subr.mxu0 0.0
    %4262 = vmatpush2.msra.mxu0 0.0
    %4263 = vmatprep.subr.mxu0 0.0
    %4264 = vmatpush2.msra.mxu0 0.0
    %4265 = vmatprep.subr.mxu0 0.0
    %4266 = vmatpush2.msra.mxu0 0.0
    %4267 = vmatprep.subr.mxu0 0.0
    %4268 = vmatpush2.msra.mxu0 0.0
    %4269 = vmatprep.subr.mxu0 0.0
    %4270 = vmatpush2.msra.mxu0 0.0
    %4271 = vmatprep.mubr.f32.mxu0 0.0
    %4272 = vmatmul.mubr.f32.gmra.mxu0 %v4205
    %v4273 = vpop.f32.mrf.mxu0
    %v4274 = vadd.f32 0.0, %v4273
    %v4275 = vpop.f32.mrf.mxu0
    %4276 = vdwg.mxu0
    %4277 = vst.msk [vmem:[#allocation2] sm:$0xff] %vm37, %v4274
    %4278 = vrot.lane.b32.xlu0 %v4099, 112
    %v4279 = vpop.permute.xlu0 %4278
    %4280 = vrot.lane.b32.xlu0 %v4108, 48
    %v4281 = vpop.permute.xlu0 %4280
    %v4282 = vsel %vm37, %v4279, 0
    %v4284 = vsel %vm37, %v4281, 0
    %4286 = vmatprep.subr.mxu0 0.0
    %4287 = vmatpush1.xpose.msra.mxu0 0.0
    %4288 = vmatprep.subr.mxu0 0.0
    %4289 = vmatpush1.xpose.msra.mxu0 0.0
    %4290 = vmatprep.subr.mxu0 0.0
    %4291 = vmatpush1.xpose.msra.mxu0 0.0
    %4292 = vmatprep.subr.mxu0 0.0
    %4293 = vmatpush1.xpose.msra.mxu0 0.0
    %4294 = vmatprep.subr.mxu0 0.0
    %4295 = vmatpush1.xpose.msra.mxu0 0.0
    %4296 = vmatprep.subr.mxu0 0.0
    %4297 = vmatpush1.xpose.msra.mxu0 0.0
    %4298 = vmatprep.subr.mxu0 0.0
    %4299 = vmatpush1.xpose.msra.mxu0 0.0
    %4300 = vmatprep.subr.mxu0 0.0
    %4301 = vmatpush1.xpose.msra.mxu0 0.0
    %4302 = vmatprep.subr.mxu0 0.0
    %4303 = vmatpush1.xpose.msra.mxu0 0.0
    %4304 = vmatprep.subr.mxu0 0.0
    %4305 = vmatpush1.xpose.msra.mxu0 0.0
    %4306 = vmatprep.subr.mxu0 0.0
    %4307 = vmatpush1.xpose.msra.mxu0 0.0
    %4308 = vmatprep.subr.mxu0 0.0
    %4309 = vmatpush1.xpose.msra.mxu0 0.0
    %4310 = vmatprep.subr.mxu0 0.0
    %4311 = vmatpush1.xpose.msra.mxu0 0.0
    %4312 = vmatprep.subr.mxu0 0.0
    %4313 = vmatpush1.xpose.msra.mxu0 0.0
    %4314 = vmatprep.subr.mxu0 0.0
    %4315 = vmatpush1.xpose.msra.mxu0 0.0
    %4316 = vmatprep.subr.mxu0 0.0
    %4317 = vmatpush1.xpose.msra.mxu0 %v4284
    %4318 = vmatprep.subr.mxu0 0.0
    %4319 = vmatpush2.xpose.msra.mxu0 0.0
    %4320 = vmatprep.subr.mxu0 0.0
    %4321 = vmatpush2.xpose.msra.mxu0 0.0
    %4322 = vmatprep.subr.mxu0 0.0
    %4323 = vmatpush2.xpose.msra.mxu0 0.0
    %4324 = vmatprep.subr.mxu0 0.0
    %4325 = vmatpush2.xpose.msra.mxu0 0.0
    %4326 = vmatprep.subr.mxu0 0.0
    %4327 = vmatpush2.xpose.msra.mxu0 0.0
    %4328 = vmatprep.subr.mxu0 0.0
    %4329 = vmatpush2.xpose.msra.mxu0 0.0
    %4330 = vmatprep.subr.mxu0 0.0
    %4331 = vmatpush2.xpose.msra.mxu0 0.0
    %4332 = vmatprep.subr.mxu0 0.0
    %4333 = vmatpush2.xpose.msra.mxu0 0.0
    %4334 = vmatprep.subr.mxu0 0.0
    %4335 = vmatpush2.xpose.msra.mxu0 0.0
    %4336 = vmatprep.subr.mxu0 0.0
    %4337 = vmatpush2.xpose.msra.mxu0 0.0
    %4338 = vmatprep.subr.mxu0 0.0
    %4339 = vmatpush2.xpose.msra.mxu0 0.0
    %4340 = vmatprep.subr.mxu0 0.0
    %4341 = vmatpush2.xpose.msra.mxu0 0.0
    %4342 = vmatprep.subr.mxu0 0.0
    %4343 = vmatpush2.xpose.msra.mxu0 0.0
    %4344 = vmatprep.subr.mxu0 0.0
    %4345 = vmatpush2.xpose.msra.mxu0 0.0
    %4346 = vmatprep.subr.mxu0 0.0
    %4347 = vmatpush2.xpose.msra.mxu0 0.0
    %4348 = vmatprep.subr.mxu0 0.0
    %4349 = vmatpush2.xpose.msra.mxu0 0.0
    %4350 = vmatprep.mubr.f32.mxu0 0.0
    %4351 = vmatmul.mubr.f32.gmra.mxu0 %v4282
    %v4352 = vpop.f32.mrf.mxu0
    %v4353 = vadd.f32 0.0, %v4352
    %v4354 = vpop.f32.mrf.mxu0
    %4355 = vdwg.mxu0
    %v4356 = vmul.f32 %v4353, 0.25
    %v4357 = vsel %vm322, %v4356, -inf
    %4358 = vmax.xlane.f32.xlu0 %v4357
    %v4359 = vpop.xlane.xlu0 %4358
    %v4360 = vsub.f32 %v4356, %v4359
    %v4361 = vmul.f32 %v4360, 1.442695
    %v4362 = vpow.pop %v4361
    %v4363 = vsel %vm322, %v4362, 0.0
    %4364 = vadd.xlane.f32.xlu0 %v4363
    %v4365 = vpop.xlane.xlu0 %4364
    %v4366 = vrcp.pop %v4365
    %v4367 = vmul.f32 %v4362, %v4366
    %4369 = vrot.lane.b32.xlu0 %v4113, 112
    %v4370 = vpop.permute.xlu0 %4369
    %v4373 = vsel %vm322, %v4367, 0
    %4375 = vmatprep.subr.mxu0 0.0
    %4376 = vmatpush1.msra.mxu0 0.0
    %4377 = vmatprep.subr.mxu0 0.0
    %4378 = vmatpush1.msra.mxu0 0.0
    %4379 = vmatprep.subr.mxu0 0.0
    %4380 = vmatpush1.msra.mxu0 0.0
    %4381 = vmatprep.subr.mxu0 0.0
    %4382 = vmatpush1.msra.mxu0 0.0
    %4383 = vmatprep.subr.mxu0 0.0
    %4384 = vmatpush1.msra.mxu0 0.0
    %4385 = vmatprep.subr.mxu0 0.0
    %4386 = vmatpush1.msra.mxu0 0.0
    %4387 = vmatprep.subr.mxu0 0.0
    %4388 = vmatpush1.msra.mxu0 0.0
    %4389 = vmatprep.subr.mxu0 0.0
    %4390 = vmatpush1.msra.mxu0 0.0
    %4391 = vmatprep.subr.mxu0 0.0
    %4392 = vmatpush1.msra.mxu0 0.0
    %4393 = vmatprep.subr.mxu0 0.0
    %4394 = vmatpush1.msra.mxu0 0.0
    %4395 = vmatprep.subr.mxu0 0.0
    %4396 = vmatpush1.msra.mxu0 0.0
    %4397 = vmatprep.subr.mxu0 0.0
    %4398 = vmatpush1.msra.mxu0 0.0
    %4399 = vmatprep.subr.mxu0 0.0
    %4400 = vmatpush1.msra.mxu0 0.0
    %4401 = vmatprep.subr.mxu0 0.0
    %4402 = vmatpush1.msra.mxu0 0.0
    %4403 = vmatprep.subr.mxu0 0.0
    %4404 = vmatpush1.msra.mxu0 0.0
    %4405 = vmatprep.subr.mxu0 0.0
    %4406 = vmatpush1.msra.mxu0 %v4370
    %4407 = vmatprep.subr.mxu0 0.0
    %4408 = vmatpush2.msra.mxu0 0.0
    %4409 = vmatprep.subr.mxu0 0.0
    %4410 = vmatpush2.msra.mxu0 0.0
    %4411 = vmatprep.subr.mxu0 0.0
    %4412 = vmatpush2.msra.mxu0 0.0
    %4413 = vmatprep.subr.mxu0 0.0
    %4414 = vmatpush2.msra.mxu0 0.0
    %4415 = vmatprep.subr.mxu0 0.0
    %4416 = vmatpush2.msra.mxu0 0.0
    %4417 = vmatprep.subr.mxu0 0.0
    %4418 = vmatpush2.msra.mxu0 0.0
    %4419 = vmatprep.subr.mxu0 0.0
    %4420 = vmatpush2.msra.mxu0 0.0
    %4421 = vmatprep.subr.mxu0 0.0
    %4422 = vmatpush2.msra.mxu0 0.0
    %4423 = vmatprep.subr.mxu0 0.0
    %4424 = vmatpush2.msra.mxu0 0.0
    %4425 = vmatprep.subr.mxu0 0.0
    %4426 = vmatpush2.msra.mxu0 0.0
    %4427 = vmatprep.subr.mxu0 0.0
    %4428 = vmatpush2.msra.mxu0 0.0
    %4429 = vmatprep.subr.mxu0 0.0
    %4430 = vmatpush2.msra.mxu0 0.0
    %4431 = vmatprep.subr.mxu0 0.0
    %4432 = vmatpush2.msra.mxu0 0.0
    %4433 = vmatprep.subr.mxu0 0.0
    %4434 = vmatpush2.msra.mxu0 0.0
    %4435 = vmatprep.subr.mxu0 0.0
    %4436 = vmatpush2.msra.mxu0 0.0
    %4437 = vmatprep.subr.mxu0 0.0
    %4438 = vmatpush2.msra.mxu0 0.0
    %4439 = vmatprep.mubr.f32.mxu0 0.0
    %4440 = vmatmul.mubr.f32.gmra.mxu0 %v4373
    %v4441 = vpop.f32.mrf.mxu0
    %v4442 = vadd.f32 0.0, %v4441
    %v4443 = vpop.f32.mrf.mxu0
    %4444 = vdwg.mxu0
    %4446 = vrot.lane.b32.xlu0 %v4442, 16
    %v4447 = vpop.permute.xlu0 %4446
    %4449 = vst.msk [vmem:[#allocation2] sm:$0xff] %vm579, %v4447
    %4450 = vrot.lane.b32.xlu0 %v4099, 96
    %v4451 = vpop.permute.xlu0 %4450
    %4452 = vrot.lane.b32.xlu0 %v4108, 32
    %v4453 = vpop.permute.xlu0 %4452
    %v4454 = vsel %vm37, %v4451, 0
    %v4456 = vsel %vm37, %v4453, 0
    %4458 = vmatprep.subr.mxu0 0.0
    %4459 = vmatpush1.xpose.msra.mxu0 0.0
    %4460 = vmatprep.subr.mxu0 0.0
    %4461 = vmatpush1.xpose.msra.mxu0 0.0
    %4462 = vmatprep.subr.mxu0 0.0
    %4463 = vmatpush1.xpose.msra.mxu0 0.0
    %4464 = vmatprep.subr.mxu0 0.0
    %4465 = vmatpush1.xpose.msra.mxu0 0.0
    %4466 = vmatprep.subr.mxu0 0.0
    %4467 = vmatpush1.xpose.msra.mxu0 0.0
    %4468 = vmatprep.subr.mxu0 0.0
    %4469 = vmatpush1.xpose.msra.mxu0 0.0
    %4470 = vmatprep.subr.mxu0 0.0
    %4471 = vmatpush1.xpose.msra.mxu0 0.0
    %4472 = vmatprep.subr.mxu0 0.0
    %4473 = vmatpush1.xpose.msra.mxu0 0.0
    %4474 = vmatprep.subr.mxu0 0.0
    %4475 = vmatpush1.xpose.msra.mxu0 0.0
    %4476 = vmatprep.subr.mxu0 0.0
    %4477 = vmatpush1.xpose.msra.mxu0 0.0
    %4478 = vmatprep.subr.mxu0 0.0
    %4479 = vmatpush1.xpose.msra.mxu0 0.0
    %4480 = vmatprep.subr.mxu0 0.0
    %4481 = vmatpush1.xpose.msra.mxu0 0.0
    %4482 = vmatprep.subr.mxu0 0.0
    %4483 = vmatpush1.xpose.msra.mxu0 0.0
    %4484 = vmatprep.subr.mxu0 0.0
    %4485 = vmatpush1.xpose.msra.mxu0 0.0
    %4486 = vmatprep.subr.mxu0 0.0
    %4487 = vmatpush1.xpose.msra.mxu0 0.0
    %4488 = vmatprep.subr.mxu0 0.0
    %4489 = vmatpush1.xpose.msra.mxu0 %v4456
    %4490 = vmatprep.subr.mxu0 0.0
    %4491 = vmatpush2.xpose.msra.mxu0 0.0
    %4492 = vmatprep.subr.mxu0 0.0
    %4493 = vmatpush2.xpose.msra.mxu0 0.0
    %4494 = vmatprep.subr.mxu0 0.0
    %4495 = vmatpush2.xpose.msra.mxu0 0.0
    %4496 = vmatprep.subr.mxu0 0.0
    %4497 = vmatpush2.xpose.msra.mxu0 0.0
    %4498 = vmatprep.subr.mxu0 0.0
    %4499 = vmatpush2.xpose.msra.mxu0 0.0
    %4500 = vmatprep.subr.mxu0 0.0
    %4501 = vmatpush2.xpose.msra.mxu0 0.0
    %4502 = vmatprep.subr.mxu0 0.0
    %4503 = vmatpush2.xpose.msra.mxu0 0.0
    %4504 = vmatprep.subr.mxu0 0.0
    %4505 = vmatpush2.xpose.msra.mxu0 0.0
    %4506 = vmatprep.subr.mxu0 0.0
    %4507 = vmatpush2.xpose.msra.mxu0 0.0
    %4508 = vmatprep.subr.mxu0 0.0
    %4509 = vmatpush2.xpose.msra.mxu0 0.0
    %4510 = vmatprep.subr.mxu0 0.0
    %4511 = vmatpush2.xpose.msra.mxu0 0.0
    %4512 = vmatprep.subr.mxu0 0.0
    %4513 = vmatpush2.xpose.msra.mxu0 0.0
    %4514 = vmatprep.subr.mxu0 0.0
    %4515 = vmatpush2.xpose.msra.mxu0 0.0
    %4516 = vmatprep.subr.mxu0 0.0
    %4517 = vmatpush2.xpose.msra.mxu0 0.0
    %4518 = vmatprep.subr.mxu0 0.0
    %4519 = vmatpush2.xpose.msra.mxu0 0.0
    %4520 = vmatprep.subr.mxu0 0.0
    %4521 = vmatpush2.xpose.msra.mxu0 0.0
    %4522 = vmatprep.mubr.f32.mxu0 0.0
    %4523 = vmatmul.mubr.f32.gmra.mxu0 %v4454
    %v4524 = vpop.f32.mrf.mxu0
    %v4525 = vadd.f32 0.0, %v4524
    %v4526 = vpop.f32.mrf.mxu0
    %4527 = vdwg.mxu0
    %v4528 = vmul.f32 %v4525, 0.25
    %v4529 = vsel %vm322, %v4528, -inf
    %4530 = vmax.xlane.f32.xlu0 %v4529
    %v4531 = vpop.xlane.xlu0 %4530
    %v4532 = vsub.f32 %v4528, %v4531
    %v4533 = vmul.f32 %v4532, 1.442695
    %v4534 = vpow.pop %v4533
    %v4535 = vsel %vm322, %v4534, 0.0
    %4536 = vadd.xlane.f32.xlu0 %v4535
    %v4537 = vpop.xlane.xlu0 %4536
    %v4538 = vrcp.pop %v4537
    %v4539 = vmul.f32 %v4534, %v4538
    %4540 = vrot.lane.b32.xlu0 %v4113, 96
    %v4541 = vpop.permute.xlu0 %4540
    %v4544 = vsel %vm322, %v4539, 0
    %4546 = vmatprep.subr.mxu0 0.0
    %4547 = vmatpush1.msra.mxu0 0.0
    %4548 = vmatprep.subr.mxu0 0.0
    %4549 = vmatpush1.msra.mxu0 0.0
    %4550 = vmatprep.subr.mxu0 0.0
    %4551 = vmatpush1.msra.mxu0 0.0
    %4552 = vmatprep.subr.mxu0 0.0
    %4553 = vmatpush1.msra.mxu0 0.0
    %4554 = vmatprep.subr.mxu0 0.0
    %4555 = vmatpush1.msra.mxu0 0.0
    %4556 = vmatprep.subr.mxu0 0.0
    %4557 = vmatpush1.msra.mxu0 0.0
    %4558 = vmatprep.subr.mxu0 0.0
    %4559 = vmatpush1.msra.mxu0 0.0
    %4560 = vmatprep.subr.mxu0 0.0
    %4561 = vmatpush1.msra.mxu0 0.0
    %4562 = vmatprep.subr.mxu0 0.0
    %4563 = vmatpush1.msra.mxu0 0.0
    %4564 = vmatprep.subr.mxu0 0.0
    %4565 = vmatpush1.msra.mxu0 0.0
    %4566 = vmatprep.subr.mxu0 0.0
    %4567 = vmatpush1.msra.mxu0 0.0
    %4568 = vmatprep.subr.mxu0 0.0
    %4569 = vmatpush1.msra.mxu0 0.0
    %4570 = vmatprep.subr.mxu0 0.0
    %4571 = vmatpush1.msra.mxu0 0.0
    %4572 = vmatprep.subr.mxu0 0.0
    %4573 = vmatpush1.msra.mxu0 0.0
    %4574 = vmatprep.subr.mxu0 0.0
    %4575 = vmatpush1.msra.mxu0 0.0
    %4576 = vmatprep.subr.mxu0 0.0
    %4577 = vmatpush1.msra.mxu0 %v4541
    %4578 = vmatprep.subr.mxu0 0.0
    %4579 = vmatpush2.msra.mxu0 0.0
    %4580 = vmatprep.subr.mxu0 0.0
    %4581 = vmatpush2.msra.mxu0 0.0
    %4582 = vmatprep.subr.mxu0 0.0
    %4583 = vmatpush2.msra.mxu0 0.0
    %4584 = vmatprep.subr.mxu0 0.0
    %4585 = vmatpush2.msra.mxu0 0.0
    %4586 = vmatprep.subr.mxu0 0.0
    %4587 = vmatpush2.msra.mxu0 0.0
    %4588 = vmatprep.subr.mxu0 0.0
    %4589 = vmatpush2.msra.mxu0 0.0
    %4590 = vmatprep.subr.mxu0 0.0
    %4591 = vmatpush2.msra.mxu0 0.0
    %4592 = vmatprep.subr.mxu0 0.0
    %4593 = vmatpush2.msra.mxu0 0.0
    %4594 = vmatprep.subr.mxu0 0.0
    %4595 = vmatpush2.msra.mxu0 0.0
    %4596 = vmatprep.subr.mxu0 0.0
    %4597 = vmatpush2.msra.mxu0 0.0
    %4598 = vmatprep.subr.mxu0 0.0
    %4599 = vmatpush2.msra.mxu0 0.0
    %4600 = vmatprep.subr.mxu0 0.0
    %4601 = vmatpush2.msra.mxu0 0.0
    %4602 = vmatprep.subr.mxu0 0.0
    %4603 = vmatpush2.msra.mxu0 0.0
    %4604 = vmatprep.subr.mxu0 0.0
    %4605 = vmatpush2.msra.mxu0 0.0
    %4606 = vmatprep.subr.mxu0 0.0
    %4607 = vmatpush2.msra.mxu0 0.0
    %4608 = vmatprep.subr.mxu0 0.0
    %4609 = vmatpush2.msra.mxu0 0.0
    %4610 = vmatprep.mubr.f32.mxu0 0.0
    %4611 = vmatmul.mubr.f32.gmra.mxu0 %v4544
    %v4612 = vpop.f32.mrf.mxu0
    %v4613 = vadd.f32 0.0, %v4612
    %v4614 = vpop.f32.mrf.mxu0
    %4615 = vdwg.mxu0
    %4617 = vrot.lane.b32.xlu0 %v4613, 32
    %v4618 = vpop.permute.xlu0 %4617
    %4620 = vst.msk [vmem:[#allocation2] sm:$0xff] %vm751, %v4618
    %4621 = vrot.lane.b32.xlu0 %v4099, 80
    %v4622 = vpop.permute.xlu0 %4621
    %4623 = vrot.lane.b32.xlu0 %v4108, 16
    %v4624 = vpop.permute.xlu0 %4623
    %v4625 = vsel %vm37, %v4622, 0
    %v4627 = vsel %vm37, %v4624, 0
    %4629 = vmatprep.subr.mxu0 0.0
    %4630 = vmatpush1.xpose.msra.mxu0 0.0
    %4631 = vmatprep.subr.mxu0 0.0
    %4632 = vmatpush1.xpose.msra.mxu0 0.0
    %4633 = vmatprep.subr.mxu0 0.0
    %4634 = vmatpush1.xpose.msra.mxu0 0.0
    %4635 = vmatprep.subr.mxu0 0.0
    %4636 = vmatpush1.xpose.msra.mxu0 0.0
    %4637 = vmatprep.subr.mxu0 0.0
    %4638 = vmatpush1.xpose.msra.mxu0 0.0
    %4639 = vmatprep.subr.mxu0 0.0
    %4640 = vmatpush1.xpose.msra.mxu0 0.0
    %4641 = vmatprep.subr.mxu0 0.0
    %4642 = vmatpush1.xpose.msra.mxu0 0.0
    %4643 = vmatprep.subr.mxu0 0.0
    %4644 = vmatpush1.xpose.msra.mxu0 0.0
    %4645 = vmatprep.subr.mxu0 0.0
    %4646 = vmatpush1.xpose.msra.mxu0 0.0
    %4647 = vmatprep.subr.mxu0 0.0
    %4648 = vmatpush1.xpose.msra.mxu0 0.0
    %4649 = vmatprep.subr.mxu0 0.0
    %4650 = vmatpush1.xpose.msra.mxu0 0.0
    %4651 = vmatprep.subr.mxu0 0.0
    %4652 = vmatpush1.xpose.msra.mxu0 0.0
    %4653 = vmatprep.subr.mxu0 0.0
    %4654 = vmatpush1.xpose.msra.mxu0 0.0
    %4655 = vmatprep.subr.mxu0 0.0
    %4656 = vmatpush1.xpose.msra.mxu0 0.0
    %4657 = vmatprep.subr.mxu0 0.0
    %4658 = vmatpush1.xpose.msra.mxu0 0.0
    %4659 = vmatprep.subr.mxu0 0.0
    %4660 = vmatpush1.xpose.msra.mxu0 %v4627
    %4661 = vmatprep.subr.mxu0 0.0
    %4662 = vmatpush2.xpose.msra.mxu0 0.0
    %4663 = vmatprep.subr.mxu0 0.0
    %4664 = vmatpush2.xpose.msra.mxu0 0.0
    %4665 = vmatprep.subr.mxu0 0.0
    %4666 = vmatpush2.xpose.msra.mxu0 0.0
    %4667 = vmatprep.subr.mxu0 0.0
    %4668 = vmatpush2.xpose.msra.mxu0 0.0
    %4669 = vmatprep.subr.mxu0 0.0
    %4670 = vmatpush2.xpose.msra.mxu0 0.0
    %4671 = vmatprep.subr.mxu0 0.0
    %4672 = vmatpush2.xpose.msra.mxu0 0.0
    %4673 = vmatprep.subr.mxu0 0.0
    %4674 = vmatpush2.xpose.msra.mxu0 0.0
    %4675 = vmatprep.subr.mxu0 0.0
    %4676 = vmatpush2.xpose.msra.mxu0 0.0
    %4677 = vmatprep.subr.mxu0 0.0
    %4678 = vmatpush2.xpose.msra.mxu0 0.0
    %4679 = vmatprep.subr.mxu0 0.0
    %4680 = vmatpush2.xpose.msra.mxu0 0.0
    %4681 = vmatprep.subr.mxu0 0.0
    %4682 = vmatpush2.xpose.msra.mxu0 0.0
    %4683 = vmatprep.subr.mxu0 0.0
    %4684 = vmatpush2.xpose.msra.mxu0 0.0
    %4685 = vmatprep.subr.mxu0 0.0
    %4686 = vmatpush2.xpose.msra.mxu0 0.0
    %4687 = vmatprep.subr.mxu0 0.0
    %4688 = vmatpush2.xpose.msra.mxu0 0.0
    %4689 = vmatprep.subr.mxu0 0.0
    %4690 = vmatpush2.xpose.msra.mxu0 0.0
    %4691 = vmatprep.subr.mxu0 0.0
    %4692 = vmatpush2.xpose.msra.mxu0 0.0
    %4693 = vmatprep.mubr.f32.mxu0 0.0
    %4694 = vmatmul.mubr.f32.gmra.mxu0 %v4625
    %v4695 = vpop.f32.mrf.mxu0
    %v4696 = vadd.f32 0.0, %v4695
    %v4697 = vpop.f32.mrf.mxu0
    %4698 = vdwg.mxu0
    %v4699 = vmul.f32 %v4696, 0.25
    %v4700 = vsel %vm322, %v4699, -inf
    %4701 = vmax.xlane.f32.xlu0 %v4700
    %v4702 = vpop.xlane.xlu0 %4701
    %v4703 = vsub.f32 %v4699, %v4702
    %v4704 = vmul.f32 %v4703, 1.442695
    %v4705 = vpow.pop %v4704
    %v4706 = vsel %vm322, %v4705, 0.0
    %4707 = vadd.xlane.f32.xlu0 %v4706
    %v4708 = vpop.xlane.xlu0 %4707
    %v4709 = vrcp.pop %v4708
    %v4710 = vmul.f32 %v4705, %v4709
    %4711 = vrot.lane.b32.xlu0 %v4113, 80
    %v4712 = vpop.permute.xlu0 %4711
    %v4715 = vsel %vm322, %v4710, 0
    %4717 = vmatprep.subr.mxu0 0.0
    %4718 = vmatpush1.msra.mxu0 0.0
    %4719 = vmatprep.subr.mxu0 0.0
    %4720 = vmatpush1.msra.mxu0 0.0
    %4721 = vmatprep.subr.mxu0 0.0
    %4722 = vmatpush1.msra.mxu0 0.0
    %4723 = vmatprep.subr.mxu0 0.0
    %4724 = vmatpush1.msra.mxu0 0.0
    %4725 = vmatprep.subr.mxu0 0.0
    %4726 = vmatpush1.msra.mxu0 0.0
    %4727 = vmatprep.subr.mxu0 0.0
    %4728 = vmatpush1.msra.mxu0 0.0
    %4729 = vmatprep.subr.mxu0 0.0
    %4730 = vmatpush1.msra.mxu0 0.0
    %4731 = vmatprep.subr.mxu0 0.0
    %4732 = vmatpush1.msra.mxu0 0.0
    %4733 = vmatprep.subr.mxu0 0.0
    %4734 = vmatpush1.msra.mxu0 0.0
    %4735 = vmatprep.subr.mxu0 0.0
    %4736 = vmatpush1.msra.mxu0 0.0
    %4737 = vmatprep.subr.mxu0 0.0
    %4738 = vmatpush1.msra.mxu0 0.0
    %4739 = vmatprep.subr.mxu0 0.0
    %4740 = vmatpush1.msra.mxu0 0.0
    %4741 = vmatprep.subr.mxu0 0.0
    %4742 = vmatpush1.msra.mxu0 0.0
    %4743 = vmatprep.subr.mxu0 0.0
    %4744 = vmatpush1.msra.mxu0 0.0
    %4745 = vmatprep.subr.mxu0 0.0
    %4746 = vmatpush1.msra.mxu0 0.0
    %4747 = vmatprep.subr.mxu0 0.0
    %4748 = vmatpush1.msra.mxu0 %v4712
    %4749 = vmatprep.subr.mxu0 0.0
    %4750 = vmatpush2.msra.mxu0 0.0
    %4751 = vmatprep.subr.mxu0 0.0
    %4752 = vmatpush2.msra.mxu0 0.0
    %4753 = vmatprep.subr.mxu0 0.0
    %4754 = vmatpush2.msra.mxu0 0.0
    %4755 = vmatprep.subr.mxu0 0.0
    %4756 = vmatpush2.msra.mxu0 0.0
    %4757 = vmatprep.subr.mxu0 0.0
    %4758 = vmatpush2.msra.mxu0 0.0
    %4759 = vmatprep.subr.mxu0 0.0
    %4760 = vmatpush2.msra.mxu0 0.0
    %4761 = vmatprep.subr.mxu0 0.0
    %4762 = vmatpush2.msra.mxu0 0.0
    %4763 = vmatprep.subr.mxu0 0.0
    %4764 = vmatpush2.msra.mxu0 0.0
    %4765 = vmatprep.subr.mxu0 0.0
    %4766 = vmatpush2.msra.mxu0 0.0
    %4767 = vmatprep.subr.mxu0 0.0
    %4768 = vmatpush2.msra.mxu0 0.0
    %4769 = vmatprep.subr.mxu0 0.0
    %4770 = vmatpush2.msra.mxu0 0.0
    %4771 = vmatprep.subr.mxu0 0.0
    %4772 = vmatpush2.msra.mxu0 0.0
    %4773 = vmatprep.subr.mxu0 0.0
    %4774 = vmatpush2.msra.mxu0 0.0
    %4775 = vmatprep.subr.mxu0 0.0
    %4776 = vmatpush2.msra.mxu0 0.0
    %4777 = vmatprep.subr.mxu0 0.0
    %4778 = vmatpush2.msra.mxu0 0.0
    %4779 = vmatprep.subr.mxu0 0.0
    %4780 = vmatpush2.msra.mxu0 0.0
    %4781 = vmatprep.mubr.f32.mxu0 0.0
    %4782 = vmatmul.mubr.f32.gmra.mxu0 %v4715
    %v4783 = vpop.f32.mrf.mxu0
    %v4784 = vadd.f32 0.0, %v4783
    %v4785 = vpop.f32.mrf.mxu0
    %4786 = vdwg.mxu0
    %4788 = vrot.lane.b32.xlu0 %v4784, 48
    %v4789 = vpop.permute.xlu0 %4788
    %4791 = vst.msk [vmem:[#allocation2] sm:$0xff] %vm923, %v4789
    %v4792 = vadd.f32 %v4091, %v4098
    %v4793 = vadd.f32 %v4091, %v4106
    %v4794 = vadd.f32 %v4093, %v4112
    %4796 = vrot.lane.b32.xlu0 %v4793, 64
    %v4797 = vpop.permute.xlu0 %4796
    %v4799 = vsel %vm37, %v4792, 0
    %v4801 = vsel %vm37, %v4797, 0
    %4803 = vmatprep.subr.mxu0 0.0
    %4804 = vmatpush1.xpose.msra.mxu0 0.0
    %4805 = vmatprep.subr.mxu0 0.0
    %4806 = vmatpush1.xpose.msra.mxu0 0.0
    %4807 = vmatprep.subr.mxu0 0.0
    %4808 = vmatpush1.xpose.msra.mxu0 0.0
    %4809 = vmatprep.subr.mxu0 0.0
    %4810 = vmatpush1.xpose.msra.mxu0 0.0
    %4811 = vmatprep.subr.mxu0 0.0
    %4812 = vmatpush1.xpose.msra.mxu0 0.0
    %4813 = vmatprep.subr.mxu0 0.0
    %4814 = vmatpush1.xpose.msra.mxu0 0.0
    %4815 = vmatprep.subr.mxu0 0.0
    %4816 = vmatpush1.xpose.msra.mxu0 0.0
    %4817 = vmatprep.subr.mxu0 0.0
    %4818 = vmatpush1.xpose.msra.mxu0 0.0
    %4819 = vmatprep.subr.mxu0 0.0
    %4820 = vmatpush1.xpose.msra.mxu0 0.0
    %4821 = vmatprep.subr.mxu0 0.0
    %4822 = vmatpush1.xpose.msra.mxu0 0.0
    %4823 = vmatprep.subr.mxu0 0.0
    %4824 = vmatpush1.xpose.msra.mxu0 0.0
    %4825 = vmatprep.subr.mxu0 0.0
    %4826 = vmatpush1.xpose.msra.mxu0 0.0
    %4827 = vmatprep.subr.mxu0 0.0
    %4828 = vmatpush1.xpose.msra.mxu0 0.0
    %4829 = vmatprep.subr.mxu0 0.0
    %4830 = vmatpush1.xpose.msra.mxu0 0.0
    %4831 = vmatprep.subr.mxu0 0.0
    %4832 = vmatpush1.xpose.msra.mxu0 0.0
    %4833 = vmatprep.subr.mxu0 0.0
    %4834 = vmatpush1.xpose.msra.mxu0 %v4801
    %4835 = vmatprep.subr.mxu0 0.0
    %4836 = vmatpush2.xpose.msra.mxu0 0.0
    %4837 = vmatprep.subr.mxu0 0.0
    %4838 = vmatpush2.xpose.msra.mxu0 0.0
    %4839 = vmatprep.subr.mxu0 0.0
    %4840 = vmatpush2.xpose.msra.mxu0 0.0
    %4841 = vmatprep.subr.mxu0 0.0
    %4842 = vmatpush2.xpose.msra.mxu0 0.0
    %4843 = vmatprep.subr.mxu0 0.0
    %4844 = vmatpush2.xpose.msra.mxu0 0.0
    %4845 = vmatprep.subr.mxu0 0.0
    %4846 = vmatpush2.xpose.msra.mxu0 0.0
    %4847 = vmatprep.subr.mxu0 0.0
    %4848 = vmatpush2.xpose.msra.mxu0 0.0
    %4849 = vmatprep.subr.mxu0 0.0
    %4850 = vmatpush2.xpose.msra.mxu0 0.0
    %4851 = vmatprep.subr.mxu0 0.0
    %4852 = vmatpush2.xpose.msra.mxu0 0.0
    %4853 = vmatprep.subr.mxu0 0.0
    %4854 = vmatpush2.xpose.msra.mxu0 0.0
    %4855 = vmatprep.subr.mxu0 0.0
    %4856 = vmatpush2.xpose.msra.mxu0 0.0
    %4857 = vmatprep.subr.mxu0 0.0
    %4858 = vmatpush2.xpose.msra.mxu0 0.0
    %4859 = vmatprep.subr.mxu0 0.0
    %4860 = vmatpush2.xpose.msra.mxu0 0.0
    %4861 = vmatprep.subr.mxu0 0.0
    %4862 = vmatpush2.xpose.msra.mxu0 0.0
    %4863 = vmatprep.subr.mxu0 0.0
    %4864 = vmatpush2.xpose.msra.mxu0 0.0
    %4865 = vmatprep.subr.mxu0 0.0
    %4866 = vmatpush2.xpose.msra.mxu0 0.0
    %4867 = vmatprep.mubr.f32.mxu0 0.0
    %4868 = vmatmul.mubr.f32.gmra.mxu0 %v4799
    %v4869 = vpop.f32.mrf.mxu0
    %v4870 = vadd.f32 0.0, %v4869
    %v4871 = vpop.f32.mrf.mxu0
    %4872 = vdwg.mxu0
    %v4873 = vmul.f32 %v4870, 0.25
    %v4874 = vsel %vm322, %v4873, -inf
    %4875 = vmax.xlane.f32.xlu0 %v4874
    %v4876 = vpop.xlane.xlu0 %4875
    %v4877 = vsub.f32 %v4873, %v4876
    %v4878 = vmul.f32 %v4877, 1.442695
    %v4879 = vpow.pop %v4878
    %v4880 = vsel %vm322, %v4879, 0.0
    %4881 = vadd.xlane.f32.xlu0 %v4880
    %v4882 = vpop.xlane.xlu0 %4881
    %v4883 = vrcp.pop %v4882
    %v4884 = vmul.f32 %v4879, %v4883
    %v4886 = vsel %vm322, %v4884, 0
    %4888 = vmatprep.subr.mxu0 0.0
    %4889 = vmatpush1.msra.mxu0 0.0
    %4890 = vmatprep.subr.mxu0 0.0
    %4891 = vmatpush1.msra.mxu0 0.0
    %4892 = vmatprep.subr.mxu0 0.0
    %4893 = vmatpush1.msra.mxu0 0.0
    %4894 = vmatprep.subr.mxu0 0.0
    %4895 = vmatpush1.msra.mxu0 0.0
    %4896 = vmatprep.subr.mxu0 0.0
    %4897 = vmatpush1.msra.mxu0 0.0
    %4898 = vmatprep.subr.mxu0 0.0
    %4899 = vmatpush1.msra.mxu0 0.0
    %4900 = vmatprep.subr.mxu0 0.0
    %4901 = vmatpush1.msra.mxu0 0.0
    %4902 = vmatprep.subr.mxu0 0.0
    %4903 = vmatpush1.msra.mxu0 0.0
    %4904 = vmatprep.subr.mxu0 0.0
    %4905 = vmatpush1.msra.mxu0 0.0
    %4906 = vmatprep.subr.mxu0 0.0
    %4907 = vmatpush1.msra.mxu0 0.0
    %4908 = vmatprep.subr.mxu0 0.0
    %4909 = vmatpush1.msra.mxu0 0.0
    %4910 = vmatprep.subr.mxu0 0.0
    %4911 = vmatpush1.msra.mxu0 0.0
    %4912 = vmatprep.subr.mxu0 0.0
    %4913 = vmatpush1.msra.mxu0 0.0
    %4914 = vmatprep.subr.mxu0 0.0
    %4915 = vmatpush1.msra.mxu0 0.0
    %4916 = vmatprep.subr.mxu0 0.0
    %4917 = vmatpush1.msra.mxu0 0.0
    %4918 = vmatprep.subr.mxu0 0.0
    %4919 = vmatpush1.msra.mxu0 %v4794
    %4920 = vmatprep.subr.mxu0 0.0
    %4921 = vmatpush2.msra.mxu0 0.0
    %4922 = vmatprep.subr.mxu0 0.0
    %4923 = vmatpush2.msra.mxu0 0.0
    %4924 = vmatprep.subr.mxu0 0.0
    %4925 = vmatpush2.msra.mxu0 0.0
    %4926 = vmatprep.subr.mxu0 0.0
    %4927 = vmatpush2.msra.mxu0 0.0
    %4928 = vmatprep.subr.mxu0 0.0
    %4929 = vmatpush2.msra.mxu0 0.0
    %4930 = vmatprep.subr.mxu0 0.0
    %4931 = vmatpush2.msra.mxu0 0.0
    %4932 = vmatprep.subr.mxu0 0.0
    %4933 = vmatpush2.msra.mxu0 0.0
    %4934 = vmatprep.subr.mxu0 0.0
    %4935 = vmatpush2.msra.mxu0 0.0
    %4936 = vmatprep.subr.mxu0 0.0
    %4937 = vmatpush2.msra.mxu0 0.0
    %4938 = vmatprep.subr.mxu0 0.0
    %4939 = vmatpush2.msra.mxu0 0.0
    %4940 = vmatprep.subr.mxu0 0.0
    %4941 = vmatpush2.msra.mxu0 0.0
    %4942 = vmatprep.subr.mxu0 0.0
    %4943 = vmatpush2.msra.mxu0 0.0
    %4944 = vmatprep.subr.mxu0 0.0
    %4945 = vmatpush2.msra.mxu0 0.0
    %4946 = vmatprep.subr.mxu0 0.0
    %4947 = vmatpush2.msra.mxu0 0.0
    %4948 = vmatprep.subr.mxu0 0.0
    %4949 = vmatpush2.msra.mxu0 0.0
    %4950 = vmatprep.subr.mxu0 0.0
    %4951 = vmatpush2.msra.mxu0 0.0
    %4952 = vmatprep.mubr.f32.mxu0 0.0
    %4953 = vmatmul.mubr.f32.gmra.mxu0 %v4886
    %v4954 = vpop.f32.mrf.mxu0
    %v4955 = vadd.f32 0.0, %v4954
    %v4956 = vpop.f32.mrf.mxu0
    %4957 = vdwg.mxu0
    %4958 = vst.msk [vmem:[#allocation2 + $0x8] sm:$0xff] %vm37, %v4955
    %4959 = vrot.lane.b32.xlu0 %v4792, 112
    %v4960 = vpop.permute.xlu0 %4959
    %4961 = vrot.lane.b32.xlu0 %v4793, 48
    %v4962 = vpop.permute.xlu0 %4961
    %v4963 = vsel %vm37, %v4960, 0
    %v4965 = vsel %vm37, %v4962, 0
    %4967 = vmatprep.subr.mxu0 0.0
    %4968 = vmatpush1.xpose.msra.mxu0 0.0
    %4969 = vmatprep.subr.mxu0 0.0
    %4970 = vmatpush1.xpose.msra.mxu0 0.0
    %4971 = vmatprep.subr.mxu0 0.0
    %4972 = vmatpush1.xpose.msra.mxu0 0.0
    %4973 = vmatprep.subr.mxu0 0.0
    %4974 = vmatpush1.xpose.msra.mxu0 0.0
    %4975 = vmatprep.subr.mxu0 0.0
    %4976 = vmatpush1.xpose.msra.mxu0 0.0
    %4977 = vmatprep.subr.mxu0 0.0
    %4978 = vmatpush1.xpose.msra.mxu0 0.0
    %4979 = vmatprep.subr.mxu0 0.0
    %4980 = vmatpush1.xpose.msra.mxu0 0.0
    %4981 = vmatprep.subr.mxu0 0.0
    %4982 = vmatpush1.xpose.msra.mxu0 0.0
    %4983 = vmatprep.subr.mxu0 0.0
    %4984 = vmatpush1.xpose.msra.mxu0 0.0
    %4985 = vmatprep.subr.mxu0 0.0
    %4986 = vmatpush1.xpose.msra.mxu0 0.0
    %4987 = vmatprep.subr.mxu0 0.0
    %4988 = vmatpush1.xpose.msra.mxu0 0.0
    %4989 = vmatprep.subr.mxu0 0.0
    %4990 = vmatpush1.xpose.msra.mxu0 0.0
    %4991 = vmatprep.subr.mxu0 0.0
    %4992 = vmatpush1.xpose.msra.mxu0 0.0
    %4993 = vmatprep.subr.mxu0 0.0
    %4994 = vmatpush1.xpose.msra.mxu0 0.0
    %4995 = vmatprep.subr.mxu0 0.0
    %4996 = vmatpush1.xpose.msra.mxu0 0.0
    %4997 = vmatprep.subr.mxu0 0.0
    %4998 = vmatpush1.xpose.msra.mxu0 %v4965
    %4999 = vmatprep.subr.mxu0 0.0
    %5000 = vmatpush2.xpose.msra.mxu0 0.0
    %5001 = vmatprep.subr.mxu0 0.0
    %5002 = vmatpush2.xpose.msra.mxu0 0.0
    %5003 = vmatprep.subr.mxu0 0.0
    %5004 = vmatpush2.xpose.msra.mxu0 0.0
    %5005 = vmatprep.subr.mxu0 0.0
    %5006 = vmatpush2.xpose.msra.mxu0 0.0
    %5007 = vmatprep.subr.mxu0 0.0
    %5008 = vmatpush2.xpose.msra.mxu0 0.0
    %5009 = vmatprep.subr.mxu0 0.0
    %5010 = vmatpush2.xpose.msra.mxu0 0.0
    %5011 = vmatprep.subr.mxu0 0.0
    %5012 = vmatpush2.xpose.msra.mxu0 0.0
    %5013 = vmatprep.subr.mxu0 0.0
    %5014 = vmatpush2.xpose.msra.mxu0 0.0
    %5015 = vmatprep.subr.mxu0 0.0
    %5016 = vmatpush2.xpose.msra.mxu0 0.0
    %5017 = vmatprep.subr.mxu0 0.0
    %5018 = vmatpush2.xpose.msra.mxu0 0.0
    %5019 = vmatprep.subr.mxu0 0.0
    %5020 = vmatpush2.xpose.msra.mxu0 0.0
    %5021 = vmatprep.subr.mxu0 0.0
    %5022 = vmatpush2.xpose.msra.mxu0 0.0
    %5023 = vmatprep.subr.mxu0 0.0
    %5024 = vmatpush2.xpose.msra.mxu0 0.0
    %5025 = vmatprep.subr.mxu0 0.0
    %5026 = vmatpush2.xpose.msra.mxu0 0.0
    %5027 = vmatprep.subr.mxu0 0.0
    %5028 = vmatpush2.xpose.msra.mxu0 0.0
    %5029 = vmatprep.subr.mxu0 0.0
    %5030 = vmatpush2.xpose.msra.mxu0 0.0
    %5031 = vmatprep.mubr.f32.mxu0 0.0
    %5032 = vmatmul.mubr.f32.gmra.mxu0 %v4963
    %v5033 = vpop.f32.mrf.mxu0
    %v5034 = vadd.f32 0.0, %v5033
    %v5035 = vpop.f32.mrf.mxu0
    %5036 = vdwg.mxu0
    %v5037 = vmul.f32 %v5034, 0.25
    %v5038 = vsel %vm322, %v5037, -inf
    %5039 = vmax.xlane.f32.xlu0 %v5038
    %v5040 = vpop.xlane.xlu0 %5039
    %v5041 = vsub.f32 %v5037, %v5040
    %v5042 = vmul.f32 %v5041, 1.442695
    %v5043 = vpow.pop %v5042
    %v5044 = vsel %vm322, %v5043, 0.0
    %5045 = vadd.xlane.f32.xlu0 %v5044
    %v5046 = vpop.xlane.xlu0 %5045
    %v5047 = vrcp.pop %v5046
    %v5048 = vmul.f32 %v5043, %v5047
    %5050 = vrot.lane.b32.xlu0 %v4794, 112
    %v5051 = vpop.permute.xlu0 %5050
    %v5054 = vsel %vm322, %v5048, 0
    %5056 = vmatprep.subr.mxu0 0.0
    %5057 = vmatpush1.msra.mxu0 0.0
    %5058 = vmatprep.subr.mxu0 0.0
    %5059 = vmatpush1.msra.mxu0 0.0
    %5060 = vmatprep.subr.mxu0 0.0
    %5061 = vmatpush1.msra.mxu0 0.0
    %5062 = vmatprep.subr.mxu0 0.0
    %5063 = vmatpush1.msra.mxu0 0.0
    %5064 = vmatprep.subr.mxu0 0.0
    %5065 = vmatpush1.msra.mxu0 0.0
    %5066 = vmatprep.subr.mxu0 0.0
    %5067 = vmatpush1.msra.mxu0 0.0
    %5068 = vmatprep.subr.mxu0 0.0
    %5069 = vmatpush1.msra.mxu0 0.0
    %5070 = vmatprep.subr.mxu0 0.0
    %5071 = vmatpush1.msra.mxu0 0.0
    %5072 = vmatprep.subr.mxu0 0.0
    %5073 = vmatpush1.msra.mxu0 0.0
    %5074 = vmatprep.subr.mxu0 0.0
    %5075 = vmatpush1.msra.mxu0 0.0
    %5076 = vmatprep.subr.mxu0 0.0
    %5077 = vmatpush1.msra.mxu0 0.0
    %5078 = vmatprep.subr.mxu0 0.0
    %5079 = vmatpush1.msra.mxu0 0.0
    %5080 = vmatprep.subr.mxu0 0.0
    %5081 = vmatpush1.msra.mxu0 0.0
    %5082 = vmatprep.subr.mxu0 0.0
    %5083 = vmatpush1.msra.mxu0 0.0
    %5084 = vmatprep.subr.mxu0 0.0
    %5085 = vmatpush1.msra.mxu0 0.0
    %5086 = vmatprep.subr.mxu0 0.0
    %5087 = vmatpush1.msra.mxu0 %v5051
    %5088 = vmatprep.subr.mxu0 0.0
    %5089 = vmatpush2.msra.mxu0 0.0
    %5090 = vmatprep.subr.mxu0 0.0
    %5091 = vmatpush2.msra.mxu0 0.0
    %5092 = vmatprep.subr.mxu0 0.0
    %5093 = vmatpush2.msra.mxu0 0.0
    %5094 = vmatprep.subr.mxu0 0.0
    %5095 = vmatpush2.msra.mxu0 0.0
    %5096 = vmatprep.subr.mxu0 0.0
    %5097 = vmatpush2.msra.mxu0 0.0
    %5098 = vmatprep.subr.mxu0 0.0
    %5099 = vmatpush2.msra.mxu0 0.0
    %5100 = vmatprep.subr.mxu0 0.0
    %5101 = vmatpush2.msra.mxu0 0.0
    %5102 = vmatprep.subr.mxu0 0.0
    %5103 = vmatpush2.msra.mxu0 0.0
    %5104 = vmatprep.subr.mxu0 0.0
    %5105 = vmatpush2.msra.mxu0 0.0
    %5106 = vmatprep.subr.mxu0 0.0
    %5107 = vmatpush2.msra.mxu0 0.0
    %5108 = vmatprep.subr.mxu0 0.0
    %5109 = vmatpush2.msra.mxu0 0.0
    %5110 = vmatprep.subr.mxu0 0.0
    %5111 = vmatpush2.msra.mxu0 0.0
    %5112 = vmatprep.subr.mxu0 0.0
    %5113 = vmatpush2.msra.mxu0 0.0
    %5114 = vmatprep.subr.mxu0 0.0
    %5115 = vmatpush2.msra.mxu0 0.0
    %5116 = vmatprep.subr.mxu0 0.0
    %5117 = vmatpush2.msra.mxu0 0.0
    %5118 = vmatprep.subr.mxu0 0.0
    %5119 = vmatpush2.msra.mxu0 0.0
    %5120 = vmatprep.mubr.f32.mxu0 0.0
    %5121 = vmatmul.mubr.f32.gmra.mxu0 %v5054
    %v5122 = vpop.f32.mrf.mxu0
    %v5123 = vadd.f32 0.0, %v5122
    %v5124 = vpop.f32.mrf.mxu0
    %5125 = vdwg.mxu0
    %5127 = vrot.lane.b32.xlu0 %v5123, 16
    %v5128 = vpop.permute.xlu0 %5127
    %5130 = vst.msk [vmem:[#allocation2 + $0x8] sm:$0xff] %vm579, %v5128
    %5131 = vrot.lane.b32.xlu0 %v4792, 96
    %v5132 = vpop.permute.xlu0 %5131
    %5133 = vrot.lane.b32.xlu0 %v4793, 32
    %v5134 = vpop.permute.xlu0 %5133
    %v5135 = vsel %vm37, %v5132, 0
    %v5137 = vsel %vm37, %v5134, 0
    %5139 = vmatprep.subr.mxu0 0.0
    %5140 = vmatpush1.xpose.msra.mxu0 0.0
    %5141 = vmatprep.subr.mxu0 0.0
    %5142 = vmatpush1.xpose.msra.mxu0 0.0
    %5143 = vmatprep.subr.mxu0 0.0
    %5144 = vmatpush1.xpose.msra.mxu0 0.0
    %5145 = vmatprep.subr.mxu0 0.0
    %5146 = vmatpush1.xpose.msra.mxu0 0.0
    %5147 = vmatprep.subr.mxu0 0.0
    %5148 = vmatpush1.xpose.msra.mxu0 0.0
    %5149 = vmatprep.subr.mxu0 0.0
    %5150 = vmatpush1.xpose.msra.mxu0 0.0
    %5151 = vmatprep.subr.mxu0 0.0
    %5152 = vmatpush1.xpose.msra.mxu0 0.0
    %5153 = vmatprep.subr.mxu0 0.0
    %5154 = vmatpush1.xpose.msra.mxu0 0.0
    %5155 = vmatprep.subr.mxu0 0.0
    %5156 = vmatpush1.xpose.msra.mxu0 0.0
    %5157 = vmatprep.subr.mxu0 0.0
    %5158 = vmatpush1.xpose.msra.mxu0 0.0
    %5159 = vmatprep.subr.mxu0 0.0
    %5160 = vmatpush1.xpose.msra.mxu0 0.0
    %5161 = vmatprep.subr.mxu0 0.0
    %5162 = vmatpush1.xpose.msra.mxu0 0.0
    %5163 = vmatprep.subr.mxu0 0.0
    %5164 = vmatpush1.xpose.msra.mxu0 0.0
    %5165 = vmatprep.subr.mxu0 0.0
    %5166 = vmatpush1.xpose.msra.mxu0 0.0
    %5167 = vmatprep.subr.mxu0 0.0
    %5168 = vmatpush1.xpose.msra.mxu0 0.0
    %5169 = vmatprep.subr.mxu0 0.0
    %5170 = vmatpush1.xpose.msra.mxu0 %v5137
    %5171 = vmatprep.subr.mxu0 0.0
    %5172 = vmatpush2.xpose.msra.mxu0 0.0
    %5173 = vmatprep.subr.mxu0 0.0
    %5174 = vmatpush2.xpose.msra.mxu0 0.0
    %5175 = vmatprep.subr.mxu0 0.0
    %5176 = vmatpush2.xpose.msra.mxu0 0.0
    %5177 = vmatprep.subr.mxu0 0.0
    %5178 = vmatpush2.xpose.msra.mxu0 0.0
    %5179 = vmatprep.subr.mxu0 0.0
    %5180 = vmatpush2.xpose.msra.mxu0 0.0
    %5181 = vmatprep.subr.mxu0 0.0
    %5182 = vmatpush2.xpose.msra.mxu0 0.0
    %5183 = vmatprep.subr.mxu0 0.0
    %5184 = vmatpush2.xpose.msra.mxu0 0.0
    %5185 = vmatprep.subr.mxu0 0.0
    %5186 = vmatpush2.xpose.msra.mxu0 0.0
    %5187 = vmatprep.subr.mxu0 0.0
    %5188 = vmatpush2.xpose.msra.mxu0 0.0
    %5189 = vmatprep.subr.mxu0 0.0
    %5190 = vmatpush2.xpose.msra.mxu0 0.0
    %5191 = vmatprep.subr.mxu0 0.0
    %5192 = vmatpush2.xpose.msra.mxu0 0.0
    %5193 = vmatprep.subr.mxu0 0.0
    %5194 = vmatpush2.xpose.msra.mxu0 0.0
    %5195 = vmatprep.subr.mxu0 0.0
    %5196 = vmatpush2.xpose.msra.mxu0 0.0
    %5197 = vmatprep.subr.mxu0 0.0
    %5198 = vmatpush2.xpose.msra.mxu0 0.0
    %5199 = vmatprep.subr.mxu0 0.0
    %5200 = vmatpush2.xpose.msra.mxu0 0.0
    %5201 = vmatprep.subr.mxu0 0.0
    %5202 = vmatpush2.xpose.msra.mxu0 0.0
    %5203 = vmatprep.mubr.f32.mxu0 0.0
    %5204 = vmatmul.mubr.f32.gmra.mxu0 %v5135
    %v5205 = vpop.f32.mrf.mxu0
    %v5206 = vadd.f32 0.0, %v5205
    %v5207 = vpop.f32.mrf.mxu0
    %5208 = vdwg.mxu0
    %v5209 = vmul.f32 %v5206, 0.25
    %v5210 = vsel %vm322, %v5209, -inf
    %5211 = vmax.xlane.f32.xlu0 %v5210
    %v5212 = vpop.xlane.xlu0 %5211
    %v5213 = vsub.f32 %v5209, %v5212
    %v5214 = vmul.f32 %v5213, 1.442695
    %v5215 = vpow.pop %v5214
    %v5216 = vsel %vm322, %v5215, 0.0
    %5217 = vadd.xlane.f32.xlu0 %v5216
    %v5218 = vpop.xlane.xlu0 %5217
    %v5219 = vrcp.pop %v5218
    %v5220 = vmul.f32 %v5215, %v5219
    %5221 = vrot.lane.b32.xlu0 %v4794, 96
    %v5222 = vpop.permute.xlu0 %5221
    %v5225 = vsel %vm322, %v5220, 0
    %5227 = vmatprep.subr.mxu0 0.0
    %5228 = vmatpush1.msra.mxu0 0.0
    %5229 = vmatprep.subr.mxu0 0.0
    %5230 = vmatpush1.msra.mxu0 0.0
    %5231 = vmatprep.subr.mxu0 0.0
    %5232 = vmatpush1.msra.mxu0 0.0
    %5233 = vmatprep.subr.mxu0 0.0
    %5234 = vmatpush1.msra.mxu0 0.0
    %5235 = vmatprep.subr.mxu0 0.0
    %5236 = vmatpush1.msra.mxu0 0.0
    %5237 = vmatprep.subr.mxu0 0.0
    %5238 = vmatpush1.msra.mxu0 0.0
    %5239 = vmatprep.subr.mxu0 0.0
    %5240 = vmatpush1.msra.mxu0 0.0
    %5241 = vmatprep.subr.mxu0 0.0
    %5242 = vmatpush1.msra.mxu0 0.0
    %5243 = vmatprep.subr.mxu0 0.0
    %5244 = vmatpush1.msra.mxu0 0.0
    %5245 = vmatprep.subr.mxu0 0.0
    %5246 = vmatpush1.msra.mxu0 0.0
    %5247 = vmatprep.subr.mxu0 0.0
    %5248 = vmatpush1.msra.mxu0 0.0
    %5249 = vmatprep.subr.mxu0 0.0
    %5250 = vmatpush1.msra.mxu0 0.0
    %5251 = vmatprep.subr.mxu0 0.0
    %5252 = vmatpush1.msra.mxu0 0.0
    %5253 = vmatprep.subr.mxu0 0.0
    %5254 = vmatpush1.msra.mxu0 0.0
    %5255 = vmatprep.subr.mxu0 0.0
    %5256 = vmatpush1.msra.mxu0 0.0
    %5257 = vmatprep.subr.mxu0 0.0
    %5258 = vmatpush1.msra.mxu0 %v5222
    %5259 = vmatprep.subr.mxu0 0.0
    %5260 = vmatpush2.msra.mxu0 0.0
    %5261 = vmatprep.subr.mxu0 0.0
    %5262 = vmatpush2.msra.mxu0 0.0
    %5263 = vmatprep.subr.mxu0 0.0
    %5264 = vmatpush2.msra.mxu0 0.0
    %5265 = vmatprep.subr.mxu0 0.0
    %5266 = vmatpush2.msra.mxu0 0.0
    %5267 = vmatprep.subr.mxu0 0.0
    %5268 = vmatpush2.msra.mxu0 0.0
    %5269 = vmatprep.subr.mxu0 0.0
    %5270 = vmatpush2.msra.mxu0 0.0
    %5271 = vmatprep.subr.mxu0 0.0
    %5272 = vmatpush2.msra.mxu0 0.0
    %5273 = vmatprep.subr.mxu0 0.0
    %5274 = vmatpush2.msra.mxu0 0.0
    %5275 = vmatprep.subr.mxu0 0.0
    %5276 = vmatpush2.msra.mxu0 0.0
    %5277 = vmatprep.subr.mxu0 0.0
    %5278 = vmatpush2.msra.mxu0 0.0
    %5279 = vmatprep.subr.mxu0 0.0
    %5280 = vmatpush2.msra.mxu0 0.0
    %5281 = vmatprep.subr.mxu0 0.0
    %5282 = vmatpush2.msra.mxu0 0.0
    %5283 = vmatprep.subr.mxu0 0.0
    %5284 = vmatpush2.msra.mxu0 0.0
    %5285 = vmatprep.subr.mxu0 0.0
    %5286 = vmatpush2.msra.mxu0 0.0
    %5287 = vmatprep.subr.mxu0 0.0
    %5288 = vmatpush2.msra.mxu0 0.0
    %5289 = vmatprep.subr.mxu0 0.0
    %5290 = vmatpush2.msra.mxu0 0.0
    %5291 = vmatprep.mubr.f32.mxu0 0.0
    %5292 = vmatmul.mubr.f32.gmra.mxu0 %v5225
    %v5293 = vpop.f32.mrf.mxu0
    %v5294 = vadd.f32 0.0, %v5293
    %v5295 = vpop.f32.mrf.mxu0
    %5296 = vdwg.mxu0
    %5298 = vrot.lane.b32.xlu0 %v5294, 32
    %v5299 = vpop.permute.xlu0 %5298
    %5301 = vst.msk [vmem:[#allocation2 + $0x8] sm:$0xff] %vm751, %v5299
    %5302 = vrot.lane.b32.xlu0 %v4792, 80
    %v5303 = vpop.permute.xlu0 %5302
    %5304 = vrot.lane.b32.xlu0 %v4793, 16
    %v5305 = vpop.permute.xlu0 %5304
    %v5306 = vsel %vm37, %v5303, 0
    %v5308 = vsel %vm37, %v5305, 0
    %5310 = vmatprep.subr.mxu0 0.0
    %5311 = vmatpush1.xpose.msra.mxu0 0.0
    %5312 = vmatprep.subr.mxu0 0.0
    %5313 = vmatpush1.xpose.msra.mxu0 0.0
    %5314 = vmatprep.subr.mxu0 0.0
    %5315 = vmatpush1.xpose.msra.mxu0 0.0
    %5316 = vmatprep.subr.mxu0 0.0
    %5317 = vmatpush1.xpose.msra.mxu0 0.0
    %5318 = vmatprep.subr.mxu0 0.0
    %5319 = vmatpush1.xpose.msra.mxu0 0.0
    %5320 = vmatprep.subr.mxu0 0.0
    %5321 = vmatpush1.xpose.msra.mxu0 0.0
    %5322 = vmatprep.subr.mxu0 0.0
    %5323 = vmatpush1.xpose.msra.mxu0 0.0
    %5324 = vmatprep.subr.mxu0 0.0
    %5325 = vmatpush1.xpose.msra.mxu0 0.0
    %5326 = vmatprep.subr.mxu0 0.0
    %5327 = vmatpush1.xpose.msra.mxu0 0.0
    %5328 = vmatprep.subr.mxu0 0.0
    %5329 = vmatpush1.xpose.msra.mxu0 0.0
    %5330 = vmatprep.subr.mxu0 0.0
    %5331 = vmatpush1.xpose.msra.mxu0 0.0
    %5332 = vmatprep.subr.mxu0 0.0
    %5333 = vmatpush1.xpose.msra.mxu0 0.0
    %5334 = vmatprep.subr.mxu0 0.0
    %5335 = vmatpush1.xpose.msra.mxu0 0.0
    %5336 = vmatprep.subr.mxu0 0.0
    %5337 = vmatpush1.xpose.msra.mxu0 0.0
    %5338 = vmatprep.subr.mxu0 0.0
    %5339 = vmatpush1.xpose.msra.mxu0 0.0
    %5340 = vmatprep.subr.mxu0 0.0
    %5341 = vmatpush1.xpose.msra.mxu0 %v5308
    %5342 = vmatprep.subr.mxu0 0.0
    %5343 = vmatpush2.xpose.msra.mxu0 0.0
    %5344 = vmatprep.subr.mxu0 0.0
    %5345 = vmatpush2.xpose.msra.mxu0 0.0
    %5346 = vmatprep.subr.mxu0 0.0
    %5347 = vmatpush2.xpose.msra.mxu0 0.0
    %5348 = vmatprep.subr.mxu0 0.0
    %5349 = vmatpush2.xpose.msra.mxu0 0.0
    %5350 = vmatprep.subr.mxu0 0.0
    %5351 = vmatpush2.xpose.msra.mxu0 0.0
    %5352 = vmatprep.subr.mxu0 0.0
    %5353 = vmatpush2.xpose.msra.mxu0 0.0
    %5354 = vmatprep.subr.mxu0 0.0
    %5355 = vmatpush2.xpose.msra.mxu0 0.0
    %5356 = vmatprep.subr.mxu0 0.0
    %5357 = vmatpush2.xpose.msra.mxu0 0.0
    %5358 = vmatprep.subr.mxu0 0.0
    %5359 = vmatpush2.xpose.msra.mxu0 0.0
    %5360 = vmatprep.subr.mxu0 0.0
    %5361 = vmatpush2.xpose.msra.mxu0 0.0
    %5362 = vmatprep.subr.mxu0 0.0
    %5363 = vmatpush2.xpose.msra.mxu0 0.0
    %5364 = vmatprep.subr.mxu0 0.0
    %5365 = vmatpush2.xpose.msra.mxu0 0.0
    %5366 = vmatprep.subr.mxu0 0.0
    %5367 = vmatpush2.xpose.msra.mxu0 0.0
    %5368 = vmatprep.subr.mxu0 0.0
    %5369 = vmatpush2.xpose.msra.mxu0 0.0
    %5370 = vmatprep.subr.mxu0 0.0
    %5371 = vmatpush2.xpose.msra.mxu0 0.0
    %5372 = vmatprep.subr.mxu0 0.0
    %5373 = vmatpush2.xpose.msra.mxu0 0.0
    %5374 = vmatprep.mubr.f32.mxu0 0.0
    %5375 = vmatmul.mubr.f32.gmra.mxu0 %v5306
    %v5376 = vpop.f32.mrf.mxu0
    %v5377 = vadd.f32 0.0, %v5376
    %v5378 = vpop.f32.mrf.mxu0
    %5379 = vdwg.mxu0
    %v5380 = vmul.f32 %v5377, 0.25
    %v5381 = vsel %vm322, %v5380, -inf
    %5382 = vmax.xlane.f32.xlu0 %v5381
    %v5383 = vpop.xlane.xlu0 %5382
    %v5384 = vsub.f32 %v5380, %v5383
    %v5385 = vmul.f32 %v5384, 1.442695
    %v5386 = vpow.pop %v5385
    %v5387 = vsel %vm322, %v5386, 0.0
    %5388 = vadd.xlane.f32.xlu0 %v5387
    %v5389 = vpop.xlane.xlu0 %5388
    %v5390 = vrcp.pop %v5389
    %v5391 = vmul.f32 %v5386, %v5390
    %5392 = vrot.lane.b32.xlu0 %v4794, 80
    %v5393 = vpop.permute.xlu0 %5392
    %v5396 = vsel %vm322, %v5391, 0
    %5398 = vmatprep.subr.mxu0 0.0
    %5399 = vmatpush1.msra.mxu0 0.0
    %5400 = vmatprep.subr.mxu0 0.0
    %5401 = vmatpush1.msra.mxu0 0.0
    %5402 = vmatprep.subr.mxu0 0.0
    %5403 = vmatpush1.msra.mxu0 0.0
    %5404 = vmatprep.subr.mxu0 0.0
    %5405 = vmatpush1.msra.mxu0 0.0
    %5406 = vmatprep.subr.mxu0 0.0
    %5407 = vmatpush1.msra.mxu0 0.0
    %5408 = vmatprep.subr.mxu0 0.0
    %5409 = vmatpush1.msra.mxu0 0.0
    %5410 = vmatprep.subr.mxu0 0.0
    %5411 = vmatpush1.msra.mxu0 0.0
    %5412 = vmatprep.subr.mxu0 0.0
    %5413 = vmatpush1.msra.mxu0 0.0
    %5414 = vmatprep.subr.mxu0 0.0
    %5415 = vmatpush1.msra.mxu0 0.0
    %5416 = vmatprep.subr.mxu0 0.0
    %5417 = vmatpush1.msra.mxu0 0.0
    %5418 = vmatprep.subr.mxu0 0.0
    %5419 = vmatpush1.msra.mxu0 0.0
    %5420 = vmatprep.subr.mxu0 0.0
    %5421 = vmatpush1.msra.mxu0 0.0
    %5422 = vmatprep.subr.mxu0 0.0
    %5423 = vmatpush1.msra.mxu0 0.0
    %5424 = vmatprep.subr.mxu0 0.0
    %5425 = vmatpush1.msra.mxu0 0.0
    %5426 = vmatprep.subr.mxu0 0.0
    %5427 = vmatpush1.msra.mxu0 0.0
    %5428 = vmatprep.subr.mxu0 0.0
    %5429 = vmatpush1.msra.mxu0 %v5393
    %5430 = vmatprep.subr.mxu0 0.0
    %5431 = vmatpush2.msra.mxu0 0.0
    %5432 = vmatprep.subr.mxu0 0.0
    %5433 = vmatpush2.msra.mxu0 0.0
    %5434 = vmatprep.subr.mxu0 0.0
    %5435 = vmatpush2.msra.mxu0 0.0
    %5436 = vmatprep.subr.mxu0 0.0
    %5437 = vmatpush2.msra.mxu0 0.0
    %5438 = vmatprep.subr.mxu0 0.0
    %5439 = vmatpush2.msra.mxu0 0.0
    %5440 = vmatprep.subr.mxu0 0.0
    %5441 = vmatpush2.msra.mxu0 0.0
    %5442 = vmatprep.subr.mxu0 0.0
    %5443 = vmatpush2.msra.mxu0 0.0
    %5444 = vmatprep.subr.mxu0 0.0
    %5445 = vmatpush2.msra.mxu0 0.0
    %5446 = vmatprep.subr.mxu0 0.0
    %5447 = vmatpush2.msra.mxu0 0.0
    %5448 = vmatprep.subr.mxu0 0.0
    %5449 = vmatpush2.msra.mxu0 0.0
    %5450 = vmatprep.subr.mxu0 0.0
    %5451 = vmatpush2.msra.mxu0 0.0
    %5452 = vmatprep.subr.mxu0 0.0
    %5453 = vmatpush2.msra.mxu0 0.0
    %5454 = vmatprep.subr.mxu0 0.0
    %5455 = vmatpush2.msra.mxu0 0.0
    %5456 = vmatprep.subr.mxu0 0.0
    %5457 = vmatpush2.msra.mxu0 0.0
    %5458 = vmatprep.subr.mxu0 0.0
    %5459 = vmatpush2.msra.mxu0 0.0
    %5460 = vmatprep.subr.mxu0 0.0
    %5461 = vmatpush2.msra.mxu0 0.0
    %5462 = vmatprep.mubr.f32.mxu0 0.0
    %5463 = vmatmul.mubr.f32.gmra.mxu0 %v5396
    %v5464 = vpop.f32.mrf.mxu0
    %v5465 = vadd.f32 0.0, %v5464
    %v5466 = vpop.f32.mrf.mxu0
    %5467 = vdwg.mxu0
    %5469 = vrot.lane.b32.xlu0 %v5465, 48
    %v5470 = vpop.permute.xlu0 %5469
    %5472 = vst.msk [vmem:[#allocation2 + $0x8] sm:$0xff] %vm923, %v5470
    %v5473 = vld [vmem:[#allocation2] sm:$0xff]
    %v5474 = vld [vmem:[#allocation2 + $0x8] sm:$0xff]
    %v5475 = vpack.c.bf16 %v5474, %v5473
    %s5476 = scalar_lea.vmem %s3, 32
    %v5477 = vld [vmem:[%s5476] sm:$0xf]
    %v5478 = vld [vmem:[%s5476 + $0x4] sm:$0xf]
    %v5479 = vld [vmem:[%s5476 + $0x8] sm:$0xf]
    %v5480 = vld [vmem:[%s5476 + $0xc] sm:$0xf]
    %v5481 = vld [vmem:[%s5476 + $0x10] sm:$0xf]
    %v5482 = vld [vmem:[%s5476 + $0x14] sm:$0xf]
    %v5483 = vld [vmem:[%s5476 + $0x18] sm:$0xf]
    %v5484 = vld [vmem:[%s5476 + $0x1c] sm:$0xf]
    %v5485 = vlaneseq
    %v5486 = vshrl.u32 %v5485, 7
    %v5487 = vsub.s32 0, %v5486
    %v5488 = vrot.slane %v3993, %v5487
    %v5497 = vunpack.c.l.b16 %v5477
    %v5498 = vunpack.c.l.b16 %v5478
    %v5499 = vunpack.c.l.b16 %v5479
    %v5500 = vunpack.c.l.b16 %v5480
    %v5501 = vunpack.c.l.b16 %v5481
    %v5502 = vunpack.c.l.b16 %v5482
    %v5503 = vunpack.c.l.b16 %v5483
    %v5504 = vunpack.c.l.b16 %v5484
    %v5505 = vpack.c.b16 %v5498, %v5497
    %v5506 = vpack.c.b16 %v5500, %v5499
    %v5507 = vpack.c.b16 %v5502, %v5501
    %v5508 = vpack.c.b16 %v5504, %v5503
    %v5514 = vsel %vm177, %v5475, 0
    %5516 = vmatprep.subr.bf16.mxu0 0
    %5517 = vmatpush1.bf16.msra.mxu0 0
    %5518 = vmatprep.subr.bf16.mxu0 0
    %5519 = vmatpush1.bf16.msra.mxu0 0
    %5520 = vmatprep.subr.bf16.mxu0 0
    %5521 = vmatpush1.bf16.msra.mxu0 0
    %5522 = vmatprep.subr.bf16.mxu0 0
    %5523 = vmatpush1.bf16.msra.mxu0 0
    %5524 = vmatprep.subr.bf16.mxu0 0
    %5525 = vmatpush1.bf16.msra.mxu0 %v5508
    %5526 = vmatprep.subr.bf16.mxu0 0
    %5527 = vmatpush1.bf16.msra.mxu0 %v5507
    %5528 = vmatprep.subr.bf16.mxu0 0
    %5529 = vmatpush1.bf16.msra.mxu0 %v5506
    %5530 = vmatprep.subr.bf16.mxu0 0
    %5531 = vmatpush1.bf16.msra.mxu0 %v5505
    %5532 = vmatprep.subr.bf16.mxu0 0
    %5533 = vmatpush2.bf16.msra.mxu0 0
    %5534 = vmatprep.subr.bf16.mxu0 0
    %5535 = vmatpush2.bf16.msra.mxu0 0
    %5536 = vmatprep.subr.bf16.mxu0 0
    %5537 = vmatpush2.bf16.msra.mxu0 0
    %5538 = vmatprep.subr.bf16.mxu0 0
    %5539 = vmatpush2.bf16.msra.mxu0 0
    %5540 = vmatprep.subr.bf16.mxu0 0
    %5541 = vmatpush2.bf16.msra.mxu0 0
    %5542 = vmatprep.subr.bf16.mxu0 0
    %5543 = vmatpush2.bf16.msra.mxu0 0
    %5544 = vmatprep.subr.bf16.mxu0 0
    %5545 = vmatpush2.bf16.msra.mxu0 0
    %5546 = vmatprep.subr.bf16.mxu0 0
    %5547 = vmatpush2.bf16.msra.mxu0 0
    %5548 = vmatprep.mubr.bf16.mxu0 0
    %5549 = vmatmul.mubr.bf16.gmra.mxu0 %v5514
    %v5550 = vpop.f32.mrf.mxu0
    %v5551 = vadd.f32 %v5488, %v5550
    %v5552 = vpop.f32.mrf.mxu0
    %v5553 = vpop.f32.mrf.mxu0
    %v5554 = vadd.f32 %v5488, %v5553
    %v5555 = vpop.f32.mrf.mxu0
    %5556 = vdwg.mxu0
    %v5557 = vadd.f32 %v3988, %v5551
    %v5558 = vadd.f32 %v3989, %v5554
    %v5559 = vsel %vm177, %v5557, 0.0
    %5560 = vadd.xlane.f32.xlu0 %v5559
    %v5561 = vpop.xlane.xlu0 %5560
    %v5562 = vsel %vm177, %v5558, 0.0
    %5563 = vadd.xlane.f32.xlu0 %v5562
    %v5564 = vpop.xlane.xlu0 %5563
    %v5565 = vmul.f32 %v5561, %v1697
    %v5566 = vmul.f32 %v5564, %v1697
    %v5567 = vsub.f32 %v5557, %v5565
    %v5568 = vsub.f32 %v5558, %v5566
    %v5569 = vmul.f32 %v5567, %v5567
    %v5570 = vmul.f32 %v5568, %v5568
    %v5571 = vsel %vm177, %v5569, 0.0
    %5572 = vadd.xlane.f32.xlu0 %v5571
    %v5573 = vpop.xlane.xlu0 %5572
    %v5574 = vsel %vm177, %v5570, 0.0
    %5575 = vadd.xlane.f32.xlu0 %v5574
    %v5576 = vpop.xlane.xlu0 %5575
    %v5577 = vmul.f32 %v5573, %v1697
    %v5578 = vmul.f32 %v5576, %v1697
    %v5579 = vadd.f32 %v5577, 1e-05
    %v5580 = vadd.f32 %v5578, 1e-05
    %v5581 = vrsqrt.pop %v5579
    %v5582 = vrsqrt.pop %v5580
    %v5583 = vmul.f32 %v5567, %v5581
    %v5584 = vmul.f32 %v5568, %v5582
    %v5585 = vlaneseq
    %v5586 = vshrl.u32 %v5585, 7
    %v5587 = vsub.s32 0, %v5586
    %v5588 = vrot.slane %v3994, %v5587
    %v5589 = vmul.f32 %v5583, %v5588
    %v5590 = vmul.f32 %v5584, %v5588
    %v5591 = vlaneseq
    %v5592 = vshrl.u32 %v5591, 7
    %v5593 = vsub.s32 0, %v5592
    %v5594 = vrot.slane %v3995, %v5593
    %v5595 = vadd.f32 %v5589, %v5594
    %v5596 = vadd.f32 %v5590, %v5594
    %v5597 = vpack.c.bf16 %v5596, %v5595
    %s5598 = scalar_lea.vmem %s4, 512
    %v5599 = vld [vmem:[%s5598] sm:$0xff]
    %v5600 = vld [vmem:[%s5598 + $0x8] sm:$0xff]
    %v5601 = vld [vmem:[%s5598 + $0x10] sm:$0xff]
    %v5602 = vld [vmem:[%s5598 + $0x18] sm:$0xff]
    %v5603 = vld [vmem:[%s5598 + $0x20] sm:$0xff]
    %v5604 = vld [vmem:[%s5598 + $0x28] sm:$0xff]
    %v5605 = vld [vmem:[%s5598 + $0x30] sm:$0xff]
    %v5606 = vld [vmem:[%s5598 + $0x38] sm:$0xff]
    %v5607 = vld [vmem:[%s5598 + $0x40] sm:$0xff]
    %v5608 = vld [vmem:[%s5598 + $0x48] sm:$0xff]
    %v5609 = vld [vmem:[%s5598 + $0x50] sm:$0xff]
    %v5610 = vld [vmem:[%s5598 + $0x58] sm:$0xff]
    %v5611 = vld [vmem:[%s5598 + $0x60] sm:$0xff]
    %v5612 = vld [vmem:[%s5598 + $0x68] sm:$0xff]
    %v5613 = vld [vmem:[%s5598 + $0x70] sm:$0xff]
    %v5614 = vld [vmem:[%s5598 + $0x78] sm:$0xff]
    %v5615 = vld [vmem:[%s5598 + $0x80] sm:$0xff]
    %v5616 = vld [vmem:[%s5598 + $0x88] sm:$0xff]
    %v5617 = vld [vmem:[%s5598 + $0x90] sm:$0xff]
    %v5618 = vld [vmem:[%s5598 + $0x98] sm:$0xff]
    %v5619 = vld [vmem:[%s5598 + $0xa0] sm:$0xff]
    %v5620 = vld [vmem:[%s5598 + $0xa8] sm:$0xff]
    %v5621 = vld [vmem:[%s5598 + $0xb0] sm:$0xff]
    %v5622 = vld [vmem:[%s5598 + $0xb8] sm:$0xff]
    %v5623 = vld [vmem:[%s5598 + $0xc0] sm:$0xff]
    %v5624 = vld [vmem:[%s5598 + $0xc8] sm:$0xff]
    %v5625 = vld [vmem:[%s5598 + $0xd0] sm:$0xff]
    %v5626 = vld [vmem:[%s5598 + $0xd8] sm:$0xff]
    %v5627 = vld [vmem:[%s5598 + $0xe0] sm:$0xff]
    %v5628 = vld [vmem:[%s5598 + $0xe8] sm:$0xff]
    %v5629 = vld [vmem:[%s5598 + $0xf0] sm:$0xff]
    %v5630 = vld [vmem:[%s5598 + $0xf8] sm:$0xff]
    %v5631 = vld [vmem:[%s5598 + $0x100] sm:$0xff]
    %v5632 = vld [vmem:[%s5598 + $0x108] sm:$0xff]
    %v5633 = vld [vmem:[%s5598 + $0x110] sm:$0xff]
    %v5634 = vld [vmem:[%s5598 + $0x118] sm:$0xff]
    %v5635 = vld [vmem:[%s5598 + $0x120] sm:$0xff]
    %v5636 = vld [vmem:[%s5598 + $0x128] sm:$0xff]
    %v5637 = vld [vmem:[%s5598 + $0x130] sm:$0xff]
    %v5638 = vld [vmem:[%s5598 + $0x138] sm:$0xff]
    %v5639 = vld [vmem:[%s5598 + $0x140] sm:$0xff]
    %v5640 = vld [vmem:[%s5598 + $0x148] sm:$0xff]
    %v5641 = vld [vmem:[%s5598 + $0x150] sm:$0xff]
    %v5642 = vld [vmem:[%s5598 + $0x158] sm:$0xff]
    %v5643 = vld [vmem:[%s5598 + $0x160] sm:$0xff]
    %v5644 = vld [vmem:[%s5598 + $0x168] sm:$0xff]
    %v5645 = vld [vmem:[%s5598 + $0x170] sm:$0xff]
    %v5646 = vld [vmem:[%s5598 + $0x178] sm:$0xff]
    %v5647 = vld [vmem:[%s5598 + $0x180] sm:$0xff]
    %v5648 = vld [vmem:[%s5598 + $0x188] sm:$0xff]
    %v5649 = vld [vmem:[%s5598 + $0x190] sm:$0xff]
    %v5650 = vld [vmem:[%s5598 + $0x198] sm:$0xff]
    %v5651 = vld [vmem:[%s5598 + $0x1a0] sm:$0xff]
    %v5652 = vld [vmem:[%s5598 + $0x1a8] sm:$0xff]
    %v5653 = vld [vmem:[%s5598 + $0x1b0] sm:$0xff]
    %v5654 = vld [vmem:[%s5598 + $0x1b8] sm:$0xff]
    %v5655 = vld [vmem:[%s5598 + $0x1c0] sm:$0xff]
    %v5656 = vld [vmem:[%s5598 + $0x1c8] sm:$0xff]
    %v5657 = vld [vmem:[%s5598 + $0x1d0] sm:$0xff]
    %v5658 = vld [vmem:[%s5598 + $0x1d8] sm:$0xff]
    %v5659 = vld [vmem:[%s5598 + $0x1e0] sm:$0xff]
    %v5660 = vld [vmem:[%s5598 + $0x1e8] sm:$0xff]
    %v5661 = vld [vmem:[%s5598 + $0x1f0] sm:$0xff]
    %v5662 = vld [vmem:[%s5598 + $0x1f8] sm:$0xff]
    %s5663 = scalar_lea.vmem %s5, 16
    %v5664 = vld [vmem:[%s5663] sm:$0xff]
    %v5665 = vld [vmem:[%s5663 + $0x8] sm:$0xff]
    %v5668 = vlaneseq
    %v5669 = vshrl.u32 %v5668, 7
    %v5670 = vsub.s32 0, %v5669
    %v5671 = vrot.slane %v5664, %v5670
    %v5672 = vlaneseq
    %v5673 = vshrl.u32 %v5672, 7
    %v5674 = vsub.s32 1, %v5673
    %v5675 = vrot.slane %v5664, %v5674
    %v5676 = vlaneseq
    %v5677 = vshrl.u32 %v5676, 7
    %v5678 = vsub.s32 2, %v5677
    %v5679 = vrot.slane %v5664, %v5678
    %v5680 = vlaneseq
    %v5681 = vshrl.u32 %v5680, 7
    %v5682 = vsub.s32 3, %v5681
    %v5683 = vrot.slane %v5664, %v5682
    %v5684 = vlaneseq
    %v5685 = vshrl.u32 %v5684, 7
    %v5686 = vsub.s32 4, %v5685
    %v5687 = vrot.slane %v5664, %v5686
    %v5688 = vlaneseq
    %v5689 = vshrl.u32 %v5688, 7
    %v5690 = vsub.s32 5, %v5689
    %v5691 = vrot.slane %v5664, %v5690
    %v5692 = vlaneseq
    %v5693 = vshrl.u32 %v5692, 7
    %v5694 = vsub.s32 6, %v5693
    %v5695 = vrot.slane %v5664, %v5694
    %v5696 = vlaneseq
    %v5697 = vshrl.u32 %v5696, 7
    %v5698 = vsub.s32 7, %v5697
    %v5699 = vrot.slane %v5664, %v5698
    %v5700 = vlaneseq
    %v5701 = vshrl.u32 %v5700, 7
    %v5702 = vsub.s32 0, %v5701
    %v5703 = vrot.slane %v5665, %v5702
    %v5704 = vlaneseq
    %v5705 = vshrl.u32 %v5704, 7
    %v5706 = vsub.s32 1, %v5705
    %v5707 = vrot.slane %v5665, %v5706
    %v5708 = vlaneseq
    %v5709 = vshrl.u32 %v5708, 7
    %v5710 = vsub.s32 2, %v5709
    %v5711 = vrot.slane %v5665, %v5710
    %v5712 = vlaneseq
    %v5713 = vshrl.u32 %v5712, 7
    %v5714 = vsub.s32 3, %v5713
    %v5715 = vrot.slane %v5665, %v5714
    %v5716 = vlaneseq
    %v5717 = vshrl.u32 %v5716, 7
    %v5718 = vsub.s32 4, %v5717
    %v5719 = vrot.slane %v5665, %v5718
    %v5720 = vlaneseq
    %v5721 = vshrl.u32 %v5720, 7
    %v5722 = vsub.s32 5, %v5721
    %v5723 = vrot.slane %v5665, %v5722
    %v5724 = vlaneseq
    %v5725 = vshrl.u32 %v5724, 7
    %v5726 = vsub.s32 6, %v5725
    %v5727 = vrot.slane %v5665, %v5726
    %v5728 = vlaneseq
    %v5729 = vshrl.u32 %v5728, 7
    %v5730 = vsub.s32 7, %v5729
    %v5731 = vrot.slane %v5665, %v5730
    %v5812 = vunpack.c.l.b16 %v5599
    %v5813 = vunpack.c.h.b16 %v5599
    %v5814 = vunpack.c.l.b16 %v5600
    %v5815 = vunpack.c.h.b16 %v5600
    %v5816 = vunpack.c.l.b16 %v5601
    %v5817 = vunpack.c.h.b16 %v5601
    %v5818 = vunpack.c.l.b16 %v5602
    %v5819 = vunpack.c.h.b16 %v5602
    %v5820 = vunpack.c.l.b16 %v5603
    %v5821 = vunpack.c.h.b16 %v5603
    %v5822 = vunpack.c.l.b16 %v5604
    %v5823 = vunpack.c.h.b16 %v5604
    %v5824 = vunpack.c.l.b16 %v5605
    %v5825 = vunpack.c.h.b16 %v5605
    %v5826 = vunpack.c.l.b16 %v5606
    %v5827 = vunpack.c.h.b16 %v5606
    %v5828 = vunpack.c.l.b16 %v5607
    %v5829 = vunpack.c.h.b16 %v5607
    %v5830 = vunpack.c.l.b16 %v5608
    %v5831 = vunpack.c.h.b16 %v5608
    %v5832 = vunpack.c.l.b16 %v5609
    %v5833 = vunpack.c.h.b16 %v5609
    %v5834 = vunpack.c.l.b16 %v5610
    %v5835 = vunpack.c.h.b16 %v5610
    %v5836 = vunpack.c.l.b16 %v5611
    %v5837 = vunpack.c.h.b16 %v5611
    %v5838 = vunpack.c.l.b16 %v5612
    %v5839 = vunpack.c.h.b16 %v5612
    %v5840 = vunpack.c.l.b16 %v5613
    %v5841 = vunpack.c.h.b16 %v5613
    %v5842 = vunpack.c.l.b16 %v5614
    %v5843 = vunpack.c.h.b16 %v5614
    %v5844 = vunpack.c.l.b16 %v5615
    %v5845 = vunpack.c.h.b16 %v5615
    %v5846 = vunpack.c.l.b16 %v5616
    %v5847 = vunpack.c.h.b16 %v5616
    %v5848 = vunpack.c.l.b16 %v5617
    %v5849 = vunpack.c.h.b16 %v5617
    %v5850 = vunpack.c.l.b16 %v5618
    %v5851 = vunpack.c.h.b16 %v5618
    %v5852 = vunpack.c.l.b16 %v5619
    %v5853 = vunpack.c.h.b16 %v5619
    %v5854 = vunpack.c.l.b16 %v5620
    %v5855 = vunpack.c.h.b16 %v5620
    %v5856 = vunpack.c.l.b16 %v5621
    %v5857 = vunpack.c.h.b16 %v5621
    %v5858 = vunpack.c.l.b16 %v5622
    %v5859 = vunpack.c.h.b16 %v5622
    %v5860 = vunpack.c.l.b16 %v5623
    %v5861 = vunpack.c.h.b16 %v5623
    %v5862 = vunpack.c.l.b16 %v5624
    %v5863 = vunpack.c.h.b16 %v5624
    %v5864 = vunpack.c.l.b16 %v5625
    %v5865 = vunpack.c.h.b16 %v5625
    %v5866 = vunpack.c.l.b16 %v5626
    %v5867 = vunpack.c.h.b16 %v5626
    %v5868 = vunpack.c.l.b16 %v5627
    %v5869 = vunpack.c.h.b16 %v5627
    %v5870 = vunpack.c.l.b16 %v5628
    %v5871 = vunpack.c.h.b16 %v5628
    %v5872 = vunpack.c.l.b16 %v5629
    %v5873 = vunpack.c.h.b16 %v5629
    %v5874 = vunpack.c.l.b16 %v5630
    %v5875 = vunpack.c.h.b16 %v5630
    %v5876 = vunpack.c.l.b16 %v5631
    %v5877 = vunpack.c.h.b16 %v5631
    %v5878 = vunpack.c.l.b16 %v5632
    %v5879 = vunpack.c.h.b16 %v5632
    %v5880 = vunpack.c.l.b16 %v5633
    %v5881 = vunpack.c.h.b16 %v5633
    %v5882 = vunpack.c.l.b16 %v5634
    %v5883 = vunpack.c.h.b16 %v5634
    %v5884 = vunpack.c.l.b16 %v5635
    %v5885 = vunpack.c.h.b16 %v5635
    %v5886 = vunpack.c.l.b16 %v5636
    %v5887 = vunpack.c.h.b16 %v5636
    %v5888 = vunpack.c.l.b16 %v5637
    %v5889 = vunpack.c.h.b16 %v5637
    %v5890 = vunpack.c.l.b16 %v5638
    %v5891 = vunpack.c.h.b16 %v5638
    %v5892 = vunpack.c.l.b16 %v5639
    %v5893 = vunpack.c.h.b16 %v5639
    %v5894 = vunpack.c.l.b16 %v5640
    %v5895 = vunpack.c.h.b16 %v5640
    %v5896 = vunpack.c.l.b16 %v5641
    %v5897 = vunpack.c.h.b16 %v5641
    %v5898 = vunpack.c.l.b16 %v5642
    %v5899 = vunpack.c.h.b16 %v5642
    %v5900 = vunpack.c.l.b16 %v5643
    %v5901 = vunpack.c.h.b16 %v5643
    %v5902 = vunpack.c.l.b16 %v5644
    %v5903 = vunpack.c.h.b16 %v5644
    %v5904 = vunpack.c.l.b16 %v5645
    %v5905 = vunpack.c.h.b16 %v5645
    %v5906 = vunpack.c.l.b16 %v5646
    %v5907 = vunpack.c.h.b16 %v5646
    %v5908 = vunpack.c.l.b16 %v5647
    %v5909 = vunpack.c.h.b16 %v5647
    %v5910 = vunpack.c.l.b16 %v5648
    %v5911 = vunpack.c.h.b16 %v5648
    %v5912 = vunpack.c.l.b16 %v5649
    %v5913 = vunpack.c.h.b16 %v5649
    %v5914 = vunpack.c.l.b16 %v5650
    %v5915 = vunpack.c.h.b16 %v5650
    %v5916 = vunpack.c.l.b16 %v5651
    %v5917 = vunpack.c.h.b16 %v5651
    %v5918 = vunpack.c.l.b16 %v5652
    %v5919 = vunpack.c.h.b16 %v5652
    %v5920 = vunpack.c.l.b16 %v5653
    %v5921 = vunpack.c.h.b16 %v5653
    %v5922 = vunpack.c.l.b16 %v5654
    %v5923 = vunpack.c.h.b16 %v5654
    %v5924 = vunpack.c.l.b16 %v5655
    %v5925 = vunpack.c.h.b16 %v5655
    %v5926 = vunpack.c.l.b16 %v5656
    %v5927 = vunpack.c.h.b16 %v5656
    %v5928 = vunpack.c.l.b16 %v5657
    %v5929 = vunpack.c.h.b16 %v5657
    %v5930 = vunpack.c.l.b16 %v5658
    %v5931 = vunpack.c.h.b16 %v5658
    %v5932 = vunpack.c.l.b16 %v5659
    %v5933 = vunpack.c.h.b16 %v5659
    %v5934 = vunpack.c.l.b16 %v5660
    %v5935 = vunpack.c.h.b16 %v5660
    %v5936 = vunpack.c.l.b16 %v5661
    %v5937 = vunpack.c.h.b16 %v5661
    %v5938 = vunpack.c.l.b16 %v5662
    %v5939 = vunpack.c.h.b16 %v5662
    %v5940 = vpack.c.b16 %v5828, %v5812
    %v5941 = vpack.c.b16 %v5829, %v5813
    %v5942 = vpack.c.b16 %v5830, %v5814
    %v5943 = vpack.c.b16 %v5831, %v5815
    %v5944 = vpack.c.b16 %v5832, %v5816
    %v5945 = vpack.c.b16 %v5833, %v5817
    %v5946 = vpack.c.b16 %v5834, %v5818
    %v5947 = vpack.c.b16 %v5835, %v5819
    %v5948 = vpack.c.b16 %v5836, %v5820
    %v5949 = vpack.c.b16 %v5837, %v5821
    %v5950 = vpack.c.b16 %v5838, %v5822
    %v5951 = vpack.c.b16 %v5839, %v5823
    %v5952 = vpack.c.b16 %v5840, %v5824
    %v5953 = vpack.c.b16 %v5841, %v5825
    %v5954 = vpack.c.b16 %v5842, %v5826
    %v5955 = vpack.c.b16 %v5843, %v5827
    %v5956 = vpack.c.b16 %v5860, %v5844
    %v5957 = vpack.c.b16 %v5861, %v5845
    %v5958 = vpack.c.b16 %v5862, %v5846
    %v5959 = vpack.c.b16 %v5863, %v5847
    %v5960 = vpack.c.b16 %v5864, %v5848
    %v5961 = vpack.c.b16 %v5865, %v5849
    %v5962 = vpack.c.b16 %v5866, %v5850
    %v5963 = vpack.c.b16 %v5867, %v5851
    %v5964 = vpack.c.b16 %v5868, %v5852
    %v5965 = vpack.c.b16 %v5869, %v5853
    %v5966 = vpack.c.b16 %v5870, %v5854
    %v5967 = vpack.c.b16 %v5871, %v5855
    %v5968 = vpack.c.b16 %v5872, %v5856
    %v5969 = vpack.c.b16 %v5873, %v5857
    %v5970 = vpack.c.b16 %v5874, %v5858
    %v5971 = vpack.c.b16 %v5875, %v5859
    %v5972 = vpack.c.b16 %v5892, %v5876
    %v5973 = vpack.c.b16 %v5893, %v5877
    %v5974 = vpack.c.b16 %v5894, %v5878
    %v5975 = vpack.c.b16 %v5895, %v5879
    %v5976 = vpack.c.b16 %v5896, %v5880
    %v5977 = vpack.c.b16 %v5897, %v5881
    %v5978 = vpack.c.b16 %v5898, %v5882
    %v5979 = vpack.c.b16 %v5899, %v5883
    %v5980 = vpack.c.b16 %v5900, %v5884
    %v5981 = vpack.c.b16 %v5901, %v5885
    %v5982 = vpack.c.b16 %v5902, %v5886
    %v5983 = vpack.c.b16 %v5903, %v5887
    %v5984 = vpack.c.b16 %v5904, %v5888
    %v5985 = vpack.c.b16 %v5905, %v5889
    %v5986 = vpack.c.b16 %v5906, %v5890
    %v5987 = vpack.c.b16 %v5907, %v5891
    %v5988 = vpack.c.b16 %v5924, %v5908
    %v5989 = vpack.c.b16 %v5925, %v5909
    %v5990 = vpack.c.b16 %v5926, %v5910
    %v5991 = vpack.c.b16 %v5927, %v5911
    %v5992 = vpack.c.b16 %v5928, %v5912
    %v5993 = vpack.c.b16 %v5929, %v5913
    %v5994 = vpack.c.b16 %v5930, %v5914
    %v5995 = vpack.c.b16 %v5931, %v5915
    %v5996 = vpack.c.b16 %v5932, %v5916
    %v5997 = vpack.c.b16 %v5933, %v5917
    %v5998 = vpack.c.b16 %v5934, %v5918
    %v5999 = vpack.c.b16 %v5935, %v5919
    %v6000 = vpack.c.b16 %v5936, %v5920
    %v6001 = vpack.c.b16 %v5937, %v5921
    %v6002 = vpack.c.b16 %v5938, %v5922
    %v6003 = vpack.c.b16 %v5939, %v5923
    %v6069 = vsel %vm177, %v5597, 0
    %6071 = vmatprep.subr.bf16.mxu0 0
    %6072 = vmatpush1.bf16.msra.mxu0 0
    %6073 = vmatprep.subr.bf16.mxu0 0
    %6074 = vmatpush1.bf16.msra.mxu0 0
    %6075 = vmatprep.subr.bf16.mxu0 0
    %6076 = vmatpush1.bf16.msra.mxu0 0
    %6077 = vmatprep.subr.bf16.mxu0 0
    %6078 = vmatpush1.bf16.msra.mxu0 0
    %6079 = vmatprep.subr.bf16.mxu0 %v5989
    %6080 = vmatpush1.bf16.msra.mxu0 %v5988
    %6081 = vmatprep.subr.bf16.mxu0 %v5973
    %6082 = vmatpush1.bf16.msra.mxu0 %v5972
    %6083 = vmatprep.subr.bf16.mxu0 %v5957
    %6084 = vmatpush1.bf16.msra.mxu0 %v5956
    %6085 = vmatprep.subr.bf16.mxu0 %v5941
    %6086 = vmatpush1.bf16.msra.mxu0 %v5940
    %6087 = vmatprep.subr.bf16.mxu0 0
    %6088 = vmatpush2.bf16.msra.mxu0 0
    %6089 = vmatprep.subr.bf16.mxu0 0
    %6090 = vmatpush2.bf16.msra.mxu0 0
    %6091 = vmatprep.subr.bf16.mxu0 0
    %6092 = vmatpush2.bf16.msra.mxu0 0
    %6093 = vmatprep.subr.bf16.mxu0 0
    %6094 = vmatpush2.bf16.msra.mxu0 0
    %6095 = vmatprep.subr.bf16.mxu0 0
    %6096 = vmatpush2.bf16.msra.mxu0 0
    %6097 = vmatprep.subr.bf16.mxu0 0
    %6098 = vmatpush2.bf16.msra.mxu0 0
    %6099 = vmatprep.subr.bf16.mxu0 0
    %6100 = vmatpush2.bf16.msra.mxu0 0
    %6101 = vmatprep.subr.bf16.mxu0 0
    %6102 = vmatpush2.bf16.msra.mxu0 0
    %6103 = vmatprep.mubr.bf16.mxu0 0
    %6104 = vmatmul.mubr.bf16.gmra.mxu0 %v6069
    %v6105 = vpop.f32.mrf.mxu0
    %v6106 = vadd.f32 %v5671, %v6105
    %v6107 = vpop.f32.mrf.mxu0
    %v6108 = vadd.f32 %v5675, %v6107
    %v6109 = vpop.f32.mrf.mxu0
    %v6110 = vadd.f32 %v5671, %v6109
    %v6111 = vpop.f32.mrf.mxu0
    %v6112 = vadd.f32 %v5675, %v6111
    %6113 = vdwg.mxu0
    %6114 = vmatprep.subr.bf16.mxu0 0
    %6115 = vmatpush1.bf16.msra.mxu0 0
    %6116 = vmatprep.subr.bf16.mxu0 0
    %6117 = vmatpush1.bf16.msra.mxu0 0
    %6118 = vmatprep.subr.bf16.mxu0 0
    %6119 = vmatpush1.bf16.msra.mxu0 0
    %6120 = vmatprep.subr.bf16.mxu0 0
    %6121 = vmatpush1.bf16.msra.mxu0 0
    %6122 = vmatprep.subr.bf16.mxu0 %v5991
    %6123 = vmatpush1.bf16.msra.mxu0 %v5990
    %6124 = vmatprep.subr.bf16.mxu0 %v5975
    %6125 = vmatpush1.bf16.msra.mxu0 %v5974
    %6126 = vmatprep.subr.bf16.mxu0 %v5959
    %6127 = vmatpush1.bf16.msra.mxu0 %v5958
    %6128 = vmatprep.subr.bf16.mxu0 %v5943
    %6129 = vmatpush1.bf16.msra.mxu0 %v5942
    %6130 = vmatprep.subr.bf16.mxu0 0
    %6131 = vmatpush2.bf16.msra.mxu0 0
    %6132 = vmatprep.subr.bf16.mxu0 0
    %6133 = vmatpush2.bf16.msra.mxu0 0
    %6134 = vmatprep.subr.bf16.mxu0 0
    %6135 = vmatpush2.bf16.msra.mxu0 0
    %6136 = vmatprep.subr.bf16.mxu0 0
    %6137 = vmatpush2.bf16.msra.mxu0 0
    %6138 = vmatprep.subr.bf16.mxu0 0
    %6139 = vmatpush2.bf16.msra.mxu0 0
    %6140 = vmatprep.subr.bf16.mxu0 0
    %6141 = vmatpush2.bf16.msra.mxu0 0
    %6142 = vmatprep.subr.bf16.mxu0 0
    %6143 = vmatpush2.bf16.msra.mxu0 0
    %6144 = vmatprep.subr.bf16.mxu0 0
    %6145 = vmatpush2.bf16.msra.mxu0 0
    %6146 = vmatprep.mubr.bf16.mxu0 0
    %6147 = vmatmul.mubr.bf16.gmra.mxu0 %v6069
    %v6148 = vpop.f32.mrf.mxu0
    %v6149 = vadd.f32 %v5679, %v6148
    %v6150 = vpop.f32.mrf.mxu0
    %v6151 = vadd.f32 %v5683, %v6150
    %v6152 = vpop.f32.mrf.mxu0
    %v6153 = vadd.f32 %v5679, %v6152
    %v6154 = vpop.f32.mrf.mxu0
    %v6155 = vadd.f32 %v5683, %v6154
    %6156 = vdwg.mxu0
    %6157 = vmatprep.subr.bf16.mxu0 0
    %6158 = vmatpush1.bf16.msra.mxu0 0
    %6159 = vmatprep.subr.bf16.mxu0 0
    %6160 = vmatpush1.bf16.msra.mxu0 0
    %6161 = vmatprep.subr.bf16.mxu0 0
    %6162 = vmatpush1.bf16.msra.mxu0 0
    %6163 = vmatprep.subr.bf16.mxu0 0
    %6164 = vmatpush1.bf16.msra.mxu0 0
    %6165 = vmatprep.subr.bf16.mxu0 %v5993
    %6166 = vmatpush1.bf16.msra.mxu0 %v5992
    %6167 = vmatprep.subr.bf16.mxu0 %v5977
    %6168 = vmatpush1.bf16.msra.mxu0 %v5976
    %6169 = vmatprep.subr.bf16.mxu0 %v5961
    %6170 = vmatpush1.bf16.msra.mxu0 %v5960
    %6171 = vmatprep.subr.bf16.mxu0 %v5945
    %6172 = vmatpush1.bf16.msra.mxu0 %v5944
    %6173 = vmatprep.subr.bf16.mxu0 0
    %6174 = vmatpush2.bf16.msra.mxu0 0
    %6175 = vmatprep.subr.bf16.mxu0 0
    %6176 = vmatpush2.bf16.msra.mxu0 0
    %6177 = vmatprep.subr.bf16.mxu0 0
    %6178 = vmatpush2.bf16.msra.mxu0 0
    %6179 = vmatprep.subr.bf16.mxu0 0
    %6180 = vmatpush2.bf16.msra.mxu0 0
    %6181 = vmatprep.subr.bf16.mxu0 0
    %6182 = vmatpush2.bf16.msra.mxu0 0
    %6183 = vmatprep.subr.bf16.mxu0 0
    %6184 = vmatpush2.bf16.msra.mxu0 0
    %6185 = vmatprep.subr.bf16.mxu0 0
    %6186 = vmatpush2.bf16.msra.mxu0 0
    %6187 = vmatprep.subr.bf16.mxu0 0
    %6188 = vmatpush2.bf16.msra.mxu0 0
    %6189 = vmatprep.mubr.bf16.mxu0 0
    %6190 = vmatmul.mubr.bf16.gmra.mxu0 %v6069
    %v6191 = vpop.f32.mrf.mxu0
    %v6192 = vadd.f32 %v5687, %v6191
    %v6193 = vpop.f32.mrf.mxu0
    %v6194 = vadd.f32 %v5691, %v6193
    %v6195 = vpop.f32.mrf.mxu0
    %v6196 = vadd.f32 %v5687, %v6195
    %v6197 = vpop.f32.mrf.mxu0
    %v6198 = vadd.f32 %v5691, %v6197
    %6199 = vdwg.mxu0
    %6200 = vmatprep.subr.bf16.mxu0 0
    %6201 = vmatpush1.bf16.msra.mxu0 0
    %6202 = vmatprep.subr.bf16.mxu0 0
    %6203 = vmatpush1.bf16.msra.mxu0 0
    %6204 = vmatprep.subr.bf16.mxu0 0
    %6205 = vmatpush1.bf16.msra.mxu0 0
    %6206 = vmatprep.subr.bf16.mxu0 0
    %6207 = vmatpush1.bf16.msra.mxu0 0
    %6208 = vmatprep.subr.bf16.mxu0 %v5995
    %6209 = vmatpush1.bf16.msra.mxu0 %v5994
    %6210 = vmatprep.subr.bf16.mxu0 %v5979
    %6211 = vmatpush1.bf16.msra.mxu0 %v5978
    %6212 = vmatprep.subr.bf16.mxu0 %v5963
    %6213 = vmatpush1.bf16.msra.mxu0 %v5962
    %6214 = vmatprep.subr.bf16.mxu0 %v5947
    %6215 = vmatpush1.bf16.msra.mxu0 %v5946
    %6216 = vmatprep.subr.bf16.mxu0 0
    %6217 = vmatpush2.bf16.msra.mxu0 0
    %6218 = vmatprep.subr.bf16.mxu0 0
    %6219 = vmatpush2.bf16.msra.mxu0 0
    %6220 = vmatprep.subr.bf16.mxu0 0
    %6221 = vmatpush2.bf16.msra.mxu0 0
    %6222 = vmatprep.subr.bf16.mxu0 0
    %6223 = vmatpush2.bf16.msra.mxu0 0
    %6224 = vmatprep.subr.bf16.mxu0 0
    %6225 = vmatpush2.bf16.msra.mxu0 0
    %6226 = vmatprep.subr.bf16.mxu0 0
    %6227 = vmatpush2.bf16.msra.mxu0 0
    %6228 = vmatprep.subr.bf16.mxu0 0
    %6229 = vmatpush2.bf16.msra.mxu0 0
    %6230 = vmatprep.subr.bf16.mxu0 0
    %6231 = vmatpush2.bf16.msra.mxu0 0
    %6232 = vmatprep.mubr.bf16.mxu0 0
    %6233 = vmatmul.mubr.bf16.gmra.mxu0 %v6069
    %v6234 = vpop.f32.mrf.mxu0
    %v6235 = vadd.f32 %v5695, %v6234
    %v6236 = vpop.f32.mrf.mxu0
    %v6237 = vadd.f32 %v5699, %v6236
    %v6238 = vpop.f32.mrf.mxu0
    %v6239 = vadd.f32 %v5695, %v6238
    %v6240 = vpop.f32.mrf.mxu0
    %v6241 = vadd.f32 %v5699, %v6240
    %6242 = vdwg.mxu0
    %6243 = vmatprep.subr.bf16.mxu0 0
    %6244 = vmatpush1.bf16.msra.mxu0 0
    %6245 = vmatprep.subr.bf16.mxu0 0
    %6246 = vmatpush1.bf16.msra.mxu0 0
    %6247 = vmatprep.subr.bf16.mxu0 0
    %6248 = vmatpush1.bf16.msra.mxu0 0
    %6249 = vmatprep.subr.bf16.mxu0 0
    %6250 = vmatpush1.bf16.msra.mxu0 0
    %6251 = vmatprep.subr.bf16.mxu0 %v5997
    %6252 = vmatpush1.bf16.msra.mxu0 %v5996
    %6253 = vmatprep.subr.bf16.mxu0 %v5981
    %6254 = vmatpush1.bf16.msra.mxu0 %v5980
    %6255 = vmatprep.subr.bf16.mxu0 %v5965
    %6256 = vmatpush1.bf16.msra.mxu0 %v5964
    %6257 = vmatprep.subr.bf16.mxu0 %v5949
    %6258 = vmatpush1.bf16.msra.mxu0 %v5948
    %6259 = vmatprep.subr.bf16.mxu0 0
    %6260 = vmatpush2.bf16.msra.mxu0 0
    %6261 = vmatprep.subr.bf16.mxu0 0
    %6262 = vmatpush2.bf16.msra.mxu0 0
    %6263 = vmatprep.subr.bf16.mxu0 0
    %6264 = vmatpush2.bf16.msra.mxu0 0
    %6265 = vmatprep.subr.bf16.mxu0 0
    %6266 = vmatpush2.bf16.msra.mxu0 0
    %6267 = vmatprep.subr.bf16.mxu0 0
    %6268 = vmatpush2.bf16.msra.mxu0 0
    %6269 = vmatprep.subr.bf16.mxu0 0
    %6270 = vmatpush2.bf16.msra.mxu0 0
    %6271 = vmatprep.subr.bf16.mxu0 0
    %6272 = vmatpush2.bf16.msra.mxu0 0
    %6273 = vmatprep.subr.bf16.mxu0 0
    %6274 = vmatpush2.bf16.msra.mxu0 0
    %6275 = vmatprep.mubr.bf16.mxu0 0
    %6276 = vmatmul.mubr.bf16.gmra.mxu0 %v6069
    %v6277 = vpop.f32.mrf.mxu0
    %v6278 = vadd.f32 %v5703, %v6277
    %v6279 = vpop.f32.mrf.mxu0
    %v6280 = vadd.f32 %v5707, %v6279
    %v6281 = vpop.f32.mrf.mxu0
    %v6282 = vadd.f32 %v5703, %v6281
    %v6283 = vpop.f32.mrf.mxu0
    %v6284 = vadd.f32 %v5707, %v6283
    %6285 = vdwg.mxu0
    %6286 = vmatprep.subr.bf16.mxu0 0
    %6287 = vmatpush1.bf16.msra.mxu0 0
    %6288 = vmatprep.subr.bf16.mxu0 0
    %6289 = vmatpush1.bf16.msra.mxu0 0
    %6290 = vmatprep.subr.bf16.mxu0 0
    %6291 = vmatpush1.bf16.msra.mxu0 0
    %6292 = vmatprep.subr.bf16.mxu0 0
    %6293 = vmatpush1.bf16.msra.mxu0 0
    %6294 = vmatprep.subr.bf16.mxu0 %v5999
    %6295 = vmatpush1.bf16.msra.mxu0 %v5998
    %6296 = vmatprep.subr.bf16.mxu0 %v5983
    %6297 = vmatpush1.bf16.msra.mxu0 %v5982
    %6298 = vmatprep.subr.bf16.mxu0 %v5967
    %6299 = vmatpush1.bf16.msra.mxu0 %v5966
    %6300 = vmatprep.subr.bf16.mxu0 %v5951
    %6301 = vmatpush1.bf16.msra.mxu0 %v5950
    %6302 = vmatprep.subr.bf16.mxu0 0
    %6303 = vmatpush2.bf16.msra.mxu0 0
    %6304 = vmatprep.subr.bf16.mxu0 0
    %6305 = vmatpush2.bf16.msra.mxu0 0
    %6306 = vmatprep.subr.bf16.mxu0 0
    %6307 = vmatpush2.bf16.msra.mxu0 0
    %6308 = vmatprep.subr.bf16.mxu0 0
    %6309 = vmatpush2.bf16.msra.mxu0 0
    %6310 = vmatprep.subr.bf16.mxu0 0
    %6311 = vmatpush2.bf16.msra.mxu0 0
    %6312 = vmatprep.subr.bf16.mxu0 0
    %6313 = vmatpush2.bf16.msra.mxu0 0
    %6314 = vmatprep.subr.bf16.mxu0 0
    %6315 = vmatpush2.bf16.msra.mxu0 0
    %6316 = vmatprep.subr.bf16.mxu0 0
    %6317 = vmatpush2.bf16.msra.mxu0 0
    %6318 = vmatprep.mubr.bf16.mxu0 0
    %6319 = vmatmul.mubr.bf16.gmra.mxu0 %v6069
    %v6320 = vpop.f32.mrf.mxu0
    %v6321 = vadd.f32 %v5711, %v6320
    %v6322 = vpop.f32.mrf.mxu0
    %v6323 = vadd.f32 %v5715, %v6322
    %v6324 = vpop.f32.mrf.mxu0
    %v6325 = vadd.f32 %v5711, %v6324
    %v6326 = vpop.f32.mrf.mxu0
    %v6327 = vadd.f32 %v5715, %v6326
    %6328 = vdwg.mxu0
    %6329 = vmatprep.subr.bf16.mxu0 0
    %6330 = vmatpush1.bf16.msra.mxu0 0
    %6331 = vmatprep.subr.bf16.mxu0 0
    %6332 = vmatpush1.bf16.msra.mxu0 0
    %6333 = vmatprep.subr.bf16.mxu0 0
    %6334 = vmatpush1.bf16.msra.mxu0 0
    %6335 = vmatprep.subr.bf16.mxu0 0
    %6336 = vmatpush1.bf16.msra.mxu0 0
    %6337 = vmatprep.subr.bf16.mxu0 %v6001
    %6338 = vmatpush1.bf16.msra.mxu0 %v6000
    %6339 = vmatprep.subr.bf16.mxu0 %v5985
    %6340 = vmatpush1.bf16.msra.mxu0 %v5984
    %6341 = vmatprep.subr.bf16.mxu0 %v5969
    %6342 = vmatpush1.bf16.msra.mxu0 %v5968
    %6343 = vmatprep.subr.bf16.mxu0 %v5953
    %6344 = vmatpush1.bf16.msra.mxu0 %v5952
    %6345 = vmatprep.subr.bf16.mxu0 0
    %6346 = vmatpush2.bf16.msra.mxu0 0
    %6347 = vmatprep.subr.bf16.mxu0 0
    %6348 = vmatpush2.bf16.msra.mxu0 0
    %6349 = vmatprep.subr.bf16.mxu0 0
    %6350 = vmatpush2.bf16.msra.mxu0 0
    %6351 = vmatprep.subr.bf16.mxu0 0
    %6352 = vmatpush2.bf16.msra.mxu0 0
    %6353 = vmatprep.subr.bf16.mxu0 0
    %6354 = vmatpush2.bf16.msra.mxu0 0
    %6355 = vmatprep.subr.bf16.mxu0 0
    %6356 = vmatpush2.bf16.msra.mxu0 0
    %6357 = vmatprep.subr.bf16.mxu0 0
    %6358 = vmatpush2.bf16.msra.mxu0 0
    %6359 = vmatprep.subr.bf16.mxu0 0
    %6360 = vmatpush2.bf16.msra.mxu0 0
    %6361 = vmatprep.mubr.bf16.mxu0 0
    %6362 = vmatmul.mubr.bf16.gmra.mxu0 %v6069
    %v6363 = vpop.f32.mrf.mxu0
    %v6364 = vadd.f32 %v5719, %v6363
    %v6365 = vpop.f32.mrf.mxu0
    %v6366 = vadd.f32 %v5723, %v6365
    %v6367 = vpop.f32.mrf.mxu0
    %v6368 = vadd.f32 %v5719, %v6367
    %v6369 = vpop.f32.mrf.mxu0
    %v6370 = vadd.f32 %v5723, %v6369
    %6371 = vdwg.mxu0
    %6372 = vmatprep.subr.bf16.mxu0 0
    %6373 = vmatpush1.bf16.msra.mxu0 0
    %6374 = vmatprep.subr.bf16.mxu0 0
    %6375 = vmatpush1.bf16.msra.mxu0 0
    %6376 = vmatprep.subr.bf16.mxu0 0
    %6377 = vmatpush1.bf16.msra.mxu0 0
    %6378 = vmatprep.subr.bf16.mxu0 0
    %6379 = vmatpush1.bf16.msra.mxu0 0
    %6380 = vmatprep.subr.bf16.mxu0 %v6003
    %6381 = vmatpush1.bf16.msra.mxu0 %v6002
    %6382 = vmatprep.subr.bf16.mxu0 %v5987
    %6383 = vmatpush1.bf16.msra.mxu0 %v5986
    %6384 = vmatprep.subr.bf16.mxu0 %v5971
    %6385 = vmatpush1.bf16.msra.mxu0 %v5970
    %6386 = vmatprep.subr.bf16.mxu0 %v5955
    %6387 = vmatpush1.bf16.msra.mxu0 %v5954
    %6388 = vmatprep.subr.bf16.mxu0 0
    %6389 = vmatpush2.bf16.msra.mxu0 0
    %6390 = vmatprep.subr.bf16.mxu0 0
    %6391 = vmatpush2.bf16.msra.mxu0 0
    %6392 = vmatprep.subr.bf16.mxu0 0
    %6393 = vmatpush2.bf16.msra.mxu0 0
    %6394 = vmatprep.subr.bf16.mxu0 0
    %6395 = vmatpush2.bf16.msra.mxu0 0
    %6396 = vmatprep.subr.bf16.mxu0 0
    %6397 = vmatpush2.bf16.msra.mxu0 0
    %6398 = vmatprep.subr.bf16.mxu0 0
    %6399 = vmatpush2.bf16.msra.mxu0 0
    %6400 = vmatprep.subr.bf16.mxu0 0
    %6401 = vmatpush2.bf16.msra.mxu0 0
    %6402 = vmatprep.subr.bf16.mxu0 0
    %6403 = vmatpush2.bf16.msra.mxu0 0
    %6404 = vmatprep.mubr.bf16.mxu0 0
    %6405 = vmatmul.mubr.bf16.gmra.mxu0 %v6069
    %v6406 = vpop.f32.mrf.mxu0
    %v6407 = vadd.f32 %v5727, %v6406
    %v6408 = vpop.f32.mrf.mxu0
    %v6409 = vadd.f32 %v5731, %v6408
    %v6410 = vpop.f32.mrf.mxu0
    %v6411 = vadd.f32 %v5727, %v6410
    %v6412 = vpop.f32.mrf.mxu0
    %v6413 = vadd.f32 %v5731, %v6412
    %6414 = vdwg.mxu0
    %v6415 = vmax.f32 %v6106, 0.0
    %v6416 = vmax.f32 %v6108, 0.0
    %v6417 = vmax.f32 %v6149, 0.0
    %v6418 = vmax.f32 %v6151, 0.0
    %v6419 = vmax.f32 %v6192, 0.0
    %v6420 = vmax.f32 %v6194, 0.0
    %v6421 = vmax.f32 %v6235, 0.0
    %v6422 = vmax.f32 %v6237, 0.0
    %v6423 = vmax.f32 %v6278, 0.0
    %v6424 = vmax.f32 %v6280, 0.0
    %v6425 = vmax.f32 %v6321, 0.0
    %v6426 = vmax.f32 %v6323, 0.0
    %v6427 = vmax.f32 %v6364, 0.0
    %v6428 = vmax.f32 %v6366, 0.0
    %v6429 = vmax.f32 %v6407, 0.0
    %v6430 = vmax.f32 %v6409, 0.0
    %v6431 = vmax.f32 %v6110, 0.0
    %v6432 = vmax.f32 %v6112, 0.0
    %v6433 = vmax.f32 %v6153, 0.0
    %v6434 = vmax.f32 %v6155, 0.0
    %v6435 = vmax.f32 %v6196, 0.0
    %v6436 = vmax.f32 %v6198, 0.0
    %v6437 = vmax.f32 %v6239, 0.0
    %v6438 = vmax.f32 %v6241, 0.0
    %v6439 = vmax.f32 %v6282, 0.0
    %v6440 = vmax.f32 %v6284, 0.0
    %v6441 = vmax.f32 %v6325, 0.0
    %v6442 = vmax.f32 %v6327, 0.0
    %v6443 = vmax.f32 %v6368, 0.0
    %v6444 = vmax.f32 %v6370, 0.0
    %v6445 = vmax.f32 %v6411, 0.0
    %v6446 = vmax.f32 %v6413, 0.0
    %v6447 = vpack.c.bf16 %v6431, %v6415
    %v6448 = vpack.c.bf16 %v6432, %v6416
    %v6449 = vpack.c.bf16 %v6433, %v6417
    %v6450 = vpack.c.bf16 %v6434, %v6418
    %v6451 = vpack.c.bf16 %v6435, %v6419
    %v6452 = vpack.c.bf16 %v6436, %v6420
    %v6453 = vpack.c.bf16 %v6437, %v6421
    %v6454 = vpack.c.bf16 %v6438, %v6422
    %v6455 = vpack.c.bf16 %v6439, %v6423
    %v6456 = vpack.c.bf16 %v6440, %v6424
    %v6457 = vpack.c.bf16 %v6441, %v6425
    %v6458 = vpack.c.bf16 %v6442, %v6426
    %v6459 = vpack.c.bf16 %v6443, %v6427
    %v6460 = vpack.c.bf16 %v6444, %v6428
    %v6461 = vpack.c.bf16 %v6445, %v6429
    %v6462 = vpack.c.bf16 %v6446, %v6430
    %s6463 = scalar_lea.vmem %s6, 1024
    %v6464 = vld [vmem:[%s6463] sm:$0xf]
    %v6465 = vld [vmem:[%s6463 + $0x4] sm:$0xf]
    %v6466 = vld [vmem:[%s6463 + $0x8] sm:$0xf]
    %v6467 = vld [vmem:[%s6463 + $0xc] sm:$0xf]
    %v6468 = vld [vmem:[%s6463 + $0x10] sm:$0xf]
    %v6469 = vld [vmem:[%s6463 + $0x14] sm:$0xf]
    %v6470 = vld [vmem:[%s6463 + $0x18] sm:$0xf]
    %v6471 = vld [vmem:[%s6463 + $0x1c] sm:$0xf]
    %v6472 = vld [vmem:[%s6463 + $0x20] sm:$0xf]
    %v6473 = vld [vmem:[%s6463 + $0x24] sm:$0xf]
    %v6474 = vld [vmem:[%s6463 + $0x28] sm:$0xf]
    %v6475 = vld [vmem:[%s6463 + $0x2c] sm:$0xf]
    %v6476 = vld [vmem:[%s6463 + $0x30] sm:$0xf]
    %v6477 = vld [vmem:[%s6463 + $0x34] sm:$0xf]
    %v6478 = vld [vmem:[%s6463 + $0x38] sm:$0xf]
    %v6479 = vld [vmem:[%s6463 + $0x3c] sm:$0xf]
    %v6480 = vld [vmem:[%s6463 + $0x40] sm:$0xf]
    %v6481 = vld [vmem:[%s6463 + $0x44] sm:$0xf]
    %v6482 = vld [vmem:[%s6463 + $0x48] sm:$0xf]
    %v6483 = vld [vmem:[%s6463 + $0x4c] sm:$0xf]
    %v6484 = vld [vmem:[%s6463 + $0x50] sm:$0xf]
    %v6485 = vld [vmem:[%s6463 + $0x54] sm:$0xf]
    %v6486 = vld [vmem:[%s6463 + $0x58] sm:$0xf]
    %v6487 = vld [vmem:[%s6463 + $0x5c] sm:$0xf]
    %v6488 = vld [vmem:[%s6463 + $0x60] sm:$0xf]
    %v6489 = vld [vmem:[%s6463 + $0x64] sm:$0xf]
    %v6490 = vld [vmem:[%s6463 + $0x68] sm:$0xf]
    %v6491 = vld [vmem:[%s6463 + $0x6c] sm:$0xf]
    %v6492 = vld [vmem:[%s6463 + $0x70] sm:$0xf]
    %v6493 = vld [vmem:[%s6463 + $0x74] sm:$0xf]
    %v6494 = vld [vmem:[%s6463 + $0x78] sm:$0xf]
    %v6495 = vld [vmem:[%s6463 + $0x7c] sm:$0xf]
    %v6496 = vld [vmem:[%s6463 + $0x80] sm:$0xf]
    %v6497 = vld [vmem:[%s6463 + $0x84] sm:$0xf]
    %v6498 = vld [vmem:[%s6463 + $0x88] sm:$0xf]
    %v6499 = vld [vmem:[%s6463 + $0x8c] sm:$0xf]
    %v6500 = vld [vmem:[%s6463 + $0x90] sm:$0xf]
    %v6501 = vld [vmem:[%s6463 + $0x94] sm:$0xf]
    %v6502 = vld [vmem:[%s6463 + $0x98] sm:$0xf]
    %v6503 = vld [vmem:[%s6463 + $0x9c] sm:$0xf]
    %v6504 = vld [vmem:[%s6463 + $0xa0] sm:$0xf]
    %v6505 = vld [vmem:[%s6463 + $0xa4] sm:$0xf]
    %v6506 = vld [vmem:[%s6463 + $0xa8] sm:$0xf]
    %v6507 = vld [vmem:[%s6463 + $0xac] sm:$0xf]
    %v6508 = vld [vmem:[%s6463 + $0xb0] sm:$0xf]
    %v6509 = vld [vmem:[%s6463 + $0xb4] sm:$0xf]
    %v6510 = vld [vmem:[%s6463 + $0xb8] sm:$0xf]
    %v6511 = vld [vmem:[%s6463 + $0xbc] sm:$0xf]
    %v6512 = vld [vmem:[%s6463 + $0xc0] sm:$0xf]
    %v6513 = vld [vmem:[%s6463 + $0xc4] sm:$0xf]
    %v6514 = vld [vmem:[%s6463 + $0xc8] sm:$0xf]
    %v6515 = vld [vmem:[%s6463 + $0xcc] sm:$0xf]
    %v6516 = vld [vmem:[%s6463 + $0xd0] sm:$0xf]
    %v6517 = vld [vmem:[%s6463 + $0xd4] sm:$0xf]
    %v6518 = vld [vmem:[%s6463 + $0xd8] sm:$0xf]
    %v6519 = vld [vmem:[%s6463 + $0xdc] sm:$0xf]
    %v6520 = vld [vmem:[%s6463 + $0xe0] sm:$0xf]
    %v6521 = vld [vmem:[%s6463 + $0xe4] sm:$0xf]
    %v6522 = vld [vmem:[%s6463 + $0xe8] sm:$0xf]
    %v6523 = vld [vmem:[%s6463 + $0xec] sm:$0xf]
    %v6524 = vld [vmem:[%s6463 + $0xf0] sm:$0xf]
    %v6525 = vld [vmem:[%s6463 + $0xf4] sm:$0xf]
    %v6526 = vld [vmem:[%s6463 + $0xf8] sm:$0xf]
    %v6527 = vld [vmem:[%s6463 + $0xfc] sm:$0xf]
    %v6528 = vld [vmem:[%s6463 + $0x100] sm:$0xf]
    %v6529 = vld [vmem:[%s6463 + $0x104] sm:$0xf]
    %v6530 = vld [vmem:[%s6463 + $0x108] sm:$0xf]
    %v6531 = vld [vmem:[%s6463 + $0x10c] sm:$0xf]
    %v6532 = vld [vmem:[%s6463 + $0x110] sm:$0xf]
    %v6533 = vld [vmem:[%s6463 + $0x114] sm:$0xf]
    %v6534 = vld [vmem:[%s6463 + $0x118] sm:$0xf]
    %v6535 = vld [vmem:[%s6463 + $0x11c] sm:$0xf]
    %v6536 = vld [vmem:[%s6463 + $0x120] sm:$0xf]
    %v6537 = vld [vmem:[%s6463 + $0x124] sm:$0xf]
    %v6538 = vld [vmem:[%s6463 + $0x128] sm:$0xf]
    %v6539 = vld [vmem:[%s6463 + $0x12c] sm:$0xf]
    %v6540 = vld [vmem:[%s6463 + $0x130] sm:$0xf]
    %v6541 = vld [vmem:[%s6463 + $0x134] sm:$0xf]
    %v6542 = vld [vmem:[%s6463 + $0x138] sm:$0xf]
    %v6543 = vld [vmem:[%s6463 + $0x13c] sm:$0xf]
    %v6544 = vld [vmem:[%s6463 + $0x140] sm:$0xf]
    %v6545 = vld [vmem:[%s6463 + $0x144] sm:$0xf]
    %v6546 = vld [vmem:[%s6463 + $0x148] sm:$0xf]
    %v6547 = vld [vmem:[%s6463 + $0x14c] sm:$0xf]
    %v6548 = vld [vmem:[%s6463 + $0x150] sm:$0xf]
    %v6549 = vld [vmem:[%s6463 + $0x154] sm:$0xf]
    %v6550 = vld [vmem:[%s6463 + $0x158] sm:$0xf]
    %v6551 = vld [vmem:[%s6463 + $0x15c] sm:$0xf]
    %v6552 = vld [vmem:[%s6463 + $0x160] sm:$0xf]
    %v6553 = vld [vmem:[%s6463 + $0x164] sm:$0xf]
    %v6554 = vld [vmem:[%s6463 + $0x168] sm:$0xf]
    %v6555 = vld [vmem:[%s6463 + $0x16c] sm:$0xf]
    %v6556 = vld [vmem:[%s6463 + $0x170] sm:$0xf]
    %v6557 = vld [vmem:[%s6463 + $0x174] sm:$0xf]
    %v6558 = vld [vmem:[%s6463 + $0x178] sm:$0xf]
    %v6559 = vld [vmem:[%s6463 + $0x17c] sm:$0xf]
    %v6560 = vld [vmem:[%s6463 + $0x180] sm:$0xf]
    %v6561 = vld [vmem:[%s6463 + $0x184] sm:$0xf]
    %v6562 = vld [vmem:[%s6463 + $0x188] sm:$0xf]
    %v6563 = vld [vmem:[%s6463 + $0x18c] sm:$0xf]
    %v6564 = vld [vmem:[%s6463 + $0x190] sm:$0xf]
    %v6565 = vld [vmem:[%s6463 + $0x194] sm:$0xf]
    %v6566 = vld [vmem:[%s6463 + $0x198] sm:$0xf]
    %v6567 = vld [vmem:[%s6463 + $0x19c] sm:$0xf]
    %v6568 = vld [vmem:[%s6463 + $0x1a0] sm:$0xf]
    %v6569 = vld [vmem:[%s6463 + $0x1a4] sm:$0xf]
    %v6570 = vld [vmem:[%s6463 + $0x1a8] sm:$0xf]
    %v6571 = vld [vmem:[%s6463 + $0x1ac] sm:$0xf]
    %v6572 = vld [vmem:[%s6463 + $0x1b0] sm:$0xf]
    %v6573 = vld [vmem:[%s6463 + $0x1b4] sm:$0xf]
    %v6574 = vld [vmem:[%s6463 + $0x1b8] sm:$0xf]
    %v6575 = vld [vmem:[%s6463 + $0x1bc] sm:$0xf]
    %v6576 = vld [vmem:[%s6463 + $0x1c0] sm:$0xf]
    %v6577 = vld [vmem:[%s6463 + $0x1c4] sm:$0xf]
    %v6578 = vld [vmem:[%s6463 + $0x1c8] sm:$0xf]
    %v6579 = vld [vmem:[%s6463 + $0x1cc] sm:$0xf]
    %v6580 = vld [vmem:[%s6463 + $0x1d0] sm:$0xf]
    %v6581 = vld [vmem:[%s6463 + $0x1d4] sm:$0xf]
    %v6582 = vld [vmem:[%s6463 + $0x1d8] sm:$0xf]
    %v6583 = vld [vmem:[%s6463 + $0x1dc] sm:$0xf]
    %v6584 = vld [vmem:[%s6463 + $0x1e0] sm:$0xf]
    %v6585 = vld [vmem:[%s6463 + $0x1e4] sm:$0xf]
    %v6586 = vld [vmem:[%s6463 + $0x1e8] sm:$0xf]
    %v6587 = vld [vmem:[%s6463 + $0x1ec] sm:$0xf]
    %v6588 = vld [vmem:[%s6463 + $0x1f0] sm:$0xf]
    %v6589 = vld [vmem:[%s6463 + $0x1f4] sm:$0xf]
    %v6590 = vld [vmem:[%s6463 + $0x1f8] sm:$0xf]
    %v6591 = vld [vmem:[%s6463 + $0x1fc] sm:$0xf]
    %v6592 = vld [vmem:[%s6463 + $0x200] sm:$0xf]
    %v6593 = vld [vmem:[%s6463 + $0x204] sm:$0xf]
    %v6594 = vld [vmem:[%s6463 + $0x208] sm:$0xf]
    %v6595 = vld [vmem:[%s6463 + $0x20c] sm:$0xf]
    %v6596 = vld [vmem:[%s6463 + $0x210] sm:$0xf]
    %v6597 = vld [vmem:[%s6463 + $0x214] sm:$0xf]
    %v6598 = vld [vmem:[%s6463 + $0x218] sm:$0xf]
    %v6599 = vld [vmem:[%s6463 + $0x21c] sm:$0xf]
    %v6600 = vld [vmem:[%s6463 + $0x220] sm:$0xf]
    %v6601 = vld [vmem:[%s6463 + $0x224] sm:$0xf]
    %v6602 = vld [vmem:[%s6463 + $0x228] sm:$0xf]
    %v6603 = vld [vmem:[%s6463 + $0x22c] sm:$0xf]
    %v6604 = vld [vmem:[%s6463 + $0x230] sm:$0xf]
    %v6605 = vld [vmem:[%s6463 + $0x234] sm:$0xf]
    %v6606 = vld [vmem:[%s6463 + $0x238] sm:$0xf]
    %v6607 = vld [vmem:[%s6463 + $0x23c] sm:$0xf]
    %v6608 = vld [vmem:[%s6463 + $0x240] sm:$0xf]
    %v6609 = vld [vmem:[%s6463 + $0x244] sm:$0xf]
    %v6610 = vld [vmem:[%s6463 + $0x248] sm:$0xf]
    %v6611 = vld [vmem:[%s6463 + $0x24c] sm:$0xf]
    %v6612 = vld [vmem:[%s6463 + $0x250] sm:$0xf]
    %v6613 = vld [vmem:[%s6463 + $0x254] sm:$0xf]
    %v6614 = vld [vmem:[%s6463 + $0x258] sm:$0xf]
    %v6615 = vld [vmem:[%s6463 + $0x25c] sm:$0xf]
    %v6616 = vld [vmem:[%s6463 + $0x260] sm:$0xf]
    %v6617 = vld [vmem:[%s6463 + $0x264] sm:$0xf]
    %v6618 = vld [vmem:[%s6463 + $0x268] sm:$0xf]
    %v6619 = vld [vmem:[%s6463 + $0x26c] sm:$0xf]
    %v6620 = vld [vmem:[%s6463 + $0x270] sm:$0xf]
    %v6621 = vld [vmem:[%s6463 + $0x274] sm:$0xf]
    %v6622 = vld [vmem:[%s6463 + $0x278] sm:$0xf]
    %v6623 = vld [vmem:[%s6463 + $0x27c] sm:$0xf]
    %v6624 = vld [vmem:[%s6463 + $0x280] sm:$0xf]
    %v6625 = vld [vmem:[%s6463 + $0x284] sm:$0xf]
    %v6626 = vld [vmem:[%s6463 + $0x288] sm:$0xf]
    %v6627 = vld [vmem:[%s6463 + $0x28c] sm:$0xf]
    %v6628 = vld [vmem:[%s6463 + $0x290] sm:$0xf]
    %v6629 = vld [vmem:[%s6463 + $0x294] sm:$0xf]
    %v6630 = vld [vmem:[%s6463 + $0x298] sm:$0xf]
    %v6631 = vld [vmem:[%s6463 + $0x29c] sm:$0xf]
    %v6632 = vld [vmem:[%s6463 + $0x2a0] sm:$0xf]
    %v6633 = vld [vmem:[%s6463 + $0x2a4] sm:$0xf]
    %v6634 = vld [vmem:[%s6463 + $0x2a8] sm:$0xf]
    %v6635 = vld [vmem:[%s6463 + $0x2ac] sm:$0xf]
    %v6636 = vld [vmem:[%s6463 + $0x2b0] sm:$0xf]
    %v6637 = vld [vmem:[%s6463 + $0x2b4] sm:$0xf]
    %v6638 = vld [vmem:[%s6463 + $0x2b8] sm:$0xf]
    %v6639 = vld [vmem:[%s6463 + $0x2bc] sm:$0xf]
    %v6640 = vld [vmem:[%s6463 + $0x2c0] sm:$0xf]
    %v6641 = vld [vmem:[%s6463 + $0x2c4] sm:$0xf]
    %v6642 = vld [vmem:[%s6463 + $0x2c8] sm:$0xf]
    %v6643 = vld [vmem:[%s6463 + $0x2cc] sm:$0xf]
    %v6644 = vld [vmem:[%s6463 + $0x2d0] sm:$0xf]
    %v6645 = vld [vmem:[%s6463 + $0x2d4] sm:$0xf]
    %v6646 = vld [vmem:[%s6463 + $0x2d8] sm:$0xf]
    %v6647 = vld [vmem:[%s6463 + $0x2dc] sm:$0xf]
    %v6648 = vld [vmem:[%s6463 + $0x2e0] sm:$0xf]
    %v6649 = vld [vmem:[%s6463 + $0x2e4] sm:$0xf]
    %v6650 = vld [vmem:[%s6463 + $0x2e8] sm:$0xf]
    %v6651 = vld [vmem:[%s6463 + $0x2ec] sm:$0xf]
    %v6652 = vld [vmem:[%s6463 + $0x2f0] sm:$0xf]
    %v6653 = vld [vmem:[%s6463 + $0x2f4] sm:$0xf]
    %v6654 = vld [vmem:[%s6463 + $0x2f8] sm:$0xf]
    %v6655 = vld [vmem:[%s6463 + $0x2fc] sm:$0xf]
    %v6656 = vld [vmem:[%s6463 + $0x300] sm:$0xf]
    %v6657 = vld [vmem:[%s6463 + $0x304] sm:$0xf]
    %v6658 = vld [vmem:[%s6463 + $0x308] sm:$0xf]
    %v6659 = vld [vmem:[%s6463 + $0x30c] sm:$0xf]
    %v6660 = vld [vmem:[%s6463 + $0x310] sm:$0xf]
    %v6661 = vld [vmem:[%s6463 + $0x314] sm:$0xf]
    %v6662 = vld [vmem:[%s6463 + $0x318] sm:$0xf]
    %v6663 = vld [vmem:[%s6463 + $0x31c] sm:$0xf]
    %v6664 = vld [vmem:[%s6463 + $0x320] sm:$0xf]
    %v6665 = vld [vmem:[%s6463 + $0x324] sm:$0xf]
    %v6666 = vld [vmem:[%s6463 + $0x328] sm:$0xf]
    %v6667 = vld [vmem:[%s6463 + $0x32c] sm:$0xf]
    %v6668 = vld [vmem:[%s6463 + $0x330] sm:$0xf]
    %v6669 = vld [vmem:[%s6463 + $0x334] sm:$0xf]
    %v6670 = vld [vmem:[%s6463 + $0x338] sm:$0xf]
    %v6671 = vld [vmem:[%s6463 + $0x33c] sm:$0xf]
    %v6672 = vld [vmem:[%s6463 + $0x340] sm:$0xf]
    %v6673 = vld [vmem:[%s6463 + $0x344] sm:$0xf]
    %v6674 = vld [vmem:[%s6463 + $0x348] sm:$0xf]
    %v6675 = vld [vmem:[%s6463 + $0x34c] sm:$0xf]
    %v6676 = vld [vmem:[%s6463 + $0x350] sm:$0xf]
    %v6677 = vld [vmem:[%s6463 + $0x354] sm:$0xf]
    %v6678 = vld [vmem:[%s6463 + $0x358] sm:$0xf]
    %v6679 = vld [vmem:[%s6463 + $0x35c] sm:$0xf]
    %v6680 = vld [vmem:[%s6463 + $0x360] sm:$0xf]
    %v6681 = vld [vmem:[%s6463 + $0x364] sm:$0xf]
    %v6682 = vld [vmem:[%s6463 + $0x368] sm:$0xf]
    %v6683 = vld [vmem:[%s6463 + $0x36c] sm:$0xf]
    %v6684 = vld [vmem:[%s6463 + $0x370] sm:$0xf]
    %v6685 = vld [vmem:[%s6463 + $0x374] sm:$0xf]
    %v6686 = vld [vmem:[%s6463 + $0x378] sm:$0xf]
    %v6687 = vld [vmem:[%s6463 + $0x37c] sm:$0xf]
    %v6688 = vld [vmem:[%s6463 + $0x380] sm:$0xf]
    %v6689 = vld [vmem:[%s6463 + $0x384] sm:$0xf]
    %v6690 = vld [vmem:[%s6463 + $0x388] sm:$0xf]
    %v6691 = vld [vmem:[%s6463 + $0x38c] sm:$0xf]
    %v6692 = vld [vmem:[%s6463 + $0x390] sm:$0xf]
    %v6693 = vld [vmem:[%s6463 + $0x394] sm:$0xf]
    %v6694 = vld [vmem:[%s6463 + $0x398] sm:$0xf]
    %v6695 = vld [vmem:[%s6463 + $0x39c] sm:$0xf]
    %v6696 = vld [vmem:[%s6463 + $0x3a0] sm:$0xf]
    %v6697 = vld [vmem:[%s6463 + $0x3a4] sm:$0xf]
    %v6698 = vld [vmem:[%s6463 + $0x3a8] sm:$0xf]
    %v6699 = vld [vmem:[%s6463 + $0x3ac] sm:$0xf]
    %v6700 = vld [vmem:[%s6463 + $0x3b0] sm:$0xf]
    %v6701 = vld [vmem:[%s6463 + $0x3b4] sm:$0xf]
    %v6702 = vld [vmem:[%s6463 + $0x3b8] sm:$0xf]
    %v6703 = vld [vmem:[%s6463 + $0x3bc] sm:$0xf]
    %v6704 = vld [vmem:[%s6463 + $0x3c0] sm:$0xf]
    %v6705 = vld [vmem:[%s6463 + $0x3c4] sm:$0xf]
    %v6706 = vld [vmem:[%s6463 + $0x3c8] sm:$0xf]
    %v6707 = vld [vmem:[%s6463 + $0x3cc] sm:$0xf]
    %v6708 = vld [vmem:[%s6463 + $0x3d0] sm:$0xf]
    %v6709 = vld [vmem:[%s6463 + $0x3d4] sm:$0xf]
    %v6710 = vld [vmem:[%s6463 + $0x3d8] sm:$0xf]
    %v6711 = vld [vmem:[%s6463 + $0x3dc] sm:$0xf]
    %v6712 = vld [vmem:[%s6463 + $0x3e0] sm:$0xf]
    %v6713 = vld [vmem:[%s6463 + $0x3e4] sm:$0xf]
    %v6714 = vld [vmem:[%s6463 + $0x3e8] sm:$0xf]
    %v6715 = vld [vmem:[%s6463 + $0x3ec] sm:$0xf]
    %v6716 = vld [vmem:[%s6463 + $0x3f0] sm:$0xf]
    %v6717 = vld [vmem:[%s6463 + $0x3f4] sm:$0xf]
    %v6718 = vld [vmem:[%s6463 + $0x3f8] sm:$0xf]
    %v6719 = vld [vmem:[%s6463 + $0x3fc] sm:$0xf]
    %v6720 = vlaneseq
    %v6721 = vshrl.u32 %v6720, 7
    %v6722 = vsub.s32 0, %v6721
    %v6723 = vrot.slane %v3996, %v6722
    %v6980 = vunpack.c.l.b16 %v6464
    %v6981 = vunpack.c.l.b16 %v6465
    %v6982 = vunpack.c.l.b16 %v6466
    %v6983 = vunpack.c.l.b16 %v6467
    %v6984 = vunpack.c.l.b16 %v6468
    %v6985 = vunpack.c.l.b16 %v6469
    %v6986 = vunpack.c.l.b16 %v6470
    %v6987 = vunpack.c.l.b16 %v6471
    %v6988 = vunpack.c.l.b16 %v6472
    %v6989 = vunpack.c.l.b16 %v6473
    %v6990 = vunpack.c.l.b16 %v6474
    %v6991 = vunpack.c.l.b16 %v6475
    %v6992 = vunpack.c.l.b16 %v6476
    %v6993 = vunpack.c.l.b16 %v6477
    %v6994 = vunpack.c.l.b16 %v6478
    %v6995 = vunpack.c.l.b16 %v6479
    %v6996 = vunpack.c.l.b16 %v6480
    %v6997 = vunpack.c.l.b16 %v6481
    %v6998 = vunpack.c.l.b16 %v6482
    %v6999 = vunpack.c.l.b16 %v6483
    %v7000 = vunpack.c.l.b16 %v6484
    %v7001 = vunpack.c.l.b16 %v6485
    %v7002 = vunpack.c.l.b16 %v6486
    %v7003 = vunpack.c.l.b16 %v6487
    %v7004 = vunpack.c.l.b16 %v6488
    %v7005 = vunpack.c.l.b16 %v6489
    %v7006 = vunpack.c.l.b16 %v6490
    %v7007 = vunpack.c.l.b16 %v6491
    %v7008 = vunpack.c.l.b16 %v6492
    %v7009 = vunpack.c.l.b16 %v6493
    %v7010 = vunpack.c.l.b16 %v6494
    %v7011 = vunpack.c.l.b16 %v6495
    %v7012 = vunpack.c.l.b16 %v6496
    %v7013 = vunpack.c.l.b16 %v6497
    %v7014 = vunpack.c.l.b16 %v6498
    %v7015 = vunpack.c.l.b16 %v6499
    %v7016 = vunpack.c.l.b16 %v6500
    %v7017 = vunpack.c.l.b16 %v6501
    %v7018 = vunpack.c.l.b16 %v6502
    %v7019 = vunpack.c.l.b16 %v6503
    %v7020 = vunpack.c.l.b16 %v6504
    %v7021 = vunpack.c.l.b16 %v6505
    %v7022 = vunpack.c.l.b16 %v6506
    %v7023 = vunpack.c.l.b16 %v6507
    %v7024 = vunpack.c.l.b16 %v6508
    %v7025 = vunpack.c.l.b16 %v6509
    %v7026 = vunpack.c.l.b16 %v6510
    %v7027 = vunpack.c.l.b16 %v6511
    %v7028 = vunpack.c.l.b16 %v6512
    %v7029 = vunpack.c.l.b16 %v6513
    %v7030 = vunpack.c.l.b16 %v6514
    %v7031 = vunpack.c.l.b16 %v6515
    %v7032 = vunpack.c.l.b16 %v6516
    %v7033 = vunpack.c.l.b16 %v6517
    %v7034 = vunpack.c.l.b16 %v6518
    %v7035 = vunpack.c.l.b16 %v6519
    %v7036 = vunpack.c.l.b16 %v6520
    %v7037 = vunpack.c.l.b16 %v6521
    %v7038 = vunpack.c.l.b16 %v6522
    %v7039 = vunpack.c.l.b16 %v6523
    %v7040 = vunpack.c.l.b16 %v6524
    %v7041 = vunpack.c.l.b16 %v6525
    %v7042 = vunpack.c.l.b16 %v6526
    %v7043 = vunpack.c.l.b16 %v6527
    %v7044 = vunpack.c.l.b16 %v6528
    %v7045 = vunpack.c.l.b16 %v6529
    %v7046 = vunpack.c.l.b16 %v6530
    %v7047 = vunpack.c.l.b16 %v6531
    %v7048 = vunpack.c.l.b16 %v6532
    %v7049 = vunpack.c.l.b16 %v6533
    %v7050 = vunpack.c.l.b16 %v6534
    %v7051 = vunpack.c.l.b16 %v6535
    %v7052 = vunpack.c.l.b16 %v6536
    %v7053 = vunpack.c.l.b16 %v6537
    %v7054 = vunpack.c.l.b16 %v6538
    %v7055 = vunpack.c.l.b16 %v6539
    %v7056 = vunpack.c.l.b16 %v6540
    %v7057 = vunpack.c.l.b16 %v6541
    %v7058 = vunpack.c.l.b16 %v6542
    %v7059 = vunpack.c.l.b16 %v6543
    %v7060 = vunpack.c.l.b16 %v6544
    %v7061 = vunpack.c.l.b16 %v6545
    %v7062 = vunpack.c.l.b16 %v6546
    %v7063 = vunpack.c.l.b16 %v6547
    %v7064 = vunpack.c.l.b16 %v6548
    %v7065 = vunpack.c.l.b16 %v6549
    %v7066 = vunpack.c.l.b16 %v6550
    %v7067 = vunpack.c.l.b16 %v6551
    %v7068 = vunpack.c.l.b16 %v6552
    %v7069 = vunpack.c.l.b16 %v6553
    %v7070 = vunpack.c.l.b16 %v6554
    %v7071 = vunpack.c.l.b16 %v6555
    %v7072 = vunpack.c.l.b16 %v6556
    %v7073 = vunpack.c.l.b16 %v6557
    %v7074 = vunpack.c.l.b16 %v6558
    %v7075 = vunpack.c.l.b16 %v6559
    %v7076 = vunpack.c.l.b16 %v6560
    %v7077 = vunpack.c.l.b16 %v6561
    %v7078 = vunpack.c.l.b16 %v6562
    %v7079 = vunpack.c.l.b16 %v6563
    %v7080 = vunpack.c.l.b16 %v6564
    %v7081 = vunpack.c.l.b16 %v6565
    %v7082 = vunpack.c.l.b16 %v6566
    %v7083 = vunpack.c.l.b16 %v6567
    %v7084 = vunpack.c.l.b16 %v6568
    %v7085 = vunpack.c.l.b16 %v6569
    %v7086 = vunpack.c.l.b16 %v6570
    %v7087 = vunpack.c.l.b16 %v6571
    %v7088 = vunpack.c.l.b16 %v6572
    %v7089 = vunpack.c.l.b16 %v6573
    %v7090 = vunpack.c.l.b16 %v6574
    %v7091 = vunpack.c.l.b16 %v6575
    %v7092 = vunpack.c.l.b16 %v6576
    %v7093 = vunpack.c.l.b16 %v6577
    %v7094 = vunpack.c.l.b16 %v6578
    %v7095 = vunpack.c.l.b16 %v6579
    %v7096 = vunpack.c.l.b16 %v6580
    %v7097 = vunpack.c.l.b16 %v6581
    %v7098 = vunpack.c.l.b16 %v6582
    %v7099 = vunpack.c.l.b16 %v6583
    %v7100 = vunpack.c.l.b16 %v6584
    %v7101 = vunpack.c.l.b16 %v6585
    %v7102 = vunpack.c.l.b16 %v6586
    %v7103 = vunpack.c.l.b16 %v6587
    %v7104 = vunpack.c.l.b16 %v6588
    %v7105 = vunpack.c.l.b16 %v6589
    %v7106 = vunpack.c.l.b16 %v6590
    %v7107 = vunpack.c.l.b16 %v6591
    %v7108 = vunpack.c.l.b16 %v6592
    %v7109 = vunpack.c.l.b16 %v6593
    %v7110 = vunpack.c.l.b16 %v6594
    %v7111 = vunpack.c.l.b16 %v6595
    %v7112 = vunpack.c.l.b16 %v6596
    %v7113 = vunpack.c.l.b16 %v6597
    %v7114 = vunpack.c.l.b16 %v6598
    %v7115 = vunpack.c.l.b16 %v6599
    %v7116 = vunpack.c.l.b16 %v6600
    %v7117 = vunpack.c.l.b16 %v6601
    %v7118 = vunpack.c.l.b16 %v6602
    %v7119 = vunpack.c.l.b16 %v6603
    %v7120 = vunpack.c.l.b16 %v6604
    %v7121 = vunpack.c.l.b16 %v6605
    %v7122 = vunpack.c.l.b16 %v6606
    %v7123 = vunpack.c.l.b16 %v6607
    %v7124 = vunpack.c.l.b16 %v6608
    %v7125 = vunpack.c.l.b16 %v6609
    %v7126 = vunpack.c.l.b16 %v6610
    %v7127 = vunpack.c.l.b16 %v6611
    %v7128 = vunpack.c.l.b16 %v6612
    %v7129 = vunpack.c.l.b16 %v6613
    %v7130 = vunpack.c.l.b16 %v6614
    %v7131 = vunpack.c.l.b16 %v6615
    %v7132 = vunpack.c.l.b16 %v6616
    %v7133 = vunpack.c.l.b16 %v6617
    %v7134 = vunpack.c.l.b16 %v6618
    %v7135 = vunpack.c.l.b16 %v6619
    %v7136 = vunpack.c.l.b16 %v6620
    %v7137 = vunpack.c.l.b16 %v6621
    %v7138 = vunpack.c.l.b16 %v6622
    %v7139 = vunpack.c.l.b16 %v6623
    %v7140 = vunpack.c.l.b16 %v6624
    %v7141 = vunpack.c.l.b16 %v6625
    %v7142 = vunpack.c.l.b16 %v6626
    %v7143 = vunpack.c.l.b16 %v6627
    %v7144 = vunpack.c.l.b16 %v6628
    %v7145 = vunpack.c.l.b16 %v6629
    %v7146 = vunpack.c.l.b16 %v6630
    %v7147 = vunpack.c.l.b16 %v6631
    %v7148 = vunpack.c.l.b16 %v6632
    %v7149 = vunpack.c.l.b16 %v6633
    %v7150 = vunpack.c.l.b16 %v6634
    %v7151 = vunpack.c.l.b16 %v6635
    %v7152 = vunpack.c.l.b16 %v6636
    %v7153 = vunpack.c.l.b16 %v6637
    %v7154 = vunpack.c.l.b16 %v6638
    %v7155 = vunpack.c.l.b16 %v6639
    %v7156 = vunpack.c.l.b16 %v6640
    %v7157 = vunpack.c.l.b16 %v6641
    %v7158 = vunpack.c.l.b16 %v6642
    %v7159 = vunpack.c.l.b16 %v6643
    %v7160 = vunpack.c.l.b16 %v6644
    %v7161 = vunpack.c.l.b16 %v6645
    %v7162 = vunpack.c.l.b16 %v6646
    %v7163 = vunpack.c.l.b16 %v6647
    %v7164 = vunpack.c.l.b16 %v6648
    %v7165 = vunpack.c.l.b16 %v6649
    %v7166 = vunpack.c.l.b16 %v6650
    %v7167 = vunpack.c.l.b16 %v6651
    %v7168 = vunpack.c.l.b16 %v6652
    %v7169 = vunpack.c.l.b16 %v6653
    %v7170 = vunpack.c.l.b16 %v6654
    %v7171 = vunpack.c.l.b16 %v6655
    %v7172 = vunpack.c.l.b16 %v6656
    %v7173 = vunpack.c.l.b16 %v6657
    %v7174 = vunpack.c.l.b16 %v6658
    %v7175 = vunpack.c.l.b16 %v6659
    %v7176 = vunpack.c.l.b16 %v6660
    %v7177 = vunpack.c.l.b16 %v6661
    %v7178 = vunpack.c.l.b16 %v6662
    %v7179 = vunpack.c.l.b16 %v6663
    %v7180 = vunpack.c.l.b16 %v6664
    %v7181 = vunpack.c.l.b16 %v6665
    %v7182 = vunpack.c.l.b16 %v6666
    %v7183 = vunpack.c.l.b16 %v6667
    %v7184 = vunpack.c.l.b16 %v6668
    %v7185 = vunpack.c.l.b16 %v6669
    %v7186 = vunpack.c.l.b16 %v6670
    %v7187 = vunpack.c.l.b16 %v6671
    %v7188 = vunpack.c.l.b16 %v6672
    %v7189 = vunpack.c.l.b16 %v6673
    %v7190 = vunpack.c.l.b16 %v6674
    %v7191 = vunpack.c.l.b16 %v6675
    %v7192 = vunpack.c.l.b16 %v6676
    %v7193 = vunpack.c.l.b16 %v6677
    %v7194 = vunpack.c.l.b16 %v6678
    %v7195 = vunpack.c.l.b16 %v6679
    %v7196 = vunpack.c.l.b16 %v6680
    %v7197 = vunpack.c.l.b16 %v6681
    %v7198 = vunpack.c.l.b16 %v6682
    %v7199 = vunpack.c.l.b16 %v6683
    %v7200 = vunpack.c.l.b16 %v6684
    %v7201 = vunpack.c.l.b16 %v6685
    %v7202 = vunpack.c.l.b16 %v6686
    %v7203 = vunpack.c.l.b16 %v6687
    %v7204 = vunpack.c.l.b16 %v6688
    %v7205 = vunpack.c.l.b16 %v6689
    %v7206 = vunpack.c.l.b16 %v6690
    %v7207 = vunpack.c.l.b16 %v6691
    %v7208 = vunpack.c.l.b16 %v6692
    %v7209 = vunpack.c.l.b16 %v6693
    %v7210 = vunpack.c.l.b16 %v6694
    %v7211 = vunpack.c.l.b16 %v6695
    %v7212 = vunpack.c.l.b16 %v6696
    %v7213 = vunpack.c.l.b16 %v6697
    %v7214 = vunpack.c.l.b16 %v6698
    %v7215 = vunpack.c.l.b16 %v6699
    %v7216 = vunpack.c.l.b16 %v6700
    %v7217 = vunpack.c.l.b16 %v6701
    %v7218 = vunpack.c.l.b16 %v6702
    %v7219 = vunpack.c.l.b16 %v6703
    %v7220 = vunpack.c.l.b16 %v6704
    %v7221 = vunpack.c.l.b16 %v6705
    %v7222 = vunpack.c.l.b16 %v6706
    %v7223 = vunpack.c.l.b16 %v6707
    %v7224 = vunpack.c.l.b16 %v6708
    %v7225 = vunpack.c.l.b16 %v6709
    %v7226 = vunpack.c.l.b16 %v6710
    %v7227 = vunpack.c.l.b16 %v6711
    %v7228 = vunpack.c.l.b16 %v6712
    %v7229 = vunpack.c.l.b16 %v6713
    %v7230 = vunpack.c.l.b16 %v6714
    %v7231 = vunpack.c.l.b16 %v6715
    %v7232 = vunpack.c.l.b16 %v6716
    %v7233 = vunpack.c.l.b16 %v6717
    %v7234 = vunpack.c.l.b16 %v6718
    %v7235 = vunpack.c.l.b16 %v6719
    %v7236 = vpack.c.b16 %v6981, %v6980
    %v7237 = vpack.c.b16 %v6983, %v6982
    %v7238 = vpack.c.b16 %v6985, %v6984
    %v7239 = vpack.c.b16 %v6987, %v6986
    %v7240 = vpack.c.b16 %v6989, %v6988
    %v7241 = vpack.c.b16 %v6991, %v6990
    %v7242 = vpack.c.b16 %v6993, %v6992
    %v7243 = vpack.c.b16 %v6995, %v6994
    %v7244 = vpack.c.b16 %v6997, %v6996
    %v7245 = vpack.c.b16 %v6999, %v6998
    %v7246 = vpack.c.b16 %v7001, %v7000
    %v7247 = vpack.c.b16 %v7003, %v7002
    %v7248 = vpack.c.b16 %v7005, %v7004
    %v7249 = vpack.c.b16 %v7007, %v7006
    %v7250 = vpack.c.b16 %v7009, %v7008
    %v7251 = vpack.c.b16 %v7011, %v7010
    %v7252 = vpack.c.b16 %v7013, %v7012
    %v7253 = vpack.c.b16 %v7015, %v7014
    %v7254 = vpack.c.b16 %v7017, %v7016
    %v7255 = vpack.c.b16 %v7019, %v7018
    %v7256 = vpack.c.b16 %v7021, %v7020
    %v7257 = vpack.c.b16 %v7023, %v7022
    %v7258 = vpack.c.b16 %v7025, %v7024
    %v7259 = vpack.c.b16 %v7027, %v7026
    %v7260 = vpack.c.b16 %v7029, %v7028
    %v7261 = vpack.c.b16 %v7031, %v7030
    %v7262 = vpack.c.b16 %v7033, %v7032
    %v7263 = vpack.c.b16 %v7035, %v7034
    %v7264 = vpack.c.b16 %v7037, %v7036
    %v7265 = vpack.c.b16 %v7039, %v7038
    %v7266 = vpack.c.b16 %v7041, %v7040
    %v7267 = vpack.c.b16 %v7043, %v7042
    %v7268 = vpack.c.b16 %v7045, %v7044
    %v7269 = vpack.c.b16 %v7047, %v7046
    %v7270 = vpack.c.b16 %v7049, %v7048
    %v7271 = vpack.c.b16 %v7051, %v7050
    %v7272 = vpack.c.b16 %v7053, %v7052
    %v7273 = vpack.c.b16 %v7055, %v7054
    %v7274 = vpack.c.b16 %v7057, %v7056
    %v7275 = vpack.c.b16 %v7059, %v7058
    %v7276 = vpack.c.b16 %v7061, %v7060
    %v7277 = vpack.c.b16 %v7063, %v7062
    %v7278 = vpack.c.b16 %v7065, %v7064
    %v7279 = vpack.c.b16 %v7067, %v7066
    %v7280 = vpack.c.b16 %v7069, %v7068
    %v7281 = vpack.c.b16 %v7071, %v7070
    %v7282 = vpack.c.b16 %v7073, %v7072
    %v7283 = vpack.c.b16 %v7075, %v7074
    %v7284 = vpack.c.b16 %v7077, %v7076
    %v7285 = vpack.c.b16 %v7079, %v7078
    %v7286 = vpack.c.b16 %v7081, %v7080
    %v7287 = vpack.c.b16 %v7083, %v7082
    %v7288 = vpack.c.b16 %v7085, %v7084
    %v7289 = vpack.c.b16 %v7087, %v7086
    %v7290 = vpack.c.b16 %v7089, %v7088
    %v7291 = vpack.c.b16 %v7091, %v7090
    %v7292 = vpack.c.b16 %v7093, %v7092
    %v7293 = vpack.c.b16 %v7095, %v7094
    %v7294 = vpack.c.b16 %v7097, %v7096
    %v7295 = vpack.c.b16 %v7099, %v7098
    %v7296 = vpack.c.b16 %v7101, %v7100
    %v7297 = vpack.c.b16 %v7103, %v7102
    %v7298 = vpack.c.b16 %v7105, %v7104
    %v7299 = vpack.c.b16 %v7107, %v7106
    %v7300 = vpack.c.b16 %v7109, %v7108
    %v7301 = vpack.c.b16 %v7111, %v7110
    %v7302 = vpack.c.b16 %v7113, %v7112
    %v7303 = vpack.c.b16 %v7115, %v7114
    %v7304 = vpack.c.b16 %v7117, %v7116
    %v7305 = vpack.c.b16 %v7119, %v7118
    %v7306 = vpack.c.b16 %v7121, %v7120
    %v7307 = vpack.c.b16 %v7123, %v7122
    %v7308 = vpack.c.b16 %v7125, %v7124
    %v7309 = vpack.c.b16 %v7127, %v7126
    %v7310 = vpack.c.b16 %v7129, %v7128
    %v7311 = vpack.c.b16 %v7131, %v7130
    %v7312 = vpack.c.b16 %v7133, %v7132
    %v7313 = vpack.c.b16 %v7135, %v7134
    %v7314 = vpack.c.b16 %v7137, %v7136
    %v7315 = vpack.c.b16 %v7139, %v7138
    %v7316 = vpack.c.b16 %v7141, %v7140
    %v7317 = vpack.c.b16 %v7143, %v7142
    %v7318 = vpack.c.b16 %v7145, %v7144
    %v7319 = vpack.c.b16 %v7147, %v7146
    %v7320 = vpack.c.b16 %v7149, %v7148
    %v7321 = vpack.c.b16 %v7151, %v7150
    %v7322 = vpack.c.b16 %v7153, %v7152
    %v7323 = vpack.c.b16 %v7155, %v7154
    %v7324 = vpack.c.b16 %v7157, %v7156
    %v7325 = vpack.c.b16 %v7159, %v7158
    %v7326 = vpack.c.b16 %v7161, %v7160
    %v7327 = vpack.c.b16 %v7163, %v7162
    %v7328 = vpack.c.b16 %v7165, %v7164
    %v7329 = vpack.c.b16 %v7167, %v7166
    %v7330 = vpack.c.b16 %v7169, %v7168
    %v7331 = vpack.c.b16 %v7171, %v7170
    %v7332 = vpack.c.b16 %v7173, %v7172
    %v7333 = vpack.c.b16 %v7175, %v7174
    %v7334 = vpack.c.b16 %v7177, %v7176
    %v7335 = vpack.c.b16 %v7179, %v7178
    %v7336 = vpack.c.b16 %v7181, %v7180
    %v7337 = vpack.c.b16 %v7183, %v7182
    %v7338 = vpack.c.b16 %v7185, %v7184
    %v7339 = vpack.c.b16 %v7187, %v7186
    %v7340 = vpack.c.b16 %v7189, %v7188
    %v7341 = vpack.c.b16 %v7191, %v7190
    %v7342 = vpack.c.b16 %v7193, %v7192
    %v7343 = vpack.c.b16 %v7195, %v7194
    %v7344 = vpack.c.b16 %v7197, %v7196
    %v7345 = vpack.c.b16 %v7199, %v7198
    %v7346 = vpack.c.b16 %v7201, %v7200
    %v7347 = vpack.c.b16 %v7203, %v7202
    %v7348 = vpack.c.b16 %v7205, %v7204
    %v7349 = vpack.c.b16 %v7207, %v7206
    %v7350 = vpack.c.b16 %v7209, %v7208
    %v7351 = vpack.c.b16 %v7211, %v7210
    %v7352 = vpack.c.b16 %v7213, %v7212
    %v7353 = vpack.c.b16 %v7215, %v7214
    %v7354 = vpack.c.b16 %v7217, %v7216
    %v7355 = vpack.c.b16 %v7219, %v7218
    %v7356 = vpack.c.b16 %v7221, %v7220
    %v7357 = vpack.c.b16 %v7223, %v7222
    %v7358 = vpack.c.b16 %v7225, %v7224
    %v7359 = vpack.c.b16 %v7227, %v7226
    %v7360 = vpack.c.b16 %v7229, %v7228
    %v7361 = vpack.c.b16 %v7231, %v7230
    %v7362 = vpack.c.b16 %v7233, %v7232
    %v7363 = vpack.c.b16 %v7235, %v7234
    %7492 = vmatprep.subr.bf16.mxu0 0
    %7493 = vmatpush1.bf16.msra.mxu0 %v7243
    %7494 = vmatprep.subr.bf16.mxu0 0
    %7495 = vmatpush1.bf16.msra.mxu0 %v7242
    %7496 = vmatprep.subr.bf16.mxu0 0
    %7497 = vmatpush1.bf16.msra.mxu0 %v7241
    %7498 = vmatprep.subr.bf16.mxu0 0
    %7499 = vmatpush1.bf16.msra.mxu0 %v7240
    %7500 = vmatprep.subr.bf16.mxu0 0
    %7501 = vmatpush1.bf16.msra.mxu0 %v7239
    %7502 = vmatprep.subr.bf16.mxu0 0
    %7503 = vmatpush1.bf16.msra.mxu0 %v7238
    %7504 = vmatprep.subr.bf16.mxu0 0
    %7505 = vmatpush1.bf16.msra.mxu0 %v7237
    %7506 = vmatprep.subr.bf16.mxu0 0
    %7507 = vmatpush1.bf16.msra.mxu0 %v7236
    %7508 = vmatprep.subr.bf16.mxu0 0
    %7509 = vmatpush2.bf16.msra.mxu0 %v7251
    %7510 = vmatprep.subr.bf16.mxu0 0
    %7511 = vmatpush2.bf16.msra.mxu0 %v7250
    %7512 = vmatprep.subr.bf16.mxu0 0
    %7513 = vmatpush2.bf16.msra.mxu0 %v7249
    %7514 = vmatprep.subr.bf16.mxu0 0
    %7515 = vmatpush2.bf16.msra.mxu0 %v7248
    %7516 = vmatprep.subr.bf16.mxu0 0
    %7517 = vmatpush2.bf16.msra.mxu0 %v7247
    %7518 = vmatprep.subr.bf16.mxu0 0
    %7519 = vmatpush2.bf16.msra.mxu0 %v7246
    %7520 = vmatprep.subr.bf16.mxu0 0
    %7521 = vmatpush2.bf16.msra.mxu0 %v7245
    %7522 = vmatprep.subr.bf16.mxu0 0
    %7523 = vmatpush2.bf16.msra.mxu0 %v7244
    %7524 = vmatprep.mubr.bf16.mxu0 %v6448
    %7525 = vmatmul.mubr.bf16.gmra.mxu0 %v6447
    %v7526 = vpop.f32.mrf.mxu0
    %v7527 = vadd.f32 %v6723, %v7526
    %v7528 = vpop.f32.mrf.mxu0
    %v7529 = vpop.f32.mrf.mxu0
    %v7530 = vadd.f32 %v6723, %v7529
    %v7531 = vpop.f32.mrf.mxu0
    %7532 = vdwg.mxu0
    %7533 = vmatprep.subr.bf16.mxu0 0
    %7534 = vmatpush1.bf16.msra.mxu0 %v7259
    %7535 = vmatprep.subr.bf16.mxu0 0
    %7536 = vmatpush1.bf16.msra.mxu0 %v7258
    %7537 = vmatprep.subr.bf16.mxu0 0
    %7538 = vmatpush1.bf16.msra.mxu0 %v7257
    %7539 = vmatprep.subr.bf16.mxu0 0
    %7540 = vmatpush1.bf16.msra.mxu0 %v7256
    %7541 = vmatprep.subr.bf16.mxu0 0
    %7542 = vmatpush1.bf16.msra.mxu0 %v7255
    %7543 = vmatprep.subr.bf16.mxu0 0
    %7544 = vmatpush1.bf16.msra.mxu0 %v7254
    %7545 = vmatprep.subr.bf16.mxu0 0
    %7546 = vmatpush1.bf16.msra.mxu0 %v7253
    %7547 = vmatprep.subr.bf16.mxu0 0
    %7548 = vmatpush1.bf16.msra.mxu0 %v7252
    %7549 = vmatprep.subr.bf16.mxu0 0
    %7550 = vmatpush2.bf16.msra.mxu0 %v7267
    %7551 = vmatprep.subr.bf16.mxu0 0
    %7552 = vmatpush2.bf16.msra.mxu0 %v7266
    %7553 = vmatprep.subr.bf16.mxu0 0
    %7554 = vmatpush2.bf16.msra.mxu0 %v7265
    %7555 = vmatprep.subr.bf16.mxu0 0
    %7556 = vmatpush2.bf16.msra.mxu0 %v7264
    %7557 = vmatprep.subr.bf16.mxu0 0
    %7558 = vmatpush2.bf16.msra.mxu0 %v7263
    %7559 = vmatprep.subr.bf16.mxu0 0
    %7560 = vmatpush2.bf16.msra.mxu0 %v7262
    %7561 = vmatprep.subr.bf16.mxu0 0
    %7562 = vmatpush2.bf16.msra.mxu0 %v7261
    %7563 = vmatprep.subr.bf16.mxu0 0
    %7564 = vmatpush2.bf16.msra.mxu0 %v7260
    %7565 = vmatprep.mubr.bf16.mxu0 %v6450
    %7566 = vmatmul.mubr.bf16.gmra.mxu0 %v6449
    %v7567 = vpop.f32.mrf.mxu0
    %v7568 = vadd.f32 %v7527, %v7567
    %v7569 = vpop.f32.mrf.mxu0
    %v7570 = vpop.f32.mrf.mxu0
    %v7571 = vadd.f32 %v7530, %v7570
    %v7572 = vpop.f32.mrf.mxu0
    %7573 = vdwg.mxu0
    %7574 = vmatprep.subr.bf16.mxu0 0
    %7575 = vmatpush1.bf16.msra.mxu0 %v7275
    %7576 = vmatprep.subr.bf16.mxu0 0
    %7577 = vmatpush1.bf16.msra.mxu0 %v7274
    %7578 = vmatprep.subr.bf16.mxu0 0
    %7579 = vmatpush1.bf16.msra.mxu0 %v7273
    %7580 = vmatprep.subr.bf16.mxu0 0
    %7581 = vmatpush1.bf16.msra.mxu0 %v7272
    %7582 = vmatprep.subr.bf16.mxu0 0
    %7583 = vmatpush1.bf16.msra.mxu0 %v7271
    %7584 = vmatprep.subr.bf16.mxu0 0
    %7585 = vmatpush1.bf16.msra.mxu0 %v7270
    %7586 = vmatprep.subr.bf16.mxu0 0
    %7587 = vmatpush1.bf16.msra.mxu0 %v7269
    %7588 = vmatprep.subr.bf16.mxu0 0
    %7589 = vmatpush1.bf16.msra.mxu0 %v7268
    %7590 = vmatprep.subr.bf16.mxu0 0
    %7591 = vmatpush2.bf16.msra.mxu0 %v7283
    %7592 = vmatprep.subr.bf16.mxu0 0
    %7593 = vmatpush2.bf16.msra.mxu0 %v7282
    %7594 = vmatprep.subr.bf16.mxu0 0
    %7595 = vmatpush2.bf16.msra.mxu0 %v7281
    %7596 = vmatprep.subr.bf16.mxu0 0
    %7597 = vmatpush2.bf16.msra.mxu0 %v7280
    %7598 = vmatprep.subr.bf16.mxu0 0
    %7599 = vmatpush2.bf16.msra.mxu0 %v7279
    %7600 = vmatprep.subr.bf16.mxu0 0
    %7601 = vmatpush2.bf16.msra.mxu0 %v7278
    %7602 = vmatprep.subr.bf16.mxu0 0
    %7603 = vmatpush2.bf16.msra.mxu0 %v7277
    %7604 = vmatprep.subr.bf16.mxu0 0
    %7605 = vmatpush2.bf16.msra.mxu0 %v7276
    %7606 = vmatprep.mubr.bf16.mxu0 %v6452
    %7607 = vmatmul.mubr.bf16.gmra.mxu0 %v6451
    %v7608 = vpop.f32.mrf.mxu0
    %v7609 = vadd.f32 %v7568, %v7608
    %v7610 = vpop.f32.mrf.mxu0
    %v7611 = vpop.f32.mrf.mxu0
    %v7612 = vadd.f32 %v7571, %v7611
    %v7613 = vpop.f32.mrf.mxu0
    %7614 = vdwg.mxu0
    %7615 = vmatprep.subr.bf16.mxu0 0
    %7616 = vmatpush1.bf16.msra.mxu0 %v7291
    %7617 = vmatprep.subr.bf16.mxu0 0
    %7618 = vmatpush1.bf16.msra.mxu0 %v7290
    %7619 = vmatprep.subr.bf16.mxu0 0
    %7620 = vmatpush1.bf16.msra.mxu0 %v7289
    %7621 = vmatprep.subr.bf16.mxu0 0
    %7622 = vmatpush1.bf16.msra.mxu0 %v7288
    %7623 = vmatprep.subr.bf16.mxu0 0
    %7624 = vmatpush1.bf16.msra.mxu0 %v7287
    %7625 = vmatprep.subr.bf16.mxu0 0
    %7626 = vmatpush1.bf16.msra.mxu0 %v7286
    %7627 = vmatprep.subr.bf16.mxu0 0
    %7628 = vmatpush1.bf16.msra.mxu0 %v7285
    %7629 = vmatprep.subr.bf16.mxu0 0
    %7630 = vmatpush1.bf16.msra.mxu0 %v7284
    %7631 = vmatprep.subr.bf16.mxu0 0
    %7632 = vmatpush2.bf16.msra.mxu0 %v7299
    %7633 = vmatprep.subr.bf16.mxu0 0
    %7634 = vmatpush2.bf16.msra.mxu0 %v7298
    %7635 = vmatprep.subr.bf16.mxu0 0
    %7636 = vmatpush2.bf16.msra.mxu0 %v7297
    %7637 = vmatprep.subr.bf16.mxu0 0
    %7638 = vmatpush2.bf16.msra.mxu0 %v7296
    %7639 = vmatprep.subr.bf16.mxu0 0
    %7640 = vmatpush2.bf16.msra.mxu0 %v7295
    %7641 = vmatprep.subr.bf16.mxu0 0
    %7642 = vmatpush2.bf16.msra.mxu0 %v7294
    %7643 = vmatprep.subr.bf16.mxu0 0
    %7644 = vmatpush2.bf16.msra.mxu0 %v7293
    %7645 = vmatprep.subr.bf16.mxu0 0
    %7646 = vmatpush2.bf16.msra.mxu0 %v7292
    %7647 = vmatprep.mubr.bf16.mxu0 %v6454
    %7648 = vmatmul.mubr.bf16.gmra.mxu0 %v6453
    %v7649 = vpop.f32.mrf.mxu0
    %v7650 = vadd.f32 %v7609, %v7649
    %v7651 = vpop.f32.mrf.mxu0
    %v7652 = vpop.f32.mrf.mxu0
    %v7653 = vadd.f32 %v7612, %v7652
    %v7654 = vpop.f32.mrf.mxu0
    %7655 = vdwg.mxu0
    %7656 = vmatprep.subr.bf16.mxu0 0
    %7657 = vmatpush1.bf16.msra.mxu0 %v7307
    %7658 = vmatprep.subr.bf16.mxu0 0
    %7659 = vmatpush1.bf16.msra.mxu0 %v7306
    %7660 = vmatprep.subr.bf16.mxu0 0
    %7661 = vmatpush1.bf16.msra.mxu0 %v7305
    %7662 = vmatprep.subr.bf16.mxu0 0
    %7663 = vmatpush1.bf16.msra.mxu0 %v7304
    %7664 = vmatprep.subr.bf16.mxu0 0
    %7665 = vmatpush1.bf16.msra.mxu0 %v7303
    %7666 = vmatprep.subr.bf16.mxu0 0
    %7667 = vmatpush1.bf16.msra.mxu0 %v7302
    %7668 = vmatprep.subr.bf16.mxu0 0
    %7669 = vmatpush1.bf16.msra.mxu0 %v7301
    %7670 = vmatprep.subr.bf16.mxu0 0
    %7671 = vmatpush1.bf16.msra.mxu0 %v7300
    %7672 = vmatprep.subr.bf16.mxu0 0
    %7673 = vmatpush2.bf16.msra.mxu0 %v7315
    %7674 = vmatprep.subr.bf16.mxu0 0
    %7675 = vmatpush2.bf16.msra.mxu0 %v7314
    %7676 = vmatprep.subr.bf16.mxu0 0
    %7677 = vmatpush2.bf16.msra.mxu0 %v7313
    %7678 = vmatprep.subr.bf16.mxu0 0
    %7679 = vmatpush2.bf16.msra.mxu0 %v7312
    %7680 = vmatprep.subr.bf16.mxu0 0
    %7681 = vmatpush2.bf16.msra.mxu0 %v7311
    %7682 = vmatprep.subr.bf16.mxu0 0
    %7683 = vmatpush2.bf16.msra.mxu0 %v7310
    %7684 = vmatprep.subr.bf16.mxu0 0
    %7685 = vmatpush2.bf16.msra.mxu0 %v7309
    %7686 = vmatprep.subr.bf16.mxu0 0
    %7687 = vmatpush2.bf16.msra.mxu0 %v7308
    %7688 = vmatprep.mubr.bf16.mxu0 %v6456
    %7689 = vmatmul.mubr.bf16.gmra.mxu0 %v6455
    %v7690 = vpop.f32.mrf.mxu0
    %v7691 = vadd.f32 %v7650, %v7690
    %v7692 = vpop.f32.mrf.mxu0
    %v7693 = vpop.f32.mrf.mxu0
    %v7694 = vadd.f32 %v7653, %v7693
    %v7695 = vpop.f32.mrf.mxu0
    %7696 = vdwg.mxu0
    %7697 = vmatprep.subr.bf16.mxu0 0
    %7698 = vmatpush1.bf16.msra.mxu0 %v7323
    %7699 = vmatprep.subr.bf16.mxu0 0
    %7700 = vmatpush1.bf16.msra.mxu0 %v7322
    %7701 = vmatprep.subr.bf16.mxu0 0
    %7702 = vmatpush1.bf16.msra.mxu0 %v7321
    %7703 = vmatprep.subr.bf16.mxu0 0
    %7704 = vmatpush1.bf16.msra.mxu0 %v7320
    %7705 = vmatprep.subr.bf16.mxu0 0
    %7706 = vmatpush1.bf16.msra.mxu0 %v7319
    %7707 = vmatprep.subr.bf16.mxu0 0
    %7708 = vmatpush1.bf16.msra.mxu0 %v7318
    %7709 = vmatprep.subr.bf16.mxu0 0
    %7710 = vmatpush1.bf16.msra.mxu0 %v7317
    %7711 = vmatprep.subr.bf16.mxu0 0
    %7712 = vmatpush1.bf16.msra.mxu0 %v7316
    %7713 = vmatprep.subr.bf16.mxu0 0
    %7714 = vmatpush2.bf16.msra.mxu0 %v7331
    %7715 = vmatprep.subr.bf16.mxu0 0
    %7716 = vmatpush2.bf16.msra.mxu0 %v7330
    %7717 = vmatprep.subr.bf16.mxu0 0
    %7718 = vmatpush2.bf16.msra.mxu0 %v7329
    %7719 = vmatprep.subr.bf16.mxu0 0
    %7720 = vmatpush2.bf16.msra.mxu0 %v7328
    %7721 = vmatprep.subr.bf16.mxu0 0
    %7722 = vmatpush2.bf16.msra.mxu0 %v7327
    %7723 = vmatprep.subr.bf16.mxu0 0
    %7724 = vmatpush2.bf16.msra.mxu0 %v7326
    %7725 = vmatprep.subr.bf16.mxu0 0
    %7726 = vmatpush2.bf16.msra.mxu0 %v7325
    %7727 = vmatprep.subr.bf16.mxu0 0
    %7728 = vmatpush2.bf16.msra.mxu0 %v7324
    %7729 = vmatprep.mubr.bf16.mxu0 %v6458
    %7730 = vmatmul.mubr.bf16.gmra.mxu0 %v6457
    %v7731 = vpop.f32.mrf.mxu0
    %v7732 = vadd.f32 %v7691, %v7731
    %v7733 = vpop.f32.mrf.mxu0
    %v7734 = vpop.f32.mrf.mxu0
    %v7735 = vadd.f32 %v7694, %v7734
    %v7736 = vpop.f32.mrf.mxu0
    %7737 = vdwg.mxu0
    %7738 = vmatprep.subr.bf16.mxu0 0
    %7739 = vmatpush1.bf16.msra.mxu0 %v7339
    %7740 = vmatprep.subr.bf16.mxu0 0
    %7741 = vmatpush1.bf16.msra.mxu0 %v7338
    %7742 = vmatprep.subr.bf16.mxu0 0
    %7743 = vmatpush1.bf16.msra.mxu0 %v7337
    %7744 = vmatprep.subr.bf16.mxu0 0
    %7745 = vmatpush1.bf16.msra.mxu0 %v7336
    %7746 = vmatprep.subr.bf16.mxu0 0
    %7747 = vmatpush1.bf16.msra.mxu0 %v7335
    %7748 = vmatprep.subr.bf16.mxu0 0
    %7749 = vmatpush1.bf16.msra.mxu0 %v7334
    %7750 = vmatprep.subr.bf16.mxu0 0
    %7751 = vmatpush1.bf16.msra.mxu0 %v7333
    %7752 = vmatprep.subr.bf16.mxu0 0
    %7753 = vmatpush1.bf16.msra.mxu0 %v7332
    %7754 = vmatprep.subr.bf16.mxu0 0
    %7755 = vmatpush2.bf16.msra.mxu0 %v7347
    %7756 = vmatprep.subr.bf16.mxu0 0
    %7757 = vmatpush2.bf16.msra.mxu0 %v7346
    %7758 = vmatprep.subr.bf16.mxu0 0
    %7759 = vmatpush2.bf16.msra.mxu0 %v7345
    %7760 = vmatprep.subr.bf16.mxu0 0
    %7761 = vmatpush2.bf16.msra.mxu0 %v7344
    %7762 = vmatprep.subr.bf16.mxu0 0
    %7763 = vmatpush2.bf16.msra.mxu0 %v7343
    %7764 = vmatprep.subr.bf16.mxu0 0
    %7765 = vmatpush2.bf16.msra.mxu0 %v7342
    %7766 = vmatprep.subr.bf16.mxu0 0
    %7767 = vmatpush2.bf16.msra.mxu0 %v7341
    %7768 = vmatprep.subr.bf16.mxu0 0
    %7769 = vmatpush2.bf16.msra.mxu0 %v7340
    %7770 = vmatprep.mubr.bf16.mxu0 %v6460
    %7771 = vmatmul.mubr.bf16.gmra.mxu0 %v6459
    %v7772 = vpop.f32.mrf.mxu0
    %v7773 = vadd.f32 %v7732, %v7772
    %v7774 = vpop.f32.mrf.mxu0
    %v7775 = vpop.f32.mrf.mxu0
    %v7776 = vadd.f32 %v7735, %v7775
    %v7777 = vpop.f32.mrf.mxu0
    %7778 = vdwg.mxu0
    %7779 = vmatprep.subr.bf16.mxu0 0
    %7780 = vmatpush1.bf16.msra.mxu0 %v7355
    %7781 = vmatprep.subr.bf16.mxu0 0
    %7782 = vmatpush1.bf16.msra.mxu0 %v7354
    %7783 = vmatprep.subr.bf16.mxu0 0
    %7784 = vmatpush1.bf16.msra.mxu0 %v7353
    %7785 = vmatprep.subr.bf16.mxu0 0
    %7786 = vmatpush1.bf16.msra.mxu0 %v7352
    %7787 = vmatprep.subr.bf16.mxu0 0
    %7788 = vmatpush1.bf16.msra.mxu0 %v7351
    %7789 = vmatprep.subr.bf16.mxu0 0
    %7790 = vmatpush1.bf16.msra.mxu0 %v7350
    %7791 = vmatprep.subr.bf16.mxu0 0
    %7792 = vmatpush1.bf16.msra.mxu0 %v7349
    %7793 = vmatprep.subr.bf16.mxu0 0
    %7794 = vmatpush1.bf16.msra.mxu0 %v7348
    %7795 = vmatprep.subr.bf16.mxu0 0
    %7796 = vmatpush2.bf16.msra.mxu0 %v7363
    %7797 = vmatprep.subr.bf16.mxu0 0
    %7798 = vmatpush2.bf16.msra.mxu0 %v7362
    %7799 = vmatprep.subr.bf16.mxu0 0
    %7800 = vmatpush2.bf16.msra.mxu0 %v7361
    %7801 = vmatprep.subr.bf16.mxu0 0
    %7802 = vmatpush2.bf16.msra.mxu0 %v7360
    %7803 = vmatprep.subr.bf16.mxu0 0
    %7804 = vmatpush2.bf16.msra.mxu0 %v7359
    %7805 = vmatprep.subr.bf16.mxu0 0
    %7806 = vmatpush2.bf16.msra.mxu0 %v7358
    %7807 = vmatprep.subr.bf16.mxu0 0
    %7808 = vmatpush2.bf16.msra.mxu0 %v7357
    %7809 = vmatprep.subr.bf16.mxu0 0
    %7810 = vmatpush2.bf16.msra.mxu0 %v7356
    %7811 = vmatprep.mubr.bf16.mxu0 %v6462
    %7812 = vmatmul.mubr.bf16.gmra.mxu0 %v6461
    %v7813 = vpop.f32.mrf.mxu0
    %v7814 = vadd.f32 %v7773, %v7813
    %v7815 = vpop.f32.mrf.mxu0
    %v7816 = vpop.f32.mrf.mxu0
    %v7817 = vadd.f32 %v7776, %v7816
    %v7818 = vpop.f32.mrf.mxu0
    %7819 = vdwg.mxu0
    %v7820 = vadd.f32 %v5595, %v7814
    %v7821 = vadd.f32 %v5596, %v7817
    %v7822 = vsel %vm177, %v7820, 0.0
    %7823 = vadd.xlane.f32.xlu0 %v7822
    %v7824 = vpop.xlane.xlu0 %7823
    %v7825 = vsel %vm177, %v7821, 0.0
    %7826 = vadd.xlane.f32.xlu0 %v7825
    %v7827 = vpop.xlane.xlu0 %7826
    %v7828 = vmul.f32 %v7824, %v1697
    %v7829 = vmul.f32 %v7827, %v1697
    %v7830 = vsub.f32 %v7820, %v7828
    %v7831 = vsub.f32 %v7821, %v7829
    %v7832 = vmul.f32 %v7830, %v7830
    %v7833 = vmul.f32 %v7831, %v7831
    %v7834 = vsel %vm177, %v7832, 0.0
    %7835 = vadd.xlane.f32.xlu0 %v7834
    %v7836 = vpop.xlane.xlu0 %7835
    %v7837 = vsel %vm177, %v7833, 0.0
    %7838 = vadd.xlane.f32.xlu0 %v7837
    %v7839 = vpop.xlane.xlu0 %7838
    %v7840 = vmul.f32 %v7836, %v1697
    %v7841 = vmul.f32 %v7839, %v1697
    %v7842 = vadd.f32 %v7840, 1e-05
    %v7843 = vadd.f32 %v7841, 1e-05
    %v7844 = vrsqrt.pop %v7842
    %v7845 = vrsqrt.pop %v7843
    %v7846 = vmul.f32 %v7830, %v7844
    %v7847 = vmul.f32 %v7831, %v7845
    %v7848 = vlaneseq
    %v7849 = vshrl.u32 %v7848, 7
    %v7850 = vsub.s32 0, %v7849
    %v7851 = vrot.slane %v3997, %v7850
    %v7852 = vmul.f32 %v7846, %v7851
    %v7853 = vmul.f32 %v7847, %v7851
    %v7854 = vlaneseq
    %v7855 = vshrl.u32 %v7854, 7
    %v7856 = vsub.s32 0, %v7855
    %v7857 = vrot.slane %v3998, %v7856
    %v7858 = vadd.f32 %v7852, %v7857
    %v7859 = vadd.f32 %v7853, %v7857
    %v7861 = vrot.slane %v7858, 7
    %v7864 = vrot.slane %v7859, 6
    %vm7866 = vcmask 1040384
    %v7867 = vsel %vm7866, %v7861, %v7864
    %v7868 = vld [vmem:[%s7 + $0x30] sm:$0xff]
    %v7869 = vld [vmem:[%s7 + $0x38] sm:$0xff]
    %v7870 = vld [vmem:[%s7 + $0x40] sm:$0xff]
    %v7871 = vld [vmem:[%s7 + $0x48] sm:$0xff]
    %v7872 = vld [vmem:[%s7 + $0x50] sm:$0xff]
    %v7873 = vld [vmem:[%s7 + $0x58] sm:$0xff]
    %v7874 = vld [vmem:[%s7 + $0x60] sm:$0xff]
    %v7875 = vld [vmem:[%s7 + $0x68] sm:$0xff]
    %v7876 = vld [vmem:[%s7 + $0x70] sm:$0x1]
    %v7877 = vld [vmem:[%s7 + $0x78] sm:$0xff]
    %v7878 = vld [vmem:[%s7 + $0x80] sm:$0xff]
    %v7879 = vld [vmem:[%s7 + $0x88] sm:$0xff]
    %v7880 = vld [vmem:[%s7 + $0x90] sm:$0xff]
    %v7881 = vld [vmem:[%s7 + $0x98] sm:$0xff]
    %v7882 = vld [vmem:[%s7 + $0xa0] sm:$0xff]
    %v7883 = vld [vmem:[%s7 + $0xa8] sm:$0xff]
    %v7884 = vld [vmem:[%s7 + $0xb0] sm:$0xff]
    %v7885 = vld [vmem:[%s7 + $0xb8] sm:$0x1]
    %v7886 = vlaneseq
    %v7887 = vshrl.u32 %v7886, 7
    %v7888 = vsub.s32 0, %v7887
    %v7889 = vrot.slane %v7876, %v7888
    %v7891 = vsel %vm177, %v7867, 0
    %7893 = vmatprep.subr.mxu0 0.0
    %7894 = vmatpush1.msra.mxu0 0.0
    %7895 = vmatprep.subr.mxu0 0.0
    %7896 = vmatpush1.msra.mxu0 0.0
    %7897 = vmatprep.subr.mxu0 0.0
    %7898 = vmatpush1.msra.mxu0 0.0
    %7899 = vmatprep.subr.mxu0 0.0
    %7900 = vmatpush1.msra.mxu0 0.0
    %7901 = vmatprep.subr.mxu0 0.0
    %7902 = vmatpush1.msra.mxu0 0.0
    %7903 = vmatprep.subr.mxu0 0.0
    %7904 = vmatpush1.msra.mxu0 0.0
    %7905 = vmatprep.subr.mxu0 0.0
    %7906 = vmatpush1.msra.mxu0 0.0
    %7907 = vmatprep.subr.mxu0 0.0
    %7908 = vmatpush1.msra.mxu0 0.0
    %7909 = vmatprep.subr.mxu0 0.0
    %7910 = vmatpush1.msra.mxu0 %v7875
    %7911 = vmatprep.subr.mxu0 0.0
    %7912 = vmatpush1.msra.mxu0 %v7874
    %7913 = vmatprep.subr.mxu0 0.0
    %7914 = vmatpush1.msra.mxu0 %v7873
    %7915 = vmatprep.subr.mxu0 0.0
    %7916 = vmatpush1.msra.mxu0 %v7872
    %7917 = vmatprep.subr.mxu0 0.0
    %7918 = vmatpush1.msra.mxu0 %v7871
    %7919 = vmatprep.subr.mxu0 0.0
    %7920 = vmatpush1.msra.mxu0 %v7870
    %7921 = vmatprep.subr.mxu0 0.0
    %7922 = vmatpush1.msra.mxu0 %v7869
    %7923 = vmatprep.subr.mxu0 0.0
    %7924 = vmatpush1.msra.mxu0 %v7868
    %7925 = vmatprep.subr.mxu0 0.0
    %7926 = vmatpush2.msra.mxu0 0.0
    %7927 = vmatprep.subr.mxu0 0.0
    %7928 = vmatpush2.msra.mxu0 0.0
    %7929 = vmatprep.subr.mxu0 0.0
    %7930 = vmatpush2.msra.mxu0 0.0
    %7931 = vmatprep.subr.mxu0 0.0
    %7932 = vmatpush2.msra.mxu0 0.0
    %7933 = vmatprep.subr.mxu0 0.0
    %7934 = vmatpush2.msra.mxu0 0.0
    %7935 = vmatprep.subr.mxu0 0.0
    %7936 = vmatpush2.msra.mxu0 0.0
    %7937 = vmatprep.subr.mxu0 0.0
    %7938 = vmatpush2.msra.mxu0 0.0
    %7939 = vmatprep.subr.mxu0 0.0
    %7940 = vmatpush2.msra.mxu0 0.0
    %7941 = vmatprep.subr.mxu0 0.0
    %7942 = vmatpush2.msra.mxu0 0.0
    %7943 = vmatprep.subr.mxu0 0.0
    %7944 = vmatpush2.msra.mxu0 0.0
    %7945 = vmatprep.subr.mxu0 0.0
    %7946 = vmatpush2.msra.mxu0 0.0
    %7947 = vmatprep.subr.mxu0 0.0
    %7948 = vmatpush2.msra.mxu0 0.0
    %7949 = vmatprep.subr.mxu0 0.0
    %7950 = vmatpush2.msra.mxu0 0.0
    %7951 = vmatprep.subr.mxu0 0.0
    %7952 = vmatpush2.msra.mxu0 0.0
    %7953 = vmatprep.subr.mxu0 0.0
    %7954 = vmatpush2.msra.mxu0 0.0
    %7955 = vmatprep.subr.mxu0 0.0
    %7956 = vmatpush2.msra.mxu0 0.0
    %7957 = vmatprep.mubr.f32.mxu0 0.0
    %7958 = vmatmul.mubr.f32.gmra.mxu0 %v7891
    %v7959 = vpop.f32.mrf.mxu0
    %v7960 = vadd.f32 %v7889, %v7959
    %v7961 = vpop.f32.mrf.mxu0
    %7962 = vdwg.mxu0
    %v7963 = vmax.f32 %v7960, 0.0
    %v7964 = vlaneseq
    %v7965 = vshrl.u32 %v7964, 7
    %v7966 = vsub.s32 0, %v7965
    %v7967 = vrot.slane %v7885, %v7966
    %v7969 = vsel %vm177, %v7963, 0
    %7971 = vmatprep.subr.mxu0 0.0
    %7972 = vmatpush1.msra.mxu0 0.0
    %7973 = vmatprep.subr.mxu0 0.0
    %7974 = vmatpush1.msra.mxu0 0.0
    %7975 = vmatprep.subr.mxu0 0.0
    %7976 = vmatpush1.msra.mxu0 0.0
    %7977 = vmatprep.subr.mxu0 0.0
    %7978 = vmatpush1.msra.mxu0 0.0
    %7979 = vmatprep.subr.mxu0 0.0
    %7980 = vmatpush1.msra.mxu0 0.0
    %7981 = vmatprep.subr.mxu0 0.0
    %7982 = vmatpush1.msra.mxu0 0.0
    %7983 = vmatprep.subr.mxu0 0.0
    %7984 = vmatpush1.msra.mxu0 0.0
    %7985 = vmatprep.subr.mxu0 0.0
    %7986 = vmatpush1.msra.mxu0 0.0
    %7987 = vmatprep.subr.mxu0 0.0
    %7988 = vmatpush1.msra.mxu0 %v7884
    %7989 = vmatprep.subr.mxu0 0.0
    %7990 = vmatpush1.msra.mxu0 %v7883
    %7991 = vmatprep.subr.mxu0 0.0
    %7992 = vmatpush1.msra.mxu0 %v7882
    %7993 = vmatprep.subr.mxu0 0.0
    %7994 = vmatpush1.msra.mxu0 %v7881
    %7995 = vmatprep.subr.mxu0 0.0
    %7996 = vmatpush1.msra.mxu0 %v7880
    %7997 = vmatprep.subr.mxu0 0.0
    %7998 = vmatpush1.msra.mxu0 %v7879
    %7999 = vmatprep.subr.mxu0 0.0
    %8000 = vmatpush1.msra.mxu0 %v7878
    %8001 = vmatprep.subr.mxu0 0.0
    %8002 = vmatpush1.msra.mxu0 %v7877
    %8003 = vmatprep.subr.mxu0 0.0
    %8004 = vmatpush2.msra.mxu0 0.0
    %8005 = vmatprep.subr.mxu0 0.0
    %8006 = vmatpush2.msra.mxu0 0.0
    %8007 = vmatprep.subr.mxu0 0.0
    %8008 = vmatpush2.msra.mxu0 0.0
    %8009 = vmatprep.subr.mxu0 0.0
    %8010 = vmatpush2.msra.mxu0 0.0
    %8011 = vmatprep.subr.mxu0 0.0
    %8012 = vmatpush2.msra.mxu0 0.0
    %8013 = vmatprep.subr.mxu0 0.0
    %8014 = vmatpush2.msra.mxu0 0.0
    %8015 = vmatprep.subr.mxu0 0.0
    %8016 = vmatpush2.msra.mxu0 0.0
    %8017 = vmatprep.subr.mxu0 0.0
    %8018 = vmatpush2.msra.mxu0 0.0
    %8019 = vmatprep.subr.mxu0 0.0
    %8020 = vmatpush2.msra.mxu0 0.0
    %8021 = vmatprep.subr.mxu0 0.0
    %8022 = vmatpush2.msra.mxu0 0.0
    %8023 = vmatprep.subr.mxu0 0.0
    %8024 = vmatpush2.msra.mxu0 0.0
    %8025 = vmatprep.subr.mxu0 0.0
    %8026 = vmatpush2.msra.mxu0 0.0
    %8027 = vmatprep.subr.mxu0 0.0
    %8028 = vmatpush2.msra.mxu0 0.0
    %8029 = vmatprep.subr.mxu0 0.0
    %8030 = vmatpush2.msra.mxu0 0.0
    %8031 = vmatprep.subr.mxu0 0.0
    %8032 = vmatpush2.msra.mxu0 0.0
    %8033 = vmatprep.subr.mxu0 0.0
    %8034 = vmatpush2.msra.mxu0 0.0
    %8035 = vmatprep.mubr.f32.mxu0 0.0
    %8036 = vmatmul.mubr.f32.gmra.mxu0 %v7969
    %v8037 = vpop.f32.mrf.mxu0
    %v8038 = vadd.f32 %v7967, %v8037
    %v8039 = vpop.f32.mrf.mxu0
    %8040 = vdwg.mxu0
    %v8041 = vsub.f32 0.0, %v8038
    %v8042 = vmul.f32 %v8041, 1.442695
    %v8043 = vpow.pop %v8042
    %v8044 = vadd.f32 %v8043, 1.0
    %v8045 = vrcp.pop %v8044
    %v8046 = vmul.f32 1.0, %v8045
    %8047 = vst [vmem:[#allocation3] sm:$0x3] %v8046
    // Predicated region
    $region34: #{pallas_forward.1} parent=1 // pred_check
      _
    $region35: #{pallas_forward.1} parent=1 // pred_check_branch
      %8049 = sbr.rel (0) target = $region37
    $region36: #{pallas_forward.1} parent=1 // pred_region
      %s8051 = ssub.s32 32, 32
      %8052 = vsyncadd [#allocation4], %s8051
      %s8054 = sshll.u32 [#allocation3], 4
      %s8055 = int_to_ptr.vmem [resolvable:$true] %s8054
      %8057 = dma.vmem_to_hbm [thread:$0]  %s8055, 32, %s8, [#allocation4]
    $region37: #{pallas_forward.1} parent=1 // pred_fallthru
      _
    // Predicated region
    $region38: #{pallas_forward.1} parent=1 // pred_check
      _
    $region39: #{pallas_forward.1} parent=1 // pred_check_branch
      %8059 = sbr.rel (0) target = $region41
    $region40: #{pallas_forward.1} parent=1 // pred_region
      %8060 = dma.done [#allocation4], 32
    $region41: #{pallas_forward.1} parent=1 // pred_fallthru
      _
    %8061 = vsyncpa [#allocation4], 1

</llo_original>
